<compile_context>
chip_gen: v7x
topology: tpu7x:2x2x1
jax: 0.10.0
libtpu: 0.0.40
codegen_flags: <defaults>
</compile_context>

<pallas_src>
import math

import jax
import jax.numpy as jnp
from jax.experimental import pallas as pl
from jax.experimental.pallas import tpu as pltpu


def _round_up(x, m):
    return (x + m - 1) // m * m


def resblock_pallas(x, w1, w2, negative_slope=0.1):
    """Pallas implementation of ResBlock.forward.

    x  : (N, C, D, H, W) float32
    w1 : (C, C, 1, 3, 3) float32   -- conv_1 weight (bias=False)
    w2 : (C, C, 1, 3, 3) float32   -- conv_2 weight (bias=False)
    returns (N, C, D, H, W) float32 :  x + conv2(leaky_relu(conv1(x), 0.1))
    """
    N, C, D, H, W = x.shape
    Cp = _round_up(C, 8)                 # channel rows padded to sublane multiple
    Hp, Wp = H + 2, W + 2                # spatial zero-pad = conv padding (1,1)
    Fd = D * Hp * Wp                     # flat padded spatial size per image
    G = Wp + 1                           # max |tap offset| = (W+2) + 1
    L_out = _round_up(Fd, 128)           # lane-dense output width (unmasked vst)
    L_in = L_out + 2 * G                 # input lanes incl. shift margin

    # ---- glue (plain JAX, no transposes): pad channels + spatial, flatten.
    xp = jnp.pad(x, ((0, 0), (0, Cp - C), (0, 0), (1, 1), (1, 1)))
    xflat = xp.reshape(N * Cp, Fd)
    xflat = jnp.pad(xflat, ((0, 0), (G, L_in - Fd - G)))          # (N*Cp, L_in)

    # Weights -> (9, C_out, C_in), tap order k = kh*3 + kw, zero-padded channels.
    def _prep_w(w):
        wt = jnp.transpose(w.reshape(C, C, 9), (2, 0, 1))          # (9, Cout, Cin)
        return jnp.pad(wt, ((0, 0), (0, Cp - C), (0, Cp - C)))
    w1t = _prep_w(w1)
    w2t = _prep_w(w2)

    # Flat-index offset of tap (kh, kw) relative to the output position.
    offsets = tuple((kh - 1) * Wp + (kw - 1) for kh in range(3) for kw in range(3))

    # Interior mask over flat padded coordinates (zeros conv1's values at the
    # spatial-padding ring so conv2 sees true zero padding).
    j = jnp.arange(L_out)
    wc = j % Wp
    hc = (j // Wp) % Hp
    interior = (j < Fd) & (wc >= 1) & (wc <= W) & (hc >= 1) & (hc <= H)
    mask = interior.astype(jnp.float32)[None, :]                   # (1, L_out)

    def kernel(x_ref, w1_ref, w2_ref, mask_ref, o_ref, y1pad_ref):
        # conv1: 9 shifted lane slices, accumulate (Cp, L_out) in registers.
        acc1 = jnp.zeros((Cp, L_out), jnp.float32)
        for k, off in enumerate(offsets):
            xs = x_ref[:, G + off: G + off + L_out]
            acc1 = acc1 + jnp.dot(w1_ref[k], xs,
                                  preferred_element_type=jnp.float32)
        y1 = jnp.where(acc1 > 0, acc1, negative_slope * acc1)       # LeakyReLU(0.1)
        y1 = y1 * mask_ref[...]                                     # zero spatial pads

        # Stage y1 into a margin-padded VMEM buffer for conv2's shifted reads.
        y1pad_ref[...] = jnp.zeros_like(y1pad_ref)
        y1pad_ref[:, G: G + L_out] = y1

        # conv2 (no activation).
        acc2 = jnp.zeros((Cp, L_out), jnp.float32)
        for k, off in enumerate(offsets):
            ys = y1pad_ref[:, G + off: G + off + L_out]
            acc2 = acc2 + jnp.dot(w2_ref[k], ys,
                                  preferred_element_type=jnp.float32)

        # Residual add, lane-dense store.
        o_ref[...] = (x_ref[:, G: G + L_out] + acc2).astype(o_ref.dtype)

    flops = 2 * (2 * N * 9 * Cp * Cp * L_out)                       # both convs
    bytes_accessed = (xflat.size + N * Cp * L_out + w1t.size + w2t.size
                      + mask.size) * 4
    cost = pl.CostEstimate(flops=flops, transcendentals=0,
                           bytes_accessed=bytes_accessed)

    out_flat = pl.pallas_call(
        kernel,
        out_shape=jax.ShapeDtypeStruct((N * Cp, L_out), x.dtype),
        grid_spec=pltpu.PrefetchScalarGridSpec(
            num_scalar_prefetch=0,
            grid=(N,),
            in_specs=[
                pl.BlockSpec((Cp, L_in), lambda n: (n, 0)),          # x rows of image n
                pl.BlockSpec((9, Cp, Cp), lambda n: (0, 0, 0)),      # resident weights
                pl.BlockSpec((9, Cp, Cp), lambda n: (0, 0, 0)),
                pl.BlockSpec((1, L_out), lambda n: (0, 0)),          # interior mask
            ],
            out_specs=pl.BlockSpec((Cp, L_out), lambda n: (n, 0)),
            scratch_shapes=[pltpu.VMEM((Cp, L_in), jnp.float32)],
        ),
        compiler_params=pltpu.CompilerParams(
            dimension_semantics=("parallel",)),
        cost_estimate=cost,
    )(xflat, w1t, w2t, mask)

    # Crop flat padded layout back to (N, C, D, H, W) (reshape + slice; no transpose).
    out = out_flat[:, :Fd].reshape(N, Cp, D, Hp, Wp)[:, :C, :, 1:H + 1, 1:W + 1]
    return out


def resblock_reference(x, w1, w2):
    """Pure-JAX transcription of the PyTorch forward (ground truth)."""
    dn = ("NCDHW", "OIDHW", "NCDHW")
    y1 = jax.lax.conv_general_dilated(
        x, w1, window_strides=(1, 1, 1),
        padding=((0, 0), (1, 1), (1, 1)), dimension_numbers=dn,
        precision=jax.lax.Precision.HIGHEST)
    y1 = jnp.where(y1 > 0, y1, 0.1 * y1)
    y2 = jax.lax.conv_general_dilated(
        y1, w2, window_strides=(1, 1, 1),
        padding=((0, 0), (1, 1), (1, 1)), dimension_numbers=dn,
        precision=jax.lax.Precision.HIGHEST)
    return x + y2


if __name__ == "__main__":
    # Small shapes consistent with the module: 5-D (N, C, D, H, W) input.
    N, C, D, H, W = 2, 8, 4, 16, 16

    key = jax.random.PRNGKey(0)
    kx, k1, k2 = jax.random.split(key, 3)
    x = jax.random.normal(kx, (N, C, D, H, W), jnp.float32)
    fan = C * 1 * 3 * 3
    w1 = jax.random.normal(k1, (C, C, 1, 3, 3), jnp.float32) * (1.0 / math.sqrt(fan))
    w2 = jax.random.normal(k2, (C, C, 1, 3, 3), jnp.float32) * (1.0 / math.sqrt(fan))

    run = jax.jit(resblock_pallas)
    out = jax.block_until_ready(run(x, w1, w2))

    ref = jax.block_until_ready(resblock_reference(x, w1, w2))

    assert out.shape == (N, C, D, H, W), out.shape
    # Kernel uses DEFAULT matmul precision (single bf16 MXU pass) per the perf
    # review; tolerance is sized for that vs. the HIGHEST-precision reference.
    max_err = float(jnp.max(jnp.abs(out - ref)))
    assert jnp.allclose(out, ref, atol=5e-2, rtol=5e-2), max_err
    print("KERNEL_OK")
</pallas_src>

<mosaic_0001>
module attributes {stable_mosaic.version = 11 : i64} {
  func.func @kernel(%arg0: i32, %arg1: memref<8x1446xf32, #tpu.memory_space<vmem>>, %arg2: memref<9x8x8xf32, #tpu.memory_space<vmem>>, %arg3: memref<9x8x8xf32, #tpu.memory_space<vmem>>, %arg4: memref<1x1408xf32, #tpu.memory_space<vmem>>, %arg5: memref<8x1408xf32, #tpu.memory_space<vmem>>, %arg6: memref<8x1446xf32, #tpu.memory_space<vmem>>) attributes {dimension_semantics = [#tpu.dimension_semantics<parallel>], iteration_bounds = array<i64: 2>, scalar_prefetch = 0 : i64, scratch_operands = 1 : i64, tpu.core_type = #tpu.core_type<tc>, window_params = [{transform_indices = @transform_0, window_bounds = array<i64: 8, 1446>}, {pipeline_mode = #tpu.pipeline_mode<synchronous>, transform_indices = @transform_1, window_bounds = array<i64: 9, 8, 8>}, {pipeline_mode = #tpu.pipeline_mode<synchronous>, transform_indices = @transform_2, window_bounds = array<i64: 9, 8, 8>}, {pipeline_mode = #tpu.pipeline_mode<synchronous>, transform_indices = @transform_3, window_bounds = array<i64: 1, 1408>}, {transform_indices = @transform_4, window_bounds = array<i64: 8, 1408>}]} {
    %cst = arith.constant 0.000000e+00 : f32
    %0 = vector.broadcast %cst : f32 to vector<8x1408xf32>
    %c0 = arith.constant 0 : index
    %c0_0 = arith.constant 0 : index
    %1 = vector.load %arg1[%c0, %c0_0] : memref<8x1446xf32, #tpu.memory_space<vmem>>, vector<8x1408xf32>
    %c0_1 = arith.constant 0 : index
    %c0_2 = arith.constant 0 : index
    %c0_3 = arith.constant 0 : index
    %2 = vector.load %arg2[%c0_1, %c0_2, %c0_3] : memref<9x8x8xf32, #tpu.memory_space<vmem>>, vector<1x8x8xf32>
    %3 = vector.shape_cast %2 : vector<1x8x8xf32> to vector<8x8xf32>
    %cst_4 = arith.constant dense<0.000000e+00> : vector<8x1408xf32>
    %4 = tpu.matmul %3, %1, %cst_4 {dimension_numbers = #tpu.dot_dimension_numbers<[1], [0], [0], [1], [0, 0, 1, 1], [], []>} : vector<8x8xf32>, vector<8x1408xf32>, vector<8x1408xf32> -> vector<8x1408xf32>
    %5 = arith.addf %0, %4 : vector<8x1408xf32>
    %c0_5 = arith.constant 0 : index
    %c1 = arith.constant 1 : index
    %6 = vector.load %arg1[%c0_5, %c1] : memref<8x1446xf32, #tpu.memory_space<vmem>>, vector<8x1408xf32>
    %c1_6 = arith.constant 1 : index
    %c0_7 = arith.constant 0 : index
    %c0_8 = arith.constant 0 : index
    %7 = vector.load %arg2[%c1_6, %c0_7, %c0_8] : memref<9x8x8xf32, #tpu.memory_space<vmem>>, vector<1x8x8xf32>
    %8 = vector.shape_cast %7 : vector<1x8x8xf32> to vector<8x8xf32>
    %cst_9 = arith.constant dense<0.000000e+00> : vector<8x1408xf32>
    %9 = tpu.matmul %8, %6, %cst_9 {dimension_numbers = #tpu.dot_dimension_numbers<[1], [0], [0], [1], [0, 0, 1, 1], [], []>} : vector<8x8xf32>, vector<8x1408xf32>, vector<8x1408xf32> -> vector<8x1408xf32>
    %10 = arith.addf %5, %9 : vector<8x1408xf32>
    %c0_10 = arith.constant 0 : index
    %c2 = arith.constant 2 : index
    %11 = vector.load %arg1[%c0_10, %c2] : memref<8x1446xf32, #tpu.memory_space<vmem>>, vector<8x1408xf32>
    %c2_11 = arith.constant 2 : index
    %c0_12 = arith.constant 0 : index
    %c0_13 = arith.constant 0 : index
    %12 = vector.load %arg2[%c2_11, %c0_12, %c0_13] : memref<9x8x8xf32, #tpu.memory_space<vmem>>, vector<1x8x8xf32>
    %13 = vector.shape_cast %12 : vector<1x8x8xf32> to vector<8x8xf32>
    %cst_14 = arith.constant dense<0.000000e+00> : vector<8x1408xf32>
    %14 = tpu.matmul %13, %11, %cst_14 {dimension_numbers = #tpu.dot_dimension_numbers<[1], [0], [0], [1], [0, 0, 1, 1], [], []>} : vector<8x8xf32>, vector<8x1408xf32>, vector<8x1408xf32> -> vector<8x1408xf32>
    %15 = arith.addf %10, %14 : vector<8x1408xf32>
    %c0_15 = arith.constant 0 : index
    %c18 = arith.constant 18 : index
    %16 = vector.load %arg1[%c0_15, %c18] : memref<8x1446xf32, #tpu.memory_space<vmem>>, vector<8x1408xf32>
    %c3 = arith.constant 3 : index
    %c0_16 = arith.constant 0 : index
    %c0_17 = arith.constant 0 : index
    %17 = vector.load %arg2[%c3, %c0_16, %c0_17] : memref<9x8x8xf32, #tpu.memory_space<vmem>>, vector<1x8x8xf32>
    %18 = vector.shape_cast %17 : vector<1x8x8xf32> to vector<8x8xf32>
    %cst_18 = arith.constant dense<0.000000e+00> : vector<8x1408xf32>
    %19 = tpu.matmul %18, %16, %cst_18 {dimension_numbers = #tpu.dot_dimension_numbers<[1], [0], [0], [1], [0, 0, 1, 1], [], []>} : vector<8x8xf32>, vector<8x1408xf32>, vector<8x1408xf32> -> vector<8x1408xf32>
    %20 = arith.addf %15, %19 : vector<8x1408xf32>
    %c0_19 = arith.constant 0 : index
    %c19 = arith.constant 19 : index
    %21 = vector.load %arg1[%c0_19, %c19] : memref<8x1446xf32, #tpu.memory_space<vmem>>, vector<8x1408xf32>
    %c4 = arith.constant 4 : index
    %c0_20 = arith.constant 0 : index
    %c0_21 = arith.constant 0 : index
    %22 = vector.load %arg2[%c4, %c0_20, %c0_21] : memref<9x8x8xf32, #tpu.memory_space<vmem>>, vector<1x8x8xf32>
    %23 = vector.shape_cast %22 : vector<1x8x8xf32> to vector<8x8xf32>
    %cst_22 = arith.constant dense<0.000000e+00> : vector<8x1408xf32>
    %24 = tpu.matmul %23, %21, %cst_22 {dimension_numbers = #tpu.dot_dimension_numbers<[1], [0], [0], [1], [0, 0, 1, 1], [], []>} : vector<8x8xf32>, vector<8x1408xf32>, vector<8x1408xf32> -> vector<8x1408xf32>
    %25 = arith.addf %20, %24 : vector<8x1408xf32>
    %c0_23 = arith.constant 0 : index
    %c20 = arith.constant 20 : index
    %26 = vector.load %arg1[%c0_23, %c20] : memref<8x1446xf32, #tpu.memory_space<vmem>>, vector<8x1408xf32>
    %c5 = arith.constant 5 : index
    %c0_24 = arith.constant 0 : index
    %c0_25 = arith.constant 0 : index
    %27 = vector.load %arg2[%c5, %c0_24, %c0_25] : memref<9x8x8xf32, #tpu.memory_space<vmem>>, vector<1x8x8xf32>
    %28 = vector.shape_cast %27 : vector<1x8x8xf32> to vector<8x8xf32>
    %cst_26 = arith.constant dense<0.000000e+00> : vector<8x1408xf32>
    %29 = tpu.matmul %28, %26, %cst_26 {dimension_numbers = #tpu.dot_dimension_numbers<[1], [0], [0], [1], [0, 0, 1, 1], [], []>} : vector<8x8xf32>, vector<8x1408xf32>, vector<8x1408xf32> -> vector<8x1408xf32>
    %30 = arith.addf %25, %29 : vector<8x1408xf32>
    %c0_27 = arith.constant 0 : index
    %c36 = arith.constant 36 : index
    %31 = vector.load %arg1[%c0_27, %c36] : memref<8x1446xf32, #tpu.memory_space<vmem>>, vector<8x1408xf32>
    %c6 = arith.constant 6 : index
    %c0_28 = arith.constant 0 : index
    %c0_29 = arith.constant 0 : index
    %32 = vector.load %arg2[%c6, %c0_28, %c0_29] : memref<9x8x8xf32, #tpu.memory_space<vmem>>, vector<1x8x8xf32>
    %33 = vector.shape_cast %32 : vector<1x8x8xf32> to vector<8x8xf32>
    %cst_30 = arith.constant dense<0.000000e+00> : vector<8x1408xf32>
    %34 = tpu.matmul %33, %31, %cst_30 {dimension_numbers = #tpu.dot_dimension_numbers<[1], [0], [0], [1], [0, 0, 1, 1], [], []>} : vector<8x8xf32>, vector<8x1408xf32>, vector<8x1408xf32> -> vector<8x1408xf32>
    %35 = arith.addf %30, %34 : vector<8x1408xf32>
    %c0_31 = arith.constant 0 : index
    %c37 = arith.constant 37 : index
    %36 = vector.load %arg1[%c0_31, %c37] : memref<8x1446xf32, #tpu.memory_space<vmem>>, vector<8x1408xf32>
    %c7 = arith.constant 7 : index
    %c0_32 = arith.constant 0 : index
    %c0_33 = arith.constant 0 : index
    %37 = vector.load %arg2[%c7, %c0_32, %c0_33] : memref<9x8x8xf32, #tpu.memory_space<vmem>>, vector<1x8x8xf32>
    %38 = vector.shape_cast %37 : vector<1x8x8xf32> to vector<8x8xf32>
    %cst_34 = arith.constant dense<0.000000e+00> : vector<8x1408xf32>
    %39 = tpu.matmul %38, %36, %cst_34 {dimension_numbers = #tpu.dot_dimension_numbers<[1], [0], [0], [1], [0, 0, 1, 1], [], []>} : vector<8x8xf32>, vector<8x1408xf32>, vector<8x1408xf32> -> vector<8x1408xf32>
    %40 = arith.addf %35, %39 : vector<8x1408xf32>
    %c0_35 = arith.constant 0 : index
    %c38 = arith.constant 38 : index
    %41 = vector.load %arg1[%c0_35, %c38] : memref<8x1446xf32, #tpu.memory_space<vmem>>, vector<8x1408xf32>
    %c8 = arith.constant 8 : index
    %c0_36 = arith.constant 0 : index
    %c0_37 = arith.constant 0 : index
    %42 = vector.load %arg2[%c8, %c0_36, %c0_37] : memref<9x8x8xf32, #tpu.memory_space<vmem>>, vector<1x8x8xf32>
    %43 = vector.shape_cast %42 : vector<1x8x8xf32> to vector<8x8xf32>
    %cst_38 = arith.constant dense<0.000000e+00> : vector<8x1408xf32>
    %44 = tpu.matmul %43, %41, %cst_38 {dimension_numbers = #tpu.dot_dimension_numbers<[1], [0], [0], [1], [0, 0, 1, 1], [], []>} : vector<8x8xf32>, vector<8x1408xf32>, vector<8x1408xf32> -> vector<8x1408xf32>
    %45 = arith.addf %40, %44 : vector<8x1408xf32>
    %cst_39 = arith.constant 0.000000e+00 : f32
    %46 = vector.broadcast %cst_39 : f32 to vector<8x1408xf32>
    %47 = arith.cmpf ogt, %45, %46 : vector<8x1408xf32>
    %cst_40 = arith.constant 1.000000e-01 : f32
    %48 = vector.broadcast %cst_40 : f32 to vector<8x1408xf32>
    %49 = arith.mulf %48, %45 : vector<8x1408xf32>
    %50 = arith.select %47, %45, %49 : vector<8x1408xi1>, vector<8x1408xf32>
    %c0_41 = arith.constant 0 : index
    %c0_42 = arith.constant 0 : index
    %51 = vector.load %arg4[%c0_41, %c0_42] : memref<1x1408xf32, #tpu.memory_space<vmem>>, vector<1x1408xf32>
    %52 = vector.broadcast %51 : vector<1x1408xf32> to vector<8x1408xf32>
    %53 = arith.mulf %50, %52 : vector<8x1408xf32>
    %cst_43 = arith.constant 0.000000e+00 : f32
    %54 = vector.broadcast %cst_43 : f32 to vector<8x1446xf32>
    %c0_44 = arith.constant 0 : index
    %c0_45 = arith.constant 0 : index
    %55 = vector.load %arg6[%c0_44, %c0_45] : memref<8x1446xf32, #tpu.memory_space<vmem>>, vector<8x1446xf32>
    tpu.vector_store %arg6[%c0_44, %c0_45], %54 {strides = array<i32>} : memref<8x1446xf32, #tpu.memory_space<vmem>>, vector<8x1446xf32>,
    %c0_46 = arith.constant 0 : index
    %c19_47 = arith.constant 19 : index
    %56 = vector.load %arg6[%c0_46, %c19_47] : memref<8x1446xf32, #tpu.memory_space<vmem>>, vector<8x1408xf32>
    tpu.vector_store %arg6[%c0_46, %c19_47], %53 {strides = array<i32>} : memref<8x1446xf32, #tpu.memory_space<vmem>>, vector<8x1408xf32>,
    %cst_48 = arith.constant 0.000000e+00 : f32
    %57 = vector.broadcast %cst_48 : f32 to vector<8x1408xf32>
    %c0_49 = arith.constant 0 : index
    %c0_50 = arith.constant 0 : index
    %58 = vector.load %arg6[%c0_49, %c0_50] : memref<8x1446xf32, #tpu.memory_space<vmem>>, vector<8x1408xf32>
    %c0_51 = arith.constant 0 : index
    %c0_52 = arith.constant 0 : index
    %c0_53 = arith.constant 0 : index
    %59 = vector.load %arg3[%c0_51, %c0_52, %c0_53] : memref<9x8x8xf32, #tpu.memory_space<vmem>>, vector<1x8x8xf32>
    %60 = vector.shape_cast %59 : vector<1x8x8xf32> to vector<8x8xf32>
    %cst_54 = arith.constant dense<0.000000e+00> : vector<8x1408xf32>
    %61 = tpu.matmul %60, %58, %cst_54 {dimension_numbers = #tpu.dot_dimension_numbers<[1], [0], [0], [1], [0, 0, 1, 1], [], []>} : vector<8x8xf32>, vector<8x1408xf32>, vector<8x1408xf32> -> vector<8x1408xf32>
    %62 = arith.addf %57, %61 : vector<8x1408xf32>
    %c0_55 = arith.constant 0 : index
    %c1_56 = arith.constant 1 : index
    %63 = vector.load %arg6[%c0_55, %c1_56] : memref<8x1446xf32, #tpu.memory_space<vmem>>, vector<8x1408xf32>
    %c1_57 = arith.constant 1 : index
    %c0_58 = arith.constant 0 : index
    %c0_59 = arith.constant 0 : index
    %64 = vector.load %arg3[%c1_57, %c0_58, %c0_59] : memref<9x8x8xf32, #tpu.memory_space<vmem>>, vector<1x8x8xf32>
    %65 = vector.shape_cast %64 : vector<1x8x8xf32> to vector<8x8xf32>
    %cst_60 = arith.constant dense<0.000000e+00> : vector<8x1408xf32>
    %66 = tpu.matmul %65, %63, %cst_60 {dimension_numbers = #tpu.dot_dimension_numbers<[1], [0], [0], [1], [0, 0, 1, 1], [], []>} : vector<8x8xf32>, vector<8x1408xf32>, vector<8x1408xf32> -> vector<8x1408xf32>
    %67 = arith.addf %62, %66 : vector<8x1408xf32>
    %c0_61 = arith.constant 0 : index
    %c2_62 = arith.constant 2 : index
    %68 = vector.load %arg6[%c0_61, %c2_62] : memref<8x1446xf32, #tpu.memory_space<vmem>>, vector<8x1408xf32>
    %c2_63 = arith.constant 2 : index
    %c0_64 = arith.constant 0 : index
    %c0_65 = arith.constant 0 : index
    %69 = vector.load %arg3[%c2_63, %c0_64, %c0_65] : memref<9x8x8xf32, #tpu.memory_space<vmem>>, vector<1x8x8xf32>
    %70 = vector.shape_cast %69 : vector<1x8x8xf32> to vector<8x8xf32>
    %cst_66 = arith.constant dense<0.000000e+00> : vector<8x1408xf32>
    %71 = tpu.matmul %70, %68, %cst_66 {dimension_numbers = #tpu.dot_dimension_numbers<[1], [0], [0], [1], [0, 0, 1, 1], [], []>} : vector<8x8xf32>, vector<8x1408xf32>, vector<8x1408xf32> -> vector<8x1408xf32>
    %72 = arith.addf %67, %71 : vector<8x1408xf32>
    %c0_67 = arith.constant 0 : index
    %c18_68 = arith.constant 18 : index
    %73 = vector.load %arg6[%c0_67, %c18_68] : memref<8x1446xf32, #tpu.memory_space<vmem>>, vector<8x1408xf32>
    %c3_69 = arith.constant 3 : index
    %c0_70 = arith.constant 0 : index
    %c0_71 = arith.constant 0 : index
    %74 = vector.load %arg3[%c3_69, %c0_70, %c0_71] : memref<9x8x8xf32, #tpu.memory_space<vmem>>, vector<1x8x8xf32>
    %75 = vector.shape_cast %74 : vector<1x8x8xf32> to vector<8x8xf32>
    %cst_72 = arith.constant dense<0.000000e+00> : vector<8x1408xf32>
    %76 = tpu.matmul %75, %73, %cst_72 {dimension_numbers = #tpu.dot_dimension_numbers<[1], [0], [0], [1], [0, 0, 1, 1], [], []>} : vector<8x8xf32>, vector<8x1408xf32>, vector<8x1408xf32> -> vector<8x1408xf32>
    %77 = arith.addf %72, %76 : vector<8x1408xf32>
    %c0_73 = arith.constant 0 : index
    %c19_74 = arith.constant 19 : index
    %78 = vector.load %arg6[%c0_73, %c19_74] : memref<8x1446xf32, #tpu.memory_space<vmem>>, vector<8x1408xf32>
    %c4_75 = arith.constant 4 : index
    %c0_76 = arith.constant 0 : index
    %c0_77 = arith.constant 0 : index
    %79 = vector.load %arg3[%c4_75, %c0_76, %c0_77] : memref<9x8x8xf32, #tpu.memory_space<vmem>>, vector<1x8x8xf32>
    %80 = vector.shape_cast %79 : vector<1x8x8xf32> to vector<8x8xf32>
    %cst_78 = arith.constant dense<0.000000e+00> : vector<8x1408xf32>
    %81 = tpu.matmul %80, %78, %cst_78 {dimension_numbers = #tpu.dot_dimension_numbers<[1], [0], [0], [1], [0, 0, 1, 1], [], []>} : vector<8x8xf32>, vector<8x1408xf32>, vector<8x1408xf32> -> vector<8x1408xf32>
    %82 = arith.addf %77, %81 : vector<8x1408xf32>
    %c0_79 = arith.constant 0 : index
    %c20_80 = arith.constant 20 : index
    %83 = vector.load %arg6[%c0_79, %c20_80] : memref<8x1446xf32, #tpu.memory_space<vmem>>, vector<8x1408xf32>
    %c5_81 = arith.constant 5 : index
    %c0_82 = arith.constant 0 : index
    %c0_83 = arith.constant 0 : index
    %84 = vector.load %arg3[%c5_81, %c0_82, %c0_83] : memref<9x8x8xf32, #tpu.memory_space<vmem>>, vector<1x8x8xf32>
    %85 = vector.shape_cast %84 : vector<1x8x8xf32> to vector<8x8xf32>
    %cst_84 = arith.constant dense<0.000000e+00> : vector<8x1408xf32>
    %86 = tpu.matmul %85, %83, %cst_84 {dimension_numbers = #tpu.dot_dimension_numbers<[1], [0], [0], [1], [0, 0, 1, 1], [], []>} : vector<8x8xf32>, vector<8x1408xf32>, vector<8x1408xf32> -> vector<8x1408xf32>
    %87 = arith.addf %82, %86 : vector<8x1408xf32>
    %c0_85 = arith.constant 0 : index
    %c36_86 = arith.constant 36 : index
    %88 = vector.load %arg6[%c0_85, %c36_86] : memref<8x1446xf32, #tpu.memory_space<vmem>>, vector<8x1408xf32>
    %c6_87 = arith.constant 6 : index
    %c0_88 = arith.constant 0 : index
    %c0_89 = arith.constant 0 : index
    %89 = vector.load %arg3[%c6_87, %c0_88, %c0_89] : memref<9x8x8xf32, #tpu.memory_space<vmem>>, vector<1x8x8xf32>
    %90 = vector.shape_cast %89 : vector<1x8x8xf32> to vector<8x8xf32>
    %cst_90 = arith.constant dense<0.000000e+00> : vector<8x1408xf32>
    %91 = tpu.matmul %90, %88, %cst_90 {dimension_numbers = #tpu.dot_dimension_numbers<[1], [0], [0], [1], [0, 0, 1, 1], [], []>} : vector<8x8xf32>, vector<8x1408xf32>, vector<8x1408xf32> -> vector<8x1408xf32>
    %92 = arith.addf %87, %91 : vector<8x1408xf32>
    %c0_91 = arith.constant 0 : index
    %c37_92 = arith.constant 37 : index
    %93 = vector.load %arg6[%c0_91, %c37_92] : memref<8x1446xf32, #tpu.memory_space<vmem>>, vector<8x1408xf32>
    %c7_93 = arith.constant 7 : index
    %c0_94 = arith.constant 0 : index
    %c0_95 = arith.constant 0 : index
    %94 = vector.load %arg3[%c7_93, %c0_94, %c0_95] : memref<9x8x8xf32, #tpu.memory_space<vmem>>, vector<1x8x8xf32>
    %95 = vector.shape_cast %94 : vector<1x8x8xf32> to vector<8x8xf32>
    %cst_96 = arith.constant dense<0.000000e+00> : vector<8x1408xf32>
    %96 = tpu.matmul %95, %93, %cst_96 {dimension_numbers = #tpu.dot_dimension_numbers<[1], [0], [0], [1], [0, 0, 1, 1], [], []>} : vector<8x8xf32>, vector<8x1408xf32>, vector<8x1408xf32> -> vector<8x1408xf32>
    %97 = arith.addf %92, %96 : vector<8x1408xf32>
    %c0_97 = arith.constant 0 : index
    %c38_98 = arith.constant 38 : index
    %98 = vector.load %arg6[%c0_97, %c38_98] : memref<8x1446xf32, #tpu.memory_space<vmem>>, vector<8x1408xf32>
    %c8_99 = arith.constant 8 : index
    %c0_100 = arith.constant 0 : index
    %c0_101 = arith.constant 0 : index
    %99 = vector.load %arg3[%c8_99, %c0_100, %c0_101] : memref<9x8x8xf32, #tpu.memory_space<vmem>>, vector<1x8x8xf32>
    %100 = vector.shape_cast %99 : vector<1x8x8xf32> to vector<8x8xf32>
    %cst_102 = arith.constant dense<0.000000e+00> : vector<8x1408xf32>
    %101 = tpu.matmul %100, %98, %cst_102 {dimension_numbers = #tpu.dot_dimension_numbers<[1], [0], [0], [1], [0, 0, 1, 1], [], []>} : vector<8x8xf32>, vector<8x1408xf32>, vector<8x1408xf32> -> vector<8x1408xf32>
    %102 = arith.addf %97, %101 : vector<8x1408xf32>
    %c0_103 = arith.constant 0 : index
    %c19_104 = arith.constant 19 : index
    %103 = vector.load %arg1[%c0_103, %c19_104] : memref<8x1446xf32, #tpu.memory_space<vmem>>, vector<8x1408xf32>
    %104 = arith.addf %103, %102 : vector<8x1408xf32>
    %c0_105 = arith.constant 0 : index
    %c0_106 = arith.constant 0 : index
    %105 = vector.load %arg5[%c0_105, %c0_106] : memref<8x1408xf32, #tpu.memory_space<vmem>>, vector<8x1408xf32>
    tpu.vector_store %arg5[%c0_105, %c0_106], %104 {strides = array<i32>} : memref<8x1408xf32, #tpu.memory_space<vmem>>, vector<8x1408xf32>,
    return
  }
  func.func @transform_0(%arg0: i32) -> (i32, i32) {
    %c0_i32 = arith.constant 0 : i32
    %c0_i32_0 = arith.constant 0 : i32
    return %arg0, %c0_i32 : i32, i32
  }
  func.func @transform_1(%arg0: i32) -> (i32, i32, i32) {
    %c0_i32 = arith.constant 0 : i32
    %c0_i32_0 = arith.constant 0 : i32
    %c0_i32_1 = arith.constant 0 : i32
    %c0_i32_2 = arith.constant 0 : i32
    return %c0_i32, %c0_i32_0, %c0_i32_1 : i32, i32, i32
  }
  func.func @transform_2(%arg0: i32) -> (i32, i32, i32) {
    %c0_i32 = arith.constant 0 : i32
    %c0_i32_0 = arith.constant 0 : i32
    %c0_i32_1 = arith.constant 0 : i32
    %c0_i32_2 = arith.constant 0 : i32
    return %c0_i32, %c0_i32_0, %c0_i32_1 : i32, i32, i32
  }
  func.func @transform_3(%arg0: i32) -> (i32, i32) {
    %c0_i32 = arith.constant 0 : i32
    %c0_i32_0 = arith.constant 0 : i32
    %c0_i32_1 = arith.constant 0 : i32
    return %c0_i32, %c0_i32_0 : i32, i32
  }
  func.func @transform_4(%arg0: i32) -> (i32, i32) {
    %c0_i32 = arith.constant 0 : i32
    %c0_i32_0 = arith.constant 0 : i32
    return %arg0, %c0_i32 : i32, i32
  }
}

</mosaic_0001>

<llo_original>
// kernel: resblock_pallas.1
$region0: #{resblock_pallas.1}
  #allocation0 [shape = 'u32[]', space=smem, size = 0x4, offset = 0x4, fixed_abs, tag = 'smem constant byte address 0x4 - core index']
  #allocation1 [shape = 'u32[144,128]{1,0:T(1,128)}', space=vmem, size = 0x12000, scoped, tag = 'internal scratch']
  #allocation2 [shape = 'f32[8,1446]{1,0:T(8,128)}', space=vmem, size = 0xc000, scoped, tag = 'scratch operand']
  %s0 = inlined_call_operand.vmem [shape: f32[16,1446], index: 0, kind: input, shape index: {}]
  %s1 = inlined_call_operand.vmem [shape: f32[9,8,8], index: 1, kind: input, shape index: {}]
  %s2 = inlined_call_operand.vmem [shape: f32[9,8,8], index: 2, kind: input, shape index: {}]
  %s3 = inlined_call_operand.vmem [shape: f32[1,1408], index: 3, kind: input, shape index: {}]
  %s4 = inlined_call_operand.vmem [shape: f32[16,1408], index: 4, kind: output, shape index: {}]
  %s5 = sld [smem:[#allocation0]]
  $region49: #{resblock_pallas.1} parent=0
    _
  %s7 = ssub.s32 1, %s5
  %s8 = scalar_select 0, %s7, %s5
  loop: start=0, step=1, limit=4
  $region2: #{resblock_pallas.1} parent=0 // loop_pre_header
    _
  $region3: #{resblock_pallas.1} parent=0 // loop_header
    %s10 = sphi 0, %s14
    %p11 = scmp.ge.s32.totalorder %s10, 4
    %s20 = sphi 0, %s22
    %s23 = sphi 0, %s20
    %s24 = sphi 0, %s23
    %s40 = sphi 0, %s24
    %s44 = sphi 0, %s44
    %s46 = sphi 0, %s44
    %s47 = sphi 0, %s46
    %s61 = sphi 0, %s47
    %s65 = sphi 0, %s65
    %s67 = sphi 0, %s65
    %s68 = sphi 0, %s67
    %s82 = sphi 0, %s68
    %s86 = sphi 0, %s86
    %s88 = sphi 0, %s86
    %s89 = sphi 0, %s88
    %s103 = sphi 0, %s89
    %s109 = sphi 0, %s111
    %s112 = sphi 0, %s109
    %s113 = sphi 0, %s112
    %s129 = sphi 0, %s113
  $region4: #{resblock_pallas.1} parent=0 // loop_header_branch
    %13 = sbr.rel (%p11) target = $region8
  $region5: #{resblock_pallas.1} parent=0 // loop_body
    %s15 = ssub.s32 %s10, 1
    %s16 = ssub.s32 %s10, 2
    %s17 = sadd.s32 %s10, 1
    %s18 = ssub.s32 %s10, %s17
    %p19 = scmp.eq.s32.totalorder %s18, 0
    %s21 = sadd.s32 %s20, 1
    %s22 = scalar_select %p19, %s20, %s21
    %p25 = pneg %p19
    %p26 = scmp.eq.s32.totalorder %s10, 1
    %p27 = por %p25, %p26
    %p28 = scmp.ne.s32.totalorder %s20, %s23
    %p29 = scmp.eq.s32.totalorder %s10, 0
    %p30 = por %p28, %p29
    %p31 = scmp.ne.s32.totalorder %s20, %s23
    %p32 = scmp.eq.s32.totalorder %s15, 1
    %p33 = por %p31, %p32
    %p34 = scmp.ne.s32.totalorder %s23, %s24
    %p35 = scmp.eq.s32.totalorder %s15, 0
    %p36 = por %p34, %p35
    %p37 = scmp.ne.s32.totalorder %s23, %s24
    %p38 = scmp.eq.s32.totalorder %s16, 1
    %p39 = por %p37, %p38
    %p41 = scmp.ne.s32.totalorder %s24, %s40
    %p42 = scmp.eq.s32.totalorder %s16, 0
    %p43 = por %p41, %p42
    %s45 = sadd.s32 %s44, 1
    %p48 = scmp.eq.s32.totalorder %s10, 1
    %p49 = scmp.ne.s32.totalorder %s44, %s46
    %p50 = scmp.eq.s32.totalorder %s10, 0
    %p51 = por %p49, %p50
    %p52 = scmp.ne.s32.totalorder %s44, %s46
    %p53 = scmp.eq.s32.totalorder %s15, 1
    %p54 = por %p52, %p53
    %p55 = scmp.ne.s32.totalorder %s46, %s47
    %p56 = scmp.eq.s32.totalorder %s15, 0
    %p57 = por %p55, %p56
    %p58 = scmp.ne.s32.totalorder %s46, %s47
    %p59 = scmp.eq.s32.totalorder %s16, 1
    %p60 = por %p58, %p59
    %p62 = scmp.ne.s32.totalorder %s47, %s61
    %p63 = scmp.eq.s32.totalorder %s16, 0
    %p64 = por %p62, %p63
    %s66 = sadd.s32 %s65, 1
    %p69 = scmp.eq.s32.totalorder %s10, 1
    %p70 = scmp.ne.s32.totalorder %s65, %s67
    %p71 = scmp.eq.s32.totalorder %s10, 0
    %p72 = por %p70, %p71
    %p73 = scmp.ne.s32.totalorder %s65, %s67
    %p74 = scmp.eq.s32.totalorder %s15, 1
    %p75 = por %p73, %p74
    %p76 = scmp.ne.s32.totalorder %s67, %s68
    %p77 = scmp.eq.s32.totalorder %s15, 0
    %p78 = por %p76, %p77
    %p79 = scmp.ne.s32.totalorder %s67, %s68
    %p80 = scmp.eq.s32.totalorder %s16, 1
    %p81 = por %p79, %p80
    %p83 = scmp.ne.s32.totalorder %s68, %s82
    %p84 = scmp.eq.s32.totalorder %s16, 0
    %p85 = por %p83, %p84
    %s87 = sadd.s32 %s86, 1
    %p90 = scmp.eq.s32.totalorder %s10, 1
    %p91 = scmp.ne.s32.totalorder %s86, %s88
    %p92 = scmp.eq.s32.totalorder %s10, 0
    %p93 = por %p91, %p92
    %p94 = scmp.ne.s32.totalorder %s86, %s88
    %p95 = scmp.eq.s32.totalorder %s15, 1
    %p96 = por %p94, %p95
    %p97 = scmp.ne.s32.totalorder %s88, %s89
    %p98 = scmp.eq.s32.totalorder %s15, 0
    %p99 = por %p97, %p98
    %p100 = scmp.ne.s32.totalorder %s88, %s89
    %p101 = scmp.eq.s32.totalorder %s16, 1
    %p102 = por %p100, %p101
    %p104 = scmp.ne.s32.totalorder %s89, %s103
    %p105 = scmp.eq.s32.totalorder %s16, 0
    %p106 = por %p104, %p105
    %s107 = ssub.s32 %s10, %s17
    %p108 = scmp.eq.s32.totalorder %s107, 0
    %s110 = sadd.s32 %s109, 1
    %s111 = scalar_select %p108, %s109, %s110
    %p114 = pneg %p108
    %p115 = scmp.eq.s32.totalorder %s10, 1
    %p116 = por %p114, %p115
    %p117 = scmp.ne.s32.totalorder %s109, %s112
    %p118 = scmp.eq.s32.totalorder %s10, 0
    %p119 = por %p117, %p118
    %p120 = scmp.ne.s32.totalorder %s109, %s112
    %p121 = scmp.eq.s32.totalorder %s15, 1
    %p122 = por %p120, %p121
    %p123 = scmp.ne.s32.totalorder %s112, %s113
    %p124 = scmp.eq.s32.totalorder %s15, 0
    %p125 = por %p123, %p124
    %p126 = scmp.ne.s32.totalorder %s112, %s113
    %p127 = scmp.eq.s32.totalorder %s16, 1
    %p128 = por %p126, %p127
    %p130 = scmp.ne.s32.totalorder %s113, %s129
    %p131 = scmp.eq.s32.totalorder %s16, 0
    %p132 = por %p130, %p131
    %p133 = scmp.le.s32.totalorder 1, %s10
    %p134 = scmp.lt.s32.totalorder %s10, 3
    %p135 = pnand %p133, %p134
    %p136 = pneg %p135
    // Predicated region
    $region9: #{resblock_pallas.1} parent=5 // pred_check
      _
    $region10: #{resblock_pallas.1} parent=5 // pred_check_branch
      %138 = sbr.rel (%p135) target = $region12
    $region11: #{resblock_pallas.1} parent=5 // pred_region
      %s139 = ssub.s32 %s10, 1
      // Predicated region
      $region13: #{resblock_pallas.1} parent=11 // pred_check
        %p140 = pneg %p57
      $region14: #{resblock_pallas.1} parent=11 // pred_check_branch
        %142 = sbr.rel (%p140) target = $region16
      $region15: #{resblock_pallas.1} parent=11 // pred_region
        _
      $region16: #{resblock_pallas.1} parent=11 // pred_fallthru
        _
      // Predicated region
      $region17: #{resblock_pallas.1} parent=11 // pred_check
        %p143 = pneg %p78
      $region18: #{resblock_pallas.1} parent=11 // pred_check_branch
        %145 = sbr.rel (%p143) target = $region20
      $region19: #{resblock_pallas.1} parent=11 // pred_region
        _
      $region20: #{resblock_pallas.1} parent=11 // pred_fallthru
        _
      // Predicated region
      $region21: #{resblock_pallas.1} parent=11 // pred_check
        %p146 = pneg %p99
      $region22: #{resblock_pallas.1} parent=11 // pred_check_branch
        %148 = sbr.rel (%p146) target = $region24
      $region23: #{resblock_pallas.1} parent=11 // pred_region
        _
      $region24: #{resblock_pallas.1} parent=11 // pred_fallthru
        _
    $region12: #{resblock_pallas.1} parent=5 // pred_fallthru
      _
    %p149 = scmp.lt.s32.totalorder %s10, 2
    // Predicated region
    $region25: #{resblock_pallas.1} parent=5 // pred_check
      %p150 = pneg %p149
    $region26: #{resblock_pallas.1} parent=5 // pred_check_branch
      %152 = sbr.rel (%p150) target = $region28
    $region27: #{resblock_pallas.1} parent=5 // pred_region
      // Predicated region
      $region29: #{resblock_pallas.1} parent=27 // pred_check
        %p153 = pneg %p30
      $region30: #{resblock_pallas.1} parent=27 // pred_check_branch
        %155 = sbr.rel (%p153) target = $region32
      $region31: #{resblock_pallas.1} parent=27 // pred_region
        %p156 = scmp.lt.s32.totalorder %s10, 1
        %s157 = scalar_select %p156, %s10, 1
        %s158 = smul.addr %s157, 12
        %s159 = smul.addr %s158, 8
        %s160 = scalar_lea.vmem %s0, %s159
      $region32: #{resblock_pallas.1} parent=27 // pred_fallthru
        _
    $region28: #{resblock_pallas.1} parent=5 // pred_fallthru
      _
    %p161 = scmp.le.s32.totalorder 1, %s10
    %p162 = scmp.lt.s32.totalorder %s10, 3
    %p163 = pnand %p161, %p162
    %p164 = pneg %p163
    // Predicated region
    $region33: #{resblock_pallas.1} parent=5 // pred_check
      _
    $region34: #{resblock_pallas.1} parent=5 // pred_check_branch
      %166 = sbr.rel (%p163) target = $region36
    $region35: #{resblock_pallas.1} parent=5 // pred_region
      %s167 = ssub.s32 %s10, 1
      %p168 = scmp.lt.s32.totalorder %s15, 1
      %s169 = scalar_select %p168, %s15, 1
      %s170 = smul.addr %s169, 12
      %s171 = smul.addr %s170, 8
      %s172 = scalar_lea.vmem %s0, %s171
      %p173 = pneg %p36
      %p174 = pneg %p33
      %p175 = pneg %p57
      %p176 = pneg %p54
      %p177 = pneg %p78
      %p178 = pneg %p75
      %p179 = pneg %p99
      %p180 = pneg %p96
      %p181 = pneg %p125
      %p182 = pneg %p122
      %p183 = scmp.lt.s32.totalorder %s15, 1
      %s184 = scalar_select %p183, %s15, 1
      %s185 = smul.addr %s184, 11
      %s186 = smul.addr %s185, 8
      %s187 = scalar_lea.vmem %s4, %s186
      %p188 = scmp.lt.s32.totalorder %s15, 1
      %s189 = scalar_select %p188, %s15, 1
      %s190 = smul.addr %s189, 12
      %s191 = smul.addr %s190, 8
      %s192 = scalar_lea.vmem %s0, %s191
      %p193 = scmp.lt.s32.totalorder %s15, 1
      %s194 = scalar_select %p193, %s15, 1
      %s195 = smul.addr %s194, 11
      %s196 = smul.addr %s195, 8
      %s197 = scalar_lea.vmem %s4, %s196
      %v198 = vld [vmem:[%s192] sm:$0xff]
      %v199 = vld [vmem:[%s192 + $0x8] sm:$0xff]
      %v200 = vld [vmem:[%s192 + $0x10] sm:$0xff]
      %v201 = vld [vmem:[%s192 + $0x18] sm:$0xff]
      %v202 = vld [vmem:[%s192 + $0x20] sm:$0xff]
      %v203 = vld [vmem:[%s192 + $0x28] sm:$0xff]
      %v204 = vld [vmem:[%s192 + $0x30] sm:$0xff]
      %v205 = vld [vmem:[%s192 + $0x38] sm:$0xff]
      %v206 = vld [vmem:[%s192 + $0x40] sm:$0xff]
      %v207 = vld [vmem:[%s192 + $0x48] sm:$0xff]
      %v208 = vld [vmem:[%s192 + $0x50] sm:$0xff]
      %v209 = vld [vmem:[%s1] sm:$0xff]
      %v210 = vld [vmem:[%s192 + $0x58] sm:$0xff]
      %s211 = scalar_lea.vmem %s1, 8
      %v212 = vld [vmem:[%s211] sm:$0xff]
      %225 = vrot.lane.b32.xlu0 %v198, 127
      %v226 = vpop.permute.xlu0 %225
      %227 = vrot.lane.b32.xlu0 %v199, 127
      %v228 = vpop.permute.xlu0 %227
      %229 = vrot.lane.b32.xlu0 %v200, 127
      %v230 = vpop.permute.xlu0 %229
      %231 = vrot.lane.b32.xlu0 %v201, 127
      %v232 = vpop.permute.xlu0 %231
      %233 = vrot.lane.b32.xlu0 %v202, 127
      %v234 = vpop.permute.xlu0 %233
      %235 = vrot.lane.b32.xlu0 %v203, 127
      %v236 = vpop.permute.xlu0 %235
      %237 = vrot.lane.b32.xlu0 %v204, 127
      %v238 = vpop.permute.xlu0 %237
      %239 = vrot.lane.b32.xlu0 %v205, 127
      %v240 = vpop.permute.xlu0 %239
      %241 = vrot.lane.b32.xlu0 %v206, 127
      %v242 = vpop.permute.xlu0 %241
      %243 = vrot.lane.b32.xlu0 %v207, 127
      %v244 = vpop.permute.xlu0 %243
      %245 = vrot.lane.b32.xlu0 %v208, 127
      %v246 = vpop.permute.xlu0 %245
      %247 = vrot.lane.b32.xlu0 %v210, 127
      %v248 = vpop.permute.xlu0 %247
      %vm249 = vcmask 1039360
      %v250 = vsel %vm249, %v226, %v228
      %v251 = vsel %vm249, %v228, %v230
      %v252 = vsel %vm249, %v230, %v232
      %v253 = vsel %vm249, %v232, %v234
      %v254 = vsel %vm249, %v234, %v236
      %v255 = vsel %vm249, %v236, %v238
      %v256 = vsel %vm249, %v238, %v240
      %v257 = vsel %vm249, %v240, %v242
      %v258 = vsel %vm249, %v242, %v244
      %v259 = vsel %vm249, %v244, %v246
      %v260 = vsel %vm249, %v246, %v248
      %vm272 = vcmask 64512
      %v274 = vsel %vm272, %v212, 0
      %276 = vmatprep.subr.mxu0 %v251
      %277 = vmatpush1.msra.mxu0 %v250
      %278 = vmatprep.subr.mxu0 0.0
      %279 = vmatpush1.msra.mxu0 0.0
      %280 = vmatprep.subr.mxu0 0.0
      %281 = vmatpush1.msra.mxu0 0.0
      %282 = vmatprep.subr.mxu0 0.0
      %283 = vmatpush1.msra.mxu0 0.0
      %284 = vmatprep.subr.mxu0 0.0
      %285 = vmatpush1.msra.mxu0 0.0
      %286 = vmatprep.subr.mxu0 0.0
      %287 = vmatpush1.msra.mxu0 0.0
      %288 = vmatprep.subr.mxu0 0.0
      %289 = vmatpush1.msra.mxu0 0.0
      %290 = vmatprep.subr.mxu0 0.0
      %291 = vmatpush1.msra.mxu0 0.0
      %292 = vmatprep.subr.mxu0 0.0
      %293 = vmatpush1.msra.mxu0 0.0
      %294 = vmatprep.subr.mxu0 0.0
      %295 = vmatpush1.msra.mxu0 0.0
      %296 = vmatprep.subr.mxu0 0.0
      %297 = vmatpush1.msra.mxu0 0.0
      %298 = vmatprep.subr.mxu0 0.0
      %299 = vmatpush1.msra.mxu0 0.0
      %300 = vmatprep.subr.mxu0 0.0
      %301 = vmatpush1.msra.mxu0 0.0
      %302 = vmatprep.subr.mxu0 0.0
      %303 = vmatpush1.msra.mxu0 0.0
      %304 = vmatprep.subr.mxu0 0.0
      %305 = vmatpush1.msra.mxu0 0.0
      %306 = vmatprep.subr.mxu0 0.0
      %307 = vmatpush1.msra.mxu0 0.0
      %308 = vmatprep.subr.mxu0 0.0
      %309 = vmatpush1.msra.mxu0 0.0
      %310 = vmatprep.subr.mxu0 0.0
      %311 = vmatpush1.msra.mxu0 0.0
      %312 = vmatprep.subr.mxu0 0.0
      %313 = vmatpush1.msra.mxu0 0.0
      %314 = vmatprep.subr.mxu0 0.0
      %315 = vmatpush1.msra.mxu0 0.0
      %316 = vmatprep.subr.mxu0 0.0
      %317 = vmatpush1.msra.mxu0 0.0
      %318 = vmatprep.subr.mxu0 0.0
      %319 = vmatpush1.msra.mxu0 0.0
      %320 = vmatprep.subr.mxu0 0.0
      %321 = vmatpush1.msra.mxu0 0.0
      %322 = vmatprep.subr.mxu0 0.0
      %323 = vmatpush1.msra.mxu0 0.0
      %324 = vmatprep.subr.mxu0 0.0
      %325 = vmatpush1.msra.mxu0 0.0
      %326 = vmatprep.subr.mxu0 0.0
      %327 = vmatpush1.msra.mxu0 0.0
      %328 = vmatprep.subr.mxu0 0.0
      %329 = vmatpush1.msra.mxu0 0.0
      %330 = vmatprep.subr.mxu0 0.0
      %331 = vmatpush1.msra.mxu0 0.0
      %332 = vmatprep.subr.mxu0 0.0
      %333 = vmatpush1.msra.mxu0 0.0
      %334 = vmatprep.subr.mxu0 0.0
      %335 = vmatpush1.msra.mxu0 0.0
      %336 = vmatprep.subr.mxu0 0.0
      %337 = vmatpush1.msra.mxu0 0.0
      %338 = vmatprep.subr.mxu0 0.0
      %339 = vmatpush1.msra.mxu0 0.0
      %340 = vmatprep.mubr.f32.mxu0 0.0
      %341 = vmatmul.mubr.f32.gmra.mrb[0].mxu0 %v274
      %v342 = vpop.f32.mrb[0].mxu0
      %v343 = vadd.f32 0.0, %v342
      %v344 = vpop.f32.mrb[0].mxu0
      %v345 = vadd.f32 0.0, %v344
      %346 = vdwg.mxu0
      %347 = vmatprep.subr.mxu0 %v253
      %348 = vmatpush1.msra.mxu0 %v252
      %349 = vmatprep.subr.mxu0 0.0
      %350 = vmatpush1.msra.mxu0 0.0
      %351 = vmatprep.subr.mxu0 0.0
      %352 = vmatpush1.msra.mxu0 0.0
      %353 = vmatprep.subr.mxu0 0.0
      %354 = vmatpush1.msra.mxu0 0.0
      %355 = vmatprep.subr.mxu0 0.0
      %356 = vmatpush1.msra.mxu0 0.0
      %357 = vmatprep.subr.mxu0 0.0
      %358 = vmatpush1.msra.mxu0 0.0
      %359 = vmatprep.subr.mxu0 0.0
      %360 = vmatpush1.msra.mxu0 0.0
      %361 = vmatprep.subr.mxu0 0.0
      %362 = vmatpush1.msra.mxu0 0.0
      %363 = vmatprep.subr.mxu0 0.0
      %364 = vmatpush1.msra.mxu0 0.0
      %365 = vmatprep.subr.mxu0 0.0
      %366 = vmatpush1.msra.mxu0 0.0
      %367 = vmatprep.subr.mxu0 0.0
      %368 = vmatpush1.msra.mxu0 0.0
      %369 = vmatprep.subr.mxu0 0.0
      %370 = vmatpush1.msra.mxu0 0.0
      %371 = vmatprep.subr.mxu0 0.0
      %372 = vmatpush1.msra.mxu0 0.0
      %373 = vmatprep.subr.mxu0 0.0
      %374 = vmatpush1.msra.mxu0 0.0
      %375 = vmatprep.subr.mxu0 0.0
      %376 = vmatpush1.msra.mxu0 0.0
      %377 = vmatprep.subr.mxu0 0.0
      %378 = vmatpush1.msra.mxu0 0.0
      %379 = vmatprep.subr.mxu0 0.0
      %380 = vmatpush1.msra.mxu0 0.0
      %381 = vmatprep.subr.mxu0 0.0
      %382 = vmatpush1.msra.mxu0 0.0
      %383 = vmatprep.subr.mxu0 0.0
      %384 = vmatpush1.msra.mxu0 0.0
      %385 = vmatprep.subr.mxu0 0.0
      %386 = vmatpush1.msra.mxu0 0.0
      %387 = vmatprep.subr.mxu0 0.0
      %388 = vmatpush1.msra.mxu0 0.0
      %389 = vmatprep.subr.mxu0 0.0
      %390 = vmatpush1.msra.mxu0 0.0
      %391 = vmatprep.subr.mxu0 0.0
      %392 = vmatpush1.msra.mxu0 0.0
      %393 = vmatprep.subr.mxu0 0.0
      %394 = vmatpush1.msra.mxu0 0.0
      %395 = vmatprep.subr.mxu0 0.0
      %396 = vmatpush1.msra.mxu0 0.0
      %397 = vmatprep.subr.mxu0 0.0
      %398 = vmatpush1.msra.mxu0 0.0
      %399 = vmatprep.subr.mxu0 0.0
      %400 = vmatpush1.msra.mxu0 0.0
      %401 = vmatprep.subr.mxu0 0.0
      %402 = vmatpush1.msra.mxu0 0.0
      %403 = vmatprep.subr.mxu0 0.0
      %404 = vmatpush1.msra.mxu0 0.0
      %405 = vmatprep.subr.mxu0 0.0
      %406 = vmatpush1.msra.mxu0 0.0
      %407 = vmatprep.subr.mxu0 0.0
      %408 = vmatpush1.msra.mxu0 0.0
      %409 = vmatprep.subr.mxu0 0.0
      %410 = vmatpush1.msra.mxu0 0.0
      %411 = vmatprep.mubr.f32.mxu0 0.0
      %412 = vmatmul.mubr.f32.gmra.mrb[0].mxu0 %v274
      %v413 = vpop.f32.mrb[0].mxu0
      %v414 = vadd.f32 0.0, %v413
      %v415 = vpop.f32.mrb[0].mxu0
      %v416 = vadd.f32 0.0, %v415
      %417 = vdwg.mxu0
      %418 = vmatprep.subr.mxu0 %v255
      %419 = vmatpush1.msra.mxu0 %v254
      %420 = vmatprep.subr.mxu0 0.0
      %421 = vmatpush1.msra.mxu0 0.0
      %422 = vmatprep.subr.mxu0 0.0
      %423 = vmatpush1.msra.mxu0 0.0
      %424 = vmatprep.subr.mxu0 0.0
      %425 = vmatpush1.msra.mxu0 0.0
      %426 = vmatprep.subr.mxu0 0.0
      %427 = vmatpush1.msra.mxu0 0.0
      %428 = vmatprep.subr.mxu0 0.0
      %429 = vmatpush1.msra.mxu0 0.0
      %430 = vmatprep.subr.mxu0 0.0
      %431 = vmatpush1.msra.mxu0 0.0
      %432 = vmatprep.subr.mxu0 0.0
      %433 = vmatpush1.msra.mxu0 0.0
      %434 = vmatprep.subr.mxu0 0.0
      %435 = vmatpush1.msra.mxu0 0.0
      %436 = vmatprep.subr.mxu0 0.0
      %437 = vmatpush1.msra.mxu0 0.0
      %438 = vmatprep.subr.mxu0 0.0
      %439 = vmatpush1.msra.mxu0 0.0
      %440 = vmatprep.subr.mxu0 0.0
      %441 = vmatpush1.msra.mxu0 0.0
      %442 = vmatprep.subr.mxu0 0.0
      %443 = vmatpush1.msra.mxu0 0.0
      %444 = vmatprep.subr.mxu0 0.0
      %445 = vmatpush1.msra.mxu0 0.0
      %446 = vmatprep.subr.mxu0 0.0
      %447 = vmatpush1.msra.mxu0 0.0
      %448 = vmatprep.subr.mxu0 0.0
      %449 = vmatpush1.msra.mxu0 0.0
      %450 = vmatprep.subr.mxu0 0.0
      %451 = vmatpush1.msra.mxu0 0.0
      %452 = vmatprep.subr.mxu0 0.0
      %453 = vmatpush1.msra.mxu0 0.0
      %454 = vmatprep.subr.mxu0 0.0
      %455 = vmatpush1.msra.mxu0 0.0
      %456 = vmatprep.subr.mxu0 0.0
      %457 = vmatpush1.msra.mxu0 0.0
      %458 = vmatprep.subr.mxu0 0.0
      %459 = vmatpush1.msra.mxu0 0.0
      %460 = vmatprep.subr.mxu0 0.0
      %461 = vmatpush1.msra.mxu0 0.0
      %462 = vmatprep.subr.mxu0 0.0
      %463 = vmatpush1.msra.mxu0 0.0
      %464 = vmatprep.subr.mxu0 0.0
      %465 = vmatpush1.msra.mxu0 0.0
      %466 = vmatprep.subr.mxu0 0.0
      %467 = vmatpush1.msra.mxu0 0.0
      %468 = vmatprep.subr.mxu0 0.0
      %469 = vmatpush1.msra.mxu0 0.0
      %470 = vmatprep.subr.mxu0 0.0
      %471 = vmatpush1.msra.mxu0 0.0
      %472 = vmatprep.subr.mxu0 0.0
      %473 = vmatpush1.msra.mxu0 0.0
      %474 = vmatprep.subr.mxu0 0.0
      %475 = vmatpush1.msra.mxu0 0.0
      %476 = vmatprep.subr.mxu0 0.0
      %477 = vmatpush1.msra.mxu0 0.0
      %478 = vmatprep.subr.mxu0 0.0
      %479 = vmatpush1.msra.mxu0 0.0
      %480 = vmatprep.subr.mxu0 0.0
      %481 = vmatpush1.msra.mxu0 0.0
      %482 = vmatprep.mubr.f32.mxu0 0.0
      %483 = vmatmul.mubr.f32.gmra.mrb[0].mxu0 %v274
      %v484 = vpop.f32.mrb[0].mxu0
      %v485 = vadd.f32 0.0, %v484
      %v486 = vpop.f32.mrb[0].mxu0
      %v487 = vadd.f32 0.0, %v486
      %488 = vdwg.mxu0
      %489 = vmatprep.subr.mxu0 %v257
      %490 = vmatpush1.msra.mxu0 %v256
      %491 = vmatprep.subr.mxu0 0.0
      %492 = vmatpush1.msra.mxu0 0.0
      %493 = vmatprep.subr.mxu0 0.0
      %494 = vmatpush1.msra.mxu0 0.0
      %495 = vmatprep.subr.mxu0 0.0
      %496 = vmatpush1.msra.mxu0 0.0
      %497 = vmatprep.subr.mxu0 0.0
      %498 = vmatpush1.msra.mxu0 0.0
      %499 = vmatprep.subr.mxu0 0.0
      %500 = vmatpush1.msra.mxu0 0.0
      %501 = vmatprep.subr.mxu0 0.0
      %502 = vmatpush1.msra.mxu0 0.0
      %503 = vmatprep.subr.mxu0 0.0
      %504 = vmatpush1.msra.mxu0 0.0
      %505 = vmatprep.subr.mxu0 0.0
      %506 = vmatpush1.msra.mxu0 0.0
      %507 = vmatprep.subr.mxu0 0.0
      %508 = vmatpush1.msra.mxu0 0.0
      %509 = vmatprep.subr.mxu0 0.0
      %510 = vmatpush1.msra.mxu0 0.0
      %511 = vmatprep.subr.mxu0 0.0
      %512 = vmatpush1.msra.mxu0 0.0
      %513 = vmatprep.subr.mxu0 0.0
      %514 = vmatpush1.msra.mxu0 0.0
      %515 = vmatprep.subr.mxu0 0.0
      %516 = vmatpush1.msra.mxu0 0.0
      %517 = vmatprep.subr.mxu0 0.0
      %518 = vmatpush1.msra.mxu0 0.0
      %519 = vmatprep.subr.mxu0 0.0
      %520 = vmatpush1.msra.mxu0 0.0
      %521 = vmatprep.subr.mxu0 0.0
      %522 = vmatpush1.msra.mxu0 0.0
      %523 = vmatprep.subr.mxu0 0.0
      %524 = vmatpush1.msra.mxu0 0.0
      %525 = vmatprep.subr.mxu0 0.0
      %526 = vmatpush1.msra.mxu0 0.0
      %527 = vmatprep.subr.mxu0 0.0
      %528 = vmatpush1.msra.mxu0 0.0
      %529 = vmatprep.subr.mxu0 0.0
      %530 = vmatpush1.msra.mxu0 0.0
      %531 = vmatprep.subr.mxu0 0.0
      %532 = vmatpush1.msra.mxu0 0.0
      %533 = vmatprep.subr.mxu0 0.0
      %534 = vmatpush1.msra.mxu0 0.0
      %535 = vmatprep.subr.mxu0 0.0
      %536 = vmatpush1.msra.mxu0 0.0
      %537 = vmatprep.subr.mxu0 0.0
      %538 = vmatpush1.msra.mxu0 0.0
      %539 = vmatprep.subr.mxu0 0.0
      %540 = vmatpush1.msra.mxu0 0.0
      %541 = vmatprep.subr.mxu0 0.0
      %542 = vmatpush1.msra.mxu0 0.0
      %543 = vmatprep.subr.mxu0 0.0
      %544 = vmatpush1.msra.mxu0 0.0
      %545 = vmatprep.subr.mxu0 0.0
      %546 = vmatpush1.msra.mxu0 0.0
      %547 = vmatprep.subr.mxu0 0.0
      %548 = vmatpush1.msra.mxu0 0.0
      %549 = vmatprep.subr.mxu0 0.0
      %550 = vmatpush1.msra.mxu0 0.0
      %551 = vmatprep.subr.mxu0 0.0
      %552 = vmatpush1.msra.mxu0 0.0
      %553 = vmatprep.mubr.f32.mxu0 0.0
      %554 = vmatmul.mubr.f32.gmra.mrb[0].mxu0 %v274
      %v555 = vpop.f32.mrb[0].mxu0
      %v556 = vadd.f32 0.0, %v555
      %v557 = vpop.f32.mrb[0].mxu0
      %v558 = vadd.f32 0.0, %v557
      %559 = vdwg.mxu0
      %560 = vmatprep.subr.mxu0 %v259
      %561 = vmatpush1.msra.mxu0 %v258
      %562 = vmatprep.subr.mxu0 0.0
      %563 = vmatpush1.msra.mxu0 0.0
      %564 = vmatprep.subr.mxu0 0.0
      %565 = vmatpush1.msra.mxu0 0.0
      %566 = vmatprep.subr.mxu0 0.0
      %567 = vmatpush1.msra.mxu0 0.0
      %568 = vmatprep.subr.mxu0 0.0
      %569 = vmatpush1.msra.mxu0 0.0
      %570 = vmatprep.subr.mxu0 0.0
      %571 = vmatpush1.msra.mxu0 0.0
      %572 = vmatprep.subr.mxu0 0.0
      %573 = vmatpush1.msra.mxu0 0.0
      %574 = vmatprep.subr.mxu0 0.0
      %575 = vmatpush1.msra.mxu0 0.0
      %576 = vmatprep.subr.mxu0 0.0
      %577 = vmatpush1.msra.mxu0 0.0
      %578 = vmatprep.subr.mxu0 0.0
      %579 = vmatpush1.msra.mxu0 0.0
      %580 = vmatprep.subr.mxu0 0.0
      %581 = vmatpush1.msra.mxu0 0.0
      %582 = vmatprep.subr.mxu0 0.0
      %583 = vmatpush1.msra.mxu0 0.0
      %584 = vmatprep.subr.mxu0 0.0
      %585 = vmatpush1.msra.mxu0 0.0
      %586 = vmatprep.subr.mxu0 0.0
      %587 = vmatpush1.msra.mxu0 0.0
      %588 = vmatprep.subr.mxu0 0.0
      %589 = vmatpush1.msra.mxu0 0.0
      %590 = vmatprep.subr.mxu0 0.0
      %591 = vmatpush1.msra.mxu0 0.0
      %592 = vmatprep.subr.mxu0 0.0
      %593 = vmatpush1.msra.mxu0 0.0
      %594 = vmatprep.subr.mxu0 0.0
      %595 = vmatpush1.msra.mxu0 0.0
      %596 = vmatprep.subr.mxu0 0.0
      %597 = vmatpush1.msra.mxu0 0.0
      %598 = vmatprep.subr.mxu0 0.0
      %599 = vmatpush1.msra.mxu0 0.0
      %600 = vmatprep.subr.mxu0 0.0
      %601 = vmatpush1.msra.mxu0 0.0
      %602 = vmatprep.subr.mxu0 0.0
      %603 = vmatpush1.msra.mxu0 0.0
      %604 = vmatprep.subr.mxu0 0.0
      %605 = vmatpush1.msra.mxu0 0.0
      %606 = vmatprep.subr.mxu0 0.0
      %607 = vmatpush1.msra.mxu0 0.0
      %608 = vmatprep.subr.mxu0 0.0
      %609 = vmatpush1.msra.mxu0 0.0
      %610 = vmatprep.subr.mxu0 0.0
      %611 = vmatpush1.msra.mxu0 0.0
      %612 = vmatprep.subr.mxu0 0.0
      %613 = vmatpush1.msra.mxu0 0.0
      %614 = vmatprep.subr.mxu0 0.0
      %615 = vmatpush1.msra.mxu0 0.0
      %616 = vmatprep.subr.mxu0 0.0
      %617 = vmatpush1.msra.mxu0 0.0
      %618 = vmatprep.subr.mxu0 0.0
      %619 = vmatpush1.msra.mxu0 0.0
      %620 = vmatprep.subr.mxu0 0.0
      %621 = vmatpush1.msra.mxu0 0.0
      %622 = vmatprep.subr.mxu0 0.0
      %623 = vmatpush1.msra.mxu0 0.0
      %624 = vmatprep.mubr.f32.mxu0 0.0
      %625 = vmatmul.mubr.f32.gmra.mrb[0].mxu0 %v274
      %v626 = vpop.f32.mrb[0].mxu0
      %v627 = vadd.f32 0.0, %v626
      %v628 = vpop.f32.mrb[0].mxu0
      %v629 = vadd.f32 0.0, %v628
      %630 = vdwg.mxu0
      %631 = vmatprep.subr.mxu0 0.0
      %632 = vmatpush1.msra.mxu0 %v260
      %633 = vmatprep.subr.mxu0 0.0
      %634 = vmatpush1.msra.mxu0 0.0
      %635 = vmatprep.subr.mxu0 0.0
      %636 = vmatpush1.msra.mxu0 0.0
      %637 = vmatprep.subr.mxu0 0.0
      %638 = vmatpush1.msra.mxu0 0.0
      %639 = vmatprep.subr.mxu0 0.0
      %640 = vmatpush1.msra.mxu0 0.0
      %641 = vmatprep.subr.mxu0 0.0
      %642 = vmatpush1.msra.mxu0 0.0
      %643 = vmatprep.subr.mxu0 0.0
      %644 = vmatpush1.msra.mxu0 0.0
      %645 = vmatprep.subr.mxu0 0.0
      %646 = vmatpush1.msra.mxu0 0.0
      %647 = vmatprep.subr.mxu0 0.0
      %648 = vmatpush1.msra.mxu0 0.0
      %649 = vmatprep.subr.mxu0 0.0
      %650 = vmatpush1.msra.mxu0 0.0
      %651 = vmatprep.subr.mxu0 0.0
      %652 = vmatpush1.msra.mxu0 0.0
      %653 = vmatprep.subr.mxu0 0.0
      %654 = vmatpush1.msra.mxu0 0.0
      %655 = vmatprep.subr.mxu0 0.0
      %656 = vmatpush1.msra.mxu0 0.0
      %657 = vmatprep.subr.mxu0 0.0
      %658 = vmatpush1.msra.mxu0 0.0
      %659 = vmatprep.subr.mxu0 0.0
      %660 = vmatpush1.msra.mxu0 0.0
      %661 = vmatprep.subr.mxu0 0.0
      %662 = vmatpush1.msra.mxu0 0.0
      %663 = vmatprep.subr.mxu0 0.0
      %664 = vmatpush1.msra.mxu0 0.0
      %665 = vmatprep.subr.mxu0 0.0
      %666 = vmatpush1.msra.mxu0 0.0
      %667 = vmatprep.subr.mxu0 0.0
      %668 = vmatpush1.msra.mxu0 0.0
      %669 = vmatprep.subr.mxu0 0.0
      %670 = vmatpush1.msra.mxu0 0.0
      %671 = vmatprep.subr.mxu0 0.0
      %672 = vmatpush1.msra.mxu0 0.0
      %673 = vmatprep.subr.mxu0 0.0
      %674 = vmatpush1.msra.mxu0 0.0
      %675 = vmatprep.subr.mxu0 0.0
      %676 = vmatpush1.msra.mxu0 0.0
      %677 = vmatprep.subr.mxu0 0.0
      %678 = vmatpush1.msra.mxu0 0.0
      %679 = vmatprep.subr.mxu0 0.0
      %680 = vmatpush1.msra.mxu0 0.0
      %681 = vmatprep.subr.mxu0 0.0
      %682 = vmatpush1.msra.mxu0 0.0
      %683 = vmatprep.subr.mxu0 0.0
      %684 = vmatpush1.msra.mxu0 0.0
      %685 = vmatprep.subr.mxu0 0.0
      %686 = vmatpush1.msra.mxu0 0.0
      %687 = vmatprep.subr.mxu0 0.0
      %688 = vmatpush1.msra.mxu0 0.0
      %689 = vmatprep.subr.mxu0 0.0
      %690 = vmatpush1.msra.mxu0 0.0
      %691 = vmatprep.subr.mxu0 0.0
      %692 = vmatpush1.msra.mxu0 0.0
      %693 = vmatprep.subr.mxu0 0.0
      %694 = vmatpush1.msra.mxu0 0.0
      %695 = vmatprep.mubr.f32.mxu0 0.0
      %696 = vmatmul.mubr.f32.gmra.mrb[0].mxu0 %v274
      %v697 = vpop.f32.mrb[0].mxu0
      %v698 = vadd.f32 0.0, %v697
      %v699 = vpop.f32.mrb[0].mxu0
      %700 = vdwg.mxu0
      %v702 = vsel %vm272, %v209, 0
      %704 = vmatprep.subr.mxu0 %v199
      %705 = vmatpush1.msra.mxu0 %v198
      %706 = vmatprep.subr.mxu0 0.0
      %707 = vmatpush1.msra.mxu0 0.0
      %708 = vmatprep.subr.mxu0 0.0
      %709 = vmatpush1.msra.mxu0 0.0
      %710 = vmatprep.subr.mxu0 0.0
      %711 = vmatpush1.msra.mxu0 0.0
      %712 = vmatprep.subr.mxu0 0.0
      %713 = vmatpush1.msra.mxu0 0.0
      %714 = vmatprep.subr.mxu0 0.0
      %715 = vmatpush1.msra.mxu0 0.0
      %716 = vmatprep.subr.mxu0 0.0
      %717 = vmatpush1.msra.mxu0 0.0
      %718 = vmatprep.subr.mxu0 0.0
      %719 = vmatpush1.msra.mxu0 0.0
      %720 = vmatprep.subr.mxu0 0.0
      %721 = vmatpush1.msra.mxu0 0.0
      %722 = vmatprep.subr.mxu0 0.0
      %723 = vmatpush1.msra.mxu0 0.0
      %724 = vmatprep.subr.mxu0 0.0
      %725 = vmatpush1.msra.mxu0 0.0
      %726 = vmatprep.subr.mxu0 0.0
      %727 = vmatpush1.msra.mxu0 0.0
      %728 = vmatprep.subr.mxu0 0.0
      %729 = vmatpush1.msra.mxu0 0.0
      %730 = vmatprep.subr.mxu0 0.0
      %731 = vmatpush1.msra.mxu0 0.0
      %732 = vmatprep.subr.mxu0 0.0
      %733 = vmatpush1.msra.mxu0 0.0
      %734 = vmatprep.subr.mxu0 0.0
      %735 = vmatpush1.msra.mxu0 0.0
      %736 = vmatprep.subr.mxu0 0.0
      %737 = vmatpush1.msra.mxu0 0.0
      %738 = vmatprep.subr.mxu0 0.0
      %739 = vmatpush1.msra.mxu0 0.0
      %740 = vmatprep.subr.mxu0 0.0
      %741 = vmatpush1.msra.mxu0 0.0
      %742 = vmatprep.subr.mxu0 0.0
      %743 = vmatpush1.msra.mxu0 0.0
      %744 = vmatprep.subr.mxu0 0.0
      %745 = vmatpush1.msra.mxu0 0.0
      %746 = vmatprep.subr.mxu0 0.0
      %747 = vmatpush1.msra.mxu0 0.0
      %748 = vmatprep.subr.mxu0 0.0
      %749 = vmatpush1.msra.mxu0 0.0
      %750 = vmatprep.subr.mxu0 0.0
      %751 = vmatpush1.msra.mxu0 0.0
      %752 = vmatprep.subr.mxu0 0.0
      %753 = vmatpush1.msra.mxu0 0.0
      %754 = vmatprep.subr.mxu0 0.0
      %755 = vmatpush1.msra.mxu0 0.0
      %756 = vmatprep.subr.mxu0 0.0
      %757 = vmatpush1.msra.mxu0 0.0
      %758 = vmatprep.subr.mxu0 0.0
      %759 = vmatpush1.msra.mxu0 0.0
      %760 = vmatprep.subr.mxu0 0.0
      %761 = vmatpush1.msra.mxu0 0.0
      %762 = vmatprep.subr.mxu0 0.0
      %763 = vmatpush1.msra.mxu0 0.0
      %764 = vmatprep.subr.mxu0 0.0
      %765 = vmatpush1.msra.mxu0 0.0
      %766 = vmatprep.subr.mxu0 0.0
      %767 = vmatpush1.msra.mxu0 0.0
      %768 = vmatprep.mubr.f32.mxu0 0.0
      %769 = vmatmul.mubr.f32.gmra.mrb[0].mxu0 %v702
      %v770 = vpop.f32.mrb[0].mxu0
      %v771 = vadd.f32 %v343, %v770
      %v772 = vpop.f32.mrb[0].mxu0
      %v773 = vadd.f32 %v345, %v772
      %774 = vdwg.mxu0
      %775 = vmatprep.subr.mxu0 %v201
      %776 = vmatpush1.msra.mxu0 %v200
      %777 = vmatprep.subr.mxu0 0.0
      %778 = vmatpush1.msra.mxu0 0.0
      %779 = vmatprep.subr.mxu0 0.0
      %780 = vmatpush1.msra.mxu0 0.0
      %781 = vmatprep.subr.mxu0 0.0
      %782 = vmatpush1.msra.mxu0 0.0
      %783 = vmatprep.subr.mxu0 0.0
      %784 = vmatpush1.msra.mxu0 0.0
      %785 = vmatprep.subr.mxu0 0.0
      %786 = vmatpush1.msra.mxu0 0.0
      %787 = vmatprep.subr.mxu0 0.0
      %788 = vmatpush1.msra.mxu0 0.0
      %789 = vmatprep.subr.mxu0 0.0
      %790 = vmatpush1.msra.mxu0 0.0
      %791 = vmatprep.subr.mxu0 0.0
      %792 = vmatpush1.msra.mxu0 0.0
      %793 = vmatprep.subr.mxu0 0.0
      %794 = vmatpush1.msra.mxu0 0.0
      %795 = vmatprep.subr.mxu0 0.0
      %796 = vmatpush1.msra.mxu0 0.0
      %797 = vmatprep.subr.mxu0 0.0
      %798 = vmatpush1.msra.mxu0 0.0
      %799 = vmatprep.subr.mxu0 0.0
      %800 = vmatpush1.msra.mxu0 0.0
      %801 = vmatprep.subr.mxu0 0.0
      %802 = vmatpush1.msra.mxu0 0.0
      %803 = vmatprep.subr.mxu0 0.0
      %804 = vmatpush1.msra.mxu0 0.0
      %805 = vmatprep.subr.mxu0 0.0
      %806 = vmatpush1.msra.mxu0 0.0
      %807 = vmatprep.subr.mxu0 0.0
      %808 = vmatpush1.msra.mxu0 0.0
      %809 = vmatprep.subr.mxu0 0.0
      %810 = vmatpush1.msra.mxu0 0.0
      %811 = vmatprep.subr.mxu0 0.0
      %812 = vmatpush1.msra.mxu0 0.0
      %813 = vmatprep.subr.mxu0 0.0
      %814 = vmatpush1.msra.mxu0 0.0
      %815 = vmatprep.subr.mxu0 0.0
      %816 = vmatpush1.msra.mxu0 0.0
      %817 = vmatprep.subr.mxu0 0.0
      %818 = vmatpush1.msra.mxu0 0.0
      %819 = vmatprep.subr.mxu0 0.0
      %820 = vmatpush1.msra.mxu0 0.0
      %821 = vmatprep.subr.mxu0 0.0
      %822 = vmatpush1.msra.mxu0 0.0
      %823 = vmatprep.subr.mxu0 0.0
      %824 = vmatpush1.msra.mxu0 0.0
      %825 = vmatprep.subr.mxu0 0.0
      %826 = vmatpush1.msra.mxu0 0.0
      %827 = vmatprep.subr.mxu0 0.0
      %828 = vmatpush1.msra.mxu0 0.0
      %829 = vmatprep.subr.mxu0 0.0
      %830 = vmatpush1.msra.mxu0 0.0
      %831 = vmatprep.subr.mxu0 0.0
      %832 = vmatpush1.msra.mxu0 0.0
      %833 = vmatprep.subr.mxu0 0.0
      %834 = vmatpush1.msra.mxu0 0.0
      %835 = vmatprep.subr.mxu0 0.0
      %836 = vmatpush1.msra.mxu0 0.0
      %837 = vmatprep.subr.mxu0 0.0
      %838 = vmatpush1.msra.mxu0 0.0
      %839 = vmatprep.mubr.f32.mxu0 0.0
      %840 = vmatmul.mubr.f32.gmra.mrb[0].mxu0 %v702
      %v841 = vpop.f32.mrb[0].mxu0
      %v842 = vadd.f32 %v414, %v841
      %v843 = vpop.f32.mrb[0].mxu0
      %v844 = vadd.f32 %v416, %v843
      %845 = vdwg.mxu0
      %846 = vmatprep.subr.mxu0 %v203
      %847 = vmatpush1.msra.mxu0 %v202
      %848 = vmatprep.subr.mxu0 0.0
      %849 = vmatpush1.msra.mxu0 0.0
      %850 = vmatprep.subr.mxu0 0.0
      %851 = vmatpush1.msra.mxu0 0.0
      %852 = vmatprep.subr.mxu0 0.0
      %853 = vmatpush1.msra.mxu0 0.0
      %854 = vmatprep.subr.mxu0 0.0
      %855 = vmatpush1.msra.mxu0 0.0
      %856 = vmatprep.subr.mxu0 0.0
      %857 = vmatpush1.msra.mxu0 0.0
      %858 = vmatprep.subr.mxu0 0.0
      %859 = vmatpush1.msra.mxu0 0.0
      %860 = vmatprep.subr.mxu0 0.0
      %861 = vmatpush1.msra.mxu0 0.0
      %862 = vmatprep.subr.mxu0 0.0
      %863 = vmatpush1.msra.mxu0 0.0
      %864 = vmatprep.subr.mxu0 0.0
      %865 = vmatpush1.msra.mxu0 0.0
      %866 = vmatprep.subr.mxu0 0.0
      %867 = vmatpush1.msra.mxu0 0.0
      %868 = vmatprep.subr.mxu0 0.0
      %869 = vmatpush1.msra.mxu0 0.0
      %870 = vmatprep.subr.mxu0 0.0
      %871 = vmatpush1.msra.mxu0 0.0
      %872 = vmatprep.subr.mxu0 0.0
      %873 = vmatpush1.msra.mxu0 0.0
      %874 = vmatprep.subr.mxu0 0.0
      %875 = vmatpush1.msra.mxu0 0.0
      %876 = vmatprep.subr.mxu0 0.0
      %877 = vmatpush1.msra.mxu0 0.0
      %878 = vmatprep.subr.mxu0 0.0
      %879 = vmatpush1.msra.mxu0 0.0
      %880 = vmatprep.subr.mxu0 0.0
      %881 = vmatpush1.msra.mxu0 0.0
      %882 = vmatprep.subr.mxu0 0.0
      %883 = vmatpush1.msra.mxu0 0.0
      %884 = vmatprep.subr.mxu0 0.0
      %885 = vmatpush1.msra.mxu0 0.0
      %886 = vmatprep.subr.mxu0 0.0
      %887 = vmatpush1.msra.mxu0 0.0
      %888 = vmatprep.subr.mxu0 0.0
      %889 = vmatpush1.msra.mxu0 0.0
      %890 = vmatprep.subr.mxu0 0.0
      %891 = vmatpush1.msra.mxu0 0.0
      %892 = vmatprep.subr.mxu0 0.0
      %893 = vmatpush1.msra.mxu0 0.0
      %894 = vmatprep.subr.mxu0 0.0
      %895 = vmatpush1.msra.mxu0 0.0
      %896 = vmatprep.subr.mxu0 0.0
      %897 = vmatpush1.msra.mxu0 0.0
      %898 = vmatprep.subr.mxu0 0.0
      %899 = vmatpush1.msra.mxu0 0.0
      %900 = vmatprep.subr.mxu0 0.0
      %901 = vmatpush1.msra.mxu0 0.0
      %902 = vmatprep.subr.mxu0 0.0
      %903 = vmatpush1.msra.mxu0 0.0
      %904 = vmatprep.subr.mxu0 0.0
      %905 = vmatpush1.msra.mxu0 0.0
      %906 = vmatprep.subr.mxu0 0.0
      %907 = vmatpush1.msra.mxu0 0.0
      %908 = vmatprep.subr.mxu0 0.0
      %909 = vmatpush1.msra.mxu0 0.0
      %910 = vmatprep.mubr.f32.mxu0 0.0
      %911 = vmatmul.mubr.f32.gmra.mrb[0].mxu0 %v702
      %v912 = vpop.f32.mrb[0].mxu0
      %v913 = vadd.f32 %v485, %v912
      %v914 = vpop.f32.mrb[0].mxu0
      %v915 = vadd.f32 %v487, %v914
      %916 = vdwg.mxu0
      %917 = vmatprep.subr.mxu0 %v205
      %918 = vmatpush1.msra.mxu0 %v204
      %919 = vmatprep.subr.mxu0 0.0
      %920 = vmatpush1.msra.mxu0 0.0
      %921 = vmatprep.subr.mxu0 0.0
      %922 = vmatpush1.msra.mxu0 0.0
      %923 = vmatprep.subr.mxu0 0.0
      %924 = vmatpush1.msra.mxu0 0.0
      %925 = vmatprep.subr.mxu0 0.0
      %926 = vmatpush1.msra.mxu0 0.0
      %927 = vmatprep.subr.mxu0 0.0
      %928 = vmatpush1.msra.mxu0 0.0
      %929 = vmatprep.subr.mxu0 0.0
      %930 = vmatpush1.msra.mxu0 0.0
      %931 = vmatprep.subr.mxu0 0.0
      %932 = vmatpush1.msra.mxu0 0.0
      %933 = vmatprep.subr.mxu0 0.0
      %934 = vmatpush1.msra.mxu0 0.0
      %935 = vmatprep.subr.mxu0 0.0
      %936 = vmatpush1.msra.mxu0 0.0
      %937 = vmatprep.subr.mxu0 0.0
      %938 = vmatpush1.msra.mxu0 0.0
      %939 = vmatprep.subr.mxu0 0.0
      %940 = vmatpush1.msra.mxu0 0.0
      %941 = vmatprep.subr.mxu0 0.0
      %942 = vmatpush1.msra.mxu0 0.0
      %943 = vmatprep.subr.mxu0 0.0
      %944 = vmatpush1.msra.mxu0 0.0
      %945 = vmatprep.subr.mxu0 0.0
      %946 = vmatpush1.msra.mxu0 0.0
      %947 = vmatprep.subr.mxu0 0.0
      %948 = vmatpush1.msra.mxu0 0.0
      %949 = vmatprep.subr.mxu0 0.0
      %950 = vmatpush1.msra.mxu0 0.0
      %951 = vmatprep.subr.mxu0 0.0
      %952 = vmatpush1.msra.mxu0 0.0
      %953 = vmatprep.subr.mxu0 0.0
      %954 = vmatpush1.msra.mxu0 0.0
      %955 = vmatprep.subr.mxu0 0.0
      %956 = vmatpush1.msra.mxu0 0.0
      %957 = vmatprep.subr.mxu0 0.0
      %958 = vmatpush1.msra.mxu0 0.0
      %959 = vmatprep.subr.mxu0 0.0
      %960 = vmatpush1.msra.mxu0 0.0
      %961 = vmatprep.subr.mxu0 0.0
      %962 = vmatpush1.msra.mxu0 0.0
      %963 = vmatprep.subr.mxu0 0.0
      %964 = vmatpush1.msra.mxu0 0.0
      %965 = vmatprep.subr.mxu0 0.0
      %966 = vmatpush1.msra.mxu0 0.0
      %967 = vmatprep.subr.mxu0 0.0
      %968 = vmatpush1.msra.mxu0 0.0
      %969 = vmatprep.subr.mxu0 0.0
      %970 = vmatpush1.msra.mxu0 0.0
      %971 = vmatprep.subr.mxu0 0.0
      %972 = vmatpush1.msra.mxu0 0.0
      %973 = vmatprep.subr.mxu0 0.0
      %974 = vmatpush1.msra.mxu0 0.0
      %975 = vmatprep.subr.mxu0 0.0
      %976 = vmatpush1.msra.mxu0 0.0
      %977 = vmatprep.subr.mxu0 0.0
      %978 = vmatpush1.msra.mxu0 0.0
      %979 = vmatprep.subr.mxu0 0.0
      %980 = vmatpush1.msra.mxu0 0.0
      %981 = vmatprep.mubr.f32.mxu0 0.0
      %982 = vmatmul.mubr.f32.gmra.mrb[0].mxu0 %v702
      %v983 = vpop.f32.mrb[0].mxu0
      %v984 = vadd.f32 %v556, %v983
      %v985 = vpop.f32.mrb[0].mxu0
      %v986 = vadd.f32 %v558, %v985
      %987 = vdwg.mxu0
      %988 = vmatprep.subr.mxu0 %v207
      %989 = vmatpush1.msra.mxu0 %v206
      %990 = vmatprep.subr.mxu0 0.0
      %991 = vmatpush1.msra.mxu0 0.0
      %992 = vmatprep.subr.mxu0 0.0
      %993 = vmatpush1.msra.mxu0 0.0
      %994 = vmatprep.subr.mxu0 0.0
      %995 = vmatpush1.msra.mxu0 0.0
      %996 = vmatprep.subr.mxu0 0.0
      %997 = vmatpush1.msra.mxu0 0.0
      %998 = vmatprep.subr.mxu0 0.0
      %999 = vmatpush1.msra.mxu0 0.0
      %1000 = vmatprep.subr.mxu0 0.0
      %1001 = vmatpush1.msra.mxu0 0.0
      %1002 = vmatprep.subr.mxu0 0.0
      %1003 = vmatpush1.msra.mxu0 0.0
      %1004 = vmatprep.subr.mxu0 0.0
      %1005 = vmatpush1.msra.mxu0 0.0
      %1006 = vmatprep.subr.mxu0 0.0
      %1007 = vmatpush1.msra.mxu0 0.0
      %1008 = vmatprep.subr.mxu0 0.0
      %1009 = vmatpush1.msra.mxu0 0.0
      %1010 = vmatprep.subr.mxu0 0.0
      %1011 = vmatpush1.msra.mxu0 0.0
      %1012 = vmatprep.subr.mxu0 0.0
      %1013 = vmatpush1.msra.mxu0 0.0
      %1014 = vmatprep.subr.mxu0 0.0
      %1015 = vmatpush1.msra.mxu0 0.0
      %1016 = vmatprep.subr.mxu0 0.0
      %1017 = vmatpush1.msra.mxu0 0.0
      %1018 = vmatprep.subr.mxu0 0.0
      %1019 = vmatpush1.msra.mxu0 0.0
      %1020 = vmatprep.subr.mxu0 0.0
      %1021 = vmatpush1.msra.mxu0 0.0
      %1022 = vmatprep.subr.mxu0 0.0
      %1023 = vmatpush1.msra.mxu0 0.0
      %1024 = vmatprep.subr.mxu0 0.0
      %1025 = vmatpush1.msra.mxu0 0.0
      %1026 = vmatprep.subr.mxu0 0.0
      %1027 = vmatpush1.msra.mxu0 0.0
      %1028 = vmatprep.subr.mxu0 0.0
      %1029 = vmatpush1.msra.mxu0 0.0
      %1030 = vmatprep.subr.mxu0 0.0
      %1031 = vmatpush1.msra.mxu0 0.0
      %1032 = vmatprep.subr.mxu0 0.0
      %1033 = vmatpush1.msra.mxu0 0.0
      %1034 = vmatprep.subr.mxu0 0.0
      %1035 = vmatpush1.msra.mxu0 0.0
      %1036 = vmatprep.subr.mxu0 0.0
      %1037 = vmatpush1.msra.mxu0 0.0
      %1038 = vmatprep.subr.mxu0 0.0
      %1039 = vmatpush1.msra.mxu0 0.0
      %1040 = vmatprep.subr.mxu0 0.0
      %1041 = vmatpush1.msra.mxu0 0.0
      %1042 = vmatprep.subr.mxu0 0.0
      %1043 = vmatpush1.msra.mxu0 0.0
      %1044 = vmatprep.subr.mxu0 0.0
      %1045 = vmatpush1.msra.mxu0 0.0
      %1046 = vmatprep.subr.mxu0 0.0
      %1047 = vmatpush1.msra.mxu0 0.0
      %1048 = vmatprep.subr.mxu0 0.0
      %1049 = vmatpush1.msra.mxu0 0.0
      %1050 = vmatprep.subr.mxu0 0.0
      %1051 = vmatpush1.msra.mxu0 0.0
      %1052 = vmatprep.mubr.f32.mxu0 0.0
      %1053 = vmatmul.mubr.f32.gmra.mrb[0].mxu0 %v702
      %v1054 = vpop.f32.mrb[0].mxu0
      %v1055 = vadd.f32 %v627, %v1054
      %v1056 = vpop.f32.mrb[0].mxu0
      %v1057 = vadd.f32 %v629, %v1056
      %1058 = vdwg.mxu0
      %1059 = vmatprep.subr.mxu0 0.0
      %1060 = vmatpush1.msra.mxu0 %v208
      %1061 = vmatprep.subr.mxu0 0.0
      %1062 = vmatpush1.msra.mxu0 0.0
      %1063 = vmatprep.subr.mxu0 0.0
      %1064 = vmatpush1.msra.mxu0 0.0
      %1065 = vmatprep.subr.mxu0 0.0
      %1066 = vmatpush1.msra.mxu0 0.0
      %1067 = vmatprep.subr.mxu0 0.0
      %1068 = vmatpush1.msra.mxu0 0.0
      %1069 = vmatprep.subr.mxu0 0.0
      %1070 = vmatpush1.msra.mxu0 0.0
      %1071 = vmatprep.subr.mxu0 0.0
      %1072 = vmatpush1.msra.mxu0 0.0
      %1073 = vmatprep.subr.mxu0 0.0
      %1074 = vmatpush1.msra.mxu0 0.0
      %1075 = vmatprep.subr.mxu0 0.0
      %1076 = vmatpush1.msra.mxu0 0.0
      %1077 = vmatprep.subr.mxu0 0.0
      %1078 = vmatpush1.msra.mxu0 0.0
      %1079 = vmatprep.subr.mxu0 0.0
      %1080 = vmatpush1.msra.mxu0 0.0
      %1081 = vmatprep.subr.mxu0 0.0
      %1082 = vmatpush1.msra.mxu0 0.0
      %1083 = vmatprep.subr.mxu0 0.0
      %1084 = vmatpush1.msra.mxu0 0.0
      %1085 = vmatprep.subr.mxu0 0.0
      %1086 = vmatpush1.msra.mxu0 0.0
      %1087 = vmatprep.subr.mxu0 0.0
      %1088 = vmatpush1.msra.mxu0 0.0
      %1089 = vmatprep.subr.mxu0 0.0
      %1090 = vmatpush1.msra.mxu0 0.0
      %1091 = vmatprep.subr.mxu0 0.0
      %1092 = vmatpush1.msra.mxu0 0.0
      %1093 = vmatprep.subr.mxu0 0.0
      %1094 = vmatpush1.msra.mxu0 0.0
      %1095 = vmatprep.subr.mxu0 0.0
      %1096 = vmatpush1.msra.mxu0 0.0
      %1097 = vmatprep.subr.mxu0 0.0
      %1098 = vmatpush1.msra.mxu0 0.0
      %1099 = vmatprep.subr.mxu0 0.0
      %1100 = vmatpush1.msra.mxu0 0.0
      %1101 = vmatprep.subr.mxu0 0.0
      %1102 = vmatpush1.msra.mxu0 0.0
      %1103 = vmatprep.subr.mxu0 0.0
      %1104 = vmatpush1.msra.mxu0 0.0
      %1105 = vmatprep.subr.mxu0 0.0
      %1106 = vmatpush1.msra.mxu0 0.0
      %1107 = vmatprep.subr.mxu0 0.0
      %1108 = vmatpush1.msra.mxu0 0.0
      %1109 = vmatprep.subr.mxu0 0.0
      %1110 = vmatpush1.msra.mxu0 0.0
      %1111 = vmatprep.subr.mxu0 0.0
      %1112 = vmatpush1.msra.mxu0 0.0
      %1113 = vmatprep.subr.mxu0 0.0
      %1114 = vmatpush1.msra.mxu0 0.0
      %1115 = vmatprep.subr.mxu0 0.0
      %1116 = vmatpush1.msra.mxu0 0.0
      %1117 = vmatprep.subr.mxu0 0.0
      %1118 = vmatpush1.msra.mxu0 0.0
      %1119 = vmatprep.subr.mxu0 0.0
      %1120 = vmatpush1.msra.mxu0 0.0
      %1121 = vmatprep.subr.mxu0 0.0
      %1122 = vmatpush1.msra.mxu0 0.0
      %1123 = vmatprep.mubr.f32.mxu0 0.0
      %1124 = vmatmul.mubr.f32.gmra.mrb[0].mxu0 %v702
      %v1125 = vpop.f32.mrb[0].mxu0
      %v1126 = vadd.f32 %v698, %v1125
      %v1127 = vpop.f32.mrb[0].mxu0
      %1128 = vdwg.mxu0
      %s1129 = scalar_lea.vmem %s1, 16
      %v1130 = vld [vmem:[%s1129] sm:$0xff]
      %1131 = vrot.lane.b32.xlu0 %v198, 126
      %v1132 = vpop.permute.xlu0 %1131
      %1133 = vrot.lane.b32.xlu0 %v199, 126
      %v1134 = vpop.permute.xlu0 %1133
      %1135 = vrot.lane.b32.xlu0 %v200, 126
      %v1136 = vpop.permute.xlu0 %1135
      %1137 = vrot.lane.b32.xlu0 %v201, 126
      %v1138 = vpop.permute.xlu0 %1137
      %1139 = vrot.lane.b32.xlu0 %v202, 126
      %v1140 = vpop.permute.xlu0 %1139
      %1141 = vrot.lane.b32.xlu0 %v203, 126
      %v1142 = vpop.permute.xlu0 %1141
      %1143 = vrot.lane.b32.xlu0 %v204, 126
      %v1144 = vpop.permute.xlu0 %1143
      %1145 = vrot.lane.b32.xlu0 %v205, 126
      %v1146 = vpop.permute.xlu0 %1145
      %1147 = vrot.lane.b32.xlu0 %v206, 126
      %v1148 = vpop.permute.xlu0 %1147
      %1149 = vrot.lane.b32.xlu0 %v207, 126
      %v1150 = vpop.permute.xlu0 %1149
      %1151 = vrot.lane.b32.xlu0 %v208, 126
      %v1152 = vpop.permute.xlu0 %1151
      %1153 = vrot.lane.b32.xlu0 %v210, 126
      %v1154 = vpop.permute.xlu0 %1153
      %vm1155 = vcmask 1031168
      %v1156 = vsel %vm1155, %v1132, %v1134
      %v1157 = vsel %vm1155, %v1134, %v1136
      %v1158 = vsel %vm1155, %v1136, %v1138
      %v1159 = vsel %vm1155, %v1138, %v1140
      %v1160 = vsel %vm1155, %v1140, %v1142
      %v1161 = vsel %vm1155, %v1142, %v1144
      %v1162 = vsel %vm1155, %v1144, %v1146
      %v1163 = vsel %vm1155, %v1146, %v1148
      %v1164 = vsel %vm1155, %v1148, %v1150
      %v1165 = vsel %vm1155, %v1150, %v1152
      %v1166 = vsel %vm1155, %v1152, %v1154
      %v1179 = vsel %vm272, %v1130, 0
      %1181 = vmatprep.subr.mxu0 %v1157
      %1182 = vmatpush1.msra.mxu0 %v1156
      %1183 = vmatprep.subr.mxu0 0.0
      %1184 = vmatpush1.msra.mxu0 0.0
      %1185 = vmatprep.subr.mxu0 0.0
      %1186 = vmatpush1.msra.mxu0 0.0
      %1187 = vmatprep.subr.mxu0 0.0
      %1188 = vmatpush1.msra.mxu0 0.0
      %1189 = vmatprep.subr.mxu0 0.0
      %1190 = vmatpush1.msra.mxu0 0.0
      %1191 = vmatprep.subr.mxu0 0.0
      %1192 = vmatpush1.msra.mxu0 0.0
      %1193 = vmatprep.subr.mxu0 0.0
      %1194 = vmatpush1.msra.mxu0 0.0
      %1195 = vmatprep.subr.mxu0 0.0
      %1196 = vmatpush1.msra.mxu0 0.0
      %1197 = vmatprep.subr.mxu0 0.0
      %1198 = vmatpush1.msra.mxu0 0.0
      %1199 = vmatprep.subr.mxu0 0.0
      %1200 = vmatpush1.msra.mxu0 0.0
      %1201 = vmatprep.subr.mxu0 0.0
      %1202 = vmatpush1.msra.mxu0 0.0
      %1203 = vmatprep.subr.mxu0 0.0
      %1204 = vmatpush1.msra.mxu0 0.0
      %1205 = vmatprep.subr.mxu0 0.0
      %1206 = vmatpush1.msra.mxu0 0.0
      %1207 = vmatprep.subr.mxu0 0.0
      %1208 = vmatpush1.msra.mxu0 0.0
      %1209 = vmatprep.subr.mxu0 0.0
      %1210 = vmatpush1.msra.mxu0 0.0
      %1211 = vmatprep.subr.mxu0 0.0
      %1212 = vmatpush1.msra.mxu0 0.0
      %1213 = vmatprep.subr.mxu0 0.0
      %1214 = vmatpush1.msra.mxu0 0.0
      %1215 = vmatprep.subr.mxu0 0.0
      %1216 = vmatpush1.msra.mxu0 0.0
      %1217 = vmatprep.subr.mxu0 0.0
      %1218 = vmatpush1.msra.mxu0 0.0
      %1219 = vmatprep.subr.mxu0 0.0
      %1220 = vmatpush1.msra.mxu0 0.0
      %1221 = vmatprep.subr.mxu0 0.0
      %1222 = vmatpush1.msra.mxu0 0.0
      %1223 = vmatprep.subr.mxu0 0.0
      %1224 = vmatpush1.msra.mxu0 0.0
      %1225 = vmatprep.subr.mxu0 0.0
      %1226 = vmatpush1.msra.mxu0 0.0
      %1227 = vmatprep.subr.mxu0 0.0
      %1228 = vmatpush1.msra.mxu0 0.0
      %1229 = vmatprep.subr.mxu0 0.0
      %1230 = vmatpush1.msra.mxu0 0.0
      %1231 = vmatprep.subr.mxu0 0.0
      %1232 = vmatpush1.msra.mxu0 0.0
      %1233 = vmatprep.subr.mxu0 0.0
      %1234 = vmatpush1.msra.mxu0 0.0
      %1235 = vmatprep.subr.mxu0 0.0
      %1236 = vmatpush1.msra.mxu0 0.0
      %1237 = vmatprep.subr.mxu0 0.0
      %1238 = vmatpush1.msra.mxu0 0.0
      %1239 = vmatprep.subr.mxu0 0.0
      %1240 = vmatpush1.msra.mxu0 0.0
      %1241 = vmatprep.subr.mxu0 0.0
      %1242 = vmatpush1.msra.mxu0 0.0
      %1243 = vmatprep.subr.mxu0 0.0
      %1244 = vmatpush1.msra.mxu0 0.0
      %1245 = vmatprep.mubr.f32.mxu0 0.0
      %1246 = vmatmul.mubr.f32.gmra.mrb[0].mxu0 %v1179
      %v1247 = vpop.f32.mrb[0].mxu0
      %v1248 = vadd.f32 0.0, %v1247
      %v1249 = vpop.f32.mrb[0].mxu0
      %v1250 = vadd.f32 0.0, %v1249
      %1251 = vdwg.mxu0
      %1252 = vmatprep.subr.mxu0 %v1159
      %1253 = vmatpush1.msra.mxu0 %v1158
      %1254 = vmatprep.subr.mxu0 0.0
      %1255 = vmatpush1.msra.mxu0 0.0
      %1256 = vmatprep.subr.mxu0 0.0
      %1257 = vmatpush1.msra.mxu0 0.0
      %1258 = vmatprep.subr.mxu0 0.0
      %1259 = vmatpush1.msra.mxu0 0.0
      %1260 = vmatprep.subr.mxu0 0.0
      %1261 = vmatpush1.msra.mxu0 0.0
      %1262 = vmatprep.subr.mxu0 0.0
      %1263 = vmatpush1.msra.mxu0 0.0
      %1264 = vmatprep.subr.mxu0 0.0
      %1265 = vmatpush1.msra.mxu0 0.0
      %1266 = vmatprep.subr.mxu0 0.0
      %1267 = vmatpush1.msra.mxu0 0.0
      %1268 = vmatprep.subr.mxu0 0.0
      %1269 = vmatpush1.msra.mxu0 0.0
      %1270 = vmatprep.subr.mxu0 0.0
      %1271 = vmatpush1.msra.mxu0 0.0
      %1272 = vmatprep.subr.mxu0 0.0
      %1273 = vmatpush1.msra.mxu0 0.0
      %1274 = vmatprep.subr.mxu0 0.0
      %1275 = vmatpush1.msra.mxu0 0.0
      %1276 = vmatprep.subr.mxu0 0.0
      %1277 = vmatpush1.msra.mxu0 0.0
      %1278 = vmatprep.subr.mxu0 0.0
      %1279 = vmatpush1.msra.mxu0 0.0
      %1280 = vmatprep.subr.mxu0 0.0
      %1281 = vmatpush1.msra.mxu0 0.0
      %1282 = vmatprep.subr.mxu0 0.0
      %1283 = vmatpush1.msra.mxu0 0.0
      %1284 = vmatprep.subr.mxu0 0.0
      %1285 = vmatpush1.msra.mxu0 0.0
      %1286 = vmatprep.subr.mxu0 0.0
      %1287 = vmatpush1.msra.mxu0 0.0
      %1288 = vmatprep.subr.mxu0 0.0
      %1289 = vmatpush1.msra.mxu0 0.0
      %1290 = vmatprep.subr.mxu0 0.0
      %1291 = vmatpush1.msra.mxu0 0.0
      %1292 = vmatprep.subr.mxu0 0.0
      %1293 = vmatpush1.msra.mxu0 0.0
      %1294 = vmatprep.subr.mxu0 0.0
      %1295 = vmatpush1.msra.mxu0 0.0
      %1296 = vmatprep.subr.mxu0 0.0
      %1297 = vmatpush1.msra.mxu0 0.0
      %1298 = vmatprep.subr.mxu0 0.0
      %1299 = vmatpush1.msra.mxu0 0.0
      %1300 = vmatprep.subr.mxu0 0.0
      %1301 = vmatpush1.msra.mxu0 0.0
      %1302 = vmatprep.subr.mxu0 0.0
      %1303 = vmatpush1.msra.mxu0 0.0
      %1304 = vmatprep.subr.mxu0 0.0
      %1305 = vmatpush1.msra.mxu0 0.0
      %1306 = vmatprep.subr.mxu0 0.0
      %1307 = vmatpush1.msra.mxu0 0.0
      %1308 = vmatprep.subr.mxu0 0.0
      %1309 = vmatpush1.msra.mxu0 0.0
      %1310 = vmatprep.subr.mxu0 0.0
      %1311 = vmatpush1.msra.mxu0 0.0
      %1312 = vmatprep.subr.mxu0 0.0
      %1313 = vmatpush1.msra.mxu0 0.0
      %1314 = vmatprep.subr.mxu0 0.0
      %1315 = vmatpush1.msra.mxu0 0.0
      %1316 = vmatprep.mubr.f32.mxu0 0.0
      %1317 = vmatmul.mubr.f32.gmra.mrb[0].mxu0 %v1179
      %v1318 = vpop.f32.mrb[0].mxu0
      %v1319 = vadd.f32 0.0, %v1318
      %v1320 = vpop.f32.mrb[0].mxu0
      %v1321 = vadd.f32 0.0, %v1320
      %1322 = vdwg.mxu0
      %1323 = vmatprep.subr.mxu0 %v1161
      %1324 = vmatpush1.msra.mxu0 %v1160
      %1325 = vmatprep.subr.mxu0 0.0
      %1326 = vmatpush1.msra.mxu0 0.0
      %1327 = vmatprep.subr.mxu0 0.0
      %1328 = vmatpush1.msra.mxu0 0.0
      %1329 = vmatprep.subr.mxu0 0.0
      %1330 = vmatpush1.msra.mxu0 0.0
      %1331 = vmatprep.subr.mxu0 0.0
      %1332 = vmatpush1.msra.mxu0 0.0
      %1333 = vmatprep.subr.mxu0 0.0
      %1334 = vmatpush1.msra.mxu0 0.0
      %1335 = vmatprep.subr.mxu0 0.0
      %1336 = vmatpush1.msra.mxu0 0.0
      %1337 = vmatprep.subr.mxu0 0.0
      %1338 = vmatpush1.msra.mxu0 0.0
      %1339 = vmatprep.subr.mxu0 0.0
      %1340 = vmatpush1.msra.mxu0 0.0
      %1341 = vmatprep.subr.mxu0 0.0
      %1342 = vmatpush1.msra.mxu0 0.0
      %1343 = vmatprep.subr.mxu0 0.0
      %1344 = vmatpush1.msra.mxu0 0.0
      %1345 = vmatprep.subr.mxu0 0.0
      %1346 = vmatpush1.msra.mxu0 0.0
      %1347 = vmatprep.subr.mxu0 0.0
      %1348 = vmatpush1.msra.mxu0 0.0
      %1349 = vmatprep.subr.mxu0 0.0
      %1350 = vmatpush1.msra.mxu0 0.0
      %1351 = vmatprep.subr.mxu0 0.0
      %1352 = vmatpush1.msra.mxu0 0.0
      %1353 = vmatprep.subr.mxu0 0.0
      %1354 = vmatpush1.msra.mxu0 0.0
      %1355 = vmatprep.subr.mxu0 0.0
      %1356 = vmatpush1.msra.mxu0 0.0
      %1357 = vmatprep.subr.mxu0 0.0
      %1358 = vmatpush1.msra.mxu0 0.0
      %1359 = vmatprep.subr.mxu0 0.0
      %1360 = vmatpush1.msra.mxu0 0.0
      %1361 = vmatprep.subr.mxu0 0.0
      %1362 = vmatpush1.msra.mxu0 0.0
      %1363 = vmatprep.subr.mxu0 0.0
      %1364 = vmatpush1.msra.mxu0 0.0
      %1365 = vmatprep.subr.mxu0 0.0
      %1366 = vmatpush1.msra.mxu0 0.0
      %1367 = vmatprep.subr.mxu0 0.0
      %1368 = vmatpush1.msra.mxu0 0.0
      %1369 = vmatprep.subr.mxu0 0.0
      %1370 = vmatpush1.msra.mxu0 0.0
      %1371 = vmatprep.subr.mxu0 0.0
      %1372 = vmatpush1.msra.mxu0 0.0
      %1373 = vmatprep.subr.mxu0 0.0
      %1374 = vmatpush1.msra.mxu0 0.0
      %1375 = vmatprep.subr.mxu0 0.0
      %1376 = vmatpush1.msra.mxu0 0.0
      %1377 = vmatprep.subr.mxu0 0.0
      %1378 = vmatpush1.msra.mxu0 0.0
      %1379 = vmatprep.subr.mxu0 0.0
      %1380 = vmatpush1.msra.mxu0 0.0
      %1381 = vmatprep.subr.mxu0 0.0
      %1382 = vmatpush1.msra.mxu0 0.0
      %1383 = vmatprep.subr.mxu0 0.0
      %1384 = vmatpush1.msra.mxu0 0.0
      %1385 = vmatprep.subr.mxu0 0.0
      %1386 = vmatpush1.msra.mxu0 0.0
      %1387 = vmatprep.mubr.f32.mxu0 0.0
      %1388 = vmatmul.mubr.f32.gmra.mrb[0].mxu0 %v1179
      %v1389 = vpop.f32.mrb[0].mxu0
      %v1390 = vadd.f32 0.0, %v1389
      %v1391 = vpop.f32.mrb[0].mxu0
      %v1392 = vadd.f32 0.0, %v1391
      %1393 = vdwg.mxu0
      %1394 = vmatprep.subr.mxu0 %v1163
      %1395 = vmatpush1.msra.mxu0 %v1162
      %1396 = vmatprep.subr.mxu0 0.0
      %1397 = vmatpush1.msra.mxu0 0.0
      %1398 = vmatprep.subr.mxu0 0.0
      %1399 = vmatpush1.msra.mxu0 0.0
      %1400 = vmatprep.subr.mxu0 0.0
      %1401 = vmatpush1.msra.mxu0 0.0
      %1402 = vmatprep.subr.mxu0 0.0
      %1403 = vmatpush1.msra.mxu0 0.0
      %1404 = vmatprep.subr.mxu0 0.0
      %1405 = vmatpush1.msra.mxu0 0.0
      %1406 = vmatprep.subr.mxu0 0.0
      %1407 = vmatpush1.msra.mxu0 0.0
      %1408 = vmatprep.subr.mxu0 0.0
      %1409 = vmatpush1.msra.mxu0 0.0
      %1410 = vmatprep.subr.mxu0 0.0
      %1411 = vmatpush1.msra.mxu0 0.0
      %1412 = vmatprep.subr.mxu0 0.0
      %1413 = vmatpush1.msra.mxu0 0.0
      %1414 = vmatprep.subr.mxu0 0.0
      %1415 = vmatpush1.msra.mxu0 0.0
      %1416 = vmatprep.subr.mxu0 0.0
      %1417 = vmatpush1.msra.mxu0 0.0
      %1418 = vmatprep.subr.mxu0 0.0
      %1419 = vmatpush1.msra.mxu0 0.0
      %1420 = vmatprep.subr.mxu0 0.0
      %1421 = vmatpush1.msra.mxu0 0.0
      %1422 = vmatprep.subr.mxu0 0.0
      %1423 = vmatpush1.msra.mxu0 0.0
      %1424 = vmatprep.subr.mxu0 0.0
      %1425 = vmatpush1.msra.mxu0 0.0
      %1426 = vmatprep.subr.mxu0 0.0
      %1427 = vmatpush1.msra.mxu0 0.0
      %1428 = vmatprep.subr.mxu0 0.0
      %1429 = vmatpush1.msra.mxu0 0.0
      %1430 = vmatprep.subr.mxu0 0.0
      %1431 = vmatpush1.msra.mxu0 0.0
      %1432 = vmatprep.subr.mxu0 0.0
      %1433 = vmatpush1.msra.mxu0 0.0
      %1434 = vmatprep.subr.mxu0 0.0
      %1435 = vmatpush1.msra.mxu0 0.0
      %1436 = vmatprep.subr.mxu0 0.0
      %1437 = vmatpush1.msra.mxu0 0.0
      %1438 = vmatprep.subr.mxu0 0.0
      %1439 = vmatpush1.msra.mxu0 0.0
      %1440 = vmatprep.subr.mxu0 0.0
      %1441 = vmatpush1.msra.mxu0 0.0
      %1442 = vmatprep.subr.mxu0 0.0
      %1443 = vmatpush1.msra.mxu0 0.0
      %1444 = vmatprep.subr.mxu0 0.0
      %1445 = vmatpush1.msra.mxu0 0.0
      %1446 = vmatprep.subr.mxu0 0.0
      %1447 = vmatpush1.msra.mxu0 0.0
      %1448 = vmatprep.subr.mxu0 0.0
      %1449 = vmatpush1.msra.mxu0 0.0
      %1450 = vmatprep.subr.mxu0 0.0
      %1451 = vmatpush1.msra.mxu0 0.0
      %1452 = vmatprep.subr.mxu0 0.0
      %1453 = vmatpush1.msra.mxu0 0.0
      %1454 = vmatprep.subr.mxu0 0.0
      %1455 = vmatpush1.msra.mxu0 0.0
      %1456 = vmatprep.subr.mxu0 0.0
      %1457 = vmatpush1.msra.mxu0 0.0
      %1458 = vmatprep.mubr.f32.mxu0 0.0
      %1459 = vmatmul.mubr.f32.gmra.mrb[0].mxu0 %v1179
      %v1460 = vpop.f32.mrb[0].mxu0
      %v1461 = vadd.f32 0.0, %v1460
      %v1462 = vpop.f32.mrb[0].mxu0
      %v1463 = vadd.f32 0.0, %v1462
      %1464 = vdwg.mxu0
      %1465 = vmatprep.subr.mxu0 %v1165
      %1466 = vmatpush1.msra.mxu0 %v1164
      %1467 = vmatprep.subr.mxu0 0.0
      %1468 = vmatpush1.msra.mxu0 0.0
      %1469 = vmatprep.subr.mxu0 0.0
      %1470 = vmatpush1.msra.mxu0 0.0
      %1471 = vmatprep.subr.mxu0 0.0
      %1472 = vmatpush1.msra.mxu0 0.0
      %1473 = vmatprep.subr.mxu0 0.0
      %1474 = vmatpush1.msra.mxu0 0.0
      %1475 = vmatprep.subr.mxu0 0.0
      %1476 = vmatpush1.msra.mxu0 0.0
      %1477 = vmatprep.subr.mxu0 0.0
      %1478 = vmatpush1.msra.mxu0 0.0
      %1479 = vmatprep.subr.mxu0 0.0
      %1480 = vmatpush1.msra.mxu0 0.0
      %1481 = vmatprep.subr.mxu0 0.0
      %1482 = vmatpush1.msra.mxu0 0.0
      %1483 = vmatprep.subr.mxu0 0.0
      %1484 = vmatpush1.msra.mxu0 0.0
      %1485 = vmatprep.subr.mxu0 0.0
      %1486 = vmatpush1.msra.mxu0 0.0
      %1487 = vmatprep.subr.mxu0 0.0
      %1488 = vmatpush1.msra.mxu0 0.0
      %1489 = vmatprep.subr.mxu0 0.0
      %1490 = vmatpush1.msra.mxu0 0.0
      %1491 = vmatprep.subr.mxu0 0.0
      %1492 = vmatpush1.msra.mxu0 0.0
      %1493 = vmatprep.subr.mxu0 0.0
      %1494 = vmatpush1.msra.mxu0 0.0
      %1495 = vmatprep.subr.mxu0 0.0
      %1496 = vmatpush1.msra.mxu0 0.0
      %1497 = vmatprep.subr.mxu0 0.0
      %1498 = vmatpush1.msra.mxu0 0.0
      %1499 = vmatprep.subr.mxu0 0.0
      %1500 = vmatpush1.msra.mxu0 0.0
      %1501 = vmatprep.subr.mxu0 0.0
      %1502 = vmatpush1.msra.mxu0 0.0
      %1503 = vmatprep.subr.mxu0 0.0
      %1504 = vmatpush1.msra.mxu0 0.0
      %1505 = vmatprep.subr.mxu0 0.0
      %1506 = vmatpush1.msra.mxu0 0.0
      %1507 = vmatprep.subr.mxu0 0.0
      %1508 = vmatpush1.msra.mxu0 0.0
      %1509 = vmatprep.subr.mxu0 0.0
      %1510 = vmatpush1.msra.mxu0 0.0
      %1511 = vmatprep.subr.mxu0 0.0
      %1512 = vmatpush1.msra.mxu0 0.0
      %1513 = vmatprep.subr.mxu0 0.0
      %1514 = vmatpush1.msra.mxu0 0.0
      %1515 = vmatprep.subr.mxu0 0.0
      %1516 = vmatpush1.msra.mxu0 0.0
      %1517 = vmatprep.subr.mxu0 0.0
      %1518 = vmatpush1.msra.mxu0 0.0
      %1519 = vmatprep.subr.mxu0 0.0
      %1520 = vmatpush1.msra.mxu0 0.0
      %1521 = vmatprep.subr.mxu0 0.0
      %1522 = vmatpush1.msra.mxu0 0.0
      %1523 = vmatprep.subr.mxu0 0.0
      %1524 = vmatpush1.msra.mxu0 0.0
      %1525 = vmatprep.subr.mxu0 0.0
      %1526 = vmatpush1.msra.mxu0 0.0
      %1527 = vmatprep.subr.mxu0 0.0
      %1528 = vmatpush1.msra.mxu0 0.0
      %1529 = vmatprep.mubr.f32.mxu0 0.0
      %1530 = vmatmul.mubr.f32.gmra.mrb[0].mxu0 %v1179
      %v1531 = vpop.f32.mrb[0].mxu0
      %v1532 = vadd.f32 0.0, %v1531
      %v1533 = vpop.f32.mrb[0].mxu0
      %v1534 = vadd.f32 0.0, %v1533
      %1535 = vdwg.mxu0
      %1536 = vmatprep.subr.mxu0 0.0
      %1537 = vmatpush1.msra.mxu0 %v1166
      %1538 = vmatprep.subr.mxu0 0.0
      %1539 = vmatpush1.msra.mxu0 0.0
      %1540 = vmatprep.subr.mxu0 0.0
      %1541 = vmatpush1.msra.mxu0 0.0
      %1542 = vmatprep.subr.mxu0 0.0
      %1543 = vmatpush1.msra.mxu0 0.0
      %1544 = vmatprep.subr.mxu0 0.0
      %1545 = vmatpush1.msra.mxu0 0.0
      %1546 = vmatprep.subr.mxu0 0.0
      %1547 = vmatpush1.msra.mxu0 0.0
      %1548 = vmatprep.subr.mxu0 0.0
      %1549 = vmatpush1.msra.mxu0 0.0
      %1550 = vmatprep.subr.mxu0 0.0
      %1551 = vmatpush1.msra.mxu0 0.0
      %1552 = vmatprep.subr.mxu0 0.0
      %1553 = vmatpush1.msra.mxu0 0.0
      %1554 = vmatprep.subr.mxu0 0.0
      %1555 = vmatpush1.msra.mxu0 0.0
      %1556 = vmatprep.subr.mxu0 0.0
      %1557 = vmatpush1.msra.mxu0 0.0
      %1558 = vmatprep.subr.mxu0 0.0
      %1559 = vmatpush1.msra.mxu0 0.0
      %1560 = vmatprep.subr.mxu0 0.0
      %1561 = vmatpush1.msra.mxu0 0.0
      %1562 = vmatprep.subr.mxu0 0.0
      %1563 = vmatpush1.msra.mxu0 0.0
      %1564 = vmatprep.subr.mxu0 0.0
      %1565 = vmatpush1.msra.mxu0 0.0
      %1566 = vmatprep.subr.mxu0 0.0
      %1567 = vmatpush1.msra.mxu0 0.0
      %1568 = vmatprep.subr.mxu0 0.0
      %1569 = vmatpush1.msra.mxu0 0.0
      %1570 = vmatprep.subr.mxu0 0.0
      %1571 = vmatpush1.msra.mxu0 0.0
      %1572 = vmatprep.subr.mxu0 0.0
      %1573 = vmatpush1.msra.mxu0 0.0
      %1574 = vmatprep.subr.mxu0 0.0
      %1575 = vmatpush1.msra.mxu0 0.0
      %1576 = vmatprep.subr.mxu0 0.0
      %1577 = vmatpush1.msra.mxu0 0.0
      %1578 = vmatprep.subr.mxu0 0.0
      %1579 = vmatpush1.msra.mxu0 0.0
      %1580 = vmatprep.subr.mxu0 0.0
      %1581 = vmatpush1.msra.mxu0 0.0
      %1582 = vmatprep.subr.mxu0 0.0
      %1583 = vmatpush1.msra.mxu0 0.0
      %1584 = vmatprep.subr.mxu0 0.0
      %1585 = vmatpush1.msra.mxu0 0.0
      %1586 = vmatprep.subr.mxu0 0.0
      %1587 = vmatpush1.msra.mxu0 0.0
      %1588 = vmatprep.subr.mxu0 0.0
      %1589 = vmatpush1.msra.mxu0 0.0
      %1590 = vmatprep.subr.mxu0 0.0
      %1591 = vmatpush1.msra.mxu0 0.0
      %1592 = vmatprep.subr.mxu0 0.0
      %1593 = vmatpush1.msra.mxu0 0.0
      %1594 = vmatprep.subr.mxu0 0.0
      %1595 = vmatpush1.msra.mxu0 0.0
      %1596 = vmatprep.subr.mxu0 0.0
      %1597 = vmatpush1.msra.mxu0 0.0
      %1598 = vmatprep.subr.mxu0 0.0
      %1599 = vmatpush1.msra.mxu0 0.0
      %1600 = vmatprep.mubr.f32.mxu0 0.0
      %1601 = vmatmul.mubr.f32.gmra.mrb[0].mxu0 %v1179
      %v1602 = vpop.f32.mrb[0].mxu0
      %v1603 = vadd.f32 0.0, %v1602
      %v1604 = vpop.f32.mrb[0].mxu0
      %1605 = vdwg.mxu0
      %v1606 = vadd.f32 %v771, %v1248
      %v1607 = vadd.f32 %v773, %v1250
      %v1608 = vadd.f32 %v842, %v1319
      %v1609 = vadd.f32 %v844, %v1321
      %v1610 = vadd.f32 %v913, %v1390
      %v1611 = vadd.f32 %v915, %v1392
      %v1612 = vadd.f32 %v984, %v1461
      %v1613 = vadd.f32 %v986, %v1463
      %v1614 = vadd.f32 %v1055, %v1532
      %v1615 = vadd.f32 %v1057, %v1534
      %v1616 = vadd.f32 %v1126, %v1603
      %s1617 = scalar_lea.vmem %s1, 24
      %v1618 = vld [vmem:[%s1617] sm:$0xff]
      %1619 = vrot.lane.b32.xlu0 %v198, 110
      %v1620 = vpop.permute.xlu0 %1619
      %1621 = vrot.lane.b32.xlu0 %v199, 110
      %v1622 = vpop.permute.xlu0 %1621
      %1623 = vrot.lane.b32.xlu0 %v200, 110
      %v1624 = vpop.permute.xlu0 %1623
      %1625 = vrot.lane.b32.xlu0 %v201, 110
      %v1626 = vpop.permute.xlu0 %1625
      %1627 = vrot.lane.b32.xlu0 %v202, 110
      %v1628 = vpop.permute.xlu0 %1627
      %1629 = vrot.lane.b32.xlu0 %v203, 110
      %v1630 = vpop.permute.xlu0 %1629
      %1631 = vrot.lane.b32.xlu0 %v204, 110
      %v1632 = vpop.permute.xlu0 %1631
      %1633 = vrot.lane.b32.xlu0 %v205, 110
      %v1634 = vpop.permute.xlu0 %1633
      %1635 = vrot.lane.b32.xlu0 %v206, 110
      %v1636 = vpop.permute.xlu0 %1635
      %1637 = vrot.lane.b32.xlu0 %v207, 110
      %v1638 = vpop.permute.xlu0 %1637
      %1639 = vrot.lane.b32.xlu0 %v208, 110
      %v1640 = vpop.permute.xlu0 %1639
      %1641 = vrot.lane.b32.xlu0 %v210, 110
      %v1642 = vpop.permute.xlu0 %1641
      %vm1643 = vcmask 900096
      %v1644 = vsel %vm1643, %v1620, %v1622
      %v1645 = vsel %vm1643, %v1622, %v1624
      %v1646 = vsel %vm1643, %v1624, %v1626
      %v1647 = vsel %vm1643, %v1626, %v1628
      %v1648 = vsel %vm1643, %v1628, %v1630
      %v1649 = vsel %vm1643, %v1630, %v1632
      %v1650 = vsel %vm1643, %v1632, %v1634
      %v1651 = vsel %vm1643, %v1634, %v1636
      %v1652 = vsel %vm1643, %v1636, %v1638
      %v1653 = vsel %vm1643, %v1638, %v1640
      %v1654 = vsel %vm1643, %v1640, %v1642
      %v1667 = vsel %vm272, %v1618, 0
      %1669 = vmatprep.subr.mxu0 %v1645
      %1670 = vmatpush1.msra.mxu0 %v1644
      %1671 = vmatprep.subr.mxu0 0.0
      %1672 = vmatpush1.msra.mxu0 0.0
      %1673 = vmatprep.subr.mxu0 0.0
      %1674 = vmatpush1.msra.mxu0 0.0
      %1675 = vmatprep.subr.mxu0 0.0
      %1676 = vmatpush1.msra.mxu0 0.0
      %1677 = vmatprep.subr.mxu0 0.0
      %1678 = vmatpush1.msra.mxu0 0.0
      %1679 = vmatprep.subr.mxu0 0.0
      %1680 = vmatpush1.msra.mxu0 0.0
      %1681 = vmatprep.subr.mxu0 0.0
      %1682 = vmatpush1.msra.mxu0 0.0
      %1683 = vmatprep.subr.mxu0 0.0
      %1684 = vmatpush1.msra.mxu0 0.0
      %1685 = vmatprep.subr.mxu0 0.0
      %1686 = vmatpush1.msra.mxu0 0.0
      %1687 = vmatprep.subr.mxu0 0.0
      %1688 = vmatpush1.msra.mxu0 0.0
      %1689 = vmatprep.subr.mxu0 0.0
      %1690 = vmatpush1.msra.mxu0 0.0
      %1691 = vmatprep.subr.mxu0 0.0
      %1692 = vmatpush1.msra.mxu0 0.0
      %1693 = vmatprep.subr.mxu0 0.0
      %1694 = vmatpush1.msra.mxu0 0.0
      %1695 = vmatprep.subr.mxu0 0.0
      %1696 = vmatpush1.msra.mxu0 0.0
      %1697 = vmatprep.subr.mxu0 0.0
      %1698 = vmatpush1.msra.mxu0 0.0
      %1699 = vmatprep.subr.mxu0 0.0
      %1700 = vmatpush1.msra.mxu0 0.0
      %1701 = vmatprep.subr.mxu0 0.0
      %1702 = vmatpush1.msra.mxu0 0.0
      %1703 = vmatprep.subr.mxu0 0.0
      %1704 = vmatpush1.msra.mxu0 0.0
      %1705 = vmatprep.subr.mxu0 0.0
      %1706 = vmatpush1.msra.mxu0 0.0
      %1707 = vmatprep.subr.mxu0 0.0
      %1708 = vmatpush1.msra.mxu0 0.0
      %1709 = vmatprep.subr.mxu0 0.0
      %1710 = vmatpush1.msra.mxu0 0.0
      %1711 = vmatprep.subr.mxu0 0.0
      %1712 = vmatpush1.msra.mxu0 0.0
      %1713 = vmatprep.subr.mxu0 0.0
      %1714 = vmatpush1.msra.mxu0 0.0
      %1715 = vmatprep.subr.mxu0 0.0
      %1716 = vmatpush1.msra.mxu0 0.0
      %1717 = vmatprep.subr.mxu0 0.0
      %1718 = vmatpush1.msra.mxu0 0.0
      %1719 = vmatprep.subr.mxu0 0.0
      %1720 = vmatpush1.msra.mxu0 0.0
      %1721 = vmatprep.subr.mxu0 0.0
      %1722 = vmatpush1.msra.mxu0 0.0
      %1723 = vmatprep.subr.mxu0 0.0
      %1724 = vmatpush1.msra.mxu0 0.0
      %1725 = vmatprep.subr.mxu0 0.0
      %1726 = vmatpush1.msra.mxu0 0.0
      %1727 = vmatprep.subr.mxu0 0.0
      %1728 = vmatpush1.msra.mxu0 0.0
      %1729 = vmatprep.subr.mxu0 0.0
      %1730 = vmatpush1.msra.mxu0 0.0
      %1731 = vmatprep.subr.mxu0 0.0
      %1732 = vmatpush1.msra.mxu0 0.0
      %1733 = vmatprep.mubr.f32.mxu0 0.0
      %1734 = vmatmul.mubr.f32.gmra.mrb[0].mxu0 %v1667
      %v1735 = vpop.f32.mrb[0].mxu0
      %v1736 = vadd.f32 0.0, %v1735
      %v1737 = vpop.f32.mrb[0].mxu0
      %v1738 = vadd.f32 0.0, %v1737
      %1739 = vdwg.mxu0
      %1740 = vmatprep.subr.mxu0 %v1647
      %1741 = vmatpush1.msra.mxu0 %v1646
      %1742 = vmatprep.subr.mxu0 0.0
      %1743 = vmatpush1.msra.mxu0 0.0
      %1744 = vmatprep.subr.mxu0 0.0
      %1745 = vmatpush1.msra.mxu0 0.0
      %1746 = vmatprep.subr.mxu0 0.0
      %1747 = vmatpush1.msra.mxu0 0.0
      %1748 = vmatprep.subr.mxu0 0.0
      %1749 = vmatpush1.msra.mxu0 0.0
      %1750 = vmatprep.subr.mxu0 0.0
      %1751 = vmatpush1.msra.mxu0 0.0
      %1752 = vmatprep.subr.mxu0 0.0
      %1753 = vmatpush1.msra.mxu0 0.0
      %1754 = vmatprep.subr.mxu0 0.0
      %1755 = vmatpush1.msra.mxu0 0.0
      %1756 = vmatprep.subr.mxu0 0.0
      %1757 = vmatpush1.msra.mxu0 0.0
      %1758 = vmatprep.subr.mxu0 0.0
      %1759 = vmatpush1.msra.mxu0 0.0
      %1760 = vmatprep.subr.mxu0 0.0
      %1761 = vmatpush1.msra.mxu0 0.0
      %1762 = vmatprep.subr.mxu0 0.0
      %1763 = vmatpush1.msra.mxu0 0.0
      %1764 = vmatprep.subr.mxu0 0.0
      %1765 = vmatpush1.msra.mxu0 0.0
      %1766 = vmatprep.subr.mxu0 0.0
      %1767 = vmatpush1.msra.mxu0 0.0
      %1768 = vmatprep.subr.mxu0 0.0
      %1769 = vmatpush1.msra.mxu0 0.0
      %1770 = vmatprep.subr.mxu0 0.0
      %1771 = vmatpush1.msra.mxu0 0.0
      %1772 = vmatprep.subr.mxu0 0.0
      %1773 = vmatpush1.msra.mxu0 0.0
      %1774 = vmatprep.subr.mxu0 0.0
      %1775 = vmatpush1.msra.mxu0 0.0
      %1776 = vmatprep.subr.mxu0 0.0
      %1777 = vmatpush1.msra.mxu0 0.0
      %1778 = vmatprep.subr.mxu0 0.0
      %1779 = vmatpush1.msra.mxu0 0.0
      %1780 = vmatprep.subr.mxu0 0.0
      %1781 = vmatpush1.msra.mxu0 0.0
      %1782 = vmatprep.subr.mxu0 0.0
      %1783 = vmatpush1.msra.mxu0 0.0
      %1784 = vmatprep.subr.mxu0 0.0
      %1785 = vmatpush1.msra.mxu0 0.0
      %1786 = vmatprep.subr.mxu0 0.0
      %1787 = vmatpush1.msra.mxu0 0.0
      %1788 = vmatprep.subr.mxu0 0.0
      %1789 = vmatpush1.msra.mxu0 0.0
      %1790 = vmatprep.subr.mxu0 0.0
      %1791 = vmatpush1.msra.mxu0 0.0
      %1792 = vmatprep.subr.mxu0 0.0
      %1793 = vmatpush1.msra.mxu0 0.0
      %1794 = vmatprep.subr.mxu0 0.0
      %1795 = vmatpush1.msra.mxu0 0.0
      %1796 = vmatprep.subr.mxu0 0.0
      %1797 = vmatpush1.msra.mxu0 0.0
      %1798 = vmatprep.subr.mxu0 0.0
      %1799 = vmatpush1.msra.mxu0 0.0
      %1800 = vmatprep.subr.mxu0 0.0
      %1801 = vmatpush1.msra.mxu0 0.0
      %1802 = vmatprep.subr.mxu0 0.0
      %1803 = vmatpush1.msra.mxu0 0.0
      %1804 = vmatprep.mubr.f32.mxu0 0.0
      %1805 = vmatmul.mubr.f32.gmra.mrb[0].mxu0 %v1667
      %v1806 = vpop.f32.mrb[0].mxu0
      %v1807 = vadd.f32 0.0, %v1806
      %v1808 = vpop.f32.mrb[0].mxu0
      %v1809 = vadd.f32 0.0, %v1808
      %1810 = vdwg.mxu0
      %1811 = vmatprep.subr.mxu0 %v1649
      %1812 = vmatpush1.msra.mxu0 %v1648
      %1813 = vmatprep.subr.mxu0 0.0
      %1814 = vmatpush1.msra.mxu0 0.0
      %1815 = vmatprep.subr.mxu0 0.0
      %1816 = vmatpush1.msra.mxu0 0.0
      %1817 = vmatprep.subr.mxu0 0.0
      %1818 = vmatpush1.msra.mxu0 0.0
      %1819 = vmatprep.subr.mxu0 0.0
      %1820 = vmatpush1.msra.mxu0 0.0
      %1821 = vmatprep.subr.mxu0 0.0
      %1822 = vmatpush1.msra.mxu0 0.0
      %1823 = vmatprep.subr.mxu0 0.0
      %1824 = vmatpush1.msra.mxu0 0.0
      %1825 = vmatprep.subr.mxu0 0.0
      %1826 = vmatpush1.msra.mxu0 0.0
      %1827 = vmatprep.subr.mxu0 0.0
      %1828 = vmatpush1.msra.mxu0 0.0
      %1829 = vmatprep.subr.mxu0 0.0
      %1830 = vmatpush1.msra.mxu0 0.0
      %1831 = vmatprep.subr.mxu0 0.0
      %1832 = vmatpush1.msra.mxu0 0.0
      %1833 = vmatprep.subr.mxu0 0.0
      %1834 = vmatpush1.msra.mxu0 0.0
      %1835 = vmatprep.subr.mxu0 0.0
      %1836 = vmatpush1.msra.mxu0 0.0
      %1837 = vmatprep.subr.mxu0 0.0
      %1838 = vmatpush1.msra.mxu0 0.0
      %1839 = vmatprep.subr.mxu0 0.0
      %1840 = vmatpush1.msra.mxu0 0.0
      %1841 = vmatprep.subr.mxu0 0.0
      %1842 = vmatpush1.msra.mxu0 0.0
      %1843 = vmatprep.subr.mxu0 0.0
      %1844 = vmatpush1.msra.mxu0 0.0
      %1845 = vmatprep.subr.mxu0 0.0
      %1846 = vmatpush1.msra.mxu0 0.0
      %1847 = vmatprep.subr.mxu0 0.0
      %1848 = vmatpush1.msra.mxu0 0.0
      %1849 = vmatprep.subr.mxu0 0.0
      %1850 = vmatpush1.msra.mxu0 0.0
      %1851 = vmatprep.subr.mxu0 0.0
      %1852 = vmatpush1.msra.mxu0 0.0
      %1853 = vmatprep.subr.mxu0 0.0
      %1854 = vmatpush1.msra.mxu0 0.0
      %1855 = vmatprep.subr.mxu0 0.0
      %1856 = vmatpush1.msra.mxu0 0.0
      %1857 = vmatprep.subr.mxu0 0.0
      %1858 = vmatpush1.msra.mxu0 0.0
      %1859 = vmatprep.subr.mxu0 0.0
      %1860 = vmatpush1.msra.mxu0 0.0
      %1861 = vmatprep.subr.mxu0 0.0
      %1862 = vmatpush1.msra.mxu0 0.0
      %1863 = vmatprep.subr.mxu0 0.0
      %1864 = vmatpush1.msra.mxu0 0.0
      %1865 = vmatprep.subr.mxu0 0.0
      %1866 = vmatpush1.msra.mxu0 0.0
      %1867 = vmatprep.subr.mxu0 0.0
      %1868 = vmatpush1.msra.mxu0 0.0
      %1869 = vmatprep.subr.mxu0 0.0
      %1870 = vmatpush1.msra.mxu0 0.0
      %1871 = vmatprep.subr.mxu0 0.0
      %1872 = vmatpush1.msra.mxu0 0.0
      %1873 = vmatprep.subr.mxu0 0.0
      %1874 = vmatpush1.msra.mxu0 0.0
      %1875 = vmatprep.mubr.f32.mxu0 0.0
      %1876 = vmatmul.mubr.f32.gmra.mrb[0].mxu0 %v1667
      %v1877 = vpop.f32.mrb[0].mxu0
      %v1878 = vadd.f32 0.0, %v1877
      %v1879 = vpop.f32.mrb[0].mxu0
      %v1880 = vadd.f32 0.0, %v1879
      %1881 = vdwg.mxu0
      %1882 = vmatprep.subr.mxu0 %v1651
      %1883 = vmatpush1.msra.mxu0 %v1650
      %1884 = vmatprep.subr.mxu0 0.0
      %1885 = vmatpush1.msra.mxu0 0.0
      %1886 = vmatprep.subr.mxu0 0.0
      %1887 = vmatpush1.msra.mxu0 0.0
      %1888 = vmatprep.subr.mxu0 0.0
      %1889 = vmatpush1.msra.mxu0 0.0
      %1890 = vmatprep.subr.mxu0 0.0
      %1891 = vmatpush1.msra.mxu0 0.0
      %1892 = vmatprep.subr.mxu0 0.0
      %1893 = vmatpush1.msra.mxu0 0.0
      %1894 = vmatprep.subr.mxu0 0.0
      %1895 = vmatpush1.msra.mxu0 0.0
      %1896 = vmatprep.subr.mxu0 0.0
      %1897 = vmatpush1.msra.mxu0 0.0
      %1898 = vmatprep.subr.mxu0 0.0
      %1899 = vmatpush1.msra.mxu0 0.0
      %1900 = vmatprep.subr.mxu0 0.0
      %1901 = vmatpush1.msra.mxu0 0.0
      %1902 = vmatprep.subr.mxu0 0.0
      %1903 = vmatpush1.msra.mxu0 0.0
      %1904 = vmatprep.subr.mxu0 0.0
      %1905 = vmatpush1.msra.mxu0 0.0
      %1906 = vmatprep.subr.mxu0 0.0
      %1907 = vmatpush1.msra.mxu0 0.0
      %1908 = vmatprep.subr.mxu0 0.0
      %1909 = vmatpush1.msra.mxu0 0.0
      %1910 = vmatprep.subr.mxu0 0.0
      %1911 = vmatpush1.msra.mxu0 0.0
      %1912 = vmatprep.subr.mxu0 0.0
      %1913 = vmatpush1.msra.mxu0 0.0
      %1914 = vmatprep.subr.mxu0 0.0
      %1915 = vmatpush1.msra.mxu0 0.0
      %1916 = vmatprep.subr.mxu0 0.0
      %1917 = vmatpush1.msra.mxu0 0.0
      %1918 = vmatprep.subr.mxu0 0.0
      %1919 = vmatpush1.msra.mxu0 0.0
      %1920 = vmatprep.subr.mxu0 0.0
      %1921 = vmatpush1.msra.mxu0 0.0
      %1922 = vmatprep.subr.mxu0 0.0
      %1923 = vmatpush1.msra.mxu0 0.0
      %1924 = vmatprep.subr.mxu0 0.0
      %1925 = vmatpush1.msra.mxu0 0.0
      %1926 = vmatprep.subr.mxu0 0.0
      %1927 = vmatpush1.msra.mxu0 0.0
      %1928 = vmatprep.subr.mxu0 0.0
      %1929 = vmatpush1.msra.mxu0 0.0
      %1930 = vmatprep.subr.mxu0 0.0
      %1931 = vmatpush1.msra.mxu0 0.0
      %1932 = vmatprep.subr.mxu0 0.0
      %1933 = vmatpush1.msra.mxu0 0.0
      %1934 = vmatprep.subr.mxu0 0.0
      %1935 = vmatpush1.msra.mxu0 0.0
      %1936 = vmatprep.subr.mxu0 0.0
      %1937 = vmatpush1.msra.mxu0 0.0
      %1938 = vmatprep.subr.mxu0 0.0
      %1939 = vmatpush1.msra.mxu0 0.0
      %1940 = vmatprep.subr.mxu0 0.0
      %1941 = vmatpush1.msra.mxu0 0.0
      %1942 = vmatprep.subr.mxu0 0.0
      %1943 = vmatpush1.msra.mxu0 0.0
      %1944 = vmatprep.subr.mxu0 0.0
      %1945 = vmatpush1.msra.mxu0 0.0
      %1946 = vmatprep.mubr.f32.mxu0 0.0
      %1947 = vmatmul.mubr.f32.gmra.mrb[0].mxu0 %v1667
      %v1948 = vpop.f32.mrb[0].mxu0
      %v1949 = vadd.f32 0.0, %v1948
      %v1950 = vpop.f32.mrb[0].mxu0
      %v1951 = vadd.f32 0.0, %v1950
      %1952 = vdwg.mxu0
      %1953 = vmatprep.subr.mxu0 %v1653
      %1954 = vmatpush1.msra.mxu0 %v1652
      %1955 = vmatprep.subr.mxu0 0.0
      %1956 = vmatpush1.msra.mxu0 0.0
      %1957 = vmatprep.subr.mxu0 0.0
      %1958 = vmatpush1.msra.mxu0 0.0
      %1959 = vmatprep.subr.mxu0 0.0
      %1960 = vmatpush1.msra.mxu0 0.0
      %1961 = vmatprep.subr.mxu0 0.0
      %1962 = vmatpush1.msra.mxu0 0.0
      %1963 = vmatprep.subr.mxu0 0.0
      %1964 = vmatpush1.msra.mxu0 0.0
      %1965 = vmatprep.subr.mxu0 0.0
      %1966 = vmatpush1.msra.mxu0 0.0
      %1967 = vmatprep.subr.mxu0 0.0
      %1968 = vmatpush1.msra.mxu0 0.0
      %1969 = vmatprep.subr.mxu0 0.0
      %1970 = vmatpush1.msra.mxu0 0.0
      %1971 = vmatprep.subr.mxu0 0.0
      %1972 = vmatpush1.msra.mxu0 0.0
      %1973 = vmatprep.subr.mxu0 0.0
      %1974 = vmatpush1.msra.mxu0 0.0
      %1975 = vmatprep.subr.mxu0 0.0
      %1976 = vmatpush1.msra.mxu0 0.0
      %1977 = vmatprep.subr.mxu0 0.0
      %1978 = vmatpush1.msra.mxu0 0.0
      %1979 = vmatprep.subr.mxu0 0.0
      %1980 = vmatpush1.msra.mxu0 0.0
      %1981 = vmatprep.subr.mxu0 0.0
      %1982 = vmatpush1.msra.mxu0 0.0
      %1983 = vmatprep.subr.mxu0 0.0
      %1984 = vmatpush1.msra.mxu0 0.0
      %1985 = vmatprep.subr.mxu0 0.0
      %1986 = vmatpush1.msra.mxu0 0.0
      %1987 = vmatprep.subr.mxu0 0.0
      %1988 = vmatpush1.msra.mxu0 0.0
      %1989 = vmatprep.subr.mxu0 0.0
      %1990 = vmatpush1.msra.mxu0 0.0
      %1991 = vmatprep.subr.mxu0 0.0
      %1992 = vmatpush1.msra.mxu0 0.0
      %1993 = vmatprep.subr.mxu0 0.0
      %1994 = vmatpush1.msra.mxu0 0.0
      %1995 = vmatprep.subr.mxu0 0.0
      %1996 = vmatpush1.msra.mxu0 0.0
      %1997 = vmatprep.subr.mxu0 0.0
      %1998 = vmatpush1.msra.mxu0 0.0
      %1999 = vmatprep.subr.mxu0 0.0
      %2000 = vmatpush1.msra.mxu0 0.0
      %2001 = vmatprep.subr.mxu0 0.0
      %2002 = vmatpush1.msra.mxu0 0.0
      %2003 = vmatprep.subr.mxu0 0.0
      %2004 = vmatpush1.msra.mxu0 0.0
      %2005 = vmatprep.subr.mxu0 0.0
      %2006 = vmatpush1.msra.mxu0 0.0
      %2007 = vmatprep.subr.mxu0 0.0
      %2008 = vmatpush1.msra.mxu0 0.0
      %2009 = vmatprep.subr.mxu0 0.0
      %2010 = vmatpush1.msra.mxu0 0.0
      %2011 = vmatprep.subr.mxu0 0.0
      %2012 = vmatpush1.msra.mxu0 0.0
      %2013 = vmatprep.subr.mxu0 0.0
      %2014 = vmatpush1.msra.mxu0 0.0
      %2015 = vmatprep.subr.mxu0 0.0
      %2016 = vmatpush1.msra.mxu0 0.0
      %2017 = vmatprep.mubr.f32.mxu0 0.0
      %2018 = vmatmul.mubr.f32.gmra.mrb[0].mxu0 %v1667
      %v2019 = vpop.f32.mrb[0].mxu0
      %v2020 = vadd.f32 0.0, %v2019
      %v2021 = vpop.f32.mrb[0].mxu0
      %v2022 = vadd.f32 0.0, %v2021
      %2023 = vdwg.mxu0
      %2024 = vmatprep.subr.mxu0 0.0
      %2025 = vmatpush1.msra.mxu0 %v1654
      %2026 = vmatprep.subr.mxu0 0.0
      %2027 = vmatpush1.msra.mxu0 0.0
      %2028 = vmatprep.subr.mxu0 0.0
      %2029 = vmatpush1.msra.mxu0 0.0
      %2030 = vmatprep.subr.mxu0 0.0
      %2031 = vmatpush1.msra.mxu0 0.0
      %2032 = vmatprep.subr.mxu0 0.0
      %2033 = vmatpush1.msra.mxu0 0.0
      %2034 = vmatprep.subr.mxu0 0.0
      %2035 = vmatpush1.msra.mxu0 0.0
      %2036 = vmatprep.subr.mxu0 0.0
      %2037 = vmatpush1.msra.mxu0 0.0
      %2038 = vmatprep.subr.mxu0 0.0
      %2039 = vmatpush1.msra.mxu0 0.0
      %2040 = vmatprep.subr.mxu0 0.0
      %2041 = vmatpush1.msra.mxu0 0.0
      %2042 = vmatprep.subr.mxu0 0.0
      %2043 = vmatpush1.msra.mxu0 0.0
      %2044 = vmatprep.subr.mxu0 0.0
      %2045 = vmatpush1.msra.mxu0 0.0
      %2046 = vmatprep.subr.mxu0 0.0
      %2047 = vmatpush1.msra.mxu0 0.0
      %2048 = vmatprep.subr.mxu0 0.0
      %2049 = vmatpush1.msra.mxu0 0.0
      %2050 = vmatprep.subr.mxu0 0.0
      %2051 = vmatpush1.msra.mxu0 0.0
      %2052 = vmatprep.subr.mxu0 0.0
      %2053 = vmatpush1.msra.mxu0 0.0
      %2054 = vmatprep.subr.mxu0 0.0
      %2055 = vmatpush1.msra.mxu0 0.0
      %2056 = vmatprep.subr.mxu0 0.0
      %2057 = vmatpush1.msra.mxu0 0.0
      %2058 = vmatprep.subr.mxu0 0.0
      %2059 = vmatpush1.msra.mxu0 0.0
      %2060 = vmatprep.subr.mxu0 0.0
      %2061 = vmatpush1.msra.mxu0 0.0
      %2062 = vmatprep.subr.mxu0 0.0
      %2063 = vmatpush1.msra.mxu0 0.0
      %2064 = vmatprep.subr.mxu0 0.0
      %2065 = vmatpush1.msra.mxu0 0.0
      %2066 = vmatprep.subr.mxu0 0.0
      %2067 = vmatpush1.msra.mxu0 0.0
      %2068 = vmatprep.subr.mxu0 0.0
      %2069 = vmatpush1.msra.mxu0 0.0
      %2070 = vmatprep.subr.mxu0 0.0
      %2071 = vmatpush1.msra.mxu0 0.0
      %2072 = vmatprep.subr.mxu0 0.0
      %2073 = vmatpush1.msra.mxu0 0.0
      %2074 = vmatprep.subr.mxu0 0.0
      %2075 = vmatpush1.msra.mxu0 0.0
      %2076 = vmatprep.subr.mxu0 0.0
      %2077 = vmatpush1.msra.mxu0 0.0
      %2078 = vmatprep.subr.mxu0 0.0
      %2079 = vmatpush1.msra.mxu0 0.0
      %2080 = vmatprep.subr.mxu0 0.0
      %2081 = vmatpush1.msra.mxu0 0.0
      %2082 = vmatprep.subr.mxu0 0.0
      %2083 = vmatpush1.msra.mxu0 0.0
      %2084 = vmatprep.subr.mxu0 0.0
      %2085 = vmatpush1.msra.mxu0 0.0
      %2086 = vmatprep.subr.mxu0 0.0
      %2087 = vmatpush1.msra.mxu0 0.0
      %2088 = vmatprep.mubr.f32.mxu0 0.0
      %2089 = vmatmul.mubr.f32.gmra.mrb[0].mxu0 %v1667
      %v2090 = vpop.f32.mrb[0].mxu0
      %v2091 = vadd.f32 0.0, %v2090
      %v2092 = vpop.f32.mrb[0].mxu0
      %2093 = vdwg.mxu0
      %v2094 = vadd.f32 %v1606, %v1736
      %v2095 = vadd.f32 %v1607, %v1738
      %v2096 = vadd.f32 %v1608, %v1807
      %v2097 = vadd.f32 %v1609, %v1809
      %v2098 = vadd.f32 %v1610, %v1878
      %v2099 = vadd.f32 %v1611, %v1880
      %v2100 = vadd.f32 %v1612, %v1949
      %v2101 = vadd.f32 %v1613, %v1951
      %v2102 = vadd.f32 %v1614, %v2020
      %v2103 = vadd.f32 %v1615, %v2022
      %v2104 = vadd.f32 %v1616, %v2091
      %s2105 = scalar_lea.vmem %s1, 32
      %v2106 = vld [vmem:[%s2105] sm:$0xff]
      %2107 = vrot.lane.b32.xlu0 %v198, 109
      %v2108 = vpop.permute.xlu0 %2107
      %2109 = vrot.lane.b32.xlu0 %v199, 109
      %v2110 = vpop.permute.xlu0 %2109
      %2111 = vrot.lane.b32.xlu0 %v200, 109
      %v2112 = vpop.permute.xlu0 %2111
      %2113 = vrot.lane.b32.xlu0 %v201, 109
      %v2114 = vpop.permute.xlu0 %2113
      %2115 = vrot.lane.b32.xlu0 %v202, 109
      %v2116 = vpop.permute.xlu0 %2115
      %2117 = vrot.lane.b32.xlu0 %v203, 109
      %v2118 = vpop.permute.xlu0 %2117
      %2119 = vrot.lane.b32.xlu0 %v204, 109
      %v2120 = vpop.permute.xlu0 %2119
      %2121 = vrot.lane.b32.xlu0 %v205, 109
      %v2122 = vpop.permute.xlu0 %2121
      %2123 = vrot.lane.b32.xlu0 %v206, 109
      %v2124 = vpop.permute.xlu0 %2123
      %2125 = vrot.lane.b32.xlu0 %v207, 109
      %v2126 = vpop.permute.xlu0 %2125
      %2127 = vrot.lane.b32.xlu0 %v208, 109
      %v2128 = vpop.permute.xlu0 %2127
      %2129 = vrot.lane.b32.xlu0 %v210, 109
      %v2130 = vpop.permute.xlu0 %2129
      %vm2131 = vcmask 891904
      %v2132 = vsel %vm2131, %v2108, %v2110
      %v2133 = vsel %vm2131, %v2110, %v2112
      %v2134 = vsel %vm2131, %v2112, %v2114
      %v2135 = vsel %vm2131, %v2114, %v2116
      %v2136 = vsel %vm2131, %v2116, %v2118
      %v2137 = vsel %vm2131, %v2118, %v2120
      %v2138 = vsel %vm2131, %v2120, %v2122
      %v2139 = vsel %vm2131, %v2122, %v2124
      %v2140 = vsel %vm2131, %v2124, %v2126
      %v2141 = vsel %vm2131, %v2126, %v2128
      %v2142 = vsel %vm2131, %v2128, %v2130
      %v2155 = vsel %vm272, %v2106, 0
      %2157 = vmatprep.subr.mxu0 %v2133
      %2158 = vmatpush1.msra.mxu0 %v2132
      %2159 = vmatprep.subr.mxu0 0.0
      %2160 = vmatpush1.msra.mxu0 0.0
      %2161 = vmatprep.subr.mxu0 0.0
      %2162 = vmatpush1.msra.mxu0 0.0
      %2163 = vmatprep.subr.mxu0 0.0
      %2164 = vmatpush1.msra.mxu0 0.0
      %2165 = vmatprep.subr.mxu0 0.0
      %2166 = vmatpush1.msra.mxu0 0.0
      %2167 = vmatprep.subr.mxu0 0.0
      %2168 = vmatpush1.msra.mxu0 0.0
      %2169 = vmatprep.subr.mxu0 0.0
      %2170 = vmatpush1.msra.mxu0 0.0
      %2171 = vmatprep.subr.mxu0 0.0
      %2172 = vmatpush1.msra.mxu0 0.0
      %2173 = vmatprep.subr.mxu0 0.0
      %2174 = vmatpush1.msra.mxu0 0.0
      %2175 = vmatprep.subr.mxu0 0.0
      %2176 = vmatpush1.msra.mxu0 0.0
      %2177 = vmatprep.subr.mxu0 0.0
      %2178 = vmatpush1.msra.mxu0 0.0
      %2179 = vmatprep.subr.mxu0 0.0
      %2180 = vmatpush1.msra.mxu0 0.0
      %2181 = vmatprep.subr.mxu0 0.0
      %2182 = vmatpush1.msra.mxu0 0.0
      %2183 = vmatprep.subr.mxu0 0.0
      %2184 = vmatpush1.msra.mxu0 0.0
      %2185 = vmatprep.subr.mxu0 0.0
      %2186 = vmatpush1.msra.mxu0 0.0
      %2187 = vmatprep.subr.mxu0 0.0
      %2188 = vmatpush1.msra.mxu0 0.0
      %2189 = vmatprep.subr.mxu0 0.0
      %2190 = vmatpush1.msra.mxu0 0.0
      %2191 = vmatprep.subr.mxu0 0.0
      %2192 = vmatpush1.msra.mxu0 0.0
      %2193 = vmatprep.subr.mxu0 0.0
      %2194 = vmatpush1.msra.mxu0 0.0
      %2195 = vmatprep.subr.mxu0 0.0
      %2196 = vmatpush1.msra.mxu0 0.0
      %2197 = vmatprep.subr.mxu0 0.0
      %2198 = vmatpush1.msra.mxu0 0.0
      %2199 = vmatprep.subr.mxu0 0.0
      %2200 = vmatpush1.msra.mxu0 0.0
      %2201 = vmatprep.subr.mxu0 0.0
      %2202 = vmatpush1.msra.mxu0 0.0
      %2203 = vmatprep.subr.mxu0 0.0
      %2204 = vmatpush1.msra.mxu0 0.0
      %2205 = vmatprep.subr.mxu0 0.0
      %2206 = vmatpush1.msra.mxu0 0.0
      %2207 = vmatprep.subr.mxu0 0.0
      %2208 = vmatpush1.msra.mxu0 0.0
      %2209 = vmatprep.subr.mxu0 0.0
      %2210 = vmatpush1.msra.mxu0 0.0
      %2211 = vmatprep.subr.mxu0 0.0
      %2212 = vmatpush1.msra.mxu0 0.0
      %2213 = vmatprep.subr.mxu0 0.0
      %2214 = vmatpush1.msra.mxu0 0.0
      %2215 = vmatprep.subr.mxu0 0.0
      %2216 = vmatpush1.msra.mxu0 0.0
      %2217 = vmatprep.subr.mxu0 0.0
      %2218 = vmatpush1.msra.mxu0 0.0
      %2219 = vmatprep.subr.mxu0 0.0
      %2220 = vmatpush1.msra.mxu0 0.0
      %2221 = vmatprep.mubr.f32.mxu0 0.0
      %2222 = vmatmul.mubr.f32.gmra.mrb[0].mxu0 %v2155
      %v2223 = vpop.f32.mrb[0].mxu0
      %v2224 = vadd.f32 0.0, %v2223
      %v2225 = vpop.f32.mrb[0].mxu0
      %v2226 = vadd.f32 0.0, %v2225
      %2227 = vdwg.mxu0
      %2228 = vmatprep.subr.mxu0 %v2135
      %2229 = vmatpush1.msra.mxu0 %v2134
      %2230 = vmatprep.subr.mxu0 0.0
      %2231 = vmatpush1.msra.mxu0 0.0
      %2232 = vmatprep.subr.mxu0 0.0
      %2233 = vmatpush1.msra.mxu0 0.0
      %2234 = vmatprep.subr.mxu0 0.0
      %2235 = vmatpush1.msra.mxu0 0.0
      %2236 = vmatprep.subr.mxu0 0.0
      %2237 = vmatpush1.msra.mxu0 0.0
      %2238 = vmatprep.subr.mxu0 0.0
      %2239 = vmatpush1.msra.mxu0 0.0
      %2240 = vmatprep.subr.mxu0 0.0
      %2241 = vmatpush1.msra.mxu0 0.0
      %2242 = vmatprep.subr.mxu0 0.0
      %2243 = vmatpush1.msra.mxu0 0.0
      %2244 = vmatprep.subr.mxu0 0.0
      %2245 = vmatpush1.msra.mxu0 0.0
      %2246 = vmatprep.subr.mxu0 0.0
      %2247 = vmatpush1.msra.mxu0 0.0
      %2248 = vmatprep.subr.mxu0 0.0
      %2249 = vmatpush1.msra.mxu0 0.0
      %2250 = vmatprep.subr.mxu0 0.0
      %2251 = vmatpush1.msra.mxu0 0.0
      %2252 = vmatprep.subr.mxu0 0.0
      %2253 = vmatpush1.msra.mxu0 0.0
      %2254 = vmatprep.subr.mxu0 0.0
      %2255 = vmatpush1.msra.mxu0 0.0
      %2256 = vmatprep.subr.mxu0 0.0
      %2257 = vmatpush1.msra.mxu0 0.0
      %2258 = vmatprep.subr.mxu0 0.0
      %2259 = vmatpush1.msra.mxu0 0.0
      %2260 = vmatprep.subr.mxu0 0.0
      %2261 = vmatpush1.msra.mxu0 0.0
      %2262 = vmatprep.subr.mxu0 0.0
      %2263 = vmatpush1.msra.mxu0 0.0
      %2264 = vmatprep.subr.mxu0 0.0
      %2265 = vmatpush1.msra.mxu0 0.0
      %2266 = vmatprep.subr.mxu0 0.0
      %2267 = vmatpush1.msra.mxu0 0.0
      %2268 = vmatprep.subr.mxu0 0.0
      %2269 = vmatpush1.msra.mxu0 0.0
      %2270 = vmatprep.subr.mxu0 0.0
      %2271 = vmatpush1.msra.mxu0 0.0
      %2272 = vmatprep.subr.mxu0 0.0
      %2273 = vmatpush1.msra.mxu0 0.0
      %2274 = vmatprep.subr.mxu0 0.0
      %2275 = vmatpush1.msra.mxu0 0.0
      %2276 = vmatprep.subr.mxu0 0.0
      %2277 = vmatpush1.msra.mxu0 0.0
      %2278 = vmatprep.subr.mxu0 0.0
      %2279 = vmatpush1.msra.mxu0 0.0
      %2280 = vmatprep.subr.mxu0 0.0
      %2281 = vmatpush1.msra.mxu0 0.0
      %2282 = vmatprep.subr.mxu0 0.0
      %2283 = vmatpush1.msra.mxu0 0.0
      %2284 = vmatprep.subr.mxu0 0.0
      %2285 = vmatpush1.msra.mxu0 0.0
      %2286 = vmatprep.subr.mxu0 0.0
      %2287 = vmatpush1.msra.mxu0 0.0
      %2288 = vmatprep.subr.mxu0 0.0
      %2289 = vmatpush1.msra.mxu0 0.0
      %2290 = vmatprep.subr.mxu0 0.0
      %2291 = vmatpush1.msra.mxu0 0.0
      %2292 = vmatprep.mubr.f32.mxu0 0.0
      %2293 = vmatmul.mubr.f32.gmra.mrb[0].mxu0 %v2155
      %v2294 = vpop.f32.mrb[0].mxu0
      %v2295 = vadd.f32 0.0, %v2294
      %v2296 = vpop.f32.mrb[0].mxu0
      %v2297 = vadd.f32 0.0, %v2296
      %2298 = vdwg.mxu0
      %2299 = vmatprep.subr.mxu0 %v2137
      %2300 = vmatpush1.msra.mxu0 %v2136
      %2301 = vmatprep.subr.mxu0 0.0
      %2302 = vmatpush1.msra.mxu0 0.0
      %2303 = vmatprep.subr.mxu0 0.0
      %2304 = vmatpush1.msra.mxu0 0.0
      %2305 = vmatprep.subr.mxu0 0.0
      %2306 = vmatpush1.msra.mxu0 0.0
      %2307 = vmatprep.subr.mxu0 0.0
      %2308 = vmatpush1.msra.mxu0 0.0
      %2309 = vmatprep.subr.mxu0 0.0
      %2310 = vmatpush1.msra.mxu0 0.0
      %2311 = vmatprep.subr.mxu0 0.0
      %2312 = vmatpush1.msra.mxu0 0.0
      %2313 = vmatprep.subr.mxu0 0.0
      %2314 = vmatpush1.msra.mxu0 0.0
      %2315 = vmatprep.subr.mxu0 0.0
      %2316 = vmatpush1.msra.mxu0 0.0
      %2317 = vmatprep.subr.mxu0 0.0
      %2318 = vmatpush1.msra.mxu0 0.0
      %2319 = vmatprep.subr.mxu0 0.0
      %2320 = vmatpush1.msra.mxu0 0.0
      %2321 = vmatprep.subr.mxu0 0.0
      %2322 = vmatpush1.msra.mxu0 0.0
      %2323 = vmatprep.subr.mxu0 0.0
      %2324 = vmatpush1.msra.mxu0 0.0
      %2325 = vmatprep.subr.mxu0 0.0
      %2326 = vmatpush1.msra.mxu0 0.0
      %2327 = vmatprep.subr.mxu0 0.0
      %2328 = vmatpush1.msra.mxu0 0.0
      %2329 = vmatprep.subr.mxu0 0.0
      %2330 = vmatpush1.msra.mxu0 0.0
      %2331 = vmatprep.subr.mxu0 0.0
      %2332 = vmatpush1.msra.mxu0 0.0
      %2333 = vmatprep.subr.mxu0 0.0
      %2334 = vmatpush1.msra.mxu0 0.0
      %2335 = vmatprep.subr.mxu0 0.0
      %2336 = vmatpush1.msra.mxu0 0.0
      %2337 = vmatprep.subr.mxu0 0.0
      %2338 = vmatpush1.msra.mxu0 0.0
      %2339 = vmatprep.subr.mxu0 0.0
      %2340 = vmatpush1.msra.mxu0 0.0
      %2341 = vmatprep.subr.mxu0 0.0
      %2342 = vmatpush1.msra.mxu0 0.0
      %2343 = vmatprep.subr.mxu0 0.0
      %2344 = vmatpush1.msra.mxu0 0.0
      %2345 = vmatprep.subr.mxu0 0.0
      %2346 = vmatpush1.msra.mxu0 0.0
      %2347 = vmatprep.subr.mxu0 0.0
      %2348 = vmatpush1.msra.mxu0 0.0
      %2349 = vmatprep.subr.mxu0 0.0
      %2350 = vmatpush1.msra.mxu0 0.0
      %2351 = vmatprep.subr.mxu0 0.0
      %2352 = vmatpush1.msra.mxu0 0.0
      %2353 = vmatprep.subr.mxu0 0.0
      %2354 = vmatpush1.msra.mxu0 0.0
      %2355 = vmatprep.subr.mxu0 0.0
      %2356 = vmatpush1.msra.mxu0 0.0
      %2357 = vmatprep.subr.mxu0 0.0
      %2358 = vmatpush1.msra.mxu0 0.0
      %2359 = vmatprep.subr.mxu0 0.0
      %2360 = vmatpush1.msra.mxu0 0.0
      %2361 = vmatprep.subr.mxu0 0.0
      %2362 = vmatpush1.msra.mxu0 0.0
      %2363 = vmatprep.mubr.f32.mxu0 0.0
      %2364 = vmatmul.mubr.f32.gmra.mrb[0].mxu0 %v2155
      %v2365 = vpop.f32.mrb[0].mxu0
      %v2366 = vadd.f32 0.0, %v2365
      %v2367 = vpop.f32.mrb[0].mxu0
      %v2368 = vadd.f32 0.0, %v2367
      %2369 = vdwg.mxu0
      %2370 = vmatprep.subr.mxu0 %v2139
      %2371 = vmatpush1.msra.mxu0 %v2138
      %2372 = vmatprep.subr.mxu0 0.0
      %2373 = vmatpush1.msra.mxu0 0.0
      %2374 = vmatprep.subr.mxu0 0.0
      %2375 = vmatpush1.msra.mxu0 0.0
      %2376 = vmatprep.subr.mxu0 0.0
      %2377 = vmatpush1.msra.mxu0 0.0
      %2378 = vmatprep.subr.mxu0 0.0
      %2379 = vmatpush1.msra.mxu0 0.0
      %2380 = vmatprep.subr.mxu0 0.0
      %2381 = vmatpush1.msra.mxu0 0.0
      %2382 = vmatprep.subr.mxu0 0.0
      %2383 = vmatpush1.msra.mxu0 0.0
      %2384 = vmatprep.subr.mxu0 0.0
      %2385 = vmatpush1.msra.mxu0 0.0
      %2386 = vmatprep.subr.mxu0 0.0
      %2387 = vmatpush1.msra.mxu0 0.0
      %2388 = vmatprep.subr.mxu0 0.0
      %2389 = vmatpush1.msra.mxu0 0.0
      %2390 = vmatprep.subr.mxu0 0.0
      %2391 = vmatpush1.msra.mxu0 0.0
      %2392 = vmatprep.subr.mxu0 0.0
      %2393 = vmatpush1.msra.mxu0 0.0
      %2394 = vmatprep.subr.mxu0 0.0
      %2395 = vmatpush1.msra.mxu0 0.0
      %2396 = vmatprep.subr.mxu0 0.0
      %2397 = vmatpush1.msra.mxu0 0.0
      %2398 = vmatprep.subr.mxu0 0.0
      %2399 = vmatpush1.msra.mxu0 0.0
      %2400 = vmatprep.subr.mxu0 0.0
      %2401 = vmatpush1.msra.mxu0 0.0
      %2402 = vmatprep.subr.mxu0 0.0
      %2403 = vmatpush1.msra.mxu0 0.0
      %2404 = vmatprep.subr.mxu0 0.0
      %2405 = vmatpush1.msra.mxu0 0.0
      %2406 = vmatprep.subr.mxu0 0.0
      %2407 = vmatpush1.msra.mxu0 0.0
      %2408 = vmatprep.subr.mxu0 0.0
      %2409 = vmatpush1.msra.mxu0 0.0
      %2410 = vmatprep.subr.mxu0 0.0
      %2411 = vmatpush1.msra.mxu0 0.0
      %2412 = vmatprep.subr.mxu0 0.0
      %2413 = vmatpush1.msra.mxu0 0.0
      %2414 = vmatprep.subr.mxu0 0.0
      %2415 = vmatpush1.msra.mxu0 0.0
      %2416 = vmatprep.subr.mxu0 0.0
      %2417 = vmatpush1.msra.mxu0 0.0
      %2418 = vmatprep.subr.mxu0 0.0
      %2419 = vmatpush1.msra.mxu0 0.0
      %2420 = vmatprep.subr.mxu0 0.0
      %2421 = vmatpush1.msra.mxu0 0.0
      %2422 = vmatprep.subr.mxu0 0.0
      %2423 = vmatpush1.msra.mxu0 0.0
      %2424 = vmatprep.subr.mxu0 0.0
      %2425 = vmatpush1.msra.mxu0 0.0
      %2426 = vmatprep.subr.mxu0 0.0
      %2427 = vmatpush1.msra.mxu0 0.0
      %2428 = vmatprep.subr.mxu0 0.0
      %2429 = vmatpush1.msra.mxu0 0.0
      %2430 = vmatprep.subr.mxu0 0.0
      %2431 = vmatpush1.msra.mxu0 0.0
      %2432 = vmatprep.subr.mxu0 0.0
      %2433 = vmatpush1.msra.mxu0 0.0
      %2434 = vmatprep.mubr.f32.mxu0 0.0
      %2435 = vmatmul.mubr.f32.gmra.mrb[0].mxu0 %v2155
      %v2436 = vpop.f32.mrb[0].mxu0
      %v2437 = vadd.f32 0.0, %v2436
      %v2438 = vpop.f32.mrb[0].mxu0
      %v2439 = vadd.f32 0.0, %v2438
      %2440 = vdwg.mxu0
      %2441 = vmatprep.subr.mxu0 %v2141
      %2442 = vmatpush1.msra.mxu0 %v2140
      %2443 = vmatprep.subr.mxu0 0.0
      %2444 = vmatpush1.msra.mxu0 0.0
      %2445 = vmatprep.subr.mxu0 0.0
      %2446 = vmatpush1.msra.mxu0 0.0
      %2447 = vmatprep.subr.mxu0 0.0
      %2448 = vmatpush1.msra.mxu0 0.0
      %2449 = vmatprep.subr.mxu0 0.0
      %2450 = vmatpush1.msra.mxu0 0.0
      %2451 = vmatprep.subr.mxu0 0.0
      %2452 = vmatpush1.msra.mxu0 0.0
      %2453 = vmatprep.subr.mxu0 0.0
      %2454 = vmatpush1.msra.mxu0 0.0
      %2455 = vmatprep.subr.mxu0 0.0
      %2456 = vmatpush1.msra.mxu0 0.0
      %2457 = vmatprep.subr.mxu0 0.0
      %2458 = vmatpush1.msra.mxu0 0.0
      %2459 = vmatprep.subr.mxu0 0.0
      %2460 = vmatpush1.msra.mxu0 0.0
      %2461 = vmatprep.subr.mxu0 0.0
      %2462 = vmatpush1.msra.mxu0 0.0
      %2463 = vmatprep.subr.mxu0 0.0
      %2464 = vmatpush1.msra.mxu0 0.0
      %2465 = vmatprep.subr.mxu0 0.0
      %2466 = vmatpush1.msra.mxu0 0.0
      %2467 = vmatprep.subr.mxu0 0.0
      %2468 = vmatpush1.msra.mxu0 0.0
      %2469 = vmatprep.subr.mxu0 0.0
      %2470 = vmatpush1.msra.mxu0 0.0
      %2471 = vmatprep.subr.mxu0 0.0
      %2472 = vmatpush1.msra.mxu0 0.0
      %2473 = vmatprep.subr.mxu0 0.0
      %2474 = vmatpush1.msra.mxu0 0.0
      %2475 = vmatprep.subr.mxu0 0.0
      %2476 = vmatpush1.msra.mxu0 0.0
      %2477 = vmatprep.subr.mxu0 0.0
      %2478 = vmatpush1.msra.mxu0 0.0
      %2479 = vmatprep.subr.mxu0 0.0
      %2480 = vmatpush1.msra.mxu0 0.0
      %2481 = vmatprep.subr.mxu0 0.0
      %2482 = vmatpush1.msra.mxu0 0.0
      %2483 = vmatprep.subr.mxu0 0.0
      %2484 = vmatpush1.msra.mxu0 0.0
      %2485 = vmatprep.subr.mxu0 0.0
      %2486 = vmatpush1.msra.mxu0 0.0
      %2487 = vmatprep.subr.mxu0 0.0
      %2488 = vmatpush1.msra.mxu0 0.0
      %2489 = vmatprep.subr.mxu0 0.0
      %2490 = vmatpush1.msra.mxu0 0.0
      %2491 = vmatprep.subr.mxu0 0.0
      %2492 = vmatpush1.msra.mxu0 0.0
      %2493 = vmatprep.subr.mxu0 0.0
      %2494 = vmatpush1.msra.mxu0 0.0
      %2495 = vmatprep.subr.mxu0 0.0
      %2496 = vmatpush1.msra.mxu0 0.0
      %2497 = vmatprep.subr.mxu0 0.0
      %2498 = vmatpush1.msra.mxu0 0.0
      %2499 = vmatprep.subr.mxu0 0.0
      %2500 = vmatpush1.msra.mxu0 0.0
      %2501 = vmatprep.subr.mxu0 0.0
      %2502 = vmatpush1.msra.mxu0 0.0
      %2503 = vmatprep.subr.mxu0 0.0
      %2504 = vmatpush1.msra.mxu0 0.0
      %2505 = vmatprep.mubr.f32.mxu0 0.0
      %2506 = vmatmul.mubr.f32.gmra.mrb[0].mxu0 %v2155
      %v2507 = vpop.f32.mrb[0].mxu0
      %v2508 = vadd.f32 0.0, %v2507
      %v2509 = vpop.f32.mrb[0].mxu0
      %v2510 = vadd.f32 0.0, %v2509
      %2511 = vdwg.mxu0
      %2512 = vmatprep.subr.mxu0 0.0
      %2513 = vmatpush1.msra.mxu0 %v2142
      %2514 = vmatprep.subr.mxu0 0.0
      %2515 = vmatpush1.msra.mxu0 0.0
      %2516 = vmatprep.subr.mxu0 0.0
      %2517 = vmatpush1.msra.mxu0 0.0
      %2518 = vmatprep.subr.mxu0 0.0
      %2519 = vmatpush1.msra.mxu0 0.0
      %2520 = vmatprep.subr.mxu0 0.0
      %2521 = vmatpush1.msra.mxu0 0.0
      %2522 = vmatprep.subr.mxu0 0.0
      %2523 = vmatpush1.msra.mxu0 0.0
      %2524 = vmatprep.subr.mxu0 0.0
      %2525 = vmatpush1.msra.mxu0 0.0
      %2526 = vmatprep.subr.mxu0 0.0
      %2527 = vmatpush1.msra.mxu0 0.0
      %2528 = vmatprep.subr.mxu0 0.0
      %2529 = vmatpush1.msra.mxu0 0.0
      %2530 = vmatprep.subr.mxu0 0.0
      %2531 = vmatpush1.msra.mxu0 0.0
      %2532 = vmatprep.subr.mxu0 0.0
      %2533 = vmatpush1.msra.mxu0 0.0
      %2534 = vmatprep.subr.mxu0 0.0
      %2535 = vmatpush1.msra.mxu0 0.0
      %2536 = vmatprep.subr.mxu0 0.0
      %2537 = vmatpush1.msra.mxu0 0.0
      %2538 = vmatprep.subr.mxu0 0.0
      %2539 = vmatpush1.msra.mxu0 0.0
      %2540 = vmatprep.subr.mxu0 0.0
      %2541 = vmatpush1.msra.mxu0 0.0
      %2542 = vmatprep.subr.mxu0 0.0
      %2543 = vmatpush1.msra.mxu0 0.0
      %2544 = vmatprep.subr.mxu0 0.0
      %2545 = vmatpush1.msra.mxu0 0.0
      %2546 = vmatprep.subr.mxu0 0.0
      %2547 = vmatpush1.msra.mxu0 0.0
      %2548 = vmatprep.subr.mxu0 0.0
      %2549 = vmatpush1.msra.mxu0 0.0
      %2550 = vmatprep.subr.mxu0 0.0
      %2551 = vmatpush1.msra.mxu0 0.0
      %2552 = vmatprep.subr.mxu0 0.0
      %2553 = vmatpush1.msra.mxu0 0.0
      %2554 = vmatprep.subr.mxu0 0.0
      %2555 = vmatpush1.msra.mxu0 0.0
      %2556 = vmatprep.subr.mxu0 0.0
      %2557 = vmatpush1.msra.mxu0 0.0
      %2558 = vmatprep.subr.mxu0 0.0
      %2559 = vmatpush1.msra.mxu0 0.0
      %2560 = vmatprep.subr.mxu0 0.0
      %2561 = vmatpush1.msra.mxu0 0.0
      %2562 = vmatprep.subr.mxu0 0.0
      %2563 = vmatpush1.msra.mxu0 0.0
      %2564 = vmatprep.subr.mxu0 0.0
      %2565 = vmatpush1.msra.mxu0 0.0
      %2566 = vmatprep.subr.mxu0 0.0
      %2567 = vmatpush1.msra.mxu0 0.0
      %2568 = vmatprep.subr.mxu0 0.0
      %2569 = vmatpush1.msra.mxu0 0.0
      %2570 = vmatprep.subr.mxu0 0.0
      %2571 = vmatpush1.msra.mxu0 0.0
      %2572 = vmatprep.subr.mxu0 0.0
      %2573 = vmatpush1.msra.mxu0 0.0
      %2574 = vmatprep.subr.mxu0 0.0
      %2575 = vmatpush1.msra.mxu0 0.0
      %2576 = vmatprep.mubr.f32.mxu0 0.0
      %2577 = vmatmul.mubr.f32.gmra.mrb[0].mxu0 %v2155
      %v2578 = vpop.f32.mrb[0].mxu0
      %v2579 = vadd.f32 0.0, %v2578
      %v2580 = vpop.f32.mrb[0].mxu0
      %2581 = vdwg.mxu0
      %v2582 = vadd.f32 %v2094, %v2224
      %v2583 = vadd.f32 %v2095, %v2226
      %v2584 = vadd.f32 %v2096, %v2295
      %v2585 = vadd.f32 %v2097, %v2297
      %v2586 = vadd.f32 %v2098, %v2366
      %v2587 = vadd.f32 %v2099, %v2368
      %v2588 = vadd.f32 %v2100, %v2437
      %v2589 = vadd.f32 %v2101, %v2439
      %v2590 = vadd.f32 %v2102, %v2508
      %v2591 = vadd.f32 %v2103, %v2510
      %v2592 = vadd.f32 %v2104, %v2579
      %s2593 = scalar_lea.vmem %s1, 40
      %v2594 = vld [vmem:[%s2593] sm:$0xff]
      %2595 = vrot.lane.b32.xlu0 %v198, 108
      %v2596 = vpop.permute.xlu0 %2595
      %2597 = vrot.lane.b32.xlu0 %v199, 108
      %v2598 = vpop.permute.xlu0 %2597
      %2599 = vrot.lane.b32.xlu0 %v200, 108
      %v2600 = vpop.permute.xlu0 %2599
      %2601 = vrot.lane.b32.xlu0 %v201, 108
      %v2602 = vpop.permute.xlu0 %2601
      %2603 = vrot.lane.b32.xlu0 %v202, 108
      %v2604 = vpop.permute.xlu0 %2603
      %2605 = vrot.lane.b32.xlu0 %v203, 108
      %v2606 = vpop.permute.xlu0 %2605
      %2607 = vrot.lane.b32.xlu0 %v204, 108
      %v2608 = vpop.permute.xlu0 %2607
      %2609 = vrot.lane.b32.xlu0 %v205, 108
      %v2610 = vpop.permute.xlu0 %2609
      %2611 = vrot.lane.b32.xlu0 %v206, 108
      %v2612 = vpop.permute.xlu0 %2611
      %2613 = vrot.lane.b32.xlu0 %v207, 108
      %v2614 = vpop.permute.xlu0 %2613
      %2615 = vrot.lane.b32.xlu0 %v208, 108
      %v2616 = vpop.permute.xlu0 %2615
      %2617 = vrot.lane.b32.xlu0 %v210, 108
      %v2618 = vpop.permute.xlu0 %2617
      %vm2619 = vcmask 883712
      %v2620 = vsel %vm2619, %v2596, %v2598
      %v2621 = vsel %vm2619, %v2598, %v2600
      %v2622 = vsel %vm2619, %v2600, %v2602
      %v2623 = vsel %vm2619, %v2602, %v2604
      %v2624 = vsel %vm2619, %v2604, %v2606
      %v2625 = vsel %vm2619, %v2606, %v2608
      %v2626 = vsel %vm2619, %v2608, %v2610
      %v2627 = vsel %vm2619, %v2610, %v2612
      %v2628 = vsel %vm2619, %v2612, %v2614
      %v2629 = vsel %vm2619, %v2614, %v2616
      %v2630 = vsel %vm2619, %v2616, %v2618
      %v2643 = vsel %vm272, %v2594, 0
      %2645 = vmatprep.subr.mxu0 %v2621
      %2646 = vmatpush1.msra.mxu0 %v2620
      %2647 = vmatprep.subr.mxu0 0.0
      %2648 = vmatpush1.msra.mxu0 0.0
      %2649 = vmatprep.subr.mxu0 0.0
      %2650 = vmatpush1.msra.mxu0 0.0
      %2651 = vmatprep.subr.mxu0 0.0
      %2652 = vmatpush1.msra.mxu0 0.0
      %2653 = vmatprep.subr.mxu0 0.0
      %2654 = vmatpush1.msra.mxu0 0.0
      %2655 = vmatprep.subr.mxu0 0.0
      %2656 = vmatpush1.msra.mxu0 0.0
      %2657 = vmatprep.subr.mxu0 0.0
      %2658 = vmatpush1.msra.mxu0 0.0
      %2659 = vmatprep.subr.mxu0 0.0
      %2660 = vmatpush1.msra.mxu0 0.0
      %2661 = vmatprep.subr.mxu0 0.0
      %2662 = vmatpush1.msra.mxu0 0.0
      %2663 = vmatprep.subr.mxu0 0.0
      %2664 = vmatpush1.msra.mxu0 0.0
      %2665 = vmatprep.subr.mxu0 0.0
      %2666 = vmatpush1.msra.mxu0 0.0
      %2667 = vmatprep.subr.mxu0 0.0
      %2668 = vmatpush1.msra.mxu0 0.0
      %2669 = vmatprep.subr.mxu0 0.0
      %2670 = vmatpush1.msra.mxu0 0.0
      %2671 = vmatprep.subr.mxu0 0.0
      %2672 = vmatpush1.msra.mxu0 0.0
      %2673 = vmatprep.subr.mxu0 0.0
      %2674 = vmatpush1.msra.mxu0 0.0
      %2675 = vmatprep.subr.mxu0 0.0
      %2676 = vmatpush1.msra.mxu0 0.0
      %2677 = vmatprep.subr.mxu0 0.0
      %2678 = vmatpush1.msra.mxu0 0.0
      %2679 = vmatprep.subr.mxu0 0.0
      %2680 = vmatpush1.msra.mxu0 0.0
      %2681 = vmatprep.subr.mxu0 0.0
      %2682 = vmatpush1.msra.mxu0 0.0
      %2683 = vmatprep.subr.mxu0 0.0
      %2684 = vmatpush1.msra.mxu0 0.0
      %2685 = vmatprep.subr.mxu0 0.0
      %2686 = vmatpush1.msra.mxu0 0.0
      %2687 = vmatprep.subr.mxu0 0.0
      %2688 = vmatpush1.msra.mxu0 0.0
      %2689 = vmatprep.subr.mxu0 0.0
      %2690 = vmatpush1.msra.mxu0 0.0
      %2691 = vmatprep.subr.mxu0 0.0
      %2692 = vmatpush1.msra.mxu0 0.0
      %2693 = vmatprep.subr.mxu0 0.0
      %2694 = vmatpush1.msra.mxu0 0.0
      %2695 = vmatprep.subr.mxu0 0.0
      %2696 = vmatpush1.msra.mxu0 0.0
      %2697 = vmatprep.subr.mxu0 0.0
      %2698 = vmatpush1.msra.mxu0 0.0
      %2699 = vmatprep.subr.mxu0 0.0
      %2700 = vmatpush1.msra.mxu0 0.0
      %2701 = vmatprep.subr.mxu0 0.0
      %2702 = vmatpush1.msra.mxu0 0.0
      %2703 = vmatprep.subr.mxu0 0.0
      %2704 = vmatpush1.msra.mxu0 0.0
      %2705 = vmatprep.subr.mxu0 0.0
      %2706 = vmatpush1.msra.mxu0 0.0
      %2707 = vmatprep.subr.mxu0 0.0
      %2708 = vmatpush1.msra.mxu0 0.0
      %2709 = vmatprep.mubr.f32.mxu0 0.0
      %2710 = vmatmul.mubr.f32.gmra.mrb[0].mxu0 %v2643
      %v2711 = vpop.f32.mrb[0].mxu0
      %v2712 = vadd.f32 0.0, %v2711
      %v2713 = vpop.f32.mrb[0].mxu0
      %v2714 = vadd.f32 0.0, %v2713
      %2715 = vdwg.mxu0
      %2716 = vmatprep.subr.mxu0 %v2623
      %2717 = vmatpush1.msra.mxu0 %v2622
      %2718 = vmatprep.subr.mxu0 0.0
      %2719 = vmatpush1.msra.mxu0 0.0
      %2720 = vmatprep.subr.mxu0 0.0
      %2721 = vmatpush1.msra.mxu0 0.0
      %2722 = vmatprep.subr.mxu0 0.0
      %2723 = vmatpush1.msra.mxu0 0.0
      %2724 = vmatprep.subr.mxu0 0.0
      %2725 = vmatpush1.msra.mxu0 0.0
      %2726 = vmatprep.subr.mxu0 0.0
      %2727 = vmatpush1.msra.mxu0 0.0
      %2728 = vmatprep.subr.mxu0 0.0
      %2729 = vmatpush1.msra.mxu0 0.0
      %2730 = vmatprep.subr.mxu0 0.0
      %2731 = vmatpush1.msra.mxu0 0.0
      %2732 = vmatprep.subr.mxu0 0.0
      %2733 = vmatpush1.msra.mxu0 0.0
      %2734 = vmatprep.subr.mxu0 0.0
      %2735 = vmatpush1.msra.mxu0 0.0
      %2736 = vmatprep.subr.mxu0 0.0
      %2737 = vmatpush1.msra.mxu0 0.0
      %2738 = vmatprep.subr.mxu0 0.0
      %2739 = vmatpush1.msra.mxu0 0.0
      %2740 = vmatprep.subr.mxu0 0.0
      %2741 = vmatpush1.msra.mxu0 0.0
      %2742 = vmatprep.subr.mxu0 0.0
      %2743 = vmatpush1.msra.mxu0 0.0
      %2744 = vmatprep.subr.mxu0 0.0
      %2745 = vmatpush1.msra.mxu0 0.0
      %2746 = vmatprep.subr.mxu0 0.0
      %2747 = vmatpush1.msra.mxu0 0.0
      %2748 = vmatprep.subr.mxu0 0.0
      %2749 = vmatpush1.msra.mxu0 0.0
      %2750 = vmatprep.subr.mxu0 0.0
      %2751 = vmatpush1.msra.mxu0 0.0
      %2752 = vmatprep.subr.mxu0 0.0
      %2753 = vmatpush1.msra.mxu0 0.0
      %2754 = vmatprep.subr.mxu0 0.0
      %2755 = vmatpush1.msra.mxu0 0.0
      %2756 = vmatprep.subr.mxu0 0.0
      %2757 = vmatpush1.msra.mxu0 0.0
      %2758 = vmatprep.subr.mxu0 0.0
      %2759 = vmatpush1.msra.mxu0 0.0
      %2760 = vmatprep.subr.mxu0 0.0
      %2761 = vmatpush1.msra.mxu0 0.0
      %2762 = vmatprep.subr.mxu0 0.0
      %2763 = vmatpush1.msra.mxu0 0.0
      %2764 = vmatprep.subr.mxu0 0.0
      %2765 = vmatpush1.msra.mxu0 0.0
      %2766 = vmatprep.subr.mxu0 0.0
      %2767 = vmatpush1.msra.mxu0 0.0
      %2768 = vmatprep.subr.mxu0 0.0
      %2769 = vmatpush1.msra.mxu0 0.0
      %2770 = vmatprep.subr.mxu0 0.0
      %2771 = vmatpush1.msra.mxu0 0.0
      %2772 = vmatprep.subr.mxu0 0.0
      %2773 = vmatpush1.msra.mxu0 0.0
      %2774 = vmatprep.subr.mxu0 0.0
      %2775 = vmatpush1.msra.mxu0 0.0
      %2776 = vmatprep.subr.mxu0 0.0
      %2777 = vmatpush1.msra.mxu0 0.0
      %2778 = vmatprep.subr.mxu0 0.0
      %2779 = vmatpush1.msra.mxu0 0.0
      %2780 = vmatprep.mubr.f32.mxu0 0.0
      %2781 = vmatmul.mubr.f32.gmra.mrb[0].mxu0 %v2643
      %v2782 = vpop.f32.mrb[0].mxu0
      %v2783 = vadd.f32 0.0, %v2782
      %v2784 = vpop.f32.mrb[0].mxu0
      %v2785 = vadd.f32 0.0, %v2784
      %2786 = vdwg.mxu0
      %2787 = vmatprep.subr.mxu0 %v2625
      %2788 = vmatpush1.msra.mxu0 %v2624
      %2789 = vmatprep.subr.mxu0 0.0
      %2790 = vmatpush1.msra.mxu0 0.0
      %2791 = vmatprep.subr.mxu0 0.0
      %2792 = vmatpush1.msra.mxu0 0.0
      %2793 = vmatprep.subr.mxu0 0.0
      %2794 = vmatpush1.msra.mxu0 0.0
      %2795 = vmatprep.subr.mxu0 0.0
      %2796 = vmatpush1.msra.mxu0 0.0
      %2797 = vmatprep.subr.mxu0 0.0
      %2798 = vmatpush1.msra.mxu0 0.0
      %2799 = vmatprep.subr.mxu0 0.0
      %2800 = vmatpush1.msra.mxu0 0.0
      %2801 = vmatprep.subr.mxu0 0.0
      %2802 = vmatpush1.msra.mxu0 0.0
      %2803 = vmatprep.subr.mxu0 0.0
      %2804 = vmatpush1.msra.mxu0 0.0
      %2805 = vmatprep.subr.mxu0 0.0
      %2806 = vmatpush1.msra.mxu0 0.0
      %2807 = vmatprep.subr.mxu0 0.0
      %2808 = vmatpush1.msra.mxu0 0.0
      %2809 = vmatprep.subr.mxu0 0.0
      %2810 = vmatpush1.msra.mxu0 0.0
      %2811 = vmatprep.subr.mxu0 0.0
      %2812 = vmatpush1.msra.mxu0 0.0
      %2813 = vmatprep.subr.mxu0 0.0
      %2814 = vmatpush1.msra.mxu0 0.0
      %2815 = vmatprep.subr.mxu0 0.0
      %2816 = vmatpush1.msra.mxu0 0.0
      %2817 = vmatprep.subr.mxu0 0.0
      %2818 = vmatpush1.msra.mxu0 0.0
      %2819 = vmatprep.subr.mxu0 0.0
      %2820 = vmatpush1.msra.mxu0 0.0
      %2821 = vmatprep.subr.mxu0 0.0
      %2822 = vmatpush1.msra.mxu0 0.0
      %2823 = vmatprep.subr.mxu0 0.0
      %2824 = vmatpush1.msra.mxu0 0.0
      %2825 = vmatprep.subr.mxu0 0.0
      %2826 = vmatpush1.msra.mxu0 0.0
      %2827 = vmatprep.subr.mxu0 0.0
      %2828 = vmatpush1.msra.mxu0 0.0
      %2829 = vmatprep.subr.mxu0 0.0
      %2830 = vmatpush1.msra.mxu0 0.0
      %2831 = vmatprep.subr.mxu0 0.0
      %2832 = vmatpush1.msra.mxu0 0.0
      %2833 = vmatprep.subr.mxu0 0.0
      %2834 = vmatpush1.msra.mxu0 0.0
      %2835 = vmatprep.subr.mxu0 0.0
      %2836 = vmatpush1.msra.mxu0 0.0
      %2837 = vmatprep.subr.mxu0 0.0
      %2838 = vmatpush1.msra.mxu0 0.0
      %2839 = vmatprep.subr.mxu0 0.0
      %2840 = vmatpush1.msra.mxu0 0.0
      %2841 = vmatprep.subr.mxu0 0.0
      %2842 = vmatpush1.msra.mxu0 0.0
      %2843 = vmatprep.subr.mxu0 0.0
      %2844 = vmatpush1.msra.mxu0 0.0
      %2845 = vmatprep.subr.mxu0 0.0
      %2846 = vmatpush1.msra.mxu0 0.0
      %2847 = vmatprep.subr.mxu0 0.0
      %2848 = vmatpush1.msra.mxu0 0.0
      %2849 = vmatprep.subr.mxu0 0.0
      %2850 = vmatpush1.msra.mxu0 0.0
      %2851 = vmatprep.mubr.f32.mxu0 0.0
      %2852 = vmatmul.mubr.f32.gmra.mrb[0].mxu0 %v2643
      %v2853 = vpop.f32.mrb[0].mxu0
      %v2854 = vadd.f32 0.0, %v2853
      %v2855 = vpop.f32.mrb[0].mxu0
      %v2856 = vadd.f32 0.0, %v2855
      %2857 = vdwg.mxu0
      %2858 = vmatprep.subr.mxu0 %v2627
      %2859 = vmatpush1.msra.mxu0 %v2626
      %2860 = vmatprep.subr.mxu0 0.0
      %2861 = vmatpush1.msra.mxu0 0.0
      %2862 = vmatprep.subr.mxu0 0.0
      %2863 = vmatpush1.msra.mxu0 0.0
      %2864 = vmatprep.subr.mxu0 0.0
      %2865 = vmatpush1.msra.mxu0 0.0
      %2866 = vmatprep.subr.mxu0 0.0
      %2867 = vmatpush1.msra.mxu0 0.0
      %2868 = vmatprep.subr.mxu0 0.0
      %2869 = vmatpush1.msra.mxu0 0.0
      %2870 = vmatprep.subr.mxu0 0.0
      %2871 = vmatpush1.msra.mxu0 0.0
      %2872 = vmatprep.subr.mxu0 0.0
      %2873 = vmatpush1.msra.mxu0 0.0
      %2874 = vmatprep.subr.mxu0 0.0
      %2875 = vmatpush1.msra.mxu0 0.0
      %2876 = vmatprep.subr.mxu0 0.0
      %2877 = vmatpush1.msra.mxu0 0.0
      %2878 = vmatprep.subr.mxu0 0.0
      %2879 = vmatpush1.msra.mxu0 0.0
      %2880 = vmatprep.subr.mxu0 0.0
      %2881 = vmatpush1.msra.mxu0 0.0
      %2882 = vmatprep.subr.mxu0 0.0
      %2883 = vmatpush1.msra.mxu0 0.0
      %2884 = vmatprep.subr.mxu0 0.0
      %2885 = vmatpush1.msra.mxu0 0.0
      %2886 = vmatprep.subr.mxu0 0.0
      %2887 = vmatpush1.msra.mxu0 0.0
      %2888 = vmatprep.subr.mxu0 0.0
      %2889 = vmatpush1.msra.mxu0 0.0
      %2890 = vmatprep.subr.mxu0 0.0
      %2891 = vmatpush1.msra.mxu0 0.0
      %2892 = vmatprep.subr.mxu0 0.0
      %2893 = vmatpush1.msra.mxu0 0.0
      %2894 = vmatprep.subr.mxu0 0.0
      %2895 = vmatpush1.msra.mxu0 0.0
      %2896 = vmatprep.subr.mxu0 0.0
      %2897 = vmatpush1.msra.mxu0 0.0
      %2898 = vmatprep.subr.mxu0 0.0
      %2899 = vmatpush1.msra.mxu0 0.0
      %2900 = vmatprep.subr.mxu0 0.0
      %2901 = vmatpush1.msra.mxu0 0.0
      %2902 = vmatprep.subr.mxu0 0.0
      %2903 = vmatpush1.msra.mxu0 0.0
      %2904 = vmatprep.subr.mxu0 0.0
      %2905 = vmatpush1.msra.mxu0 0.0
      %2906 = vmatprep.subr.mxu0 0.0
      %2907 = vmatpush1.msra.mxu0 0.0
      %2908 = vmatprep.subr.mxu0 0.0
      %2909 = vmatpush1.msra.mxu0 0.0
      %2910 = vmatprep.subr.mxu0 0.0
      %2911 = vmatpush1.msra.mxu0 0.0
      %2912 = vmatprep.subr.mxu0 0.0
      %2913 = vmatpush1.msra.mxu0 0.0
      %2914 = vmatprep.subr.mxu0 0.0
      %2915 = vmatpush1.msra.mxu0 0.0
      %2916 = vmatprep.subr.mxu0 0.0
      %2917 = vmatpush1.msra.mxu0 0.0
      %2918 = vmatprep.subr.mxu0 0.0
      %2919 = vmatpush1.msra.mxu0 0.0
      %2920 = vmatprep.subr.mxu0 0.0
      %2921 = vmatpush1.msra.mxu0 0.0
      %2922 = vmatprep.mubr.f32.mxu0 0.0
      %2923 = vmatmul.mubr.f32.gmra.mrb[0].mxu0 %v2643
      %v2924 = vpop.f32.mrb[0].mxu0
      %v2925 = vadd.f32 0.0, %v2924
      %v2926 = vpop.f32.mrb[0].mxu0
      %v2927 = vadd.f32 0.0, %v2926
      %2928 = vdwg.mxu0
      %2929 = vmatprep.subr.mxu0 %v2629
      %2930 = vmatpush1.msra.mxu0 %v2628
      %2931 = vmatprep.subr.mxu0 0.0
      %2932 = vmatpush1.msra.mxu0 0.0
      %2933 = vmatprep.subr.mxu0 0.0
      %2934 = vmatpush1.msra.mxu0 0.0
      %2935 = vmatprep.subr.mxu0 0.0
      %2936 = vmatpush1.msra.mxu0 0.0
      %2937 = vmatprep.subr.mxu0 0.0
      %2938 = vmatpush1.msra.mxu0 0.0
      %2939 = vmatprep.subr.mxu0 0.0
      %2940 = vmatpush1.msra.mxu0 0.0
      %2941 = vmatprep.subr.mxu0 0.0
      %2942 = vmatpush1.msra.mxu0 0.0
      %2943 = vmatprep.subr.mxu0 0.0
      %2944 = vmatpush1.msra.mxu0 0.0
      %2945 = vmatprep.subr.mxu0 0.0
      %2946 = vmatpush1.msra.mxu0 0.0
      %2947 = vmatprep.subr.mxu0 0.0
      %2948 = vmatpush1.msra.mxu0 0.0
      %2949 = vmatprep.subr.mxu0 0.0
      %2950 = vmatpush1.msra.mxu0 0.0
      %2951 = vmatprep.subr.mxu0 0.0
      %2952 = vmatpush1.msra.mxu0 0.0
      %2953 = vmatprep.subr.mxu0 0.0
      %2954 = vmatpush1.msra.mxu0 0.0
      %2955 = vmatprep.subr.mxu0 0.0
      %2956 = vmatpush1.msra.mxu0 0.0
      %2957 = vmatprep.subr.mxu0 0.0
      %2958 = vmatpush1.msra.mxu0 0.0
      %2959 = vmatprep.subr.mxu0 0.0
      %2960 = vmatpush1.msra.mxu0 0.0
      %2961 = vmatprep.subr.mxu0 0.0
      %2962 = vmatpush1.msra.mxu0 0.0
      %2963 = vmatprep.subr.mxu0 0.0
      %2964 = vmatpush1.msra.mxu0 0.0
      %2965 = vmatprep.subr.mxu0 0.0
      %2966 = vmatpush1.msra.mxu0 0.0
      %2967 = vmatprep.subr.mxu0 0.0
      %2968 = vmatpush1.msra.mxu0 0.0
      %2969 = vmatprep.subr.mxu0 0.0
      %2970 = vmatpush1.msra.mxu0 0.0
      %2971 = vmatprep.subr.mxu0 0.0
      %2972 = vmatpush1.msra.mxu0 0.0
      %2973 = vmatprep.subr.mxu0 0.0
      %2974 = vmatpush1.msra.mxu0 0.0
      %2975 = vmatprep.subr.mxu0 0.0
      %2976 = vmatpush1.msra.mxu0 0.0
      %2977 = vmatprep.subr.mxu0 0.0
      %2978 = vmatpush1.msra.mxu0 0.0
      %2979 = vmatprep.subr.mxu0 0.0
      %2980 = vmatpush1.msra.mxu0 0.0
      %2981 = vmatprep.subr.mxu0 0.0
      %2982 = vmatpush1.msra.mxu0 0.0
      %2983 = vmatprep.subr.mxu0 0.0
      %2984 = vmatpush1.msra.mxu0 0.0
      %2985 = vmatprep.subr.mxu0 0.0
      %2986 = vmatpush1.msra.mxu0 0.0
      %2987 = vmatprep.subr.mxu0 0.0
      %2988 = vmatpush1.msra.mxu0 0.0
      %2989 = vmatprep.subr.mxu0 0.0
      %2990 = vmatpush1.msra.mxu0 0.0
      %2991 = vmatprep.subr.mxu0 0.0
      %2992 = vmatpush1.msra.mxu0 0.0
      %2993 = vmatprep.mubr.f32.mxu0 0.0
      %2994 = vmatmul.mubr.f32.gmra.mrb[0].mxu0 %v2643
      %v2995 = vpop.f32.mrb[0].mxu0
      %v2996 = vadd.f32 0.0, %v2995
      %v2997 = vpop.f32.mrb[0].mxu0
      %v2998 = vadd.f32 0.0, %v2997
      %2999 = vdwg.mxu0
      %3000 = vmatprep.subr.mxu0 0.0
      %3001 = vmatpush1.msra.mxu0 %v2630
      %3002 = vmatprep.subr.mxu0 0.0
      %3003 = vmatpush1.msra.mxu0 0.0
      %3004 = vmatprep.subr.mxu0 0.0
      %3005 = vmatpush1.msra.mxu0 0.0
      %3006 = vmatprep.subr.mxu0 0.0
      %3007 = vmatpush1.msra.mxu0 0.0
      %3008 = vmatprep.subr.mxu0 0.0
      %3009 = vmatpush1.msra.mxu0 0.0
      %3010 = vmatprep.subr.mxu0 0.0
      %3011 = vmatpush1.msra.mxu0 0.0
      %3012 = vmatprep.subr.mxu0 0.0
      %3013 = vmatpush1.msra.mxu0 0.0
      %3014 = vmatprep.subr.mxu0 0.0
      %3015 = vmatpush1.msra.mxu0 0.0
      %3016 = vmatprep.subr.mxu0 0.0
      %3017 = vmatpush1.msra.mxu0 0.0
      %3018 = vmatprep.subr.mxu0 0.0
      %3019 = vmatpush1.msra.mxu0 0.0
      %3020 = vmatprep.subr.mxu0 0.0
      %3021 = vmatpush1.msra.mxu0 0.0
      %3022 = vmatprep.subr.mxu0 0.0
      %3023 = vmatpush1.msra.mxu0 0.0
      %3024 = vmatprep.subr.mxu0 0.0
      %3025 = vmatpush1.msra.mxu0 0.0
      %3026 = vmatprep.subr.mxu0 0.0
      %3027 = vmatpush1.msra.mxu0 0.0
      %3028 = vmatprep.subr.mxu0 0.0
      %3029 = vmatpush1.msra.mxu0 0.0
      %3030 = vmatprep.subr.mxu0 0.0
      %3031 = vmatpush1.msra.mxu0 0.0
      %3032 = vmatprep.subr.mxu0 0.0
      %3033 = vmatpush1.msra.mxu0 0.0
      %3034 = vmatprep.subr.mxu0 0.0
      %3035 = vmatpush1.msra.mxu0 0.0
      %3036 = vmatprep.subr.mxu0 0.0
      %3037 = vmatpush1.msra.mxu0 0.0
      %3038 = vmatprep.subr.mxu0 0.0
      %3039 = vmatpush1.msra.mxu0 0.0
      %3040 = vmatprep.subr.mxu0 0.0
      %3041 = vmatpush1.msra.mxu0 0.0
      %3042 = vmatprep.subr.mxu0 0.0
      %3043 = vmatpush1.msra.mxu0 0.0
      %3044 = vmatprep.subr.mxu0 0.0
      %3045 = vmatpush1.msra.mxu0 0.0
      %3046 = vmatprep.subr.mxu0 0.0
      %3047 = vmatpush1.msra.mxu0 0.0
      %3048 = vmatprep.subr.mxu0 0.0
      %3049 = vmatpush1.msra.mxu0 0.0
      %3050 = vmatprep.subr.mxu0 0.0
      %3051 = vmatpush1.msra.mxu0 0.0
      %3052 = vmatprep.subr.mxu0 0.0
      %3053 = vmatpush1.msra.mxu0 0.0
      %3054 = vmatprep.subr.mxu0 0.0
      %3055 = vmatpush1.msra.mxu0 0.0
      %3056 = vmatprep.subr.mxu0 0.0
      %3057 = vmatpush1.msra.mxu0 0.0
      %3058 = vmatprep.subr.mxu0 0.0
      %3059 = vmatpush1.msra.mxu0 0.0
      %3060 = vmatprep.subr.mxu0 0.0
      %3061 = vmatpush1.msra.mxu0 0.0
      %3062 = vmatprep.subr.mxu0 0.0
      %3063 = vmatpush1.msra.mxu0 0.0
      %3064 = vmatprep.mubr.f32.mxu0 0.0
      %3065 = vmatmul.mubr.f32.gmra.mrb[0].mxu0 %v2643
      %v3066 = vpop.f32.mrb[0].mxu0
      %v3067 = vadd.f32 0.0, %v3066
      %v3068 = vpop.f32.mrb[0].mxu0
      %3069 = vdwg.mxu0
      %v3070 = vadd.f32 %v2582, %v2712
      %v3071 = vadd.f32 %v2583, %v2714
      %v3072 = vadd.f32 %v2584, %v2783
      %v3073 = vadd.f32 %v2585, %v2785
      %v3074 = vadd.f32 %v2586, %v2854
      %v3075 = vadd.f32 %v2587, %v2856
      %v3076 = vadd.f32 %v2588, %v2925
      %v3077 = vadd.f32 %v2589, %v2927
      %v3078 = vadd.f32 %v2590, %v2996
      %v3079 = vadd.f32 %v2591, %v2998
      %v3080 = vadd.f32 %v2592, %v3067
      %s3081 = scalar_lea.vmem %s1, 48
      %v3082 = vld [vmem:[%s3081] sm:$0xff]
      %3083 = vrot.lane.b32.xlu0 %v198, 92
      %v3084 = vpop.permute.xlu0 %3083
      %3085 = vrot.lane.b32.xlu0 %v199, 92
      %v3086 = vpop.permute.xlu0 %3085
      %3087 = vrot.lane.b32.xlu0 %v200, 92
      %v3088 = vpop.permute.xlu0 %3087
      %3089 = vrot.lane.b32.xlu0 %v201, 92
      %v3090 = vpop.permute.xlu0 %3089
      %3091 = vrot.lane.b32.xlu0 %v202, 92
      %v3092 = vpop.permute.xlu0 %3091
      %3093 = vrot.lane.b32.xlu0 %v203, 92
      %v3094 = vpop.permute.xlu0 %3093
      %3095 = vrot.lane.b32.xlu0 %v204, 92
      %v3096 = vpop.permute.xlu0 %3095
      %3097 = vrot.lane.b32.xlu0 %v205, 92
      %v3098 = vpop.permute.xlu0 %3097
      %3099 = vrot.lane.b32.xlu0 %v206, 92
      %v3100 = vpop.permute.xlu0 %3099
      %3101 = vrot.lane.b32.xlu0 %v207, 92
      %v3102 = vpop.permute.xlu0 %3101
      %3103 = vrot.lane.b32.xlu0 %v208, 92
      %v3104 = vpop.permute.xlu0 %3103
      %3105 = vrot.lane.b32.xlu0 %v210, 92
      %v3106 = vpop.permute.xlu0 %3105
      %vm3107 = vcmask 752640
      %v3108 = vsel %vm3107, %v3084, %v3086
      %v3109 = vsel %vm3107, %v3086, %v3088
      %v3110 = vsel %vm3107, %v3088, %v3090
      %v3111 = vsel %vm3107, %v3090, %v3092
      %v3112 = vsel %vm3107, %v3092, %v3094
      %v3113 = vsel %vm3107, %v3094, %v3096
      %v3114 = vsel %vm3107, %v3096, %v3098
      %v3115 = vsel %vm3107, %v3098, %v3100
      %v3116 = vsel %vm3107, %v3100, %v3102
      %v3117 = vsel %vm3107, %v3102, %v3104
      %v3118 = vsel %vm3107, %v3104, %v3106
      %v3131 = vsel %vm272, %v3082, 0
      %3133 = vmatprep.subr.mxu0 %v3109
      %3134 = vmatpush1.msra.mxu0 %v3108
      %3135 = vmatprep.subr.mxu0 0.0
      %3136 = vmatpush1.msra.mxu0 0.0
      %3137 = vmatprep.subr.mxu0 0.0
      %3138 = vmatpush1.msra.mxu0 0.0
      %3139 = vmatprep.subr.mxu0 0.0
      %3140 = vmatpush1.msra.mxu0 0.0
      %3141 = vmatprep.subr.mxu0 0.0
      %3142 = vmatpush1.msra.mxu0 0.0
      %3143 = vmatprep.subr.mxu0 0.0
      %3144 = vmatpush1.msra.mxu0 0.0
      %3145 = vmatprep.subr.mxu0 0.0
      %3146 = vmatpush1.msra.mxu0 0.0
      %3147 = vmatprep.subr.mxu0 0.0
      %3148 = vmatpush1.msra.mxu0 0.0
      %3149 = vmatprep.subr.mxu0 0.0
      %3150 = vmatpush1.msra.mxu0 0.0
      %3151 = vmatprep.subr.mxu0 0.0
      %3152 = vmatpush1.msra.mxu0 0.0
      %3153 = vmatprep.subr.mxu0 0.0
      %3154 = vmatpush1.msra.mxu0 0.0
      %3155 = vmatprep.subr.mxu0 0.0
      %3156 = vmatpush1.msra.mxu0 0.0
      %3157 = vmatprep.subr.mxu0 0.0
      %3158 = vmatpush1.msra.mxu0 0.0
      %3159 = vmatprep.subr.mxu0 0.0
      %3160 = vmatpush1.msra.mxu0 0.0
      %3161 = vmatprep.subr.mxu0 0.0
      %3162 = vmatpush1.msra.mxu0 0.0
      %3163 = vmatprep.subr.mxu0 0.0
      %3164 = vmatpush1.msra.mxu0 0.0
      %3165 = vmatprep.subr.mxu0 0.0
      %3166 = vmatpush1.msra.mxu0 0.0
      %3167 = vmatprep.subr.mxu0 0.0
      %3168 = vmatpush1.msra.mxu0 0.0
      %3169 = vmatprep.subr.mxu0 0.0
      %3170 = vmatpush1.msra.mxu0 0.0
      %3171 = vmatprep.subr.mxu0 0.0
      %3172 = vmatpush1.msra.mxu0 0.0
      %3173 = vmatprep.subr.mxu0 0.0
      %3174 = vmatpush1.msra.mxu0 0.0
      %3175 = vmatprep.subr.mxu0 0.0
      %3176 = vmatpush1.msra.mxu0 0.0
      %3177 = vmatprep.subr.mxu0 0.0
      %3178 = vmatpush1.msra.mxu0 0.0
      %3179 = vmatprep.subr.mxu0 0.0
      %3180 = vmatpush1.msra.mxu0 0.0
      %3181 = vmatprep.subr.mxu0 0.0
      %3182 = vmatpush1.msra.mxu0 0.0
      %3183 = vmatprep.subr.mxu0 0.0
      %3184 = vmatpush1.msra.mxu0 0.0
      %3185 = vmatprep.subr.mxu0 0.0
      %3186 = vmatpush1.msra.mxu0 0.0
      %3187 = vmatprep.subr.mxu0 0.0
      %3188 = vmatpush1.msra.mxu0 0.0
      %3189 = vmatprep.subr.mxu0 0.0
      %3190 = vmatpush1.msra.mxu0 0.0
      %3191 = vmatprep.subr.mxu0 0.0
      %3192 = vmatpush1.msra.mxu0 0.0
      %3193 = vmatprep.subr.mxu0 0.0
      %3194 = vmatpush1.msra.mxu0 0.0
      %3195 = vmatprep.subr.mxu0 0.0
      %3196 = vmatpush1.msra.mxu0 0.0
      %3197 = vmatprep.mubr.f32.mxu0 0.0
      %3198 = vmatmul.mubr.f32.gmra.mrb[0].mxu0 %v3131
      %v3199 = vpop.f32.mrb[0].mxu0
      %v3200 = vadd.f32 0.0, %v3199
      %v3201 = vpop.f32.mrb[0].mxu0
      %v3202 = vadd.f32 0.0, %v3201
      %3203 = vdwg.mxu0
      %3204 = vmatprep.subr.mxu0 %v3111
      %3205 = vmatpush1.msra.mxu0 %v3110
      %3206 = vmatprep.subr.mxu0 0.0
      %3207 = vmatpush1.msra.mxu0 0.0
      %3208 = vmatprep.subr.mxu0 0.0
      %3209 = vmatpush1.msra.mxu0 0.0
      %3210 = vmatprep.subr.mxu0 0.0
      %3211 = vmatpush1.msra.mxu0 0.0
      %3212 = vmatprep.subr.mxu0 0.0
      %3213 = vmatpush1.msra.mxu0 0.0
      %3214 = vmatprep.subr.mxu0 0.0
      %3215 = vmatpush1.msra.mxu0 0.0
      %3216 = vmatprep.subr.mxu0 0.0
      %3217 = vmatpush1.msra.mxu0 0.0
      %3218 = vmatprep.subr.mxu0 0.0
      %3219 = vmatpush1.msra.mxu0 0.0
      %3220 = vmatprep.subr.mxu0 0.0
      %3221 = vmatpush1.msra.mxu0 0.0
      %3222 = vmatprep.subr.mxu0 0.0
      %3223 = vmatpush1.msra.mxu0 0.0
      %3224 = vmatprep.subr.mxu0 0.0
      %3225 = vmatpush1.msra.mxu0 0.0
      %3226 = vmatprep.subr.mxu0 0.0
      %3227 = vmatpush1.msra.mxu0 0.0
      %3228 = vmatprep.subr.mxu0 0.0
      %3229 = vmatpush1.msra.mxu0 0.0
      %3230 = vmatprep.subr.mxu0 0.0
      %3231 = vmatpush1.msra.mxu0 0.0
      %3232 = vmatprep.subr.mxu0 0.0
      %3233 = vmatpush1.msra.mxu0 0.0
      %3234 = vmatprep.subr.mxu0 0.0
      %3235 = vmatpush1.msra.mxu0 0.0
      %3236 = vmatprep.subr.mxu0 0.0
      %3237 = vmatpush1.msra.mxu0 0.0
      %3238 = vmatprep.subr.mxu0 0.0
      %3239 = vmatpush1.msra.mxu0 0.0
      %3240 = vmatprep.subr.mxu0 0.0
      %3241 = vmatpush1.msra.mxu0 0.0
      %3242 = vmatprep.subr.mxu0 0.0
      %3243 = vmatpush1.msra.mxu0 0.0
      %3244 = vmatprep.subr.mxu0 0.0
      %3245 = vmatpush1.msra.mxu0 0.0
      %3246 = vmatprep.subr.mxu0 0.0
      %3247 = vmatpush1.msra.mxu0 0.0
      %3248 = vmatprep.subr.mxu0 0.0
      %3249 = vmatpush1.msra.mxu0 0.0
      %3250 = vmatprep.subr.mxu0 0.0
      %3251 = vmatpush1.msra.mxu0 0.0
      %3252 = vmatprep.subr.mxu0 0.0
      %3253 = vmatpush1.msra.mxu0 0.0
      %3254 = vmatprep.subr.mxu0 0.0
      %3255 = vmatpush1.msra.mxu0 0.0
      %3256 = vmatprep.subr.mxu0 0.0
      %3257 = vmatpush1.msra.mxu0 0.0
      %3258 = vmatprep.subr.mxu0 0.0
      %3259 = vmatpush1.msra.mxu0 0.0
      %3260 = vmatprep.subr.mxu0 0.0
      %3261 = vmatpush1.msra.mxu0 0.0
      %3262 = vmatprep.subr.mxu0 0.0
      %3263 = vmatpush1.msra.mxu0 0.0
      %3264 = vmatprep.subr.mxu0 0.0
      %3265 = vmatpush1.msra.mxu0 0.0
      %3266 = vmatprep.subr.mxu0 0.0
      %3267 = vmatpush1.msra.mxu0 0.0
      %3268 = vmatprep.mubr.f32.mxu0 0.0
      %3269 = vmatmul.mubr.f32.gmra.mrb[0].mxu0 %v3131
      %v3270 = vpop.f32.mrb[0].mxu0
      %v3271 = vadd.f32 0.0, %v3270
      %v3272 = vpop.f32.mrb[0].mxu0
      %v3273 = vadd.f32 0.0, %v3272
      %3274 = vdwg.mxu0
      %3275 = vmatprep.subr.mxu0 %v3113
      %3276 = vmatpush1.msra.mxu0 %v3112
      %3277 = vmatprep.subr.mxu0 0.0
      %3278 = vmatpush1.msra.mxu0 0.0
      %3279 = vmatprep.subr.mxu0 0.0
      %3280 = vmatpush1.msra.mxu0 0.0
      %3281 = vmatprep.subr.mxu0 0.0
      %3282 = vmatpush1.msra.mxu0 0.0
      %3283 = vmatprep.subr.mxu0 0.0
      %3284 = vmatpush1.msra.mxu0 0.0
      %3285 = vmatprep.subr.mxu0 0.0
      %3286 = vmatpush1.msra.mxu0 0.0
      %3287 = vmatprep.subr.mxu0 0.0
      %3288 = vmatpush1.msra.mxu0 0.0
      %3289 = vmatprep.subr.mxu0 0.0
      %3290 = vmatpush1.msra.mxu0 0.0
      %3291 = vmatprep.subr.mxu0 0.0
      %3292 = vmatpush1.msra.mxu0 0.0
      %3293 = vmatprep.subr.mxu0 0.0
      %3294 = vmatpush1.msra.mxu0 0.0
      %3295 = vmatprep.subr.mxu0 0.0
      %3296 = vmatpush1.msra.mxu0 0.0
      %3297 = vmatprep.subr.mxu0 0.0
      %3298 = vmatpush1.msra.mxu0 0.0
      %3299 = vmatprep.subr.mxu0 0.0
      %3300 = vmatpush1.msra.mxu0 0.0
      %3301 = vmatprep.subr.mxu0 0.0
      %3302 = vmatpush1.msra.mxu0 0.0
      %3303 = vmatprep.subr.mxu0 0.0
      %3304 = vmatpush1.msra.mxu0 0.0
      %3305 = vmatprep.subr.mxu0 0.0
      %3306 = vmatpush1.msra.mxu0 0.0
      %3307 = vmatprep.subr.mxu0 0.0
      %3308 = vmatpush1.msra.mxu0 0.0
      %3309 = vmatprep.subr.mxu0 0.0
      %3310 = vmatpush1.msra.mxu0 0.0
      %3311 = vmatprep.subr.mxu0 0.0
      %3312 = vmatpush1.msra.mxu0 0.0
      %3313 = vmatprep.subr.mxu0 0.0
      %3314 = vmatpush1.msra.mxu0 0.0
      %3315 = vmatprep.subr.mxu0 0.0
      %3316 = vmatpush1.msra.mxu0 0.0
      %3317 = vmatprep.subr.mxu0 0.0
      %3318 = vmatpush1.msra.mxu0 0.0
      %3319 = vmatprep.subr.mxu0 0.0
      %3320 = vmatpush1.msra.mxu0 0.0
      %3321 = vmatprep.subr.mxu0 0.0
      %3322 = vmatpush1.msra.mxu0 0.0
      %3323 = vmatprep.subr.mxu0 0.0
      %3324 = vmatpush1.msra.mxu0 0.0
      %3325 = vmatprep.subr.mxu0 0.0
      %3326 = vmatpush1.msra.mxu0 0.0
      %3327 = vmatprep.subr.mxu0 0.0
      %3328 = vmatpush1.msra.mxu0 0.0
      %3329 = vmatprep.subr.mxu0 0.0
      %3330 = vmatpush1.msra.mxu0 0.0
      %3331 = vmatprep.subr.mxu0 0.0
      %3332 = vmatpush1.msra.mxu0 0.0
      %3333 = vmatprep.subr.mxu0 0.0
      %3334 = vmatpush1.msra.mxu0 0.0
      %3335 = vmatprep.subr.mxu0 0.0
      %3336 = vmatpush1.msra.mxu0 0.0
      %3337 = vmatprep.subr.mxu0 0.0
      %3338 = vmatpush1.msra.mxu0 0.0
      %3339 = vmatprep.mubr.f32.mxu0 0.0
      %3340 = vmatmul.mubr.f32.gmra.mrb[0].mxu0 %v3131
      %v3341 = vpop.f32.mrb[0].mxu0
      %v3342 = vadd.f32 0.0, %v3341
      %v3343 = vpop.f32.mrb[0].mxu0
      %v3344 = vadd.f32 0.0, %v3343
      %3345 = vdwg.mxu0
      %3346 = vmatprep.subr.mxu0 %v3115
      %3347 = vmatpush1.msra.mxu0 %v3114
      %3348 = vmatprep.subr.mxu0 0.0
      %3349 = vmatpush1.msra.mxu0 0.0
      %3350 = vmatprep.subr.mxu0 0.0
      %3351 = vmatpush1.msra.mxu0 0.0
      %3352 = vmatprep.subr.mxu0 0.0
      %3353 = vmatpush1.msra.mxu0 0.0
      %3354 = vmatprep.subr.mxu0 0.0
      %3355 = vmatpush1.msra.mxu0 0.0
      %3356 = vmatprep.subr.mxu0 0.0
      %3357 = vmatpush1.msra.mxu0 0.0
      %3358 = vmatprep.subr.mxu0 0.0
      %3359 = vmatpush1.msra.mxu0 0.0
      %3360 = vmatprep.subr.mxu0 0.0
      %3361 = vmatpush1.msra.mxu0 0.0
      %3362 = vmatprep.subr.mxu0 0.0
      %3363 = vmatpush1.msra.mxu0 0.0
      %3364 = vmatprep.subr.mxu0 0.0
      %3365 = vmatpush1.msra.mxu0 0.0
      %3366 = vmatprep.subr.mxu0 0.0
      %3367 = vmatpush1.msra.mxu0 0.0
      %3368 = vmatprep.subr.mxu0 0.0
      %3369 = vmatpush1.msra.mxu0 0.0
      %3370 = vmatprep.subr.mxu0 0.0
      %3371 = vmatpush1.msra.mxu0 0.0
      %3372 = vmatprep.subr.mxu0 0.0
      %3373 = vmatpush1.msra.mxu0 0.0
      %3374 = vmatprep.subr.mxu0 0.0
      %3375 = vmatpush1.msra.mxu0 0.0
      %3376 = vmatprep.subr.mxu0 0.0
      %3377 = vmatpush1.msra.mxu0 0.0
      %3378 = vmatprep.subr.mxu0 0.0
      %3379 = vmatpush1.msra.mxu0 0.0
      %3380 = vmatprep.subr.mxu0 0.0
      %3381 = vmatpush1.msra.mxu0 0.0
      %3382 = vmatprep.subr.mxu0 0.0
      %3383 = vmatpush1.msra.mxu0 0.0
      %3384 = vmatprep.subr.mxu0 0.0
      %3385 = vmatpush1.msra.mxu0 0.0
      %3386 = vmatprep.subr.mxu0 0.0
      %3387 = vmatpush1.msra.mxu0 0.0
      %3388 = vmatprep.subr.mxu0 0.0
      %3389 = vmatpush1.msra.mxu0 0.0
      %3390 = vmatprep.subr.mxu0 0.0
      %3391 = vmatpush1.msra.mxu0 0.0
      %3392 = vmatprep.subr.mxu0 0.0
      %3393 = vmatpush1.msra.mxu0 0.0
      %3394 = vmatprep.subr.mxu0 0.0
      %3395 = vmatpush1.msra.mxu0 0.0
      %3396 = vmatprep.subr.mxu0 0.0
      %3397 = vmatpush1.msra.mxu0 0.0
      %3398 = vmatprep.subr.mxu0 0.0
      %3399 = vmatpush1.msra.mxu0 0.0
      %3400 = vmatprep.subr.mxu0 0.0
      %3401 = vmatpush1.msra.mxu0 0.0
      %3402 = vmatprep.subr.mxu0 0.0
      %3403 = vmatpush1.msra.mxu0 0.0
      %3404 = vmatprep.subr.mxu0 0.0
      %3405 = vmatpush1.msra.mxu0 0.0
      %3406 = vmatprep.subr.mxu0 0.0
      %3407 = vmatpush1.msra.mxu0 0.0
      %3408 = vmatprep.subr.mxu0 0.0
      %3409 = vmatpush1.msra.mxu0 0.0
      %3410 = vmatprep.mubr.f32.mxu0 0.0
      %3411 = vmatmul.mubr.f32.gmra.mrb[0].mxu0 %v3131
      %v3412 = vpop.f32.mrb[0].mxu0
      %v3413 = vadd.f32 0.0, %v3412
      %v3414 = vpop.f32.mrb[0].mxu0
      %v3415 = vadd.f32 0.0, %v3414
      %3416 = vdwg.mxu0
      %3417 = vmatprep.subr.mxu0 %v3117
      %3418 = vmatpush1.msra.mxu0 %v3116
      %3419 = vmatprep.subr.mxu0 0.0
      %3420 = vmatpush1.msra.mxu0 0.0
      %3421 = vmatprep.subr.mxu0 0.0
      %3422 = vmatpush1.msra.mxu0 0.0
      %3423 = vmatprep.subr.mxu0 0.0
      %3424 = vmatpush1.msra.mxu0 0.0
      %3425 = vmatprep.subr.mxu0 0.0
      %3426 = vmatpush1.msra.mxu0 0.0
      %3427 = vmatprep.subr.mxu0 0.0
      %3428 = vmatpush1.msra.mxu0 0.0
      %3429 = vmatprep.subr.mxu0 0.0
      %3430 = vmatpush1.msra.mxu0 0.0
      %3431 = vmatprep.subr.mxu0 0.0
      %3432 = vmatpush1.msra.mxu0 0.0
      %3433 = vmatprep.subr.mxu0 0.0
      %3434 = vmatpush1.msra.mxu0 0.0
      %3435 = vmatprep.subr.mxu0 0.0
      %3436 = vmatpush1.msra.mxu0 0.0
      %3437 = vmatprep.subr.mxu0 0.0
      %3438 = vmatpush1.msra.mxu0 0.0
      %3439 = vmatprep.subr.mxu0 0.0
      %3440 = vmatpush1.msra.mxu0 0.0
      %3441 = vmatprep.subr.mxu0 0.0
      %3442 = vmatpush1.msra.mxu0 0.0
      %3443 = vmatprep.subr.mxu0 0.0
      %3444 = vmatpush1.msra.mxu0 0.0
      %3445 = vmatprep.subr.mxu0 0.0
      %3446 = vmatpush1.msra.mxu0 0.0
      %3447 = vmatprep.subr.mxu0 0.0
      %3448 = vmatpush1.msra.mxu0 0.0
      %3449 = vmatprep.subr.mxu0 0.0
      %3450 = vmatpush1.msra.mxu0 0.0
      %3451 = vmatprep.subr.mxu0 0.0
      %3452 = vmatpush1.msra.mxu0 0.0
      %3453 = vmatprep.subr.mxu0 0.0
      %3454 = vmatpush1.msra.mxu0 0.0
      %3455 = vmatprep.subr.mxu0 0.0
      %3456 = vmatpush1.msra.mxu0 0.0
      %3457 = vmatprep.subr.mxu0 0.0
      %3458 = vmatpush1.msra.mxu0 0.0
      %3459 = vmatprep.subr.mxu0 0.0
      %3460 = vmatpush1.msra.mxu0 0.0
      %3461 = vmatprep.subr.mxu0 0.0
      %3462 = vmatpush1.msra.mxu0 0.0
      %3463 = vmatprep.subr.mxu0 0.0
      %3464 = vmatpush1.msra.mxu0 0.0
      %3465 = vmatprep.subr.mxu0 0.0
      %3466 = vmatpush1.msra.mxu0 0.0
      %3467 = vmatprep.subr.mxu0 0.0
      %3468 = vmatpush1.msra.mxu0 0.0
      %3469 = vmatprep.subr.mxu0 0.0
      %3470 = vmatpush1.msra.mxu0 0.0
      %3471 = vmatprep.subr.mxu0 0.0
      %3472 = vmatpush1.msra.mxu0 0.0
      %3473 = vmatprep.subr.mxu0 0.0
      %3474 = vmatpush1.msra.mxu0 0.0
      %3475 = vmatprep.subr.mxu0 0.0
      %3476 = vmatpush1.msra.mxu0 0.0
      %3477 = vmatprep.subr.mxu0 0.0
      %3478 = vmatpush1.msra.mxu0 0.0
      %3479 = vmatprep.subr.mxu0 0.0
      %3480 = vmatpush1.msra.mxu0 0.0
      %3481 = vmatprep.mubr.f32.mxu0 0.0
      %3482 = vmatmul.mubr.f32.gmra.mrb[0].mxu0 %v3131
      %v3483 = vpop.f32.mrb[0].mxu0
      %v3484 = vadd.f32 0.0, %v3483
      %v3485 = vpop.f32.mrb[0].mxu0
      %v3486 = vadd.f32 0.0, %v3485
      %3487 = vdwg.mxu0
      %3488 = vmatprep.subr.mxu0 0.0
      %3489 = vmatpush1.msra.mxu0 %v3118
      %3490 = vmatprep.subr.mxu0 0.0
      %3491 = vmatpush1.msra.mxu0 0.0
      %3492 = vmatprep.subr.mxu0 0.0
      %3493 = vmatpush1.msra.mxu0 0.0
      %3494 = vmatprep.subr.mxu0 0.0
      %3495 = vmatpush1.msra.mxu0 0.0
      %3496 = vmatprep.subr.mxu0 0.0
      %3497 = vmatpush1.msra.mxu0 0.0
      %3498 = vmatprep.subr.mxu0 0.0
      %3499 = vmatpush1.msra.mxu0 0.0
      %3500 = vmatprep.subr.mxu0 0.0
      %3501 = vmatpush1.msra.mxu0 0.0
      %3502 = vmatprep.subr.mxu0 0.0
      %3503 = vmatpush1.msra.mxu0 0.0
      %3504 = vmatprep.subr.mxu0 0.0
      %3505 = vmatpush1.msra.mxu0 0.0
      %3506 = vmatprep.subr.mxu0 0.0
      %3507 = vmatpush1.msra.mxu0 0.0
      %3508 = vmatprep.subr.mxu0 0.0
      %3509 = vmatpush1.msra.mxu0 0.0
      %3510 = vmatprep.subr.mxu0 0.0
      %3511 = vmatpush1.msra.mxu0 0.0
      %3512 = vmatprep.subr.mxu0 0.0
      %3513 = vmatpush1.msra.mxu0 0.0
      %3514 = vmatprep.subr.mxu0 0.0
      %3515 = vmatpush1.msra.mxu0 0.0
      %3516 = vmatprep.subr.mxu0 0.0
      %3517 = vmatpush1.msra.mxu0 0.0
      %3518 = vmatprep.subr.mxu0 0.0
      %3519 = vmatpush1.msra.mxu0 0.0
      %3520 = vmatprep.subr.mxu0 0.0
      %3521 = vmatpush1.msra.mxu0 0.0
      %3522 = vmatprep.subr.mxu0 0.0
      %3523 = vmatpush1.msra.mxu0 0.0
      %3524 = vmatprep.subr.mxu0 0.0
      %3525 = vmatpush1.msra.mxu0 0.0
      %3526 = vmatprep.subr.mxu0 0.0
      %3527 = vmatpush1.msra.mxu0 0.0
      %3528 = vmatprep.subr.mxu0 0.0
      %3529 = vmatpush1.msra.mxu0 0.0
      %3530 = vmatprep.subr.mxu0 0.0
      %3531 = vmatpush1.msra.mxu0 0.0
      %3532 = vmatprep.subr.mxu0 0.0
      %3533 = vmatpush1.msra.mxu0 0.0
      %3534 = vmatprep.subr.mxu0 0.0
      %3535 = vmatpush1.msra.mxu0 0.0
      %3536 = vmatprep.subr.mxu0 0.0
      %3537 = vmatpush1.msra.mxu0 0.0
      %3538 = vmatprep.subr.mxu0 0.0
      %3539 = vmatpush1.msra.mxu0 0.0
      %3540 = vmatprep.subr.mxu0 0.0
      %3541 = vmatpush1.msra.mxu0 0.0
      %3542 = vmatprep.subr.mxu0 0.0
      %3543 = vmatpush1.msra.mxu0 0.0
      %3544 = vmatprep.subr.mxu0 0.0
      %3545 = vmatpush1.msra.mxu0 0.0
      %3546 = vmatprep.subr.mxu0 0.0
      %3547 = vmatpush1.msra.mxu0 0.0
      %3548 = vmatprep.subr.mxu0 0.0
      %3549 = vmatpush1.msra.mxu0 0.0
      %3550 = vmatprep.subr.mxu0 0.0
      %3551 = vmatpush1.msra.mxu0 0.0
      %3552 = vmatprep.mubr.f32.mxu0 0.0
      %3553 = vmatmul.mubr.f32.gmra.mrb[0].mxu0 %v3131
      %v3554 = vpop.f32.mrb[0].mxu0
      %v3555 = vadd.f32 0.0, %v3554
      %v3556 = vpop.f32.mrb[0].mxu0
      %3557 = vdwg.mxu0
      %v3558 = vadd.f32 %v3070, %v3200
      %v3559 = vadd.f32 %v3071, %v3202
      %v3560 = vadd.f32 %v3072, %v3271
      %v3561 = vadd.f32 %v3073, %v3273
      %v3562 = vadd.f32 %v3074, %v3342
      %v3563 = vadd.f32 %v3075, %v3344
      %v3564 = vadd.f32 %v3076, %v3413
      %v3565 = vadd.f32 %v3077, %v3415
      %v3566 = vadd.f32 %v3078, %v3484
      %v3567 = vadd.f32 %v3079, %v3486
      %v3568 = vadd.f32 %v3080, %v3555
      %s3569 = scalar_lea.vmem %s1, 56
      %v3570 = vld [vmem:[%s3569] sm:$0xff]
      %3571 = vrot.lane.b32.xlu0 %v198, 91
      %v3572 = vpop.permute.xlu0 %3571
      %3573 = vrot.lane.b32.xlu0 %v199, 91
      %v3574 = vpop.permute.xlu0 %3573
      %3575 = vrot.lane.b32.xlu0 %v200, 91
      %v3576 = vpop.permute.xlu0 %3575
      %3577 = vrot.lane.b32.xlu0 %v201, 91
      %v3578 = vpop.permute.xlu0 %3577
      %3579 = vrot.lane.b32.xlu0 %v202, 91
      %v3580 = vpop.permute.xlu0 %3579
      %3581 = vrot.lane.b32.xlu0 %v203, 91
      %v3582 = vpop.permute.xlu0 %3581
      %3583 = vrot.lane.b32.xlu0 %v204, 91
      %v3584 = vpop.permute.xlu0 %3583
      %3585 = vrot.lane.b32.xlu0 %v205, 91
      %v3586 = vpop.permute.xlu0 %3585
      %3587 = vrot.lane.b32.xlu0 %v206, 91
      %v3588 = vpop.permute.xlu0 %3587
      %3589 = vrot.lane.b32.xlu0 %v207, 91
      %v3590 = vpop.permute.xlu0 %3589
      %3591 = vrot.lane.b32.xlu0 %v208, 91
      %v3592 = vpop.permute.xlu0 %3591
      %3593 = vrot.lane.b32.xlu0 %v210, 91
      %v3594 = vpop.permute.xlu0 %3593
      %vm3595 = vcmask 744448
      %v3596 = vsel %vm3595, %v3572, %v3574
      %v3597 = vsel %vm3595, %v3574, %v3576
      %v3598 = vsel %vm3595, %v3576, %v3578
      %v3599 = vsel %vm3595, %v3578, %v3580
      %v3600 = vsel %vm3595, %v3580, %v3582
      %v3601 = vsel %vm3595, %v3582, %v3584
      %v3602 = vsel %vm3595, %v3584, %v3586
      %v3603 = vsel %vm3595, %v3586, %v3588
      %v3604 = vsel %vm3595, %v3588, %v3590
      %v3605 = vsel %vm3595, %v3590, %v3592
      %v3606 = vsel %vm3595, %v3592, %v3594
      %v3619 = vsel %vm272, %v3570, 0
      %3621 = vmatprep.subr.mxu0 %v3597
      %3622 = vmatpush1.msra.mxu0 %v3596
      %3623 = vmatprep.subr.mxu0 0.0
      %3624 = vmatpush1.msra.mxu0 0.0
      %3625 = vmatprep.subr.mxu0 0.0
      %3626 = vmatpush1.msra.mxu0 0.0
      %3627 = vmatprep.subr.mxu0 0.0
      %3628 = vmatpush1.msra.mxu0 0.0
      %3629 = vmatprep.subr.mxu0 0.0
      %3630 = vmatpush1.msra.mxu0 0.0
      %3631 = vmatprep.subr.mxu0 0.0
      %3632 = vmatpush1.msra.mxu0 0.0
      %3633 = vmatprep.subr.mxu0 0.0
      %3634 = vmatpush1.msra.mxu0 0.0
      %3635 = vmatprep.subr.mxu0 0.0
      %3636 = vmatpush1.msra.mxu0 0.0
      %3637 = vmatprep.subr.mxu0 0.0
      %3638 = vmatpush1.msra.mxu0 0.0
      %3639 = vmatprep.subr.mxu0 0.0
      %3640 = vmatpush1.msra.mxu0 0.0
      %3641 = vmatprep.subr.mxu0 0.0
      %3642 = vmatpush1.msra.mxu0 0.0
      %3643 = vmatprep.subr.mxu0 0.0
      %3644 = vmatpush1.msra.mxu0 0.0
      %3645 = vmatprep.subr.mxu0 0.0
      %3646 = vmatpush1.msra.mxu0 0.0
      %3647 = vmatprep.subr.mxu0 0.0
      %3648 = vmatpush1.msra.mxu0 0.0
      %3649 = vmatprep.subr.mxu0 0.0
      %3650 = vmatpush1.msra.mxu0 0.0
      %3651 = vmatprep.subr.mxu0 0.0
      %3652 = vmatpush1.msra.mxu0 0.0
      %3653 = vmatprep.subr.mxu0 0.0
      %3654 = vmatpush1.msra.mxu0 0.0
      %3655 = vmatprep.subr.mxu0 0.0
      %3656 = vmatpush1.msra.mxu0 0.0
      %3657 = vmatprep.subr.mxu0 0.0
      %3658 = vmatpush1.msra.mxu0 0.0
      %3659 = vmatprep.subr.mxu0 0.0
      %3660 = vmatpush1.msra.mxu0 0.0
      %3661 = vmatprep.subr.mxu0 0.0
      %3662 = vmatpush1.msra.mxu0 0.0
      %3663 = vmatprep.subr.mxu0 0.0
      %3664 = vmatpush1.msra.mxu0 0.0
      %3665 = vmatprep.subr.mxu0 0.0
      %3666 = vmatpush1.msra.mxu0 0.0
      %3667 = vmatprep.subr.mxu0 0.0
      %3668 = vmatpush1.msra.mxu0 0.0
      %3669 = vmatprep.subr.mxu0 0.0
      %3670 = vmatpush1.msra.mxu0 0.0
      %3671 = vmatprep.subr.mxu0 0.0
      %3672 = vmatpush1.msra.mxu0 0.0
      %3673 = vmatprep.subr.mxu0 0.0
      %3674 = vmatpush1.msra.mxu0 0.0
      %3675 = vmatprep.subr.mxu0 0.0
      %3676 = vmatpush1.msra.mxu0 0.0
      %3677 = vmatprep.subr.mxu0 0.0
      %3678 = vmatpush1.msra.mxu0 0.0
      %3679 = vmatprep.subr.mxu0 0.0
      %3680 = vmatpush1.msra.mxu0 0.0
      %3681 = vmatprep.subr.mxu0 0.0
      %3682 = vmatpush1.msra.mxu0 0.0
      %3683 = vmatprep.subr.mxu0 0.0
      %3684 = vmatpush1.msra.mxu0 0.0
      %3685 = vmatprep.mubr.f32.mxu0 0.0
      %3686 = vmatmul.mubr.f32.gmra.mrb[0].mxu0 %v3619
      %v3687 = vpop.f32.mrb[0].mxu0
      %v3688 = vadd.f32 0.0, %v3687
      %v3689 = vpop.f32.mrb[0].mxu0
      %v3690 = vadd.f32 0.0, %v3689
      %3691 = vdwg.mxu0
      %3692 = vmatprep.subr.mxu0 %v3599
      %3693 = vmatpush1.msra.mxu0 %v3598
      %3694 = vmatprep.subr.mxu0 0.0
      %3695 = vmatpush1.msra.mxu0 0.0
      %3696 = vmatprep.subr.mxu0 0.0
      %3697 = vmatpush1.msra.mxu0 0.0
      %3698 = vmatprep.subr.mxu0 0.0
      %3699 = vmatpush1.msra.mxu0 0.0
      %3700 = vmatprep.subr.mxu0 0.0
      %3701 = vmatpush1.msra.mxu0 0.0
      %3702 = vmatprep.subr.mxu0 0.0
      %3703 = vmatpush1.msra.mxu0 0.0
      %3704 = vmatprep.subr.mxu0 0.0
      %3705 = vmatpush1.msra.mxu0 0.0
      %3706 = vmatprep.subr.mxu0 0.0
      %3707 = vmatpush1.msra.mxu0 0.0
      %3708 = vmatprep.subr.mxu0 0.0
      %3709 = vmatpush1.msra.mxu0 0.0
      %3710 = vmatprep.subr.mxu0 0.0
      %3711 = vmatpush1.msra.mxu0 0.0
      %3712 = vmatprep.subr.mxu0 0.0
      %3713 = vmatpush1.msra.mxu0 0.0
      %3714 = vmatprep.subr.mxu0 0.0
      %3715 = vmatpush1.msra.mxu0 0.0
      %3716 = vmatprep.subr.mxu0 0.0
      %3717 = vmatpush1.msra.mxu0 0.0
      %3718 = vmatprep.subr.mxu0 0.0
      %3719 = vmatpush1.msra.mxu0 0.0
      %3720 = vmatprep.subr.mxu0 0.0
      %3721 = vmatpush1.msra.mxu0 0.0
      %3722 = vmatprep.subr.mxu0 0.0
      %3723 = vmatpush1.msra.mxu0 0.0
      %3724 = vmatprep.subr.mxu0 0.0
      %3725 = vmatpush1.msra.mxu0 0.0
      %3726 = vmatprep.subr.mxu0 0.0
      %3727 = vmatpush1.msra.mxu0 0.0
      %3728 = vmatprep.subr.mxu0 0.0
      %3729 = vmatpush1.msra.mxu0 0.0
      %3730 = vmatprep.subr.mxu0 0.0
      %3731 = vmatpush1.msra.mxu0 0.0
      %3732 = vmatprep.subr.mxu0 0.0
      %3733 = vmatpush1.msra.mxu0 0.0
      %3734 = vmatprep.subr.mxu0 0.0
      %3735 = vmatpush1.msra.mxu0 0.0
      %3736 = vmatprep.subr.mxu0 0.0
      %3737 = vmatpush1.msra.mxu0 0.0
      %3738 = vmatprep.subr.mxu0 0.0
      %3739 = vmatpush1.msra.mxu0 0.0
      %3740 = vmatprep.subr.mxu0 0.0
      %3741 = vmatpush1.msra.mxu0 0.0
      %3742 = vmatprep.subr.mxu0 0.0
      %3743 = vmatpush1.msra.mxu0 0.0
      %3744 = vmatprep.subr.mxu0 0.0
      %3745 = vmatpush1.msra.mxu0 0.0
      %3746 = vmatprep.subr.mxu0 0.0
      %3747 = vmatpush1.msra.mxu0 0.0
      %3748 = vmatprep.subr.mxu0 0.0
      %3749 = vmatpush1.msra.mxu0 0.0
      %3750 = vmatprep.subr.mxu0 0.0
      %3751 = vmatpush1.msra.mxu0 0.0
      %3752 = vmatprep.subr.mxu0 0.0
      %3753 = vmatpush1.msra.mxu0 0.0
      %3754 = vmatprep.subr.mxu0 0.0
      %3755 = vmatpush1.msra.mxu0 0.0
      %3756 = vmatprep.mubr.f32.mxu0 0.0
      %3757 = vmatmul.mubr.f32.gmra.mrb[0].mxu0 %v3619
      %v3758 = vpop.f32.mrb[0].mxu0
      %v3759 = vadd.f32 0.0, %v3758
      %v3760 = vpop.f32.mrb[0].mxu0
      %v3761 = vadd.f32 0.0, %v3760
      %3762 = vdwg.mxu0
      %3763 = vmatprep.subr.mxu0 %v3601
      %3764 = vmatpush1.msra.mxu0 %v3600
      %3765 = vmatprep.subr.mxu0 0.0
      %3766 = vmatpush1.msra.mxu0 0.0
      %3767 = vmatprep.subr.mxu0 0.0
      %3768 = vmatpush1.msra.mxu0 0.0
      %3769 = vmatprep.subr.mxu0 0.0
      %3770 = vmatpush1.msra.mxu0 0.0
      %3771 = vmatprep.subr.mxu0 0.0
      %3772 = vmatpush1.msra.mxu0 0.0
      %3773 = vmatprep.subr.mxu0 0.0
      %3774 = vmatpush1.msra.mxu0 0.0
      %3775 = vmatprep.subr.mxu0 0.0
      %3776 = vmatpush1.msra.mxu0 0.0
      %3777 = vmatprep.subr.mxu0 0.0
      %3778 = vmatpush1.msra.mxu0 0.0
      %3779 = vmatprep.subr.mxu0 0.0
      %3780 = vmatpush1.msra.mxu0 0.0
      %3781 = vmatprep.subr.mxu0 0.0
      %3782 = vmatpush1.msra.mxu0 0.0
      %3783 = vmatprep.subr.mxu0 0.0
      %3784 = vmatpush1.msra.mxu0 0.0
      %3785 = vmatprep.subr.mxu0 0.0
      %3786 = vmatpush1.msra.mxu0 0.0
      %3787 = vmatprep.subr.mxu0 0.0
      %3788 = vmatpush1.msra.mxu0 0.0
      %3789 = vmatprep.subr.mxu0 0.0
      %3790 = vmatpush1.msra.mxu0 0.0
      %3791 = vmatprep.subr.mxu0 0.0
      %3792 = vmatpush1.msra.mxu0 0.0
      %3793 = vmatprep.subr.mxu0 0.0
      %3794 = vmatpush1.msra.mxu0 0.0
      %3795 = vmatprep.subr.mxu0 0.0
      %3796 = vmatpush1.msra.mxu0 0.0
      %3797 = vmatprep.subr.mxu0 0.0
      %3798 = vmatpush1.msra.mxu0 0.0
      %3799 = vmatprep.subr.mxu0 0.0
      %3800 = vmatpush1.msra.mxu0 0.0
      %3801 = vmatprep.subr.mxu0 0.0
      %3802 = vmatpush1.msra.mxu0 0.0
      %3803 = vmatprep.subr.mxu0 0.0
      %3804 = vmatpush1.msra.mxu0 0.0
      %3805 = vmatprep.subr.mxu0 0.0
      %3806 = vmatpush1.msra.mxu0 0.0
      %3807 = vmatprep.subr.mxu0 0.0
      %3808 = vmatpush1.msra.mxu0 0.0
      %3809 = vmatprep.subr.mxu0 0.0
      %3810 = vmatpush1.msra.mxu0 0.0
      %3811 = vmatprep.subr.mxu0 0.0
      %3812 = vmatpush1.msra.mxu0 0.0
      %3813 = vmatprep.subr.mxu0 0.0
      %3814 = vmatpush1.msra.mxu0 0.0
      %3815 = vmatprep.subr.mxu0 0.0
      %3816 = vmatpush1.msra.mxu0 0.0
      %3817 = vmatprep.subr.mxu0 0.0
      %3818 = vmatpush1.msra.mxu0 0.0
      %3819 = vmatprep.subr.mxu0 0.0
      %3820 = vmatpush1.msra.mxu0 0.0
      %3821 = vmatprep.subr.mxu0 0.0
      %3822 = vmatpush1.msra.mxu0 0.0
      %3823 = vmatprep.subr.mxu0 0.0
      %3824 = vmatpush1.msra.mxu0 0.0
      %3825 = vmatprep.subr.mxu0 0.0
      %3826 = vmatpush1.msra.mxu0 0.0
      %3827 = vmatprep.mubr.f32.mxu0 0.0
      %3828 = vmatmul.mubr.f32.gmra.mrb[0].mxu0 %v3619
      %v3829 = vpop.f32.mrb[0].mxu0
      %v3830 = vadd.f32 0.0, %v3829
      %v3831 = vpop.f32.mrb[0].mxu0
      %v3832 = vadd.f32 0.0, %v3831
      %3833 = vdwg.mxu0
      %3834 = vmatprep.subr.mxu0 %v3603
      %3835 = vmatpush1.msra.mxu0 %v3602
      %3836 = vmatprep.subr.mxu0 0.0
      %3837 = vmatpush1.msra.mxu0 0.0
      %3838 = vmatprep.subr.mxu0 0.0
      %3839 = vmatpush1.msra.mxu0 0.0
      %3840 = vmatprep.subr.mxu0 0.0
      %3841 = vmatpush1.msra.mxu0 0.0
      %3842 = vmatprep.subr.mxu0 0.0
      %3843 = vmatpush1.msra.mxu0 0.0
      %3844 = vmatprep.subr.mxu0 0.0
      %3845 = vmatpush1.msra.mxu0 0.0
      %3846 = vmatprep.subr.mxu0 0.0
      %3847 = vmatpush1.msra.mxu0 0.0
      %3848 = vmatprep.subr.mxu0 0.0
      %3849 = vmatpush1.msra.mxu0 0.0
      %3850 = vmatprep.subr.mxu0 0.0
      %3851 = vmatpush1.msra.mxu0 0.0
      %3852 = vmatprep.subr.mxu0 0.0
      %3853 = vmatpush1.msra.mxu0 0.0
      %3854 = vmatprep.subr.mxu0 0.0
      %3855 = vmatpush1.msra.mxu0 0.0
      %3856 = vmatprep.subr.mxu0 0.0
      %3857 = vmatpush1.msra.mxu0 0.0
      %3858 = vmatprep.subr.mxu0 0.0
      %3859 = vmatpush1.msra.mxu0 0.0
      %3860 = vmatprep.subr.mxu0 0.0
      %3861 = vmatpush1.msra.mxu0 0.0
      %3862 = vmatprep.subr.mxu0 0.0
      %3863 = vmatpush1.msra.mxu0 0.0
      %3864 = vmatprep.subr.mxu0 0.0
      %3865 = vmatpush1.msra.mxu0 0.0
      %3866 = vmatprep.subr.mxu0 0.0
      %3867 = vmatpush1.msra.mxu0 0.0
      %3868 = vmatprep.subr.mxu0 0.0
      %3869 = vmatpush1.msra.mxu0 0.0
      %3870 = vmatprep.subr.mxu0 0.0
      %3871 = vmatpush1.msra.mxu0 0.0
      %3872 = vmatprep.subr.mxu0 0.0
      %3873 = vmatpush1.msra.mxu0 0.0
      %3874 = vmatprep.subr.mxu0 0.0
      %3875 = vmatpush1.msra.mxu0 0.0
      %3876 = vmatprep.subr.mxu0 0.0
      %3877 = vmatpush1.msra.mxu0 0.0
      %3878 = vmatprep.subr.mxu0 0.0
      %3879 = vmatpush1.msra.mxu0 0.0
      %3880 = vmatprep.subr.mxu0 0.0
      %3881 = vmatpush1.msra.mxu0 0.0
      %3882 = vmatprep.subr.mxu0 0.0
      %3883 = vmatpush1.msra.mxu0 0.0
      %3884 = vmatprep.subr.mxu0 0.0
      %3885 = vmatpush1.msra.mxu0 0.0
      %3886 = vmatprep.subr.mxu0 0.0
      %3887 = vmatpush1.msra.mxu0 0.0
      %3888 = vmatprep.subr.mxu0 0.0
      %3889 = vmatpush1.msra.mxu0 0.0
      %3890 = vmatprep.subr.mxu0 0.0
      %3891 = vmatpush1.msra.mxu0 0.0
      %3892 = vmatprep.subr.mxu0 0.0
      %3893 = vmatpush1.msra.mxu0 0.0
      %3894 = vmatprep.subr.mxu0 0.0
      %3895 = vmatpush1.msra.mxu0 0.0
      %3896 = vmatprep.subr.mxu0 0.0
      %3897 = vmatpush1.msra.mxu0 0.0
      %3898 = vmatprep.mubr.f32.mxu0 0.0
      %3899 = vmatmul.mubr.f32.gmra.mrb[0].mxu0 %v3619
      %v3900 = vpop.f32.mrb[0].mxu0
      %v3901 = vadd.f32 0.0, %v3900
      %v3902 = vpop.f32.mrb[0].mxu0
      %v3903 = vadd.f32 0.0, %v3902
      %3904 = vdwg.mxu0
      %3905 = vmatprep.subr.mxu0 %v3605
      %3906 = vmatpush1.msra.mxu0 %v3604
      %3907 = vmatprep.subr.mxu0 0.0
      %3908 = vmatpush1.msra.mxu0 0.0
      %3909 = vmatprep.subr.mxu0 0.0
      %3910 = vmatpush1.msra.mxu0 0.0
      %3911 = vmatprep.subr.mxu0 0.0
      %3912 = vmatpush1.msra.mxu0 0.0
      %3913 = vmatprep.subr.mxu0 0.0
      %3914 = vmatpush1.msra.mxu0 0.0
      %3915 = vmatprep.subr.mxu0 0.0
      %3916 = vmatpush1.msra.mxu0 0.0
      %3917 = vmatprep.subr.mxu0 0.0
      %3918 = vmatpush1.msra.mxu0 0.0
      %3919 = vmatprep.subr.mxu0 0.0
      %3920 = vmatpush1.msra.mxu0 0.0
      %3921 = vmatprep.subr.mxu0 0.0
      %3922 = vmatpush1.msra.mxu0 0.0
      %3923 = vmatprep.subr.mxu0 0.0
      %3924 = vmatpush1.msra.mxu0 0.0
      %3925 = vmatprep.subr.mxu0 0.0
      %3926 = vmatpush1.msra.mxu0 0.0
      %3927 = vmatprep.subr.mxu0 0.0
      %3928 = vmatpush1.msra.mxu0 0.0
      %3929 = vmatprep.subr.mxu0 0.0
      %3930 = vmatpush1.msra.mxu0 0.0
      %3931 = vmatprep.subr.mxu0 0.0
      %3932 = vmatpush1.msra.mxu0 0.0
      %3933 = vmatprep.subr.mxu0 0.0
      %3934 = vmatpush1.msra.mxu0 0.0
      %3935 = vmatprep.subr.mxu0 0.0
      %3936 = vmatpush1.msra.mxu0 0.0
      %3937 = vmatprep.subr.mxu0 0.0
      %3938 = vmatpush1.msra.mxu0 0.0
      %3939 = vmatprep.subr.mxu0 0.0
      %3940 = vmatpush1.msra.mxu0 0.0
      %3941 = vmatprep.subr.mxu0 0.0
      %3942 = vmatpush1.msra.mxu0 0.0
      %3943 = vmatprep.subr.mxu0 0.0
      %3944 = vmatpush1.msra.mxu0 0.0
      %3945 = vmatprep.subr.mxu0 0.0
      %3946 = vmatpush1.msra.mxu0 0.0
      %3947 = vmatprep.subr.mxu0 0.0
      %3948 = vmatpush1.msra.mxu0 0.0
      %3949 = vmatprep.subr.mxu0 0.0
      %3950 = vmatpush1.msra.mxu0 0.0
      %3951 = vmatprep.subr.mxu0 0.0
      %3952 = vmatpush1.msra.mxu0 0.0
      %3953 = vmatprep.subr.mxu0 0.0
      %3954 = vmatpush1.msra.mxu0 0.0
      %3955 = vmatprep.subr.mxu0 0.0
      %3956 = vmatpush1.msra.mxu0 0.0
      %3957 = vmatprep.subr.mxu0 0.0
      %3958 = vmatpush1.msra.mxu0 0.0
      %3959 = vmatprep.subr.mxu0 0.0
      %3960 = vmatpush1.msra.mxu0 0.0
      %3961 = vmatprep.subr.mxu0 0.0
      %3962 = vmatpush1.msra.mxu0 0.0
      %3963 = vmatprep.subr.mxu0 0.0
      %3964 = vmatpush1.msra.mxu0 0.0
      %3965 = vmatprep.subr.mxu0 0.0
      %3966 = vmatpush1.msra.mxu0 0.0
      %3967 = vmatprep.subr.mxu0 0.0
      %3968 = vmatpush1.msra.mxu0 0.0
      %3969 = vmatprep.mubr.f32.mxu0 0.0
      %3970 = vmatmul.mubr.f32.gmra.mrb[0].mxu0 %v3619
      %v3971 = vpop.f32.mrb[0].mxu0
      %v3972 = vadd.f32 0.0, %v3971
      %v3973 = vpop.f32.mrb[0].mxu0
      %v3974 = vadd.f32 0.0, %v3973
      %3975 = vdwg.mxu0
      %3976 = vmatprep.subr.mxu0 0.0
      %3977 = vmatpush1.msra.mxu0 %v3606
      %3978 = vmatprep.subr.mxu0 0.0
      %3979 = vmatpush1.msra.mxu0 0.0
      %3980 = vmatprep.subr.mxu0 0.0
      %3981 = vmatpush1.msra.mxu0 0.0
      %3982 = vmatprep.subr.mxu0 0.0
      %3983 = vmatpush1.msra.mxu0 0.0
      %3984 = vmatprep.subr.mxu0 0.0
      %3985 = vmatpush1.msra.mxu0 0.0
      %3986 = vmatprep.subr.mxu0 0.0
      %3987 = vmatpush1.msra.mxu0 0.0
      %3988 = vmatprep.subr.mxu0 0.0
      %3989 = vmatpush1.msra.mxu0 0.0
      %3990 = vmatprep.subr.mxu0 0.0
      %3991 = vmatpush1.msra.mxu0 0.0
      %3992 = vmatprep.subr.mxu0 0.0
      %3993 = vmatpush1.msra.mxu0 0.0
      %3994 = vmatprep.subr.mxu0 0.0
      %3995 = vmatpush1.msra.mxu0 0.0
      %3996 = vmatprep.subr.mxu0 0.0
      %3997 = vmatpush1.msra.mxu0 0.0
      %3998 = vmatprep.subr.mxu0 0.0
      %3999 = vmatpush1.msra.mxu0 0.0
      %4000 = vmatprep.subr.mxu0 0.0
      %4001 = vmatpush1.msra.mxu0 0.0
      %4002 = vmatprep.subr.mxu0 0.0
      %4003 = vmatpush1.msra.mxu0 0.0
      %4004 = vmatprep.subr.mxu0 0.0
      %4005 = vmatpush1.msra.mxu0 0.0
      %4006 = vmatprep.subr.mxu0 0.0
      %4007 = vmatpush1.msra.mxu0 0.0
      %4008 = vmatprep.subr.mxu0 0.0
      %4009 = vmatpush1.msra.mxu0 0.0
      %4010 = vmatprep.subr.mxu0 0.0
      %4011 = vmatpush1.msra.mxu0 0.0
      %4012 = vmatprep.subr.mxu0 0.0
      %4013 = vmatpush1.msra.mxu0 0.0
      %4014 = vmatprep.subr.mxu0 0.0
      %4015 = vmatpush1.msra.mxu0 0.0
      %4016 = vmatprep.subr.mxu0 0.0
      %4017 = vmatpush1.msra.mxu0 0.0
      %4018 = vmatprep.subr.mxu0 0.0
      %4019 = vmatpush1.msra.mxu0 0.0
      %4020 = vmatprep.subr.mxu0 0.0
      %4021 = vmatpush1.msra.mxu0 0.0
      %4022 = vmatprep.subr.mxu0 0.0
      %4023 = vmatpush1.msra.mxu0 0.0
      %4024 = vmatprep.subr.mxu0 0.0
      %4025 = vmatpush1.msra.mxu0 0.0
      %4026 = vmatprep.subr.mxu0 0.0
      %4027 = vmatpush1.msra.mxu0 0.0
      %4028 = vmatprep.subr.mxu0 0.0
      %4029 = vmatpush1.msra.mxu0 0.0
      %4030 = vmatprep.subr.mxu0 0.0
      %4031 = vmatpush1.msra.mxu0 0.0
      %4032 = vmatprep.subr.mxu0 0.0
      %4033 = vmatpush1.msra.mxu0 0.0
      %4034 = vmatprep.subr.mxu0 0.0
      %4035 = vmatpush1.msra.mxu0 0.0
      %4036 = vmatprep.subr.mxu0 0.0
      %4037 = vmatpush1.msra.mxu0 0.0
      %4038 = vmatprep.subr.mxu0 0.0
      %4039 = vmatpush1.msra.mxu0 0.0
      %4040 = vmatprep.mubr.f32.mxu0 0.0
      %4041 = vmatmul.mubr.f32.gmra.mrb[0].mxu0 %v3619
      %v4042 = vpop.f32.mrb[0].mxu0
      %v4043 = vadd.f32 0.0, %v4042
      %v4044 = vpop.f32.mrb[0].mxu0
      %4045 = vdwg.mxu0
      %v4046 = vadd.f32 %v3558, %v3688
      %v4047 = vadd.f32 %v3559, %v3690
      %v4048 = vadd.f32 %v3560, %v3759
      %v4049 = vadd.f32 %v3561, %v3761
      %v4050 = vadd.f32 %v3562, %v3830
      %v4051 = vadd.f32 %v3563, %v3832
      %v4052 = vadd.f32 %v3564, %v3901
      %v4053 = vadd.f32 %v3565, %v3903
      %v4054 = vadd.f32 %v3566, %v3972
      %v4055 = vadd.f32 %v3567, %v3974
      %v4056 = vadd.f32 %v3568, %v4043
      %s4057 = scalar_lea.vmem %s1, 64
      %v4058 = vld [vmem:[%s4057] sm:$0xff]
      %4059 = vrot.lane.b32.xlu0 %v198, 90
      %v4060 = vpop.permute.xlu0 %4059
      %4061 = vrot.lane.b32.xlu0 %v199, 90
      %v4062 = vpop.permute.xlu0 %4061
      %4063 = vrot.lane.b32.xlu0 %v200, 90
      %v4064 = vpop.permute.xlu0 %4063
      %4065 = vrot.lane.b32.xlu0 %v201, 90
      %v4066 = vpop.permute.xlu0 %4065
      %4067 = vrot.lane.b32.xlu0 %v202, 90
      %v4068 = vpop.permute.xlu0 %4067
      %4069 = vrot.lane.b32.xlu0 %v203, 90
      %v4070 = vpop.permute.xlu0 %4069
      %4071 = vrot.lane.b32.xlu0 %v204, 90
      %v4072 = vpop.permute.xlu0 %4071
      %4073 = vrot.lane.b32.xlu0 %v205, 90
      %v4074 = vpop.permute.xlu0 %4073
      %4075 = vrot.lane.b32.xlu0 %v206, 90
      %v4076 = vpop.permute.xlu0 %4075
      %4077 = vrot.lane.b32.xlu0 %v207, 90
      %v4078 = vpop.permute.xlu0 %4077
      %4079 = vrot.lane.b32.xlu0 %v208, 90
      %v4080 = vpop.permute.xlu0 %4079
      %4081 = vrot.lane.b32.xlu0 %v210, 90
      %v4082 = vpop.permute.xlu0 %4081
      %vm4083 = vcmask 736256
      %v4084 = vsel %vm4083, %v4060, %v4062
      %v4085 = vsel %vm4083, %v4062, %v4064
      %v4086 = vsel %vm4083, %v4064, %v4066
      %v4087 = vsel %vm4083, %v4066, %v4068
      %v4088 = vsel %vm4083, %v4068, %v4070
      %v4089 = vsel %vm4083, %v4070, %v4072
      %v4090 = vsel %vm4083, %v4072, %v4074
      %v4091 = vsel %vm4083, %v4074, %v4076
      %v4092 = vsel %vm4083, %v4076, %v4078
      %v4093 = vsel %vm4083, %v4078, %v4080
      %v4094 = vsel %vm4083, %v4080, %v4082
      %v4107 = vsel %vm272, %v4058, 0
      %4109 = vmatprep.subr.mxu0 %v4085
      %4110 = vmatpush1.msra.mxu0 %v4084
      %4111 = vmatprep.subr.mxu0 0.0
      %4112 = vmatpush1.msra.mxu0 0.0
      %4113 = vmatprep.subr.mxu0 0.0
      %4114 = vmatpush1.msra.mxu0 0.0
      %4115 = vmatprep.subr.mxu0 0.0
      %4116 = vmatpush1.msra.mxu0 0.0
      %4117 = vmatprep.subr.mxu0 0.0
      %4118 = vmatpush1.msra.mxu0 0.0
      %4119 = vmatprep.subr.mxu0 0.0
      %4120 = vmatpush1.msra.mxu0 0.0
      %4121 = vmatprep.subr.mxu0 0.0
      %4122 = vmatpush1.msra.mxu0 0.0
      %4123 = vmatprep.subr.mxu0 0.0
      %4124 = vmatpush1.msra.mxu0 0.0
      %4125 = vmatprep.subr.mxu0 0.0
      %4126 = vmatpush1.msra.mxu0 0.0
      %4127 = vmatprep.subr.mxu0 0.0
      %4128 = vmatpush1.msra.mxu0 0.0
      %4129 = vmatprep.subr.mxu0 0.0
      %4130 = vmatpush1.msra.mxu0 0.0
      %4131 = vmatprep.subr.mxu0 0.0
      %4132 = vmatpush1.msra.mxu0 0.0
      %4133 = vmatprep.subr.mxu0 0.0
      %4134 = vmatpush1.msra.mxu0 0.0
      %4135 = vmatprep.subr.mxu0 0.0
      %4136 = vmatpush1.msra.mxu0 0.0
      %4137 = vmatprep.subr.mxu0 0.0
      %4138 = vmatpush1.msra.mxu0 0.0
      %4139 = vmatprep.subr.mxu0 0.0
      %4140 = vmatpush1.msra.mxu0 0.0
      %4141 = vmatprep.subr.mxu0 0.0
      %4142 = vmatpush1.msra.mxu0 0.0
      %4143 = vmatprep.subr.mxu0 0.0
      %4144 = vmatpush1.msra.mxu0 0.0
      %4145 = vmatprep.subr.mxu0 0.0
      %4146 = vmatpush1.msra.mxu0 0.0
      %4147 = vmatprep.subr.mxu0 0.0
      %4148 = vmatpush1.msra.mxu0 0.0
      %4149 = vmatprep.subr.mxu0 0.0
      %4150 = vmatpush1.msra.mxu0 0.0
      %4151 = vmatprep.subr.mxu0 0.0
      %4152 = vmatpush1.msra.mxu0 0.0
      %4153 = vmatprep.subr.mxu0 0.0
      %4154 = vmatpush1.msra.mxu0 0.0
      %4155 = vmatprep.subr.mxu0 0.0
      %4156 = vmatpush1.msra.mxu0 0.0
      %4157 = vmatprep.subr.mxu0 0.0
      %4158 = vmatpush1.msra.mxu0 0.0
      %4159 = vmatprep.subr.mxu0 0.0
      %4160 = vmatpush1.msra.mxu0 0.0
      %4161 = vmatprep.subr.mxu0 0.0
      %4162 = vmatpush1.msra.mxu0 0.0
      %4163 = vmatprep.subr.mxu0 0.0
      %4164 = vmatpush1.msra.mxu0 0.0
      %4165 = vmatprep.subr.mxu0 0.0
      %4166 = vmatpush1.msra.mxu0 0.0
      %4167 = vmatprep.subr.mxu0 0.0
      %4168 = vmatpush1.msra.mxu0 0.0
      %4169 = vmatprep.subr.mxu0 0.0
      %4170 = vmatpush1.msra.mxu0 0.0
      %4171 = vmatprep.subr.mxu0 0.0
      %4172 = vmatpush1.msra.mxu0 0.0
      %4173 = vmatprep.mubr.f32.mxu0 0.0
      %4174 = vmatmul.mubr.f32.gmra.mrb[0].mxu0 %v4107
      %v4175 = vpop.f32.mrb[0].mxu0
      %v4176 = vadd.f32 0.0, %v4175
      %v4177 = vpop.f32.mrb[0].mxu0
      %v4178 = vadd.f32 0.0, %v4177
      %4179 = vdwg.mxu0
      %4180 = vmatprep.subr.mxu0 %v4087
      %4181 = vmatpush1.msra.mxu0 %v4086
      %4182 = vmatprep.subr.mxu0 0.0
      %4183 = vmatpush1.msra.mxu0 0.0
      %4184 = vmatprep.subr.mxu0 0.0
      %4185 = vmatpush1.msra.mxu0 0.0
      %4186 = vmatprep.subr.mxu0 0.0
      %4187 = vmatpush1.msra.mxu0 0.0
      %4188 = vmatprep.subr.mxu0 0.0
      %4189 = vmatpush1.msra.mxu0 0.0
      %4190 = vmatprep.subr.mxu0 0.0
      %4191 = vmatpush1.msra.mxu0 0.0
      %4192 = vmatprep.subr.mxu0 0.0
      %4193 = vmatpush1.msra.mxu0 0.0
      %4194 = vmatprep.subr.mxu0 0.0
      %4195 = vmatpush1.msra.mxu0 0.0
      %4196 = vmatprep.subr.mxu0 0.0
      %4197 = vmatpush1.msra.mxu0 0.0
      %4198 = vmatprep.subr.mxu0 0.0
      %4199 = vmatpush1.msra.mxu0 0.0
      %4200 = vmatprep.subr.mxu0 0.0
      %4201 = vmatpush1.msra.mxu0 0.0
      %4202 = vmatprep.subr.mxu0 0.0
      %4203 = vmatpush1.msra.mxu0 0.0
      %4204 = vmatprep.subr.mxu0 0.0
      %4205 = vmatpush1.msra.mxu0 0.0
      %4206 = vmatprep.subr.mxu0 0.0
      %4207 = vmatpush1.msra.mxu0 0.0
      %4208 = vmatprep.subr.mxu0 0.0
      %4209 = vmatpush1.msra.mxu0 0.0
      %4210 = vmatprep.subr.mxu0 0.0
      %4211 = vmatpush1.msra.mxu0 0.0
      %4212 = vmatprep.subr.mxu0 0.0
      %4213 = vmatpush1.msra.mxu0 0.0
      %4214 = vmatprep.subr.mxu0 0.0
      %4215 = vmatpush1.msra.mxu0 0.0
      %4216 = vmatprep.subr.mxu0 0.0
      %4217 = vmatpush1.msra.mxu0 0.0
      %4218 = vmatprep.subr.mxu0 0.0
      %4219 = vmatpush1.msra.mxu0 0.0
      %4220 = vmatprep.subr.mxu0 0.0
      %4221 = vmatpush1.msra.mxu0 0.0
      %4222 = vmatprep.subr.mxu0 0.0
      %4223 = vmatpush1.msra.mxu0 0.0
      %4224 = vmatprep.subr.mxu0 0.0
      %4225 = vmatpush1.msra.mxu0 0.0
      %4226 = vmatprep.subr.mxu0 0.0
      %4227 = vmatpush1.msra.mxu0 0.0
      %4228 = vmatprep.subr.mxu0 0.0
      %4229 = vmatpush1.msra.mxu0 0.0
      %4230 = vmatprep.subr.mxu0 0.0
      %4231 = vmatpush1.msra.mxu0 0.0
      %4232 = vmatprep.subr.mxu0 0.0
      %4233 = vmatpush1.msra.mxu0 0.0
      %4234 = vmatprep.subr.mxu0 0.0
      %4235 = vmatpush1.msra.mxu0 0.0
      %4236 = vmatprep.subr.mxu0 0.0
      %4237 = vmatpush1.msra.mxu0 0.0
      %4238 = vmatprep.subr.mxu0 0.0
      %4239 = vmatpush1.msra.mxu0 0.0
      %4240 = vmatprep.subr.mxu0 0.0
      %4241 = vmatpush1.msra.mxu0 0.0
      %4242 = vmatprep.subr.mxu0 0.0
      %4243 = vmatpush1.msra.mxu0 0.0
      %4244 = vmatprep.mubr.f32.mxu0 0.0
      %4245 = vmatmul.mubr.f32.gmra.mrb[0].mxu0 %v4107
      %v4246 = vpop.f32.mrb[0].mxu0
      %v4247 = vadd.f32 0.0, %v4246
      %v4248 = vpop.f32.mrb[0].mxu0
      %v4249 = vadd.f32 0.0, %v4248
      %4250 = vdwg.mxu0
      %4251 = vmatprep.subr.mxu0 %v4089
      %4252 = vmatpush1.msra.mxu0 %v4088
      %4253 = vmatprep.subr.mxu0 0.0
      %4254 = vmatpush1.msra.mxu0 0.0
      %4255 = vmatprep.subr.mxu0 0.0
      %4256 = vmatpush1.msra.mxu0 0.0
      %4257 = vmatprep.subr.mxu0 0.0
      %4258 = vmatpush1.msra.mxu0 0.0
      %4259 = vmatprep.subr.mxu0 0.0
      %4260 = vmatpush1.msra.mxu0 0.0
      %4261 = vmatprep.subr.mxu0 0.0
      %4262 = vmatpush1.msra.mxu0 0.0
      %4263 = vmatprep.subr.mxu0 0.0
      %4264 = vmatpush1.msra.mxu0 0.0
      %4265 = vmatprep.subr.mxu0 0.0
      %4266 = vmatpush1.msra.mxu0 0.0
      %4267 = vmatprep.subr.mxu0 0.0
      %4268 = vmatpush1.msra.mxu0 0.0
      %4269 = vmatprep.subr.mxu0 0.0
      %4270 = vmatpush1.msra.mxu0 0.0
      %4271 = vmatprep.subr.mxu0 0.0
      %4272 = vmatpush1.msra.mxu0 0.0
      %4273 = vmatprep.subr.mxu0 0.0
      %4274 = vmatpush1.msra.mxu0 0.0
      %4275 = vmatprep.subr.mxu0 0.0
      %4276 = vmatpush1.msra.mxu0 0.0
      %4277 = vmatprep.subr.mxu0 0.0
      %4278 = vmatpush1.msra.mxu0 0.0
      %4279 = vmatprep.subr.mxu0 0.0
      %4280 = vmatpush1.msra.mxu0 0.0
      %4281 = vmatprep.subr.mxu0 0.0
      %4282 = vmatpush1.msra.mxu0 0.0
      %4283 = vmatprep.subr.mxu0 0.0
      %4284 = vmatpush1.msra.mxu0 0.0
      %4285 = vmatprep.subr.mxu0 0.0
      %4286 = vmatpush1.msra.mxu0 0.0
      %4287 = vmatprep.subr.mxu0 0.0
      %4288 = vmatpush1.msra.mxu0 0.0
      %4289 = vmatprep.subr.mxu0 0.0
      %4290 = vmatpush1.msra.mxu0 0.0
      %4291 = vmatprep.subr.mxu0 0.0
      %4292 = vmatpush1.msra.mxu0 0.0
      %4293 = vmatprep.subr.mxu0 0.0
      %4294 = vmatpush1.msra.mxu0 0.0
      %4295 = vmatprep.subr.mxu0 0.0
      %4296 = vmatpush1.msra.mxu0 0.0
      %4297 = vmatprep.subr.mxu0 0.0
      %4298 = vmatpush1.msra.mxu0 0.0
      %4299 = vmatprep.subr.mxu0 0.0
      %4300 = vmatpush1.msra.mxu0 0.0
      %4301 = vmatprep.subr.mxu0 0.0
      %4302 = vmatpush1.msra.mxu0 0.0
      %4303 = vmatprep.subr.mxu0 0.0
      %4304 = vmatpush1.msra.mxu0 0.0
      %4305 = vmatprep.subr.mxu0 0.0
      %4306 = vmatpush1.msra.mxu0 0.0
      %4307 = vmatprep.subr.mxu0 0.0
      %4308 = vmatpush1.msra.mxu0 0.0
      %4309 = vmatprep.subr.mxu0 0.0
      %4310 = vmatpush1.msra.mxu0 0.0
      %4311 = vmatprep.subr.mxu0 0.0
      %4312 = vmatpush1.msra.mxu0 0.0
      %4313 = vmatprep.subr.mxu0 0.0
      %4314 = vmatpush1.msra.mxu0 0.0
      %4315 = vmatprep.mubr.f32.mxu0 0.0
      %4316 = vmatmul.mubr.f32.gmra.mrb[0].mxu0 %v4107
      %v4317 = vpop.f32.mrb[0].mxu0
      %v4318 = vadd.f32 0.0, %v4317
      %v4319 = vpop.f32.mrb[0].mxu0
      %v4320 = vadd.f32 0.0, %v4319
      %4321 = vdwg.mxu0
      %4322 = vmatprep.subr.mxu0 %v4091
      %4323 = vmatpush1.msra.mxu0 %v4090
      %4324 = vmatprep.subr.mxu0 0.0
      %4325 = vmatpush1.msra.mxu0 0.0
      %4326 = vmatprep.subr.mxu0 0.0
      %4327 = vmatpush1.msra.mxu0 0.0
      %4328 = vmatprep.subr.mxu0 0.0
      %4329 = vmatpush1.msra.mxu0 0.0
      %4330 = vmatprep.subr.mxu0 0.0
      %4331 = vmatpush1.msra.mxu0 0.0
      %4332 = vmatprep.subr.mxu0 0.0
      %4333 = vmatpush1.msra.mxu0 0.0
      %4334 = vmatprep.subr.mxu0 0.0
      %4335 = vmatpush1.msra.mxu0 0.0
      %4336 = vmatprep.subr.mxu0 0.0
      %4337 = vmatpush1.msra.mxu0 0.0
      %4338 = vmatprep.subr.mxu0 0.0
      %4339 = vmatpush1.msra.mxu0 0.0
      %4340 = vmatprep.subr.mxu0 0.0
      %4341 = vmatpush1.msra.mxu0 0.0
      %4342 = vmatprep.subr.mxu0 0.0
      %4343 = vmatpush1.msra.mxu0 0.0
      %4344 = vmatprep.subr.mxu0 0.0
      %4345 = vmatpush1.msra.mxu0 0.0
      %4346 = vmatprep.subr.mxu0 0.0
      %4347 = vmatpush1.msra.mxu0 0.0
      %4348 = vmatprep.subr.mxu0 0.0
      %4349 = vmatpush1.msra.mxu0 0.0
      %4350 = vmatprep.subr.mxu0 0.0
      %4351 = vmatpush1.msra.mxu0 0.0
      %4352 = vmatprep.subr.mxu0 0.0
      %4353 = vmatpush1.msra.mxu0 0.0
      %4354 = vmatprep.subr.mxu0 0.0
      %4355 = vmatpush1.msra.mxu0 0.0
      %4356 = vmatprep.subr.mxu0 0.0
      %4357 = vmatpush1.msra.mxu0 0.0
      %4358 = vmatprep.subr.mxu0 0.0
      %4359 = vmatpush1.msra.mxu0 0.0
      %4360 = vmatprep.subr.mxu0 0.0
      %4361 = vmatpush1.msra.mxu0 0.0
      %4362 = vmatprep.subr.mxu0 0.0
      %4363 = vmatpush1.msra.mxu0 0.0
      %4364 = vmatprep.subr.mxu0 0.0
      %4365 = vmatpush1.msra.mxu0 0.0
      %4366 = vmatprep.subr.mxu0 0.0
      %4367 = vmatpush1.msra.mxu0 0.0
      %4368 = vmatprep.subr.mxu0 0.0
      %4369 = vmatpush1.msra.mxu0 0.0
      %4370 = vmatprep.subr.mxu0 0.0
      %4371 = vmatpush1.msra.mxu0 0.0
      %4372 = vmatprep.subr.mxu0 0.0
      %4373 = vmatpush1.msra.mxu0 0.0
      %4374 = vmatprep.subr.mxu0 0.0
      %4375 = vmatpush1.msra.mxu0 0.0
      %4376 = vmatprep.subr.mxu0 0.0
      %4377 = vmatpush1.msra.mxu0 0.0
      %4378 = vmatprep.subr.mxu0 0.0
      %4379 = vmatpush1.msra.mxu0 0.0
      %4380 = vmatprep.subr.mxu0 0.0
      %4381 = vmatpush1.msra.mxu0 0.0
      %4382 = vmatprep.subr.mxu0 0.0
      %4383 = vmatpush1.msra.mxu0 0.0
      %4384 = vmatprep.subr.mxu0 0.0
      %4385 = vmatpush1.msra.mxu0 0.0
      %4386 = vmatprep.mubr.f32.mxu0 0.0
      %4387 = vmatmul.mubr.f32.gmra.mrb[0].mxu0 %v4107
      %v4388 = vpop.f32.mrb[0].mxu0
      %v4389 = vadd.f32 0.0, %v4388
      %v4390 = vpop.f32.mrb[0].mxu0
      %v4391 = vadd.f32 0.0, %v4390
      %4392 = vdwg.mxu0
      %4393 = vmatprep.subr.mxu0 %v4093
      %4394 = vmatpush1.msra.mxu0 %v4092
      %4395 = vmatprep.subr.mxu0 0.0
      %4396 = vmatpush1.msra.mxu0 0.0
      %4397 = vmatprep.subr.mxu0 0.0
      %4398 = vmatpush1.msra.mxu0 0.0
      %4399 = vmatprep.subr.mxu0 0.0
      %4400 = vmatpush1.msra.mxu0 0.0
      %4401 = vmatprep.subr.mxu0 0.0
      %4402 = vmatpush1.msra.mxu0 0.0
      %4403 = vmatprep.subr.mxu0 0.0
      %4404 = vmatpush1.msra.mxu0 0.0
      %4405 = vmatprep.subr.mxu0 0.0
      %4406 = vmatpush1.msra.mxu0 0.0
      %4407 = vmatprep.subr.mxu0 0.0
      %4408 = vmatpush1.msra.mxu0 0.0
      %4409 = vmatprep.subr.mxu0 0.0
      %4410 = vmatpush1.msra.mxu0 0.0
      %4411 = vmatprep.subr.mxu0 0.0
      %4412 = vmatpush1.msra.mxu0 0.0
      %4413 = vmatprep.subr.mxu0 0.0
      %4414 = vmatpush1.msra.mxu0 0.0
      %4415 = vmatprep.subr.mxu0 0.0
      %4416 = vmatpush1.msra.mxu0 0.0
      %4417 = vmatprep.subr.mxu0 0.0
      %4418 = vmatpush1.msra.mxu0 0.0
      %4419 = vmatprep.subr.mxu0 0.0
      %4420 = vmatpush1.msra.mxu0 0.0
      %4421 = vmatprep.subr.mxu0 0.0
      %4422 = vmatpush1.msra.mxu0 0.0
      %4423 = vmatprep.subr.mxu0 0.0
      %4424 = vmatpush1.msra.mxu0 0.0
      %4425 = vmatprep.subr.mxu0 0.0
      %4426 = vmatpush1.msra.mxu0 0.0
      %4427 = vmatprep.subr.mxu0 0.0
      %4428 = vmatpush1.msra.mxu0 0.0
      %4429 = vmatprep.subr.mxu0 0.0
      %4430 = vmatpush1.msra.mxu0 0.0
      %4431 = vmatprep.subr.mxu0 0.0
      %4432 = vmatpush1.msra.mxu0 0.0
      %4433 = vmatprep.subr.mxu0 0.0
      %4434 = vmatpush1.msra.mxu0 0.0
      %4435 = vmatprep.subr.mxu0 0.0
      %4436 = vmatpush1.msra.mxu0 0.0
      %4437 = vmatprep.subr.mxu0 0.0
      %4438 = vmatpush1.msra.mxu0 0.0
      %4439 = vmatprep.subr.mxu0 0.0
      %4440 = vmatpush1.msra.mxu0 0.0
      %4441 = vmatprep.subr.mxu0 0.0
      %4442 = vmatpush1.msra.mxu0 0.0
      %4443 = vmatprep.subr.mxu0 0.0
      %4444 = vmatpush1.msra.mxu0 0.0
      %4445 = vmatprep.subr.mxu0 0.0
      %4446 = vmatpush1.msra.mxu0 0.0
      %4447 = vmatprep.subr.mxu0 0.0
      %4448 = vmatpush1.msra.mxu0 0.0
      %4449 = vmatprep.subr.mxu0 0.0
      %4450 = vmatpush1.msra.mxu0 0.0
      %4451 = vmatprep.subr.mxu0 0.0
      %4452 = vmatpush1.msra.mxu0 0.0
      %4453 = vmatprep.subr.mxu0 0.0
      %4454 = vmatpush1.msra.mxu0 0.0
      %4455 = vmatprep.subr.mxu0 0.0
      %4456 = vmatpush1.msra.mxu0 0.0
      %4457 = vmatprep.mubr.f32.mxu0 0.0
      %4458 = vmatmul.mubr.f32.gmra.mrb[0].mxu0 %v4107
      %v4459 = vpop.f32.mrb[0].mxu0
      %v4460 = vadd.f32 0.0, %v4459
      %v4461 = vpop.f32.mrb[0].mxu0
      %v4462 = vadd.f32 0.0, %v4461
      %4463 = vdwg.mxu0
      %4464 = vmatprep.subr.mxu0 0.0
      %4465 = vmatpush1.msra.mxu0 %v4094
      %4466 = vmatprep.subr.mxu0 0.0
      %4467 = vmatpush1.msra.mxu0 0.0
      %4468 = vmatprep.subr.mxu0 0.0
      %4469 = vmatpush1.msra.mxu0 0.0
      %4470 = vmatprep.subr.mxu0 0.0
      %4471 = vmatpush1.msra.mxu0 0.0
      %4472 = vmatprep.subr.mxu0 0.0
      %4473 = vmatpush1.msra.mxu0 0.0
      %4474 = vmatprep.subr.mxu0 0.0
      %4475 = vmatpush1.msra.mxu0 0.0
      %4476 = vmatprep.subr.mxu0 0.0
      %4477 = vmatpush1.msra.mxu0 0.0
      %4478 = vmatprep.subr.mxu0 0.0
      %4479 = vmatpush1.msra.mxu0 0.0
      %4480 = vmatprep.subr.mxu0 0.0
      %4481 = vmatpush1.msra.mxu0 0.0
      %4482 = vmatprep.subr.mxu0 0.0
      %4483 = vmatpush1.msra.mxu0 0.0
      %4484 = vmatprep.subr.mxu0 0.0
      %4485 = vmatpush1.msra.mxu0 0.0
      %4486 = vmatprep.subr.mxu0 0.0
      %4487 = vmatpush1.msra.mxu0 0.0
      %4488 = vmatprep.subr.mxu0 0.0
      %4489 = vmatpush1.msra.mxu0 0.0
      %4490 = vmatprep.subr.mxu0 0.0
      %4491 = vmatpush1.msra.mxu0 0.0
      %4492 = vmatprep.subr.mxu0 0.0
      %4493 = vmatpush1.msra.mxu0 0.0
      %4494 = vmatprep.subr.mxu0 0.0
      %4495 = vmatpush1.msra.mxu0 0.0
      %4496 = vmatprep.subr.mxu0 0.0
      %4497 = vmatpush1.msra.mxu0 0.0
      %4498 = vmatprep.subr.mxu0 0.0
      %4499 = vmatpush1.msra.mxu0 0.0
      %4500 = vmatprep.subr.mxu0 0.0
      %4501 = vmatpush1.msra.mxu0 0.0
      %4502 = vmatprep.subr.mxu0 0.0
      %4503 = vmatpush1.msra.mxu0 0.0
      %4504 = vmatprep.subr.mxu0 0.0
      %4505 = vmatpush1.msra.mxu0 0.0
      %4506 = vmatprep.subr.mxu0 0.0
      %4507 = vmatpush1.msra.mxu0 0.0
      %4508 = vmatprep.subr.mxu0 0.0
      %4509 = vmatpush1.msra.mxu0 0.0
      %4510 = vmatprep.subr.mxu0 0.0
      %4511 = vmatpush1.msra.mxu0 0.0
      %4512 = vmatprep.subr.mxu0 0.0
      %4513 = vmatpush1.msra.mxu0 0.0
      %4514 = vmatprep.subr.mxu0 0.0
      %4515 = vmatpush1.msra.mxu0 0.0
      %4516 = vmatprep.subr.mxu0 0.0
      %4517 = vmatpush1.msra.mxu0 0.0
      %4518 = vmatprep.subr.mxu0 0.0
      %4519 = vmatpush1.msra.mxu0 0.0
      %4520 = vmatprep.subr.mxu0 0.0
      %4521 = vmatpush1.msra.mxu0 0.0
      %4522 = vmatprep.subr.mxu0 0.0
      %4523 = vmatpush1.msra.mxu0 0.0
      %4524 = vmatprep.subr.mxu0 0.0
      %4525 = vmatpush1.msra.mxu0 0.0
      %4526 = vmatprep.subr.mxu0 0.0
      %4527 = vmatpush1.msra.mxu0 0.0
      %4528 = vmatprep.mubr.f32.mxu0 0.0
      %4529 = vmatmul.mubr.f32.gmra.mrb[0].mxu0 %v4107
      %v4530 = vpop.f32.mrb[0].mxu0
      %v4531 = vadd.f32 0.0, %v4530
      %v4532 = vpop.f32.mrb[0].mxu0
      %4533 = vdwg.mxu0
      %v4534 = vadd.f32 %v4046, %v4176
      %v4535 = vadd.f32 %v4047, %v4178
      %v4536 = vadd.f32 %v4048, %v4247
      %v4537 = vadd.f32 %v4049, %v4249
      %v4538 = vadd.f32 %v4050, %v4318
      %v4539 = vadd.f32 %v4051, %v4320
      %v4540 = vadd.f32 %v4052, %v4389
      %v4541 = vadd.f32 %v4053, %v4391
      %v4542 = vadd.f32 %v4054, %v4460
      %v4543 = vadd.f32 %v4055, %v4462
      %v4544 = vadd.f32 %v4056, %v4531
      %vm4545 = vcmp.gt.f32.partialorder %v4534, 0.0
      %vm4546 = vcmp.gt.f32.partialorder %v4535, 0.0
      %vm4547 = vcmp.gt.f32.partialorder %v4536, 0.0
      %vm4548 = vcmp.gt.f32.partialorder %v4537, 0.0
      %vm4549 = vcmp.gt.f32.partialorder %v4538, 0.0
      %vm4550 = vcmp.gt.f32.partialorder %v4539, 0.0
      %vm4551 = vcmp.gt.f32.partialorder %v4540, 0.0
      %vm4552 = vcmp.gt.f32.partialorder %v4541, 0.0
      %vm4553 = vcmp.gt.f32.partialorder %v4542, 0.0
      %vm4554 = vcmp.gt.f32.partialorder %v4543, 0.0
      %vm4555 = vcmp.gt.f32.partialorder %v4544, 0.0
      %v4556 = vmul.f32 %v4534, 0.1
      %v4557 = vmul.f32 %v4535, 0.1
      %v4558 = vmul.f32 %v4536, 0.1
      %v4559 = vmul.f32 %v4537, 0.1
      %v4560 = vmul.f32 %v4538, 0.1
      %v4561 = vmul.f32 %v4539, 0.1
      %v4562 = vmul.f32 %v4540, 0.1
      %v4563 = vmul.f32 %v4541, 0.1
      %v4564 = vmul.f32 %v4542, 0.1
      %v4565 = vmul.f32 %v4543, 0.1
      %v4566 = vmul.f32 %v4544, 0.1
      %v4567 = vsel %vm4545, %v4534, %v4556
      %v4568 = vsel %vm4546, %v4535, %v4557
      %v4569 = vsel %vm4547, %v4536, %v4558
      %v4570 = vsel %vm4548, %v4537, %v4559
      %v4571 = vsel %vm4549, %v4538, %v4560
      %v4572 = vsel %vm4550, %v4539, %v4561
      %v4573 = vsel %vm4551, %v4540, %v4562
      %v4574 = vsel %vm4552, %v4541, %v4563
      %v4575 = vsel %vm4553, %v4542, %v4564
      %v4576 = vsel %vm4554, %v4543, %v4565
      %v4577 = vsel %vm4555, %v4544, %v4566
      %v4578 = vld [vmem:[%s3] sm:$0xff]
      %v4579 = vld [vmem:[%s3 + $0x8] sm:$0x7]
      %v4582 = vlaneseq
      %v4583 = vshrl.u32 %v4582, 7
      %v4584 = vsub.s32 0, %v4583
      %v4585 = vrot.slane %v4578, %v4584
      %v4586 = vlaneseq
      %v4587 = vshrl.u32 %v4586, 7
      %v4588 = vsub.s32 1, %v4587
      %v4589 = vrot.slane %v4578, %v4588
      %v4590 = vlaneseq
      %v4591 = vshrl.u32 %v4590, 7
      %v4592 = vsub.s32 2, %v4591
      %v4593 = vrot.slane %v4578, %v4592
      %v4594 = vlaneseq
      %v4595 = vshrl.u32 %v4594, 7
      %v4596 = vsub.s32 3, %v4595
      %v4597 = vrot.slane %v4578, %v4596
      %v4598 = vlaneseq
      %v4599 = vshrl.u32 %v4598, 7
      %v4600 = vsub.s32 4, %v4599
      %v4601 = vrot.slane %v4578, %v4600
      %v4602 = vlaneseq
      %v4603 = vshrl.u32 %v4602, 7
      %v4604 = vsub.s32 5, %v4603
      %v4605 = vrot.slane %v4578, %v4604
      %v4606 = vlaneseq
      %v4607 = vshrl.u32 %v4606, 7
      %v4608 = vsub.s32 6, %v4607
      %v4609 = vrot.slane %v4578, %v4608
      %v4610 = vlaneseq
      %v4611 = vshrl.u32 %v4610, 7
      %v4612 = vsub.s32 7, %v4611
      %v4613 = vrot.slane %v4578, %v4612
      %v4614 = vlaneseq
      %v4615 = vshrl.u32 %v4614, 7
      %v4616 = vsub.s32 0, %v4615
      %v4617 = vrot.slane %v4579, %v4616
      %v4618 = vlaneseq
      %v4619 = vshrl.u32 %v4618, 7
      %v4620 = vsub.s32 1, %v4619
      %v4621 = vrot.slane %v4579, %v4620
      %v4622 = vlaneseq
      %v4623 = vshrl.u32 %v4622, 7
      %v4624 = vsub.s32 2, %v4623
      %v4625 = vrot.slane %v4579, %v4624
      %v4637 = vmul.f32 %v4567, %v4585
      %v4638 = vmul.f32 %v4568, %v4589
      %v4639 = vmul.f32 %v4569, %v4593
      %v4640 = vmul.f32 %v4570, %v4597
      %v4641 = vmul.f32 %v4571, %v4601
      %v4642 = vmul.f32 %v4572, %v4605
      %v4643 = vmul.f32 %v4573, %v4609
      %v4644 = vmul.f32 %v4574, %v4613
      %v4645 = vmul.f32 %v4575, %v4617
      %v4646 = vmul.f32 %v4576, %v4621
      %v4647 = vmul.f32 %v4577, %v4625
      %4648 = vst [vmem:[#allocation2] sm:$0xff] 0.0
      %4649 = vst [vmem:[#allocation2 + $0x8] sm:$0xff] 0.0
      %4650 = vst [vmem:[#allocation2 + $0x10] sm:$0xff] 0.0
      %4651 = vst [vmem:[#allocation2 + $0x18] sm:$0xff] 0.0
      %4652 = vst [vmem:[#allocation2 + $0x20] sm:$0xff] 0.0
      %4653 = vst [vmem:[#allocation2 + $0x28] sm:$0xff] 0.0
      %4654 = vst [vmem:[#allocation2 + $0x30] sm:$0xff] 0.0
      %4655 = vst [vmem:[#allocation2 + $0x38] sm:$0xff] 0.0
      %4656 = vst [vmem:[#allocation2 + $0x40] sm:$0xff] 0.0
      %4657 = vst [vmem:[#allocation2 + $0x48] sm:$0xff] 0.0
      %4658 = vst [vmem:[#allocation2 + $0x50] sm:$0xff] 0.0
      %vm4659 = vcmask 310272
      %4660 = vst.msk [vmem:[#allocation2 + $0x58] sm:$0xff] %vm4659, 0.0
      %4672 = vrot.lane.b32.xlu0 %v4637, 19
      %v4673 = vpop.permute.xlu0 %4672
      %4674 = vrot.lane.b32.xlu0 %v4638, 19
      %v4675 = vpop.permute.xlu0 %4674
      %4676 = vrot.lane.b32.xlu0 %v4639, 19
      %v4677 = vpop.permute.xlu0 %4676
      %4678 = vrot.lane.b32.xlu0 %v4640, 19
      %v4679 = vpop.permute.xlu0 %4678
      %4680 = vrot.lane.b32.xlu0 %v4641, 19
      %v4681 = vpop.permute.xlu0 %4680
      %4682 = vrot.lane.b32.xlu0 %v4642, 19
      %v4683 = vpop.permute.xlu0 %4682
      %4684 = vrot.lane.b32.xlu0 %v4643, 19
      %v4685 = vpop.permute.xlu0 %4684
      %4686 = vrot.lane.b32.xlu0 %v4644, 19
      %v4687 = vpop.permute.xlu0 %4686
      %4688 = vrot.lane.b32.xlu0 %v4645, 19
      %v4689 = vpop.permute.xlu0 %4688
      %4690 = vrot.lane.b32.xlu0 %v4646, 19
      %v4691 = vpop.permute.xlu0 %4690
      %4692 = vrot.lane.b32.xlu0 %v4647, 19
      %v4693 = vpop.permute.xlu0 %4692
      %vm4694 = vcmask 154624
      %v4695 = vsel %vm4694, %v4673, %v4675
      %v4696 = vsel %vm4694, %v4675, %v4677
      %v4697 = vsel %vm4694, %v4677, %v4679
      %v4698 = vsel %vm4694, %v4679, %v4681
      %v4699 = vsel %vm4694, %v4681, %v4683
      %v4700 = vsel %vm4694, %v4683, %v4685
      %v4701 = vsel %vm4694, %v4685, %v4687
      %v4702 = vsel %vm4694, %v4687, %v4689
      %v4703 = vsel %vm4694, %v4689, %v4691
      %v4704 = vsel %vm4694, %v4691, %v4693
      %vm4717 = vcmask 1047704
      %4718 = vst.msk [vmem:[#allocation2] sm:$0xff] %vm4717, %v4673
      %4719 = vst [vmem:[#allocation2 + $0x8] sm:$0xff] %v4695
      %4720 = vst [vmem:[#allocation2 + $0x10] sm:$0xff] %v4696
      %4721 = vst [vmem:[#allocation2 + $0x18] sm:$0xff] %v4697
      %4722 = vst [vmem:[#allocation2 + $0x20] sm:$0xff] %v4698
      %4723 = vst [vmem:[#allocation2 + $0x28] sm:$0xff] %v4699
      %4724 = vst [vmem:[#allocation2 + $0x30] sm:$0xff] %v4700
      %4725 = vst [vmem:[#allocation2 + $0x38] sm:$0xff] %v4701
      %4726 = vst [vmem:[#allocation2 + $0x40] sm:$0xff] %v4702
      %4727 = vst [vmem:[#allocation2 + $0x48] sm:$0xff] %v4703
      %4728 = vst [vmem:[#allocation2 + $0x50] sm:$0xff] %v4704
      %4729 = vst.msk [vmem:[#allocation2 + $0x58] sm:$0xff] %vm4694, %v4693
      %v4730 = vld [vmem:[#allocation2] sm:$0xff]
      %v4731 = vld [vmem:[#allocation2 + $0x8] sm:$0xff]
      %v4732 = vld [vmem:[#allocation2 + $0x10] sm:$0xff]
      %v4733 = vld [vmem:[#allocation2 + $0x18] sm:$0xff]
      %v4734 = vld [vmem:[#allocation2 + $0x20] sm:$0xff]
      %v4735 = vld [vmem:[#allocation2 + $0x28] sm:$0xff]
      %v4736 = vld [vmem:[#allocation2 + $0x30] sm:$0xff]
      %v4737 = vld [vmem:[#allocation2 + $0x38] sm:$0xff]
      %v4738 = vld [vmem:[#allocation2 + $0x40] sm:$0xff]
      %v4739 = vld [vmem:[#allocation2 + $0x48] sm:$0xff]
      %v4740 = vld [vmem:[#allocation2 + $0x50] sm:$0xff]
      %v4741 = vld [vmem:[%s2] sm:$0xff]
      %v4742 = vld [vmem:[#allocation2 + $0x58] sm:$0xff]
      %s4743 = scalar_lea.vmem %s2, 8
      %v4744 = vld [vmem:[%s4743] sm:$0xff]
      %4757 = vrot.lane.b32.xlu0 %v4730, 127
      %v4758 = vpop.permute.xlu0 %4757
      %4759 = vrot.lane.b32.xlu0 %v4731, 127
      %v4760 = vpop.permute.xlu0 %4759
      %4761 = vrot.lane.b32.xlu0 %v4732, 127
      %v4762 = vpop.permute.xlu0 %4761
      %4763 = vrot.lane.b32.xlu0 %v4733, 127
      %v4764 = vpop.permute.xlu0 %4763
      %4765 = vrot.lane.b32.xlu0 %v4734, 127
      %v4766 = vpop.permute.xlu0 %4765
      %4767 = vrot.lane.b32.xlu0 %v4735, 127
      %v4768 = vpop.permute.xlu0 %4767
      %4769 = vrot.lane.b32.xlu0 %v4736, 127
      %v4770 = vpop.permute.xlu0 %4769
      %4771 = vrot.lane.b32.xlu0 %v4737, 127
      %v4772 = vpop.permute.xlu0 %4771
      %4773 = vrot.lane.b32.xlu0 %v4738, 127
      %v4774 = vpop.permute.xlu0 %4773
      %4775 = vrot.lane.b32.xlu0 %v4739, 127
      %v4776 = vpop.permute.xlu0 %4775
      %4777 = vrot.lane.b32.xlu0 %v4740, 127
      %v4778 = vpop.permute.xlu0 %4777
      %4779 = vrot.lane.b32.xlu0 %v4742, 127
      %v4780 = vpop.permute.xlu0 %4779
      %v4781 = vsel %vm249, %v4758, %v4760
      %v4782 = vsel %vm249, %v4760, %v4762
      %v4783 = vsel %vm249, %v4762, %v4764
      %v4784 = vsel %vm249, %v4764, %v4766
      %v4785 = vsel %vm249, %v4766, %v4768
      %v4786 = vsel %vm249, %v4768, %v4770
      %v4787 = vsel %vm249, %v4770, %v4772
      %v4788 = vsel %vm249, %v4772, %v4774
      %v4789 = vsel %vm249, %v4774, %v4776
      %v4790 = vsel %vm249, %v4776, %v4778
      %v4791 = vsel %vm249, %v4778, %v4780
      %v4804 = vsel %vm272, %v4744, 0
      %4806 = vmatprep.subr.mxu0 %v4782
      %4807 = vmatpush1.msra.mxu0 %v4781
      %4808 = vmatprep.subr.mxu0 0.0
      %4809 = vmatpush1.msra.mxu0 0.0
      %4810 = vmatprep.subr.mxu0 0.0
      %4811 = vmatpush1.msra.mxu0 0.0
      %4812 = vmatprep.subr.mxu0 0.0
      %4813 = vmatpush1.msra.mxu0 0.0
      %4814 = vmatprep.subr.mxu0 0.0
      %4815 = vmatpush1.msra.mxu0 0.0
      %4816 = vmatprep.subr.mxu0 0.0
      %4817 = vmatpush1.msra.mxu0 0.0
      %4818 = vmatprep.subr.mxu0 0.0
      %4819 = vmatpush1.msra.mxu0 0.0
      %4820 = vmatprep.subr.mxu0 0.0
      %4821 = vmatpush1.msra.mxu0 0.0
      %4822 = vmatprep.subr.mxu0 0.0
      %4823 = vmatpush1.msra.mxu0 0.0
      %4824 = vmatprep.subr.mxu0 0.0
      %4825 = vmatpush1.msra.mxu0 0.0
      %4826 = vmatprep.subr.mxu0 0.0
      %4827 = vmatpush1.msra.mxu0 0.0
      %4828 = vmatprep.subr.mxu0 0.0
      %4829 = vmatpush1.msra.mxu0 0.0
      %4830 = vmatprep.subr.mxu0 0.0
      %4831 = vmatpush1.msra.mxu0 0.0
      %4832 = vmatprep.subr.mxu0 0.0
      %4833 = vmatpush1.msra.mxu0 0.0
      %4834 = vmatprep.subr.mxu0 0.0
      %4835 = vmatpush1.msra.mxu0 0.0
      %4836 = vmatprep.subr.mxu0 0.0
      %4837 = vmatpush1.msra.mxu0 0.0
      %4838 = vmatprep.subr.mxu0 0.0
      %4839 = vmatpush1.msra.mxu0 0.0
      %4840 = vmatprep.subr.mxu0 0.0
      %4841 = vmatpush1.msra.mxu0 0.0
      %4842 = vmatprep.subr.mxu0 0.0
      %4843 = vmatpush1.msra.mxu0 0.0
      %4844 = vmatprep.subr.mxu0 0.0
      %4845 = vmatpush1.msra.mxu0 0.0
      %4846 = vmatprep.subr.mxu0 0.0
      %4847 = vmatpush1.msra.mxu0 0.0
      %4848 = vmatprep.subr.mxu0 0.0
      %4849 = vmatpush1.msra.mxu0 0.0
      %4850 = vmatprep.subr.mxu0 0.0
      %4851 = vmatpush1.msra.mxu0 0.0
      %4852 = vmatprep.subr.mxu0 0.0
      %4853 = vmatpush1.msra.mxu0 0.0
      %4854 = vmatprep.subr.mxu0 0.0
      %4855 = vmatpush1.msra.mxu0 0.0
      %4856 = vmatprep.subr.mxu0 0.0
      %4857 = vmatpush1.msra.mxu0 0.0
      %4858 = vmatprep.subr.mxu0 0.0
      %4859 = vmatpush1.msra.mxu0 0.0
      %4860 = vmatprep.subr.mxu0 0.0
      %4861 = vmatpush1.msra.mxu0 0.0
      %4862 = vmatprep.subr.mxu0 0.0
      %4863 = vmatpush1.msra.mxu0 0.0
      %4864 = vmatprep.subr.mxu0 0.0
      %4865 = vmatpush1.msra.mxu0 0.0
      %4866 = vmatprep.subr.mxu0 0.0
      %4867 = vmatpush1.msra.mxu0 0.0
      %4868 = vmatprep.subr.mxu0 0.0
      %4869 = vmatpush1.msra.mxu0 0.0
      %4870 = vmatprep.mubr.f32.mxu0 0.0
      %4871 = vmatmul.mubr.f32.gmra.mrb[0].mxu0 %v4804
      %v4872 = vpop.f32.mrb[0].mxu0
      %v4873 = vadd.f32 0.0, %v4872
      %v4874 = vpop.f32.mrb[0].mxu0
      %v4875 = vadd.f32 0.0, %v4874
      %4876 = vdwg.mxu0
      %4877 = vmatprep.subr.mxu0 %v4784
      %4878 = vmatpush1.msra.mxu0 %v4783
      %4879 = vmatprep.subr.mxu0 0.0
      %4880 = vmatpush1.msra.mxu0 0.0
      %4881 = vmatprep.subr.mxu0 0.0
      %4882 = vmatpush1.msra.mxu0 0.0
      %4883 = vmatprep.subr.mxu0 0.0
      %4884 = vmatpush1.msra.mxu0 0.0
      %4885 = vmatprep.subr.mxu0 0.0
      %4886 = vmatpush1.msra.mxu0 0.0
      %4887 = vmatprep.subr.mxu0 0.0
      %4888 = vmatpush1.msra.mxu0 0.0
      %4889 = vmatprep.subr.mxu0 0.0
      %4890 = vmatpush1.msra.mxu0 0.0
      %4891 = vmatprep.subr.mxu0 0.0
      %4892 = vmatpush1.msra.mxu0 0.0
      %4893 = vmatprep.subr.mxu0 0.0
      %4894 = vmatpush1.msra.mxu0 0.0
      %4895 = vmatprep.subr.mxu0 0.0
      %4896 = vmatpush1.msra.mxu0 0.0
      %4897 = vmatprep.subr.mxu0 0.0
      %4898 = vmatpush1.msra.mxu0 0.0
      %4899 = vmatprep.subr.mxu0 0.0
      %4900 = vmatpush1.msra.mxu0 0.0
      %4901 = vmatprep.subr.mxu0 0.0
      %4902 = vmatpush1.msra.mxu0 0.0
      %4903 = vmatprep.subr.mxu0 0.0
      %4904 = vmatpush1.msra.mxu0 0.0
      %4905 = vmatprep.subr.mxu0 0.0
      %4906 = vmatpush1.msra.mxu0 0.0
      %4907 = vmatprep.subr.mxu0 0.0
      %4908 = vmatpush1.msra.mxu0 0.0
      %4909 = vmatprep.subr.mxu0 0.0
      %4910 = vmatpush1.msra.mxu0 0.0
      %4911 = vmatprep.subr.mxu0 0.0
      %4912 = vmatpush1.msra.mxu0 0.0
      %4913 = vmatprep.subr.mxu0 0.0
      %4914 = vmatpush1.msra.mxu0 0.0
      %4915 = vmatprep.subr.mxu0 0.0
      %4916 = vmatpush1.msra.mxu0 0.0
      %4917 = vmatprep.subr.mxu0 0.0
      %4918 = vmatpush1.msra.mxu0 0.0
      %4919 = vmatprep.subr.mxu0 0.0
      %4920 = vmatpush1.msra.mxu0 0.0
      %4921 = vmatprep.subr.mxu0 0.0
      %4922 = vmatpush1.msra.mxu0 0.0
      %4923 = vmatprep.subr.mxu0 0.0
      %4924 = vmatpush1.msra.mxu0 0.0
      %4925 = vmatprep.subr.mxu0 0.0
      %4926 = vmatpush1.msra.mxu0 0.0
      %4927 = vmatprep.subr.mxu0 0.0
      %4928 = vmatpush1.msra.mxu0 0.0
      %4929 = vmatprep.subr.mxu0 0.0
      %4930 = vmatpush1.msra.mxu0 0.0
      %4931 = vmatprep.subr.mxu0 0.0
      %4932 = vmatpush1.msra.mxu0 0.0
      %4933 = vmatprep.subr.mxu0 0.0
      %4934 = vmatpush1.msra.mxu0 0.0
      %4935 = vmatprep.subr.mxu0 0.0
      %4936 = vmatpush1.msra.mxu0 0.0
      %4937 = vmatprep.subr.mxu0 0.0
      %4938 = vmatpush1.msra.mxu0 0.0
      %4939 = vmatprep.subr.mxu0 0.0
      %4940 = vmatpush1.msra.mxu0 0.0
      %4941 = vmatprep.mubr.f32.mxu0 0.0
      %4942 = vmatmul.mubr.f32.gmra.mrb[0].mxu0 %v4804
      %v4943 = vpop.f32.mrb[0].mxu0
      %v4944 = vadd.f32 0.0, %v4943
      %v4945 = vpop.f32.mrb[0].mxu0
      %v4946 = vadd.f32 0.0, %v4945
      %4947 = vdwg.mxu0
      %4948 = vmatprep.subr.mxu0 %v4786
      %4949 = vmatpush1.msra.mxu0 %v4785
      %4950 = vmatprep.subr.mxu0 0.0
      %4951 = vmatpush1.msra.mxu0 0.0
      %4952 = vmatprep.subr.mxu0 0.0
      %4953 = vmatpush1.msra.mxu0 0.0
      %4954 = vmatprep.subr.mxu0 0.0
      %4955 = vmatpush1.msra.mxu0 0.0
      %4956 = vmatprep.subr.mxu0 0.0
      %4957 = vmatpush1.msra.mxu0 0.0
      %4958 = vmatprep.subr.mxu0 0.0
      %4959 = vmatpush1.msra.mxu0 0.0
      %4960 = vmatprep.subr.mxu0 0.0
      %4961 = vmatpush1.msra.mxu0 0.0
      %4962 = vmatprep.subr.mxu0 0.0
      %4963 = vmatpush1.msra.mxu0 0.0
      %4964 = vmatprep.subr.mxu0 0.0
      %4965 = vmatpush1.msra.mxu0 0.0
      %4966 = vmatprep.subr.mxu0 0.0
      %4967 = vmatpush1.msra.mxu0 0.0
      %4968 = vmatprep.subr.mxu0 0.0
      %4969 = vmatpush1.msra.mxu0 0.0
      %4970 = vmatprep.subr.mxu0 0.0
      %4971 = vmatpush1.msra.mxu0 0.0
      %4972 = vmatprep.subr.mxu0 0.0
      %4973 = vmatpush1.msra.mxu0 0.0
      %4974 = vmatprep.subr.mxu0 0.0
      %4975 = vmatpush1.msra.mxu0 0.0
      %4976 = vmatprep.subr.mxu0 0.0
      %4977 = vmatpush1.msra.mxu0 0.0
      %4978 = vmatprep.subr.mxu0 0.0
      %4979 = vmatpush1.msra.mxu0 0.0
      %4980 = vmatprep.subr.mxu0 0.0
      %4981 = vmatpush1.msra.mxu0 0.0
      %4982 = vmatprep.subr.mxu0 0.0
      %4983 = vmatpush1.msra.mxu0 0.0
      %4984 = vmatprep.subr.mxu0 0.0
      %4985 = vmatpush1.msra.mxu0 0.0
      %4986 = vmatprep.subr.mxu0 0.0
      %4987 = vmatpush1.msra.mxu0 0.0
      %4988 = vmatprep.subr.mxu0 0.0
      %4989 = vmatpush1.msra.mxu0 0.0
      %4990 = vmatprep.subr.mxu0 0.0
      %4991 = vmatpush1.msra.mxu0 0.0
      %4992 = vmatprep.subr.mxu0 0.0
      %4993 = vmatpush1.msra.mxu0 0.0
      %4994 = vmatprep.subr.mxu0 0.0
      %4995 = vmatpush1.msra.mxu0 0.0
      %4996 = vmatprep.subr.mxu0 0.0
      %4997 = vmatpush1.msra.mxu0 0.0
      %4998 = vmatprep.subr.mxu0 0.0
      %4999 = vmatpush1.msra.mxu0 0.0
      %5000 = vmatprep.subr.mxu0 0.0
      %5001 = vmatpush1.msra.mxu0 0.0
      %5002 = vmatprep.subr.mxu0 0.0
      %5003 = vmatpush1.msra.mxu0 0.0
      %5004 = vmatprep.subr.mxu0 0.0
      %5005 = vmatpush1.msra.mxu0 0.0
      %5006 = vmatprep.subr.mxu0 0.0
      %5007 = vmatpush1.msra.mxu0 0.0
      %5008 = vmatprep.subr.mxu0 0.0
      %5009 = vmatpush1.msra.mxu0 0.0
      %5010 = vmatprep.subr.mxu0 0.0
      %5011 = vmatpush1.msra.mxu0 0.0
      %5012 = vmatprep.mubr.f32.mxu0 0.0
      %5013 = vmatmul.mubr.f32.gmra.mrb[0].mxu0 %v4804
      %v5014 = vpop.f32.mrb[0].mxu0
      %v5015 = vadd.f32 0.0, %v5014
      %v5016 = vpop.f32.mrb[0].mxu0
      %v5017 = vadd.f32 0.0, %v5016
      %5018 = vdwg.mxu0
      %5019 = vmatprep.subr.mxu0 %v4788
      %5020 = vmatpush1.msra.mxu0 %v4787
      %5021 = vmatprep.subr.mxu0 0.0
      %5022 = vmatpush1.msra.mxu0 0.0
      %5023 = vmatprep.subr.mxu0 0.0
      %5024 = vmatpush1.msra.mxu0 0.0
      %5025 = vmatprep.subr.mxu0 0.0
      %5026 = vmatpush1.msra.mxu0 0.0
      %5027 = vmatprep.subr.mxu0 0.0
      %5028 = vmatpush1.msra.mxu0 0.0
      %5029 = vmatprep.subr.mxu0 0.0
      %5030 = vmatpush1.msra.mxu0 0.0
      %5031 = vmatprep.subr.mxu0 0.0
      %5032 = vmatpush1.msra.mxu0 0.0
      %5033 = vmatprep.subr.mxu0 0.0
      %5034 = vmatpush1.msra.mxu0 0.0
      %5035 = vmatprep.subr.mxu0 0.0
      %5036 = vmatpush1.msra.mxu0 0.0
      %5037 = vmatprep.subr.mxu0 0.0
      %5038 = vmatpush1.msra.mxu0 0.0
      %5039 = vmatprep.subr.mxu0 0.0
      %5040 = vmatpush1.msra.mxu0 0.0
      %5041 = vmatprep.subr.mxu0 0.0
      %5042 = vmatpush1.msra.mxu0 0.0
      %5043 = vmatprep.subr.mxu0 0.0
      %5044 = vmatpush1.msra.mxu0 0.0
      %5045 = vmatprep.subr.mxu0 0.0
      %5046 = vmatpush1.msra.mxu0 0.0
      %5047 = vmatprep.subr.mxu0 0.0
      %5048 = vmatpush1.msra.mxu0 0.0
      %5049 = vmatprep.subr.mxu0 0.0
      %5050 = vmatpush1.msra.mxu0 0.0
      %5051 = vmatprep.subr.mxu0 0.0
      %5052 = vmatpush1.msra.mxu0 0.0
      %5053 = vmatprep.subr.mxu0 0.0
      %5054 = vmatpush1.msra.mxu0 0.0
      %5055 = vmatprep.subr.mxu0 0.0
      %5056 = vmatpush1.msra.mxu0 0.0
      %5057 = vmatprep.subr.mxu0 0.0
      %5058 = vmatpush1.msra.mxu0 0.0
      %5059 = vmatprep.subr.mxu0 0.0
      %5060 = vmatpush1.msra.mxu0 0.0
      %5061 = vmatprep.subr.mxu0 0.0
      %5062 = vmatpush1.msra.mxu0 0.0
      %5063 = vmatprep.subr.mxu0 0.0
      %5064 = vmatpush1.msra.mxu0 0.0
      %5065 = vmatprep.subr.mxu0 0.0
      %5066 = vmatpush1.msra.mxu0 0.0
      %5067 = vmatprep.subr.mxu0 0.0
      %5068 = vmatpush1.msra.mxu0 0.0
      %5069 = vmatprep.subr.mxu0 0.0
      %5070 = vmatpush1.msra.mxu0 0.0
      %5071 = vmatprep.subr.mxu0 0.0
      %5072 = vmatpush1.msra.mxu0 0.0
      %5073 = vmatprep.subr.mxu0 0.0
      %5074 = vmatpush1.msra.mxu0 0.0
      %5075 = vmatprep.subr.mxu0 0.0
      %5076 = vmatpush1.msra.mxu0 0.0
      %5077 = vmatprep.subr.mxu0 0.0
      %5078 = vmatpush1.msra.mxu0 0.0
      %5079 = vmatprep.subr.mxu0 0.0
      %5080 = vmatpush1.msra.mxu0 0.0
      %5081 = vmatprep.subr.mxu0 0.0
      %5082 = vmatpush1.msra.mxu0 0.0
      %5083 = vmatprep.mubr.f32.mxu0 0.0
      %5084 = vmatmul.mubr.f32.gmra.mrb[0].mxu0 %v4804
      %v5085 = vpop.f32.mrb[0].mxu0
      %v5086 = vadd.f32 0.0, %v5085
      %v5087 = vpop.f32.mrb[0].mxu0
      %v5088 = vadd.f32 0.0, %v5087
      %5089 = vdwg.mxu0
      %5090 = vmatprep.subr.mxu0 %v4790
      %5091 = vmatpush1.msra.mxu0 %v4789
      %5092 = vmatprep.subr.mxu0 0.0
      %5093 = vmatpush1.msra.mxu0 0.0
      %5094 = vmatprep.subr.mxu0 0.0
      %5095 = vmatpush1.msra.mxu0 0.0
      %5096 = vmatprep.subr.mxu0 0.0
      %5097 = vmatpush1.msra.mxu0 0.0
      %5098 = vmatprep.subr.mxu0 0.0
      %5099 = vmatpush1.msra.mxu0 0.0
      %5100 = vmatprep.subr.mxu0 0.0
      %5101 = vmatpush1.msra.mxu0 0.0
      %5102 = vmatprep.subr.mxu0 0.0
      %5103 = vmatpush1.msra.mxu0 0.0
      %5104 = vmatprep.subr.mxu0 0.0
      %5105 = vmatpush1.msra.mxu0 0.0
      %5106 = vmatprep.subr.mxu0 0.0
      %5107 = vmatpush1.msra.mxu0 0.0
      %5108 = vmatprep.subr.mxu0 0.0
      %5109 = vmatpush1.msra.mxu0 0.0
      %5110 = vmatprep.subr.mxu0 0.0
      %5111 = vmatpush1.msra.mxu0 0.0
      %5112 = vmatprep.subr.mxu0 0.0
      %5113 = vmatpush1.msra.mxu0 0.0
      %5114 = vmatprep.subr.mxu0 0.0
      %5115 = vmatpush1.msra.mxu0 0.0
      %5116 = vmatprep.subr.mxu0 0.0
      %5117 = vmatpush1.msra.mxu0 0.0
      %5118 = vmatprep.subr.mxu0 0.0
      %5119 = vmatpush1.msra.mxu0 0.0
      %5120 = vmatprep.subr.mxu0 0.0
      %5121 = vmatpush1.msra.mxu0 0.0
      %5122 = vmatprep.subr.mxu0 0.0
      %5123 = vmatpush1.msra.mxu0 0.0
      %5124 = vmatprep.subr.mxu0 0.0
      %5125 = vmatpush1.msra.mxu0 0.0
      %5126 = vmatprep.subr.mxu0 0.0
      %5127 = vmatpush1.msra.mxu0 0.0
      %5128 = vmatprep.subr.mxu0 0.0
      %5129 = vmatpush1.msra.mxu0 0.0
      %5130 = vmatprep.subr.mxu0 0.0
      %5131 = vmatpush1.msra.mxu0 0.0
      %5132 = vmatprep.subr.mxu0 0.0
      %5133 = vmatpush1.msra.mxu0 0.0
      %5134 = vmatprep.subr.mxu0 0.0
      %5135 = vmatpush1.msra.mxu0 0.0
      %5136 = vmatprep.subr.mxu0 0.0
      %5137 = vmatpush1.msra.mxu0 0.0
      %5138 = vmatprep.subr.mxu0 0.0
      %5139 = vmatpush1.msra.mxu0 0.0
      %5140 = vmatprep.subr.mxu0 0.0
      %5141 = vmatpush1.msra.mxu0 0.0
      %5142 = vmatprep.subr.mxu0 0.0
      %5143 = vmatpush1.msra.mxu0 0.0
      %5144 = vmatprep.subr.mxu0 0.0
      %5145 = vmatpush1.msra.mxu0 0.0
      %5146 = vmatprep.subr.mxu0 0.0
      %5147 = vmatpush1.msra.mxu0 0.0
      %5148 = vmatprep.subr.mxu0 0.0
      %5149 = vmatpush1.msra.mxu0 0.0
      %5150 = vmatprep.subr.mxu0 0.0
      %5151 = vmatpush1.msra.mxu0 0.0
      %5152 = vmatprep.subr.mxu0 0.0
      %5153 = vmatpush1.msra.mxu0 0.0
      %5154 = vmatprep.mubr.f32.mxu0 0.0
      %5155 = vmatmul.mubr.f32.gmra.mrb[0].mxu0 %v4804
      %v5156 = vpop.f32.mrb[0].mxu0
      %v5157 = vadd.f32 0.0, %v5156
      %v5158 = vpop.f32.mrb[0].mxu0
      %v5159 = vadd.f32 0.0, %v5158
      %5160 = vdwg.mxu0
      %5161 = vmatprep.subr.mxu0 0.0
      %5162 = vmatpush1.msra.mxu0 %v4791
      %5163 = vmatprep.subr.mxu0 0.0
      %5164 = vmatpush1.msra.mxu0 0.0
      %5165 = vmatprep.subr.mxu0 0.0
      %5166 = vmatpush1.msra.mxu0 0.0
      %5167 = vmatprep.subr.mxu0 0.0
      %5168 = vmatpush1.msra.mxu0 0.0
      %5169 = vmatprep.subr.mxu0 0.0
      %5170 = vmatpush1.msra.mxu0 0.0
      %5171 = vmatprep.subr.mxu0 0.0
      %5172 = vmatpush1.msra.mxu0 0.0
      %5173 = vmatprep.subr.mxu0 0.0
      %5174 = vmatpush1.msra.mxu0 0.0
      %5175 = vmatprep.subr.mxu0 0.0
      %5176 = vmatpush1.msra.mxu0 0.0
      %5177 = vmatprep.subr.mxu0 0.0
      %5178 = vmatpush1.msra.mxu0 0.0
      %5179 = vmatprep.subr.mxu0 0.0
      %5180 = vmatpush1.msra.mxu0 0.0
      %5181 = vmatprep.subr.mxu0 0.0
      %5182 = vmatpush1.msra.mxu0 0.0
      %5183 = vmatprep.subr.mxu0 0.0
      %5184 = vmatpush1.msra.mxu0 0.0
      %5185 = vmatprep.subr.mxu0 0.0
      %5186 = vmatpush1.msra.mxu0 0.0
      %5187 = vmatprep.subr.mxu0 0.0
      %5188 = vmatpush1.msra.mxu0 0.0
      %5189 = vmatprep.subr.mxu0 0.0
      %5190 = vmatpush1.msra.mxu0 0.0
      %5191 = vmatprep.subr.mxu0 0.0
      %5192 = vmatpush1.msra.mxu0 0.0
      %5193 = vmatprep.subr.mxu0 0.0
      %5194 = vmatpush1.msra.mxu0 0.0
      %5195 = vmatprep.subr.mxu0 0.0
      %5196 = vmatpush1.msra.mxu0 0.0
      %5197 = vmatprep.subr.mxu0 0.0
      %5198 = vmatpush1.msra.mxu0 0.0
      %5199 = vmatprep.subr.mxu0 0.0
      %5200 = vmatpush1.msra.mxu0 0.0
      %5201 = vmatprep.subr.mxu0 0.0
      %5202 = vmatpush1.msra.mxu0 0.0
      %5203 = vmatprep.subr.mxu0 0.0
      %5204 = vmatpush1.msra.mxu0 0.0
      %5205 = vmatprep.subr.mxu0 0.0
      %5206 = vmatpush1.msra.mxu0 0.0
      %5207 = vmatprep.subr.mxu0 0.0
      %5208 = vmatpush1.msra.mxu0 0.0
      %5209 = vmatprep.subr.mxu0 0.0
      %5210 = vmatpush1.msra.mxu0 0.0
      %5211 = vmatprep.subr.mxu0 0.0
      %5212 = vmatpush1.msra.mxu0 0.0
      %5213 = vmatprep.subr.mxu0 0.0
      %5214 = vmatpush1.msra.mxu0 0.0
      %5215 = vmatprep.subr.mxu0 0.0
      %5216 = vmatpush1.msra.mxu0 0.0
      %5217 = vmatprep.subr.mxu0 0.0
      %5218 = vmatpush1.msra.mxu0 0.0
      %5219 = vmatprep.subr.mxu0 0.0
      %5220 = vmatpush1.msra.mxu0 0.0
      %5221 = vmatprep.subr.mxu0 0.0
      %5222 = vmatpush1.msra.mxu0 0.0
      %5223 = vmatprep.subr.mxu0 0.0
      %5224 = vmatpush1.msra.mxu0 0.0
      %5225 = vmatprep.mubr.f32.mxu0 0.0
      %5226 = vmatmul.mubr.f32.gmra.mrb[0].mxu0 %v4804
      %v5227 = vpop.f32.mrb[0].mxu0
      %v5228 = vadd.f32 0.0, %v5227
      %v5229 = vpop.f32.mrb[0].mxu0
      %5230 = vdwg.mxu0
      %v5232 = vsel %vm272, %v4741, 0
      %5234 = vmatprep.subr.mxu0 %v4731
      %5235 = vmatpush1.msra.mxu0 %v4730
      %5236 = vmatprep.subr.mxu0 0.0
      %5237 = vmatpush1.msra.mxu0 0.0
      %5238 = vmatprep.subr.mxu0 0.0
      %5239 = vmatpush1.msra.mxu0 0.0
      %5240 = vmatprep.subr.mxu0 0.0
      %5241 = vmatpush1.msra.mxu0 0.0
      %5242 = vmatprep.subr.mxu0 0.0
      %5243 = vmatpush1.msra.mxu0 0.0
      %5244 = vmatprep.subr.mxu0 0.0
      %5245 = vmatpush1.msra.mxu0 0.0
      %5246 = vmatprep.subr.mxu0 0.0
      %5247 = vmatpush1.msra.mxu0 0.0
      %5248 = vmatprep.subr.mxu0 0.0
      %5249 = vmatpush1.msra.mxu0 0.0
      %5250 = vmatprep.subr.mxu0 0.0
      %5251 = vmatpush1.msra.mxu0 0.0
      %5252 = vmatprep.subr.mxu0 0.0
      %5253 = vmatpush1.msra.mxu0 0.0
      %5254 = vmatprep.subr.mxu0 0.0
      %5255 = vmatpush1.msra.mxu0 0.0
      %5256 = vmatprep.subr.mxu0 0.0
      %5257 = vmatpush1.msra.mxu0 0.0
      %5258 = vmatprep.subr.mxu0 0.0
      %5259 = vmatpush1.msra.mxu0 0.0
      %5260 = vmatprep.subr.mxu0 0.0
      %5261 = vmatpush1.msra.mxu0 0.0
      %5262 = vmatprep.subr.mxu0 0.0
      %5263 = vmatpush1.msra.mxu0 0.0
      %5264 = vmatprep.subr.mxu0 0.0
      %5265 = vmatpush1.msra.mxu0 0.0
      %5266 = vmatprep.subr.mxu0 0.0
      %5267 = vmatpush1.msra.mxu0 0.0
      %5268 = vmatprep.subr.mxu0 0.0
      %5269 = vmatpush1.msra.mxu0 0.0
      %5270 = vmatprep.subr.mxu0 0.0
      %5271 = vmatpush1.msra.mxu0 0.0
      %5272 = vmatprep.subr.mxu0 0.0
      %5273 = vmatpush1.msra.mxu0 0.0
      %5274 = vmatprep.subr.mxu0 0.0
      %5275 = vmatpush1.msra.mxu0 0.0
      %5276 = vmatprep.subr.mxu0 0.0
      %5277 = vmatpush1.msra.mxu0 0.0
      %5278 = vmatprep.subr.mxu0 0.0
      %5279 = vmatpush1.msra.mxu0 0.0
      %5280 = vmatprep.subr.mxu0 0.0
      %5281 = vmatpush1.msra.mxu0 0.0
      %5282 = vmatprep.subr.mxu0 0.0
      %5283 = vmatpush1.msra.mxu0 0.0
      %5284 = vmatprep.subr.mxu0 0.0
      %5285 = vmatpush1.msra.mxu0 0.0
      %5286 = vmatprep.subr.mxu0 0.0
      %5287 = vmatpush1.msra.mxu0 0.0
      %5288 = vmatprep.subr.mxu0 0.0
      %5289 = vmatpush1.msra.mxu0 0.0
      %5290 = vmatprep.subr.mxu0 0.0
      %5291 = vmatpush1.msra.mxu0 0.0
      %5292 = vmatprep.subr.mxu0 0.0
      %5293 = vmatpush1.msra.mxu0 0.0
      %5294 = vmatprep.subr.mxu0 0.0
      %5295 = vmatpush1.msra.mxu0 0.0
      %5296 = vmatprep.subr.mxu0 0.0
      %5297 = vmatpush1.msra.mxu0 0.0
      %5298 = vmatprep.mubr.f32.mxu0 0.0
      %5299 = vmatmul.mubr.f32.gmra.mrb[0].mxu0 %v5232
      %v5300 = vpop.f32.mrb[0].mxu0
      %v5301 = vadd.f32 %v4873, %v5300
      %v5302 = vpop.f32.mrb[0].mxu0
      %v5303 = vadd.f32 %v4875, %v5302
      %5304 = vdwg.mxu0
      %5305 = vmatprep.subr.mxu0 %v4733
      %5306 = vmatpush1.msra.mxu0 %v4732
      %5307 = vmatprep.subr.mxu0 0.0
      %5308 = vmatpush1.msra.mxu0 0.0
      %5309 = vmatprep.subr.mxu0 0.0
      %5310 = vmatpush1.msra.mxu0 0.0
      %5311 = vmatprep.subr.mxu0 0.0
      %5312 = vmatpush1.msra.mxu0 0.0
      %5313 = vmatprep.subr.mxu0 0.0
      %5314 = vmatpush1.msra.mxu0 0.0
      %5315 = vmatprep.subr.mxu0 0.0
      %5316 = vmatpush1.msra.mxu0 0.0
      %5317 = vmatprep.subr.mxu0 0.0
      %5318 = vmatpush1.msra.mxu0 0.0
      %5319 = vmatprep.subr.mxu0 0.0
      %5320 = vmatpush1.msra.mxu0 0.0
      %5321 = vmatprep.subr.mxu0 0.0
      %5322 = vmatpush1.msra.mxu0 0.0
      %5323 = vmatprep.subr.mxu0 0.0
      %5324 = vmatpush1.msra.mxu0 0.0
      %5325 = vmatprep.subr.mxu0 0.0
      %5326 = vmatpush1.msra.mxu0 0.0
      %5327 = vmatprep.subr.mxu0 0.0
      %5328 = vmatpush1.msra.mxu0 0.0
      %5329 = vmatprep.subr.mxu0 0.0
      %5330 = vmatpush1.msra.mxu0 0.0
      %5331 = vmatprep.subr.mxu0 0.0
      %5332 = vmatpush1.msra.mxu0 0.0
      %5333 = vmatprep.subr.mxu0 0.0
      %5334 = vmatpush1.msra.mxu0 0.0
      %5335 = vmatprep.subr.mxu0 0.0
      %5336 = vmatpush1.msra.mxu0 0.0
      %5337 = vmatprep.subr.mxu0 0.0
      %5338 = vmatpush1.msra.mxu0 0.0
      %5339 = vmatprep.subr.mxu0 0.0
      %5340 = vmatpush1.msra.mxu0 0.0
      %5341 = vmatprep.subr.mxu0 0.0
      %5342 = vmatpush1.msra.mxu0 0.0
      %5343 = vmatprep.subr.mxu0 0.0
      %5344 = vmatpush1.msra.mxu0 0.0
      %5345 = vmatprep.subr.mxu0 0.0
      %5346 = vmatpush1.msra.mxu0 0.0
      %5347 = vmatprep.subr.mxu0 0.0
      %5348 = vmatpush1.msra.mxu0 0.0
      %5349 = vmatprep.subr.mxu0 0.0
      %5350 = vmatpush1.msra.mxu0 0.0
      %5351 = vmatprep.subr.mxu0 0.0
      %5352 = vmatpush1.msra.mxu0 0.0
      %5353 = vmatprep.subr.mxu0 0.0
      %5354 = vmatpush1.msra.mxu0 0.0
      %5355 = vmatprep.subr.mxu0 0.0
      %5356 = vmatpush1.msra.mxu0 0.0
      %5357 = vmatprep.subr.mxu0 0.0
      %5358 = vmatpush1.msra.mxu0 0.0
      %5359 = vmatprep.subr.mxu0 0.0
      %5360 = vmatpush1.msra.mxu0 0.0
      %5361 = vmatprep.subr.mxu0 0.0
      %5362 = vmatpush1.msra.mxu0 0.0
      %5363 = vmatprep.subr.mxu0 0.0
      %5364 = vmatpush1.msra.mxu0 0.0
      %5365 = vmatprep.subr.mxu0 0.0
      %5366 = vmatpush1.msra.mxu0 0.0
      %5367 = vmatprep.subr.mxu0 0.0
      %5368 = vmatpush1.msra.mxu0 0.0
      %5369 = vmatprep.mubr.f32.mxu0 0.0
      %5370 = vmatmul.mubr.f32.gmra.mrb[0].mxu0 %v5232
      %v5371 = vpop.f32.mrb[0].mxu0
      %v5372 = vadd.f32 %v4944, %v5371
      %v5373 = vpop.f32.mrb[0].mxu0
      %v5374 = vadd.f32 %v4946, %v5373
      %5375 = vdwg.mxu0
      %5376 = vmatprep.subr.mxu0 %v4735
      %5377 = vmatpush1.msra.mxu0 %v4734
      %5378 = vmatprep.subr.mxu0 0.0
      %5379 = vmatpush1.msra.mxu0 0.0
      %5380 = vmatprep.subr.mxu0 0.0
      %5381 = vmatpush1.msra.mxu0 0.0
      %5382 = vmatprep.subr.mxu0 0.0
      %5383 = vmatpush1.msra.mxu0 0.0
      %5384 = vmatprep.subr.mxu0 0.0
      %5385 = vmatpush1.msra.mxu0 0.0
      %5386 = vmatprep.subr.mxu0 0.0
      %5387 = vmatpush1.msra.mxu0 0.0
      %5388 = vmatprep.subr.mxu0 0.0
      %5389 = vmatpush1.msra.mxu0 0.0
      %5390 = vmatprep.subr.mxu0 0.0
      %5391 = vmatpush1.msra.mxu0 0.0
      %5392 = vmatprep.subr.mxu0 0.0
      %5393 = vmatpush1.msra.mxu0 0.0
      %5394 = vmatprep.subr.mxu0 0.0
      %5395 = vmatpush1.msra.mxu0 0.0
      %5396 = vmatprep.subr.mxu0 0.0
      %5397 = vmatpush1.msra.mxu0 0.0
      %5398 = vmatprep.subr.mxu0 0.0
      %5399 = vmatpush1.msra.mxu0 0.0
      %5400 = vmatprep.subr.mxu0 0.0
      %5401 = vmatpush1.msra.mxu0 0.0
      %5402 = vmatprep.subr.mxu0 0.0
      %5403 = vmatpush1.msra.mxu0 0.0
      %5404 = vmatprep.subr.mxu0 0.0
      %5405 = vmatpush1.msra.mxu0 0.0
      %5406 = vmatprep.subr.mxu0 0.0
      %5407 = vmatpush1.msra.mxu0 0.0
      %5408 = vmatprep.subr.mxu0 0.0
      %5409 = vmatpush1.msra.mxu0 0.0
      %5410 = vmatprep.subr.mxu0 0.0
      %5411 = vmatpush1.msra.mxu0 0.0
      %5412 = vmatprep.subr.mxu0 0.0
      %5413 = vmatpush1.msra.mxu0 0.0
      %5414 = vmatprep.subr.mxu0 0.0
      %5415 = vmatpush1.msra.mxu0 0.0
      %5416 = vmatprep.subr.mxu0 0.0
      %5417 = vmatpush1.msra.mxu0 0.0
      %5418 = vmatprep.subr.mxu0 0.0
      %5419 = vmatpush1.msra.mxu0 0.0
      %5420 = vmatprep.subr.mxu0 0.0
      %5421 = vmatpush1.msra.mxu0 0.0
      %5422 = vmatprep.subr.mxu0 0.0
      %5423 = vmatpush1.msra.mxu0 0.0
      %5424 = vmatprep.subr.mxu0 0.0
      %5425 = vmatpush1.msra.mxu0 0.0
      %5426 = vmatprep.subr.mxu0 0.0
      %5427 = vmatpush1.msra.mxu0 0.0
      %5428 = vmatprep.subr.mxu0 0.0
      %5429 = vmatpush1.msra.mxu0 0.0
      %5430 = vmatprep.subr.mxu0 0.0
      %5431 = vmatpush1.msra.mxu0 0.0
      %5432 = vmatprep.subr.mxu0 0.0
      %5433 = vmatpush1.msra.mxu0 0.0
      %5434 = vmatprep.subr.mxu0 0.0
      %5435 = vmatpush1.msra.mxu0 0.0
      %5436 = vmatprep.subr.mxu0 0.0
      %5437 = vmatpush1.msra.mxu0 0.0
      %5438 = vmatprep.subr.mxu0 0.0
      %5439 = vmatpush1.msra.mxu0 0.0
      %5440 = vmatprep.mubr.f32.mxu0 0.0
      %5441 = vmatmul.mubr.f32.gmra.mrb[0].mxu0 %v5232
      %v5442 = vpop.f32.mrb[0].mxu0
      %v5443 = vadd.f32 %v5015, %v5442
      %v5444 = vpop.f32.mrb[0].mxu0
      %v5445 = vadd.f32 %v5017, %v5444
      %5446 = vdwg.mxu0
      %5447 = vmatprep.subr.mxu0 %v4737
      %5448 = vmatpush1.msra.mxu0 %v4736
      %5449 = vmatprep.subr.mxu0 0.0
      %5450 = vmatpush1.msra.mxu0 0.0
      %5451 = vmatprep.subr.mxu0 0.0
      %5452 = vmatpush1.msra.mxu0 0.0
      %5453 = vmatprep.subr.mxu0 0.0
      %5454 = vmatpush1.msra.mxu0 0.0
      %5455 = vmatprep.subr.mxu0 0.0
      %5456 = vmatpush1.msra.mxu0 0.0
      %5457 = vmatprep.subr.mxu0 0.0
      %5458 = vmatpush1.msra.mxu0 0.0
      %5459 = vmatprep.subr.mxu0 0.0
      %5460 = vmatpush1.msra.mxu0 0.0
      %5461 = vmatprep.subr.mxu0 0.0
      %5462 = vmatpush1.msra.mxu0 0.0
      %5463 = vmatprep.subr.mxu0 0.0
      %5464 = vmatpush1.msra.mxu0 0.0
      %5465 = vmatprep.subr.mxu0 0.0
      %5466 = vmatpush1.msra.mxu0 0.0
      %5467 = vmatprep.subr.mxu0 0.0
      %5468 = vmatpush1.msra.mxu0 0.0
      %5469 = vmatprep.subr.mxu0 0.0
      %5470 = vmatpush1.msra.mxu0 0.0
      %5471 = vmatprep.subr.mxu0 0.0
      %5472 = vmatpush1.msra.mxu0 0.0
      %5473 = vmatprep.subr.mxu0 0.0
      %5474 = vmatpush1.msra.mxu0 0.0
      %5475 = vmatprep.subr.mxu0 0.0
      %5476 = vmatpush1.msra.mxu0 0.0
      %5477 = vmatprep.subr.mxu0 0.0
      %5478 = vmatpush1.msra.mxu0 0.0
      %5479 = vmatprep.subr.mxu0 0.0
      %5480 = vmatpush1.msra.mxu0 0.0
      %5481 = vmatprep.subr.mxu0 0.0
      %5482 = vmatpush1.msra.mxu0 0.0
      %5483 = vmatprep.subr.mxu0 0.0
      %5484 = vmatpush1.msra.mxu0 0.0
      %5485 = vmatprep.subr.mxu0 0.0
      %5486 = vmatpush1.msra.mxu0 0.0
      %5487 = vmatprep.subr.mxu0 0.0
      %5488 = vmatpush1.msra.mxu0 0.0
      %5489 = vmatprep.subr.mxu0 0.0
      %5490 = vmatpush1.msra.mxu0 0.0
      %5491 = vmatprep.subr.mxu0 0.0
      %5492 = vmatpush1.msra.mxu0 0.0
      %5493 = vmatprep.subr.mxu0 0.0
      %5494 = vmatpush1.msra.mxu0 0.0
      %5495 = vmatprep.subr.mxu0 0.0
      %5496 = vmatpush1.msra.mxu0 0.0
      %5497 = vmatprep.subr.mxu0 0.0
      %5498 = vmatpush1.msra.mxu0 0.0
      %5499 = vmatprep.subr.mxu0 0.0
      %5500 = vmatpush1.msra.mxu0 0.0
      %5501 = vmatprep.subr.mxu0 0.0
      %5502 = vmatpush1.msra.mxu0 0.0
      %5503 = vmatprep.subr.mxu0 0.0
      %5504 = vmatpush1.msra.mxu0 0.0
      %5505 = vmatprep.subr.mxu0 0.0
      %5506 = vmatpush1.msra.mxu0 0.0
      %5507 = vmatprep.subr.mxu0 0.0
      %5508 = vmatpush1.msra.mxu0 0.0
      %5509 = vmatprep.subr.mxu0 0.0
      %5510 = vmatpush1.msra.mxu0 0.0
      %5511 = vmatprep.mubr.f32.mxu0 0.0
      %5512 = vmatmul.mubr.f32.gmra.mrb[0].mxu0 %v5232
      %v5513 = vpop.f32.mrb[0].mxu0
      %v5514 = vadd.f32 %v5086, %v5513
      %v5515 = vpop.f32.mrb[0].mxu0
      %v5516 = vadd.f32 %v5088, %v5515
      %5517 = vdwg.mxu0
      %5518 = vmatprep.subr.mxu0 %v4739
      %5519 = vmatpush1.msra.mxu0 %v4738
      %5520 = vmatprep.subr.mxu0 0.0
      %5521 = vmatpush1.msra.mxu0 0.0
      %5522 = vmatprep.subr.mxu0 0.0
      %5523 = vmatpush1.msra.mxu0 0.0
      %5524 = vmatprep.subr.mxu0 0.0
      %5525 = vmatpush1.msra.mxu0 0.0
      %5526 = vmatprep.subr.mxu0 0.0
      %5527 = vmatpush1.msra.mxu0 0.0
      %5528 = vmatprep.subr.mxu0 0.0
      %5529 = vmatpush1.msra.mxu0 0.0
      %5530 = vmatprep.subr.mxu0 0.0
      %5531 = vmatpush1.msra.mxu0 0.0
      %5532 = vmatprep.subr.mxu0 0.0
      %5533 = vmatpush1.msra.mxu0 0.0
      %5534 = vmatprep.subr.mxu0 0.0
      %5535 = vmatpush1.msra.mxu0 0.0
      %5536 = vmatprep.subr.mxu0 0.0
      %5537 = vmatpush1.msra.mxu0 0.0
      %5538 = vmatprep.subr.mxu0 0.0
      %5539 = vmatpush1.msra.mxu0 0.0
      %5540 = vmatprep.subr.mxu0 0.0
      %5541 = vmatpush1.msra.mxu0 0.0
      %5542 = vmatprep.subr.mxu0 0.0
      %5543 = vmatpush1.msra.mxu0 0.0
      %5544 = vmatprep.subr.mxu0 0.0
      %5545 = vmatpush1.msra.mxu0 0.0
      %5546 = vmatprep.subr.mxu0 0.0
      %5547 = vmatpush1.msra.mxu0 0.0
      %5548 = vmatprep.subr.mxu0 0.0
      %5549 = vmatpush1.msra.mxu0 0.0
      %5550 = vmatprep.subr.mxu0 0.0
      %5551 = vmatpush1.msra.mxu0 0.0
      %5552 = vmatprep.subr.mxu0 0.0
      %5553 = vmatpush1.msra.mxu0 0.0
      %5554 = vmatprep.subr.mxu0 0.0
      %5555 = vmatpush1.msra.mxu0 0.0
      %5556 = vmatprep.subr.mxu0 0.0
      %5557 = vmatpush1.msra.mxu0 0.0
      %5558 = vmatprep.subr.mxu0 0.0
      %5559 = vmatpush1.msra.mxu0 0.0
      %5560 = vmatprep.subr.mxu0 0.0
      %5561 = vmatpush1.msra.mxu0 0.0
      %5562 = vmatprep.subr.mxu0 0.0
      %5563 = vmatpush1.msra.mxu0 0.0
      %5564 = vmatprep.subr.mxu0 0.0
      %5565 = vmatpush1.msra.mxu0 0.0
      %5566 = vmatprep.subr.mxu0 0.0
      %5567 = vmatpush1.msra.mxu0 0.0
      %5568 = vmatprep.subr.mxu0 0.0
      %5569 = vmatpush1.msra.mxu0 0.0
      %5570 = vmatprep.subr.mxu0 0.0
      %5571 = vmatpush1.msra.mxu0 0.0
      %5572 = vmatprep.subr.mxu0 0.0
      %5573 = vmatpush1.msra.mxu0 0.0
      %5574 = vmatprep.subr.mxu0 0.0
      %5575 = vmatpush1.msra.mxu0 0.0
      %5576 = vmatprep.subr.mxu0 0.0
      %5577 = vmatpush1.msra.mxu0 0.0
      %5578 = vmatprep.subr.mxu0 0.0
      %5579 = vmatpush1.msra.mxu0 0.0
      %5580 = vmatprep.subr.mxu0 0.0
      %5581 = vmatpush1.msra.mxu0 0.0
      %5582 = vmatprep.mubr.f32.mxu0 0.0
      %5583 = vmatmul.mubr.f32.gmra.mrb[0].mxu0 %v5232
      %v5584 = vpop.f32.mrb[0].mxu0
      %v5585 = vadd.f32 %v5157, %v5584
      %v5586 = vpop.f32.mrb[0].mxu0
      %v5587 = vadd.f32 %v5159, %v5586
      %5588 = vdwg.mxu0
      %5589 = vmatprep.subr.mxu0 0.0
      %5590 = vmatpush1.msra.mxu0 %v4740
      %5591 = vmatprep.subr.mxu0 0.0
      %5592 = vmatpush1.msra.mxu0 0.0
      %5593 = vmatprep.subr.mxu0 0.0
      %5594 = vmatpush1.msra.mxu0 0.0
      %5595 = vmatprep.subr.mxu0 0.0
      %5596 = vmatpush1.msra.mxu0 0.0
      %5597 = vmatprep.subr.mxu0 0.0
      %5598 = vmatpush1.msra.mxu0 0.0
      %5599 = vmatprep.subr.mxu0 0.0
      %5600 = vmatpush1.msra.mxu0 0.0
      %5601 = vmatprep.subr.mxu0 0.0
      %5602 = vmatpush1.msra.mxu0 0.0
      %5603 = vmatprep.subr.mxu0 0.0
      %5604 = vmatpush1.msra.mxu0 0.0
      %5605 = vmatprep.subr.mxu0 0.0
      %5606 = vmatpush1.msra.mxu0 0.0
      %5607 = vmatprep.subr.mxu0 0.0
      %5608 = vmatpush1.msra.mxu0 0.0
      %5609 = vmatprep.subr.mxu0 0.0
      %5610 = vmatpush1.msra.mxu0 0.0
      %5611 = vmatprep.subr.mxu0 0.0
      %5612 = vmatpush1.msra.mxu0 0.0
      %5613 = vmatprep.subr.mxu0 0.0
      %5614 = vmatpush1.msra.mxu0 0.0
      %5615 = vmatprep.subr.mxu0 0.0
      %5616 = vmatpush1.msra.mxu0 0.0
      %5617 = vmatprep.subr.mxu0 0.0
      %5618 = vmatpush1.msra.mxu0 0.0
      %5619 = vmatprep.subr.mxu0 0.0
      %5620 = vmatpush1.msra.mxu0 0.0
      %5621 = vmatprep.subr.mxu0 0.0
      %5622 = vmatpush1.msra.mxu0 0.0
      %5623 = vmatprep.subr.mxu0 0.0
      %5624 = vmatpush1.msra.mxu0 0.0
      %5625 = vmatprep.subr.mxu0 0.0
      %5626 = vmatpush1.msra.mxu0 0.0
      %5627 = vmatprep.subr.mxu0 0.0
      %5628 = vmatpush1.msra.mxu0 0.0
      %5629 = vmatprep.subr.mxu0 0.0
      %5630 = vmatpush1.msra.mxu0 0.0
      %5631 = vmatprep.subr.mxu0 0.0
      %5632 = vmatpush1.msra.mxu0 0.0
      %5633 = vmatprep.subr.mxu0 0.0
      %5634 = vmatpush1.msra.mxu0 0.0
      %5635 = vmatprep.subr.mxu0 0.0
      %5636 = vmatpush1.msra.mxu0 0.0
      %5637 = vmatprep.subr.mxu0 0.0
      %5638 = vmatpush1.msra.mxu0 0.0
      %5639 = vmatprep.subr.mxu0 0.0
      %5640 = vmatpush1.msra.mxu0 0.0
      %5641 = vmatprep.subr.mxu0 0.0
      %5642 = vmatpush1.msra.mxu0 0.0
      %5643 = vmatprep.subr.mxu0 0.0
      %5644 = vmatpush1.msra.mxu0 0.0
      %5645 = vmatprep.subr.mxu0 0.0
      %5646 = vmatpush1.msra.mxu0 0.0
      %5647 = vmatprep.subr.mxu0 0.0
      %5648 = vmatpush1.msra.mxu0 0.0
      %5649 = vmatprep.subr.mxu0 0.0
      %5650 = vmatpush1.msra.mxu0 0.0
      %5651 = vmatprep.subr.mxu0 0.0
      %5652 = vmatpush1.msra.mxu0 0.0
      %5653 = vmatprep.mubr.f32.mxu0 0.0
      %5654 = vmatmul.mubr.f32.gmra.mrb[0].mxu0 %v5232
      %v5655 = vpop.f32.mrb[0].mxu0
      %v5656 = vadd.f32 %v5228, %v5655
      %v5657 = vpop.f32.mrb[0].mxu0
      %5658 = vdwg.mxu0
      %s5659 = scalar_lea.vmem %s2, 16
      %v5660 = vld [vmem:[%s5659] sm:$0xff]
      %5661 = vrot.lane.b32.xlu0 %v4730, 126
      %v5662 = vpop.permute.xlu0 %5661
      %5663 = vrot.lane.b32.xlu0 %v4731, 126
      %v5664 = vpop.permute.xlu0 %5663
      %5665 = vrot.lane.b32.xlu0 %v4732, 126
      %v5666 = vpop.permute.xlu0 %5665
      %5667 = vrot.lane.b32.xlu0 %v4733, 126
      %v5668 = vpop.permute.xlu0 %5667
      %5669 = vrot.lane.b32.xlu0 %v4734, 126
      %v5670 = vpop.permute.xlu0 %5669
      %5671 = vrot.lane.b32.xlu0 %v4735, 126
      %v5672 = vpop.permute.xlu0 %5671
      %5673 = vrot.lane.b32.xlu0 %v4736, 126
      %v5674 = vpop.permute.xlu0 %5673
      %5675 = vrot.lane.b32.xlu0 %v4737, 126
      %v5676 = vpop.permute.xlu0 %5675
      %5677 = vrot.lane.b32.xlu0 %v4738, 126
      %v5678 = vpop.permute.xlu0 %5677
      %5679 = vrot.lane.b32.xlu0 %v4739, 126
      %v5680 = vpop.permute.xlu0 %5679
      %5681 = vrot.lane.b32.xlu0 %v4740, 126
      %v5682 = vpop.permute.xlu0 %5681
      %5683 = vrot.lane.b32.xlu0 %v4742, 126
      %v5684 = vpop.permute.xlu0 %5683
      %v5685 = vsel %vm1155, %v5662, %v5664
      %v5686 = vsel %vm1155, %v5664, %v5666
      %v5687 = vsel %vm1155, %v5666, %v5668
      %v5688 = vsel %vm1155, %v5668, %v5670
      %v5689 = vsel %vm1155, %v5670, %v5672
      %v5690 = vsel %vm1155, %v5672, %v5674
      %v5691 = vsel %vm1155, %v5674, %v5676
      %v5692 = vsel %vm1155, %v5676, %v5678
      %v5693 = vsel %vm1155, %v5678, %v5680
      %v5694 = vsel %vm1155, %v5680, %v5682
      %v5695 = vsel %vm1155, %v5682, %v5684
      %v5708 = vsel %vm272, %v5660, 0
      %5710 = vmatprep.subr.mxu0 %v5686
      %5711 = vmatpush1.msra.mxu0 %v5685
      %5712 = vmatprep.subr.mxu0 0.0
      %5713 = vmatpush1.msra.mxu0 0.0
      %5714 = vmatprep.subr.mxu0 0.0
      %5715 = vmatpush1.msra.mxu0 0.0
      %5716 = vmatprep.subr.mxu0 0.0
      %5717 = vmatpush1.msra.mxu0 0.0
      %5718 = vmatprep.subr.mxu0 0.0
      %5719 = vmatpush1.msra.mxu0 0.0
      %5720 = vmatprep.subr.mxu0 0.0
      %5721 = vmatpush1.msra.mxu0 0.0
      %5722 = vmatprep.subr.mxu0 0.0
      %5723 = vmatpush1.msra.mxu0 0.0
      %5724 = vmatprep.subr.mxu0 0.0
      %5725 = vmatpush1.msra.mxu0 0.0
      %5726 = vmatprep.subr.mxu0 0.0
      %5727 = vmatpush1.msra.mxu0 0.0
      %5728 = vmatprep.subr.mxu0 0.0
      %5729 = vmatpush1.msra.mxu0 0.0
      %5730 = vmatprep.subr.mxu0 0.0
      %5731 = vmatpush1.msra.mxu0 0.0
      %5732 = vmatprep.subr.mxu0 0.0
      %5733 = vmatpush1.msra.mxu0 0.0
      %5734 = vmatprep.subr.mxu0 0.0
      %5735 = vmatpush1.msra.mxu0 0.0
      %5736 = vmatprep.subr.mxu0 0.0
      %5737 = vmatpush1.msra.mxu0 0.0
      %5738 = vmatprep.subr.mxu0 0.0
      %5739 = vmatpush1.msra.mxu0 0.0
      %5740 = vmatprep.subr.mxu0 0.0
      %5741 = vmatpush1.msra.mxu0 0.0
      %5742 = vmatprep.subr.mxu0 0.0
      %5743 = vmatpush1.msra.mxu0 0.0
      %5744 = vmatprep.subr.mxu0 0.0
      %5745 = vmatpush1.msra.mxu0 0.0
      %5746 = vmatprep.subr.mxu0 0.0
      %5747 = vmatpush1.msra.mxu0 0.0
      %5748 = vmatprep.subr.mxu0 0.0
      %5749 = vmatpush1.msra.mxu0 0.0
      %5750 = vmatprep.subr.mxu0 0.0
      %5751 = vmatpush1.msra.mxu0 0.0
      %5752 = vmatprep.subr.mxu0 0.0
      %5753 = vmatpush1.msra.mxu0 0.0
      %5754 = vmatprep.subr.mxu0 0.0
      %5755 = vmatpush1.msra.mxu0 0.0
      %5756 = vmatprep.subr.mxu0 0.0
      %5757 = vmatpush1.msra.mxu0 0.0
      %5758 = vmatprep.subr.mxu0 0.0
      %5759 = vmatpush1.msra.mxu0 0.0
      %5760 = vmatprep.subr.mxu0 0.0
      %5761 = vmatpush1.msra.mxu0 0.0
      %5762 = vmatprep.subr.mxu0 0.0
      %5763 = vmatpush1.msra.mxu0 0.0
      %5764 = vmatprep.subr.mxu0 0.0
      %5765 = vmatpush1.msra.mxu0 0.0
      %5766 = vmatprep.subr.mxu0 0.0
      %5767 = vmatpush1.msra.mxu0 0.0
      %5768 = vmatprep.subr.mxu0 0.0
      %5769 = vmatpush1.msra.mxu0 0.0
      %5770 = vmatprep.subr.mxu0 0.0
      %5771 = vmatpush1.msra.mxu0 0.0
      %5772 = vmatprep.subr.mxu0 0.0
      %5773 = vmatpush1.msra.mxu0 0.0
      %5774 = vmatprep.mubr.f32.mxu0 0.0
      %5775 = vmatmul.mubr.f32.gmra.mrb[0].mxu0 %v5708
      %v5776 = vpop.f32.mrb[0].mxu0
      %v5777 = vadd.f32 0.0, %v5776
      %v5778 = vpop.f32.mrb[0].mxu0
      %v5779 = vadd.f32 0.0, %v5778
      %5780 = vdwg.mxu0
      %5781 = vmatprep.subr.mxu0 %v5688
      %5782 = vmatpush1.msra.mxu0 %v5687
      %5783 = vmatprep.subr.mxu0 0.0
      %5784 = vmatpush1.msra.mxu0 0.0
      %5785 = vmatprep.subr.mxu0 0.0
      %5786 = vmatpush1.msra.mxu0 0.0
      %5787 = vmatprep.subr.mxu0 0.0
      %5788 = vmatpush1.msra.mxu0 0.0
      %5789 = vmatprep.subr.mxu0 0.0
      %5790 = vmatpush1.msra.mxu0 0.0
      %5791 = vmatprep.subr.mxu0 0.0
      %5792 = vmatpush1.msra.mxu0 0.0
      %5793 = vmatprep.subr.mxu0 0.0
      %5794 = vmatpush1.msra.mxu0 0.0
      %5795 = vmatprep.subr.mxu0 0.0
      %5796 = vmatpush1.msra.mxu0 0.0
      %5797 = vmatprep.subr.mxu0 0.0
      %5798 = vmatpush1.msra.mxu0 0.0
      %5799 = vmatprep.subr.mxu0 0.0
      %5800 = vmatpush1.msra.mxu0 0.0
      %5801 = vmatprep.subr.mxu0 0.0
      %5802 = vmatpush1.msra.mxu0 0.0
      %5803 = vmatprep.subr.mxu0 0.0
      %5804 = vmatpush1.msra.mxu0 0.0
      %5805 = vmatprep.subr.mxu0 0.0
      %5806 = vmatpush1.msra.mxu0 0.0
      %5807 = vmatprep.subr.mxu0 0.0
      %5808 = vmatpush1.msra.mxu0 0.0
      %5809 = vmatprep.subr.mxu0 0.0
      %5810 = vmatpush1.msra.mxu0 0.0
      %5811 = vmatprep.subr.mxu0 0.0
      %5812 = vmatpush1.msra.mxu0 0.0
      %5813 = vmatprep.subr.mxu0 0.0
      %5814 = vmatpush1.msra.mxu0 0.0
      %5815 = vmatprep.subr.mxu0 0.0
      %5816 = vmatpush1.msra.mxu0 0.0
      %5817 = vmatprep.subr.mxu0 0.0
      %5818 = vmatpush1.msra.mxu0 0.0
      %5819 = vmatprep.subr.mxu0 0.0
      %5820 = vmatpush1.msra.mxu0 0.0
      %5821 = vmatprep.subr.mxu0 0.0
      %5822 = vmatpush1.msra.mxu0 0.0
      %5823 = vmatprep.subr.mxu0 0.0
      %5824 = vmatpush1.msra.mxu0 0.0
      %5825 = vmatprep.subr.mxu0 0.0
      %5826 = vmatpush1.msra.mxu0 0.0
      %5827 = vmatprep.subr.mxu0 0.0
      %5828 = vmatpush1.msra.mxu0 0.0
      %5829 = vmatprep.subr.mxu0 0.0
      %5830 = vmatpush1.msra.mxu0 0.0
      %5831 = vmatprep.subr.mxu0 0.0
      %5832 = vmatpush1.msra.mxu0 0.0
      %5833 = vmatprep.subr.mxu0 0.0
      %5834 = vmatpush1.msra.mxu0 0.0
      %5835 = vmatprep.subr.mxu0 0.0
      %5836 = vmatpush1.msra.mxu0 0.0
      %5837 = vmatprep.subr.mxu0 0.0
      %5838 = vmatpush1.msra.mxu0 0.0
      %5839 = vmatprep.subr.mxu0 0.0
      %5840 = vmatpush1.msra.mxu0 0.0
      %5841 = vmatprep.subr.mxu0 0.0
      %5842 = vmatpush1.msra.mxu0 0.0
      %5843 = vmatprep.subr.mxu0 0.0
      %5844 = vmatpush1.msra.mxu0 0.0
      %5845 = vmatprep.mubr.f32.mxu0 0.0
      %5846 = vmatmul.mubr.f32.gmra.mrb[0].mxu0 %v5708
      %v5847 = vpop.f32.mrb[0].mxu0
      %v5848 = vadd.f32 0.0, %v5847
      %v5849 = vpop.f32.mrb[0].mxu0
      %v5850 = vadd.f32 0.0, %v5849
      %5851 = vdwg.mxu0
      %5852 = vmatprep.subr.mxu0 %v5690
      %5853 = vmatpush1.msra.mxu0 %v5689
      %5854 = vmatprep.subr.mxu0 0.0
      %5855 = vmatpush1.msra.mxu0 0.0
      %5856 = vmatprep.subr.mxu0 0.0
      %5857 = vmatpush1.msra.mxu0 0.0
      %5858 = vmatprep.subr.mxu0 0.0
      %5859 = vmatpush1.msra.mxu0 0.0
      %5860 = vmatprep.subr.mxu0 0.0
      %5861 = vmatpush1.msra.mxu0 0.0
      %5862 = vmatprep.subr.mxu0 0.0
      %5863 = vmatpush1.msra.mxu0 0.0
      %5864 = vmatprep.subr.mxu0 0.0
      %5865 = vmatpush1.msra.mxu0 0.0
      %5866 = vmatprep.subr.mxu0 0.0
      %5867 = vmatpush1.msra.mxu0 0.0
      %5868 = vmatprep.subr.mxu0 0.0
      %5869 = vmatpush1.msra.mxu0 0.0
      %5870 = vmatprep.subr.mxu0 0.0
      %5871 = vmatpush1.msra.mxu0 0.0
      %5872 = vmatprep.subr.mxu0 0.0
      %5873 = vmatpush1.msra.mxu0 0.0
      %5874 = vmatprep.subr.mxu0 0.0
      %5875 = vmatpush1.msra.mxu0 0.0
      %5876 = vmatprep.subr.mxu0 0.0
      %5877 = vmatpush1.msra.mxu0 0.0
      %5878 = vmatprep.subr.mxu0 0.0
      %5879 = vmatpush1.msra.mxu0 0.0
      %5880 = vmatprep.subr.mxu0 0.0
      %5881 = vmatpush1.msra.mxu0 0.0
      %5882 = vmatprep.subr.mxu0 0.0
      %5883 = vmatpush1.msra.mxu0 0.0
      %5884 = vmatprep.subr.mxu0 0.0
      %5885 = vmatpush1.msra.mxu0 0.0
      %5886 = vmatprep.subr.mxu0 0.0
      %5887 = vmatpush1.msra.mxu0 0.0
      %5888 = vmatprep.subr.mxu0 0.0
      %5889 = vmatpush1.msra.mxu0 0.0
      %5890 = vmatprep.subr.mxu0 0.0
      %5891 = vmatpush1.msra.mxu0 0.0
      %5892 = vmatprep.subr.mxu0 0.0
      %5893 = vmatpush1.msra.mxu0 0.0
      %5894 = vmatprep.subr.mxu0 0.0
      %5895 = vmatpush1.msra.mxu0 0.0
      %5896 = vmatprep.subr.mxu0 0.0
      %5897 = vmatpush1.msra.mxu0 0.0
      %5898 = vmatprep.subr.mxu0 0.0
      %5899 = vmatpush1.msra.mxu0 0.0
      %5900 = vmatprep.subr.mxu0 0.0
      %5901 = vmatpush1.msra.mxu0 0.0
      %5902 = vmatprep.subr.mxu0 0.0
      %5903 = vmatpush1.msra.mxu0 0.0
      %5904 = vmatprep.subr.mxu0 0.0
      %5905 = vmatpush1.msra.mxu0 0.0
      %5906 = vmatprep.subr.mxu0 0.0
      %5907 = vmatpush1.msra.mxu0 0.0
      %5908 = vmatprep.subr.mxu0 0.0
      %5909 = vmatpush1.msra.mxu0 0.0
      %5910 = vmatprep.subr.mxu0 0.0
      %5911 = vmatpush1.msra.mxu0 0.0
      %5912 = vmatprep.subr.mxu0 0.0
      %5913 = vmatpush1.msra.mxu0 0.0
      %5914 = vmatprep.subr.mxu0 0.0
      %5915 = vmatpush1.msra.mxu0 0.0
      %5916 = vmatprep.mubr.f32.mxu0 0.0
      %5917 = vmatmul.mubr.f32.gmra.mrb[0].mxu0 %v5708
      %v5918 = vpop.f32.mrb[0].mxu0
      %v5919 = vadd.f32 0.0, %v5918
      %v5920 = vpop.f32.mrb[0].mxu0
      %v5921 = vadd.f32 0.0, %v5920
      %5922 = vdwg.mxu0
      %5923 = vmatprep.subr.mxu0 %v5692
      %5924 = vmatpush1.msra.mxu0 %v5691
      %5925 = vmatprep.subr.mxu0 0.0
      %5926 = vmatpush1.msra.mxu0 0.0
      %5927 = vmatprep.subr.mxu0 0.0
      %5928 = vmatpush1.msra.mxu0 0.0
      %5929 = vmatprep.subr.mxu0 0.0
      %5930 = vmatpush1.msra.mxu0 0.0
      %5931 = vmatprep.subr.mxu0 0.0
      %5932 = vmatpush1.msra.mxu0 0.0
      %5933 = vmatprep.subr.mxu0 0.0
      %5934 = vmatpush1.msra.mxu0 0.0
      %5935 = vmatprep.subr.mxu0 0.0
      %5936 = vmatpush1.msra.mxu0 0.0
      %5937 = vmatprep.subr.mxu0 0.0
      %5938 = vmatpush1.msra.mxu0 0.0
      %5939 = vmatprep.subr.mxu0 0.0
      %5940 = vmatpush1.msra.mxu0 0.0
      %5941 = vmatprep.subr.mxu0 0.0
      %5942 = vmatpush1.msra.mxu0 0.0
      %5943 = vmatprep.subr.mxu0 0.0
      %5944 = vmatpush1.msra.mxu0 0.0
      %5945 = vmatprep.subr.mxu0 0.0
      %5946 = vmatpush1.msra.mxu0 0.0
      %5947 = vmatprep.subr.mxu0 0.0
      %5948 = vmatpush1.msra.mxu0 0.0
      %5949 = vmatprep.subr.mxu0 0.0
      %5950 = vmatpush1.msra.mxu0 0.0
      %5951 = vmatprep.subr.mxu0 0.0
      %5952 = vmatpush1.msra.mxu0 0.0
      %5953 = vmatprep.subr.mxu0 0.0
      %5954 = vmatpush1.msra.mxu0 0.0
      %5955 = vmatprep.subr.mxu0 0.0
      %5956 = vmatpush1.msra.mxu0 0.0
      %5957 = vmatprep.subr.mxu0 0.0
      %5958 = vmatpush1.msra.mxu0 0.0
      %5959 = vmatprep.subr.mxu0 0.0
      %5960 = vmatpush1.msra.mxu0 0.0
      %5961 = vmatprep.subr.mxu0 0.0
      %5962 = vmatpush1.msra.mxu0 0.0
      %5963 = vmatprep.subr.mxu0 0.0
      %5964 = vmatpush1.msra.mxu0 0.0
      %5965 = vmatprep.subr.mxu0 0.0
      %5966 = vmatpush1.msra.mxu0 0.0
      %5967 = vmatprep.subr.mxu0 0.0
      %5968 = vmatpush1.msra.mxu0 0.0
      %5969 = vmatprep.subr.mxu0 0.0
      %5970 = vmatpush1.msra.mxu0 0.0
      %5971 = vmatprep.subr.mxu0 0.0
      %5972 = vmatpush1.msra.mxu0 0.0
      %5973 = vmatprep.subr.mxu0 0.0
      %5974 = vmatpush1.msra.mxu0 0.0
      %5975 = vmatprep.subr.mxu0 0.0
      %5976 = vmatpush1.msra.mxu0 0.0
      %5977 = vmatprep.subr.mxu0 0.0
      %5978 = vmatpush1.msra.mxu0 0.0
      %5979 = vmatprep.subr.mxu0 0.0
      %5980 = vmatpush1.msra.mxu0 0.0
      %5981 = vmatprep.subr.mxu0 0.0
      %5982 = vmatpush1.msra.mxu0 0.0
      %5983 = vmatprep.subr.mxu0 0.0
      %5984 = vmatpush1.msra.mxu0 0.0
      %5985 = vmatprep.subr.mxu0 0.0
      %5986 = vmatpush1.msra.mxu0 0.0
      %5987 = vmatprep.mubr.f32.mxu0 0.0
      %5988 = vmatmul.mubr.f32.gmra.mrb[0].mxu0 %v5708
      %v5989 = vpop.f32.mrb[0].mxu0
      %v5990 = vadd.f32 0.0, %v5989
      %v5991 = vpop.f32.mrb[0].mxu0
      %v5992 = vadd.f32 0.0, %v5991
      %5993 = vdwg.mxu0
      %5994 = vmatprep.subr.mxu0 %v5694
      %5995 = vmatpush1.msra.mxu0 %v5693
      %5996 = vmatprep.subr.mxu0 0.0
      %5997 = vmatpush1.msra.mxu0 0.0
      %5998 = vmatprep.subr.mxu0 0.0
      %5999 = vmatpush1.msra.mxu0 0.0
      %6000 = vmatprep.subr.mxu0 0.0
      %6001 = vmatpush1.msra.mxu0 0.0
      %6002 = vmatprep.subr.mxu0 0.0
      %6003 = vmatpush1.msra.mxu0 0.0
      %6004 = vmatprep.subr.mxu0 0.0
      %6005 = vmatpush1.msra.mxu0 0.0
      %6006 = vmatprep.subr.mxu0 0.0
      %6007 = vmatpush1.msra.mxu0 0.0
      %6008 = vmatprep.subr.mxu0 0.0
      %6009 = vmatpush1.msra.mxu0 0.0
      %6010 = vmatprep.subr.mxu0 0.0
      %6011 = vmatpush1.msra.mxu0 0.0
      %6012 = vmatprep.subr.mxu0 0.0
      %6013 = vmatpush1.msra.mxu0 0.0
      %6014 = vmatprep.subr.mxu0 0.0
      %6015 = vmatpush1.msra.mxu0 0.0
      %6016 = vmatprep.subr.mxu0 0.0
      %6017 = vmatpush1.msra.mxu0 0.0
      %6018 = vmatprep.subr.mxu0 0.0
      %6019 = vmatpush1.msra.mxu0 0.0
      %6020 = vmatprep.subr.mxu0 0.0
      %6021 = vmatpush1.msra.mxu0 0.0
      %6022 = vmatprep.subr.mxu0 0.0
      %6023 = vmatpush1.msra.mxu0 0.0
      %6024 = vmatprep.subr.mxu0 0.0
      %6025 = vmatpush1.msra.mxu0 0.0
      %6026 = vmatprep.subr.mxu0 0.0
      %6027 = vmatpush1.msra.mxu0 0.0
      %6028 = vmatprep.subr.mxu0 0.0
      %6029 = vmatpush1.msra.mxu0 0.0
      %6030 = vmatprep.subr.mxu0 0.0
      %6031 = vmatpush1.msra.mxu0 0.0
      %6032 = vmatprep.subr.mxu0 0.0
      %6033 = vmatpush1.msra.mxu0 0.0
      %6034 = vmatprep.subr.mxu0 0.0
      %6035 = vmatpush1.msra.mxu0 0.0
      %6036 = vmatprep.subr.mxu0 0.0
      %6037 = vmatpush1.msra.mxu0 0.0
      %6038 = vmatprep.subr.mxu0 0.0
      %6039 = vmatpush1.msra.mxu0 0.0
      %6040 = vmatprep.subr.mxu0 0.0
      %6041 = vmatpush1.msra.mxu0 0.0
      %6042 = vmatprep.subr.mxu0 0.0
      %6043 = vmatpush1.msra.mxu0 0.0
      %6044 = vmatprep.subr.mxu0 0.0
      %6045 = vmatpush1.msra.mxu0 0.0
      %6046 = vmatprep.subr.mxu0 0.0
      %6047 = vmatpush1.msra.mxu0 0.0
      %6048 = vmatprep.subr.mxu0 0.0
      %6049 = vmatpush1.msra.mxu0 0.0
      %6050 = vmatprep.subr.mxu0 0.0
      %6051 = vmatpush1.msra.mxu0 0.0
      %6052 = vmatprep.subr.mxu0 0.0
      %6053 = vmatpush1.msra.mxu0 0.0
      %6054 = vmatprep.subr.mxu0 0.0
      %6055 = vmatpush1.msra.mxu0 0.0
      %6056 = vmatprep.subr.mxu0 0.0
      %6057 = vmatpush1.msra.mxu0 0.0
      %6058 = vmatprep.mubr.f32.mxu0 0.0
      %6059 = vmatmul.mubr.f32.gmra.mrb[0].mxu0 %v5708
      %v6060 = vpop.f32.mrb[0].mxu0
      %v6061 = vadd.f32 0.0, %v6060
      %v6062 = vpop.f32.mrb[0].mxu0
      %v6063 = vadd.f32 0.0, %v6062
      %6064 = vdwg.mxu0
      %6065 = vmatprep.subr.mxu0 0.0
      %6066 = vmatpush1.msra.mxu0 %v5695
      %6067 = vmatprep.subr.mxu0 0.0
      %6068 = vmatpush1.msra.mxu0 0.0
      %6069 = vmatprep.subr.mxu0 0.0
      %6070 = vmatpush1.msra.mxu0 0.0
      %6071 = vmatprep.subr.mxu0 0.0
      %6072 = vmatpush1.msra.mxu0 0.0
      %6073 = vmatprep.subr.mxu0 0.0
      %6074 = vmatpush1.msra.mxu0 0.0
      %6075 = vmatprep.subr.mxu0 0.0
      %6076 = vmatpush1.msra.mxu0 0.0
      %6077 = vmatprep.subr.mxu0 0.0
      %6078 = vmatpush1.msra.mxu0 0.0
      %6079 = vmatprep.subr.mxu0 0.0
      %6080 = vmatpush1.msra.mxu0 0.0
      %6081 = vmatprep.subr.mxu0 0.0
      %6082 = vmatpush1.msra.mxu0 0.0
      %6083 = vmatprep.subr.mxu0 0.0
      %6084 = vmatpush1.msra.mxu0 0.0
      %6085 = vmatprep.subr.mxu0 0.0
      %6086 = vmatpush1.msra.mxu0 0.0
      %6087 = vmatprep.subr.mxu0 0.0
      %6088 = vmatpush1.msra.mxu0 0.0
      %6089 = vmatprep.subr.mxu0 0.0
      %6090 = vmatpush1.msra.mxu0 0.0
      %6091 = vmatprep.subr.mxu0 0.0
      %6092 = vmatpush1.msra.mxu0 0.0
      %6093 = vmatprep.subr.mxu0 0.0
      %6094 = vmatpush1.msra.mxu0 0.0
      %6095 = vmatprep.subr.mxu0 0.0
      %6096 = vmatpush1.msra.mxu0 0.0
      %6097 = vmatprep.subr.mxu0 0.0
      %6098 = vmatpush1.msra.mxu0 0.0
      %6099 = vmatprep.subr.mxu0 0.0
      %6100 = vmatpush1.msra.mxu0 0.0
      %6101 = vmatprep.subr.mxu0 0.0
      %6102 = vmatpush1.msra.mxu0 0.0
      %6103 = vmatprep.subr.mxu0 0.0
      %6104 = vmatpush1.msra.mxu0 0.0
      %6105 = vmatprep.subr.mxu0 0.0
      %6106 = vmatpush1.msra.mxu0 0.0
      %6107 = vmatprep.subr.mxu0 0.0
      %6108 = vmatpush1.msra.mxu0 0.0
      %6109 = vmatprep.subr.mxu0 0.0
      %6110 = vmatpush1.msra.mxu0 0.0
      %6111 = vmatprep.subr.mxu0 0.0
      %6112 = vmatpush1.msra.mxu0 0.0
      %6113 = vmatprep.subr.mxu0 0.0
      %6114 = vmatpush1.msra.mxu0 0.0
      %6115 = vmatprep.subr.mxu0 0.0
      %6116 = vmatpush1.msra.mxu0 0.0
      %6117 = vmatprep.subr.mxu0 0.0
      %6118 = vmatpush1.msra.mxu0 0.0
      %6119 = vmatprep.subr.mxu0 0.0
      %6120 = vmatpush1.msra.mxu0 0.0
      %6121 = vmatprep.subr.mxu0 0.0
      %6122 = vmatpush1.msra.mxu0 0.0
      %6123 = vmatprep.subr.mxu0 0.0
      %6124 = vmatpush1.msra.mxu0 0.0
      %6125 = vmatprep.subr.mxu0 0.0
      %6126 = vmatpush1.msra.mxu0 0.0
      %6127 = vmatprep.subr.mxu0 0.0
      %6128 = vmatpush1.msra.mxu0 0.0
      %6129 = vmatprep.mubr.f32.mxu0 0.0
      %6130 = vmatmul.mubr.f32.gmra.mrb[0].mxu0 %v5708
      %v6131 = vpop.f32.mrb[0].mxu0
      %v6132 = vadd.f32 0.0, %v6131
      %v6133 = vpop.f32.mrb[0].mxu0
      %6134 = vdwg.mxu0
      %v6135 = vadd.f32 %v5301, %v5777
      %v6136 = vadd.f32 %v5303, %v5779
      %v6137 = vadd.f32 %v5372, %v5848
      %v6138 = vadd.f32 %v5374, %v5850
      %v6139 = vadd.f32 %v5443, %v5919
      %v6140 = vadd.f32 %v5445, %v5921
      %v6141 = vadd.f32 %v5514, %v5990
      %v6142 = vadd.f32 %v5516, %v5992
      %v6143 = vadd.f32 %v5585, %v6061
      %v6144 = vadd.f32 %v5587, %v6063
      %v6145 = vadd.f32 %v5656, %v6132
      %s6146 = scalar_lea.vmem %s2, 24
      %v6147 = vld [vmem:[%s6146] sm:$0xff]
      %6148 = vrot.lane.b32.xlu0 %v4730, 110
      %v6149 = vpop.permute.xlu0 %6148
      %6150 = vrot.lane.b32.xlu0 %v4731, 110
      %v6151 = vpop.permute.xlu0 %6150
      %6152 = vrot.lane.b32.xlu0 %v4732, 110
      %v6153 = vpop.permute.xlu0 %6152
      %6154 = vrot.lane.b32.xlu0 %v4733, 110
      %v6155 = vpop.permute.xlu0 %6154
      %6156 = vrot.lane.b32.xlu0 %v4734, 110
      %v6157 = vpop.permute.xlu0 %6156
      %6158 = vrot.lane.b32.xlu0 %v4735, 110
      %v6159 = vpop.permute.xlu0 %6158
      %6160 = vrot.lane.b32.xlu0 %v4736, 110
      %v6161 = vpop.permute.xlu0 %6160
      %6162 = vrot.lane.b32.xlu0 %v4737, 110
      %v6163 = vpop.permute.xlu0 %6162
      %6164 = vrot.lane.b32.xlu0 %v4738, 110
      %v6165 = vpop.permute.xlu0 %6164
      %6166 = vrot.lane.b32.xlu0 %v4739, 110
      %v6167 = vpop.permute.xlu0 %6166
      %6168 = vrot.lane.b32.xlu0 %v4740, 110
      %v6169 = vpop.permute.xlu0 %6168
      %6170 = vrot.lane.b32.xlu0 %v4742, 110
      %v6171 = vpop.permute.xlu0 %6170
      %v6172 = vsel %vm1643, %v6149, %v6151
      %v6173 = vsel %vm1643, %v6151, %v6153
      %v6174 = vsel %vm1643, %v6153, %v6155
      %v6175 = vsel %vm1643, %v6155, %v6157
      %v6176 = vsel %vm1643, %v6157, %v6159
      %v6177 = vsel %vm1643, %v6159, %v6161
      %v6178 = vsel %vm1643, %v6161, %v6163
      %v6179 = vsel %vm1643, %v6163, %v6165
      %v6180 = vsel %vm1643, %v6165, %v6167
      %v6181 = vsel %vm1643, %v6167, %v6169
      %v6182 = vsel %vm1643, %v6169, %v6171
      %v6195 = vsel %vm272, %v6147, 0
      %6197 = vmatprep.subr.mxu0 %v6173
      %6198 = vmatpush1.msra.mxu0 %v6172
      %6199 = vmatprep.subr.mxu0 0.0
      %6200 = vmatpush1.msra.mxu0 0.0
      %6201 = vmatprep.subr.mxu0 0.0
      %6202 = vmatpush1.msra.mxu0 0.0
      %6203 = vmatprep.subr.mxu0 0.0
      %6204 = vmatpush1.msra.mxu0 0.0
      %6205 = vmatprep.subr.mxu0 0.0
      %6206 = vmatpush1.msra.mxu0 0.0
      %6207 = vmatprep.subr.mxu0 0.0
      %6208 = vmatpush1.msra.mxu0 0.0
      %6209 = vmatprep.subr.mxu0 0.0
      %6210 = vmatpush1.msra.mxu0 0.0
      %6211 = vmatprep.subr.mxu0 0.0
      %6212 = vmatpush1.msra.mxu0 0.0
      %6213 = vmatprep.subr.mxu0 0.0
      %6214 = vmatpush1.msra.mxu0 0.0
      %6215 = vmatprep.subr.mxu0 0.0
      %6216 = vmatpush1.msra.mxu0 0.0
      %6217 = vmatprep.subr.mxu0 0.0
      %6218 = vmatpush1.msra.mxu0 0.0
      %6219 = vmatprep.subr.mxu0 0.0
      %6220 = vmatpush1.msra.mxu0 0.0
      %6221 = vmatprep.subr.mxu0 0.0
      %6222 = vmatpush1.msra.mxu0 0.0
      %6223 = vmatprep.subr.mxu0 0.0
      %6224 = vmatpush1.msra.mxu0 0.0
      %6225 = vmatprep.subr.mxu0 0.0
      %6226 = vmatpush1.msra.mxu0 0.0
      %6227 = vmatprep.subr.mxu0 0.0
      %6228 = vmatpush1.msra.mxu0 0.0
      %6229 = vmatprep.subr.mxu0 0.0
      %6230 = vmatpush1.msra.mxu0 0.0
      %6231 = vmatprep.subr.mxu0 0.0
      %6232 = vmatpush1.msra.mxu0 0.0
      %6233 = vmatprep.subr.mxu0 0.0
      %6234 = vmatpush1.msra.mxu0 0.0
      %6235 = vmatprep.subr.mxu0 0.0
      %6236 = vmatpush1.msra.mxu0 0.0
      %6237 = vmatprep.subr.mxu0 0.0
      %6238 = vmatpush1.msra.mxu0 0.0
      %6239 = vmatprep.subr.mxu0 0.0
      %6240 = vmatpush1.msra.mxu0 0.0
      %6241 = vmatprep.subr.mxu0 0.0
      %6242 = vmatpush1.msra.mxu0 0.0
      %6243 = vmatprep.subr.mxu0 0.0
      %6244 = vmatpush1.msra.mxu0 0.0
      %6245 = vmatprep.subr.mxu0 0.0
      %6246 = vmatpush1.msra.mxu0 0.0
      %6247 = vmatprep.subr.mxu0 0.0
      %6248 = vmatpush1.msra.mxu0 0.0
      %6249 = vmatprep.subr.mxu0 0.0
      %6250 = vmatpush1.msra.mxu0 0.0
      %6251 = vmatprep.subr.mxu0 0.0
      %6252 = vmatpush1.msra.mxu0 0.0
      %6253 = vmatprep.subr.mxu0 0.0
      %6254 = vmatpush1.msra.mxu0 0.0
      %6255 = vmatprep.subr.mxu0 0.0
      %6256 = vmatpush1.msra.mxu0 0.0
      %6257 = vmatprep.subr.mxu0 0.0
      %6258 = vmatpush1.msra.mxu0 0.0
      %6259 = vmatprep.subr.mxu0 0.0
      %6260 = vmatpush1.msra.mxu0 0.0
      %6261 = vmatprep.mubr.f32.mxu0 0.0
      %6262 = vmatmul.mubr.f32.gmra.mrb[0].mxu0 %v6195
      %v6263 = vpop.f32.mrb[0].mxu0
      %v6264 = vadd.f32 0.0, %v6263
      %v6265 = vpop.f32.mrb[0].mxu0
      %v6266 = vadd.f32 0.0, %v6265
      %6267 = vdwg.mxu0
      %6268 = vmatprep.subr.mxu0 %v6175
      %6269 = vmatpush1.msra.mxu0 %v6174
      %6270 = vmatprep.subr.mxu0 0.0
      %6271 = vmatpush1.msra.mxu0 0.0
      %6272 = vmatprep.subr.mxu0 0.0
      %6273 = vmatpush1.msra.mxu0 0.0
      %6274 = vmatprep.subr.mxu0 0.0
      %6275 = vmatpush1.msra.mxu0 0.0
      %6276 = vmatprep.subr.mxu0 0.0
      %6277 = vmatpush1.msra.mxu0 0.0
      %6278 = vmatprep.subr.mxu0 0.0
      %6279 = vmatpush1.msra.mxu0 0.0
      %6280 = vmatprep.subr.mxu0 0.0
      %6281 = vmatpush1.msra.mxu0 0.0
      %6282 = vmatprep.subr.mxu0 0.0
      %6283 = vmatpush1.msra.mxu0 0.0
      %6284 = vmatprep.subr.mxu0 0.0
      %6285 = vmatpush1.msra.mxu0 0.0
      %6286 = vmatprep.subr.mxu0 0.0
      %6287 = vmatpush1.msra.mxu0 0.0
      %6288 = vmatprep.subr.mxu0 0.0
      %6289 = vmatpush1.msra.mxu0 0.0
      %6290 = vmatprep.subr.mxu0 0.0
      %6291 = vmatpush1.msra.mxu0 0.0
      %6292 = vmatprep.subr.mxu0 0.0
      %6293 = vmatpush1.msra.mxu0 0.0
      %6294 = vmatprep.subr.mxu0 0.0
      %6295 = vmatpush1.msra.mxu0 0.0
      %6296 = vmatprep.subr.mxu0 0.0
      %6297 = vmatpush1.msra.mxu0 0.0
      %6298 = vmatprep.subr.mxu0 0.0
      %6299 = vmatpush1.msra.mxu0 0.0
      %6300 = vmatprep.subr.mxu0 0.0
      %6301 = vmatpush1.msra.mxu0 0.0
      %6302 = vmatprep.subr.mxu0 0.0
      %6303 = vmatpush1.msra.mxu0 0.0
      %6304 = vmatprep.subr.mxu0 0.0
      %6305 = vmatpush1.msra.mxu0 0.0
      %6306 = vmatprep.subr.mxu0 0.0
      %6307 = vmatpush1.msra.mxu0 0.0
      %6308 = vmatprep.subr.mxu0 0.0
      %6309 = vmatpush1.msra.mxu0 0.0
      %6310 = vmatprep.subr.mxu0 0.0
      %6311 = vmatpush1.msra.mxu0 0.0
      %6312 = vmatprep.subr.mxu0 0.0
      %6313 = vmatpush1.msra.mxu0 0.0
      %6314 = vmatprep.subr.mxu0 0.0
      %6315 = vmatpush1.msra.mxu0 0.0
      %6316 = vmatprep.subr.mxu0 0.0
      %6317 = vmatpush1.msra.mxu0 0.0
      %6318 = vmatprep.subr.mxu0 0.0
      %6319 = vmatpush1.msra.mxu0 0.0
      %6320 = vmatprep.subr.mxu0 0.0
      %6321 = vmatpush1.msra.mxu0 0.0
      %6322 = vmatprep.subr.mxu0 0.0
      %6323 = vmatpush1.msra.mxu0 0.0
      %6324 = vmatprep.subr.mxu0 0.0
      %6325 = vmatpush1.msra.mxu0 0.0
      %6326 = vmatprep.subr.mxu0 0.0
      %6327 = vmatpush1.msra.mxu0 0.0
      %6328 = vmatprep.subr.mxu0 0.0
      %6329 = vmatpush1.msra.mxu0 0.0
      %6330 = vmatprep.subr.mxu0 0.0
      %6331 = vmatpush1.msra.mxu0 0.0
      %6332 = vmatprep.mubr.f32.mxu0 0.0
      %6333 = vmatmul.mubr.f32.gmra.mrb[0].mxu0 %v6195
      %v6334 = vpop.f32.mrb[0].mxu0
      %v6335 = vadd.f32 0.0, %v6334
      %v6336 = vpop.f32.mrb[0].mxu0
      %v6337 = vadd.f32 0.0, %v6336
      %6338 = vdwg.mxu0
      %6339 = vmatprep.subr.mxu0 %v6177
      %6340 = vmatpush1.msra.mxu0 %v6176
      %6341 = vmatprep.subr.mxu0 0.0
      %6342 = vmatpush1.msra.mxu0 0.0
      %6343 = vmatprep.subr.mxu0 0.0
      %6344 = vmatpush1.msra.mxu0 0.0
      %6345 = vmatprep.subr.mxu0 0.0
      %6346 = vmatpush1.msra.mxu0 0.0
      %6347 = vmatprep.subr.mxu0 0.0
      %6348 = vmatpush1.msra.mxu0 0.0
      %6349 = vmatprep.subr.mxu0 0.0
      %6350 = vmatpush1.msra.mxu0 0.0
      %6351 = vmatprep.subr.mxu0 0.0
      %6352 = vmatpush1.msra.mxu0 0.0
      %6353 = vmatprep.subr.mxu0 0.0
      %6354 = vmatpush1.msra.mxu0 0.0
      %6355 = vmatprep.subr.mxu0 0.0
      %6356 = vmatpush1.msra.mxu0 0.0
      %6357 = vmatprep.subr.mxu0 0.0
      %6358 = vmatpush1.msra.mxu0 0.0
      %6359 = vmatprep.subr.mxu0 0.0
      %6360 = vmatpush1.msra.mxu0 0.0
      %6361 = vmatprep.subr.mxu0 0.0
      %6362 = vmatpush1.msra.mxu0 0.0
      %6363 = vmatprep.subr.mxu0 0.0
      %6364 = vmatpush1.msra.mxu0 0.0
      %6365 = vmatprep.subr.mxu0 0.0
      %6366 = vmatpush1.msra.mxu0 0.0
      %6367 = vmatprep.subr.mxu0 0.0
      %6368 = vmatpush1.msra.mxu0 0.0
      %6369 = vmatprep.subr.mxu0 0.0
      %6370 = vmatpush1.msra.mxu0 0.0
      %6371 = vmatprep.subr.mxu0 0.0
      %6372 = vmatpush1.msra.mxu0 0.0
      %6373 = vmatprep.subr.mxu0 0.0
      %6374 = vmatpush1.msra.mxu0 0.0
      %6375 = vmatprep.subr.mxu0 0.0
      %6376 = vmatpush1.msra.mxu0 0.0
      %6377 = vmatprep.subr.mxu0 0.0
      %6378 = vmatpush1.msra.mxu0 0.0
      %6379 = vmatprep.subr.mxu0 0.0
      %6380 = vmatpush1.msra.mxu0 0.0
      %6381 = vmatprep.subr.mxu0 0.0
      %6382 = vmatpush1.msra.mxu0 0.0
      %6383 = vmatprep.subr.mxu0 0.0
      %6384 = vmatpush1.msra.mxu0 0.0
      %6385 = vmatprep.subr.mxu0 0.0
      %6386 = vmatpush1.msra.mxu0 0.0
      %6387 = vmatprep.subr.mxu0 0.0
      %6388 = vmatpush1.msra.mxu0 0.0
      %6389 = vmatprep.subr.mxu0 0.0
      %6390 = vmatpush1.msra.mxu0 0.0
      %6391 = vmatprep.subr.mxu0 0.0
      %6392 = vmatpush1.msra.mxu0 0.0
      %6393 = vmatprep.subr.mxu0 0.0
      %6394 = vmatpush1.msra.mxu0 0.0
      %6395 = vmatprep.subr.mxu0 0.0
      %6396 = vmatpush1.msra.mxu0 0.0
      %6397 = vmatprep.subr.mxu0 0.0
      %6398 = vmatpush1.msra.mxu0 0.0
      %6399 = vmatprep.subr.mxu0 0.0
      %6400 = vmatpush1.msra.mxu0 0.0
      %6401 = vmatprep.subr.mxu0 0.0
      %6402 = vmatpush1.msra.mxu0 0.0
      %6403 = vmatprep.mubr.f32.mxu0 0.0
      %6404 = vmatmul.mubr.f32.gmra.mrb[0].mxu0 %v6195
      %v6405 = vpop.f32.mrb[0].mxu0
      %v6406 = vadd.f32 0.0, %v6405
      %v6407 = vpop.f32.mrb[0].mxu0
      %v6408 = vadd.f32 0.0, %v6407
      %6409 = vdwg.mxu0
      %6410 = vmatprep.subr.mxu0 %v6179
      %6411 = vmatpush1.msra.mxu0 %v6178
      %6412 = vmatprep.subr.mxu0 0.0
      %6413 = vmatpush1.msra.mxu0 0.0
      %6414 = vmatprep.subr.mxu0 0.0
      %6415 = vmatpush1.msra.mxu0 0.0
      %6416 = vmatprep.subr.mxu0 0.0
      %6417 = vmatpush1.msra.mxu0 0.0
      %6418 = vmatprep.subr.mxu0 0.0
      %6419 = vmatpush1.msra.mxu0 0.0
      %6420 = vmatprep.subr.mxu0 0.0
      %6421 = vmatpush1.msra.mxu0 0.0
      %6422 = vmatprep.subr.mxu0 0.0
      %6423 = vmatpush1.msra.mxu0 0.0
      %6424 = vmatprep.subr.mxu0 0.0
      %6425 = vmatpush1.msra.mxu0 0.0
      %6426 = vmatprep.subr.mxu0 0.0
      %6427 = vmatpush1.msra.mxu0 0.0
      %6428 = vmatprep.subr.mxu0 0.0
      %6429 = vmatpush1.msra.mxu0 0.0
      %6430 = vmatprep.subr.mxu0 0.0
      %6431 = vmatpush1.msra.mxu0 0.0
      %6432 = vmatprep.subr.mxu0 0.0
      %6433 = vmatpush1.msra.mxu0 0.0
      %6434 = vmatprep.subr.mxu0 0.0
      %6435 = vmatpush1.msra.mxu0 0.0
      %6436 = vmatprep.subr.mxu0 0.0
      %6437 = vmatpush1.msra.mxu0 0.0
      %6438 = vmatprep.subr.mxu0 0.0
      %6439 = vmatpush1.msra.mxu0 0.0
      %6440 = vmatprep.subr.mxu0 0.0
      %6441 = vmatpush1.msra.mxu0 0.0
      %6442 = vmatprep.subr.mxu0 0.0
      %6443 = vmatpush1.msra.mxu0 0.0
      %6444 = vmatprep.subr.mxu0 0.0
      %6445 = vmatpush1.msra.mxu0 0.0
      %6446 = vmatprep.subr.mxu0 0.0
      %6447 = vmatpush1.msra.mxu0 0.0
      %6448 = vmatprep.subr.mxu0 0.0
      %6449 = vmatpush1.msra.mxu0 0.0
      %6450 = vmatprep.subr.mxu0 0.0
      %6451 = vmatpush1.msra.mxu0 0.0
      %6452 = vmatprep.subr.mxu0 0.0
      %6453 = vmatpush1.msra.mxu0 0.0
      %6454 = vmatprep.subr.mxu0 0.0
      %6455 = vmatpush1.msra.mxu0 0.0
      %6456 = vmatprep.subr.mxu0 0.0
      %6457 = vmatpush1.msra.mxu0 0.0
      %6458 = vmatprep.subr.mxu0 0.0
      %6459 = vmatpush1.msra.mxu0 0.0
      %6460 = vmatprep.subr.mxu0 0.0
      %6461 = vmatpush1.msra.mxu0 0.0
      %6462 = vmatprep.subr.mxu0 0.0
      %6463 = vmatpush1.msra.mxu0 0.0
      %6464 = vmatprep.subr.mxu0 0.0
      %6465 = vmatpush1.msra.mxu0 0.0
      %6466 = vmatprep.subr.mxu0 0.0
      %6467 = vmatpush1.msra.mxu0 0.0
      %6468 = vmatprep.subr.mxu0 0.0
      %6469 = vmatpush1.msra.mxu0 0.0
      %6470 = vmatprep.subr.mxu0 0.0
      %6471 = vmatpush1.msra.mxu0 0.0
      %6472 = vmatprep.subr.mxu0 0.0
      %6473 = vmatpush1.msra.mxu0 0.0
      %6474 = vmatprep.mubr.f32.mxu0 0.0
      %6475 = vmatmul.mubr.f32.gmra.mrb[0].mxu0 %v6195
      %v6476 = vpop.f32.mrb[0].mxu0
      %v6477 = vadd.f32 0.0, %v6476
      %v6478 = vpop.f32.mrb[0].mxu0
      %v6479 = vadd.f32 0.0, %v6478
      %6480 = vdwg.mxu0
      %6481 = vmatprep.subr.mxu0 %v6181
      %6482 = vmatpush1.msra.mxu0 %v6180
      %6483 = vmatprep.subr.mxu0 0.0
      %6484 = vmatpush1.msra.mxu0 0.0
      %6485 = vmatprep.subr.mxu0 0.0
      %6486 = vmatpush1.msra.mxu0 0.0
      %6487 = vmatprep.subr.mxu0 0.0
      %6488 = vmatpush1.msra.mxu0 0.0
      %6489 = vmatprep.subr.mxu0 0.0
      %6490 = vmatpush1.msra.mxu0 0.0
      %6491 = vmatprep.subr.mxu0 0.0
      %6492 = vmatpush1.msra.mxu0 0.0
      %6493 = vmatprep.subr.mxu0 0.0
      %6494 = vmatpush1.msra.mxu0 0.0
      %6495 = vmatprep.subr.mxu0 0.0
      %6496 = vmatpush1.msra.mxu0 0.0
      %6497 = vmatprep.subr.mxu0 0.0
      %6498 = vmatpush1.msra.mxu0 0.0
      %6499 = vmatprep.subr.mxu0 0.0
      %6500 = vmatpush1.msra.mxu0 0.0
      %6501 = vmatprep.subr.mxu0 0.0
      %6502 = vmatpush1.msra.mxu0 0.0
      %6503 = vmatprep.subr.mxu0 0.0
      %6504 = vmatpush1.msra.mxu0 0.0
      %6505 = vmatprep.subr.mxu0 0.0
      %6506 = vmatpush1.msra.mxu0 0.0
      %6507 = vmatprep.subr.mxu0 0.0
      %6508 = vmatpush1.msra.mxu0 0.0
      %6509 = vmatprep.subr.mxu0 0.0
      %6510 = vmatpush1.msra.mxu0 0.0
      %6511 = vmatprep.subr.mxu0 0.0
      %6512 = vmatpush1.msra.mxu0 0.0
      %6513 = vmatprep.subr.mxu0 0.0
      %6514 = vmatpush1.msra.mxu0 0.0
      %6515 = vmatprep.subr.mxu0 0.0
      %6516 = vmatpush1.msra.mxu0 0.0
      %6517 = vmatprep.subr.mxu0 0.0
      %6518 = vmatpush1.msra.mxu0 0.0
      %6519 = vmatprep.subr.mxu0 0.0
      %6520 = vmatpush1.msra.mxu0 0.0
      %6521 = vmatprep.subr.mxu0 0.0
      %6522 = vmatpush1.msra.mxu0 0.0
      %6523 = vmatprep.subr.mxu0 0.0
      %6524 = vmatpush1.msra.mxu0 0.0
      %6525 = vmatprep.subr.mxu0 0.0
      %6526 = vmatpush1.msra.mxu0 0.0
      %6527 = vmatprep.subr.mxu0 0.0
      %6528 = vmatpush1.msra.mxu0 0.0
      %6529 = vmatprep.subr.mxu0 0.0
      %6530 = vmatpush1.msra.mxu0 0.0
      %6531 = vmatprep.subr.mxu0 0.0
      %6532 = vmatpush1.msra.mxu0 0.0
      %6533 = vmatprep.subr.mxu0 0.0
      %6534 = vmatpush1.msra.mxu0 0.0
      %6535 = vmatprep.subr.mxu0 0.0
      %6536 = vmatpush1.msra.mxu0 0.0
      %6537 = vmatprep.subr.mxu0 0.0
      %6538 = vmatpush1.msra.mxu0 0.0
      %6539 = vmatprep.subr.mxu0 0.0
      %6540 = vmatpush1.msra.mxu0 0.0
      %6541 = vmatprep.subr.mxu0 0.0
      %6542 = vmatpush1.msra.mxu0 0.0
      %6543 = vmatprep.subr.mxu0 0.0
      %6544 = vmatpush1.msra.mxu0 0.0
      %6545 = vmatprep.mubr.f32.mxu0 0.0
      %6546 = vmatmul.mubr.f32.gmra.mrb[0].mxu0 %v6195
      %v6547 = vpop.f32.mrb[0].mxu0
      %v6548 = vadd.f32 0.0, %v6547
      %v6549 = vpop.f32.mrb[0].mxu0
      %v6550 = vadd.f32 0.0, %v6549
      %6551 = vdwg.mxu0
      %6552 = vmatprep.subr.mxu0 0.0
      %6553 = vmatpush1.msra.mxu0 %v6182
      %6554 = vmatprep.subr.mxu0 0.0
      %6555 = vmatpush1.msra.mxu0 0.0
      %6556 = vmatprep.subr.mxu0 0.0
      %6557 = vmatpush1.msra.mxu0 0.0
      %6558 = vmatprep.subr.mxu0 0.0
      %6559 = vmatpush1.msra.mxu0 0.0
      %6560 = vmatprep.subr.mxu0 0.0
      %6561 = vmatpush1.msra.mxu0 0.0
      %6562 = vmatprep.subr.mxu0 0.0
      %6563 = vmatpush1.msra.mxu0 0.0
      %6564 = vmatprep.subr.mxu0 0.0
      %6565 = vmatpush1.msra.mxu0 0.0
      %6566 = vmatprep.subr.mxu0 0.0
      %6567 = vmatpush1.msra.mxu0 0.0
      %6568 = vmatprep.subr.mxu0 0.0
      %6569 = vmatpush1.msra.mxu0 0.0
      %6570 = vmatprep.subr.mxu0 0.0
      %6571 = vmatpush1.msra.mxu0 0.0
      %6572 = vmatprep.subr.mxu0 0.0
      %6573 = vmatpush1.msra.mxu0 0.0
      %6574 = vmatprep.subr.mxu0 0.0
      %6575 = vmatpush1.msra.mxu0 0.0
      %6576 = vmatprep.subr.mxu0 0.0
      %6577 = vmatpush1.msra.mxu0 0.0
      %6578 = vmatprep.subr.mxu0 0.0
      %6579 = vmatpush1.msra.mxu0 0.0
      %6580 = vmatprep.subr.mxu0 0.0
      %6581 = vmatpush1.msra.mxu0 0.0
      %6582 = vmatprep.subr.mxu0 0.0
      %6583 = vmatpush1.msra.mxu0 0.0
      %6584 = vmatprep.subr.mxu0 0.0
      %6585 = vmatpush1.msra.mxu0 0.0
      %6586 = vmatprep.subr.mxu0 0.0
      %6587 = vmatpush1.msra.mxu0 0.0
      %6588 = vmatprep.subr.mxu0 0.0
      %6589 = vmatpush1.msra.mxu0 0.0
      %6590 = vmatprep.subr.mxu0 0.0
      %6591 = vmatpush1.msra.mxu0 0.0
      %6592 = vmatprep.subr.mxu0 0.0
      %6593 = vmatpush1.msra.mxu0 0.0
      %6594 = vmatprep.subr.mxu0 0.0
      %6595 = vmatpush1.msra.mxu0 0.0
      %6596 = vmatprep.subr.mxu0 0.0
      %6597 = vmatpush1.msra.mxu0 0.0
      %6598 = vmatprep.subr.mxu0 0.0
      %6599 = vmatpush1.msra.mxu0 0.0
      %6600 = vmatprep.subr.mxu0 0.0
      %6601 = vmatpush1.msra.mxu0 0.0
      %6602 = vmatprep.subr.mxu0 0.0
      %6603 = vmatpush1.msra.mxu0 0.0
      %6604 = vmatprep.subr.mxu0 0.0
      %6605 = vmatpush1.msra.mxu0 0.0
      %6606 = vmatprep.subr.mxu0 0.0
      %6607 = vmatpush1.msra.mxu0 0.0
      %6608 = vmatprep.subr.mxu0 0.0
      %6609 = vmatpush1.msra.mxu0 0.0
      %6610 = vmatprep.subr.mxu0 0.0
      %6611 = vmatpush1.msra.mxu0 0.0
      %6612 = vmatprep.subr.mxu0 0.0
      %6613 = vmatpush1.msra.mxu0 0.0
      %6614 = vmatprep.subr.mxu0 0.0
      %6615 = vmatpush1.msra.mxu0 0.0
      %6616 = vmatprep.mubr.f32.mxu0 0.0
      %6617 = vmatmul.mubr.f32.gmra.mrb[0].mxu0 %v6195
      %v6618 = vpop.f32.mrb[0].mxu0
      %v6619 = vadd.f32 0.0, %v6618
      %v6620 = vpop.f32.mrb[0].mxu0
      %6621 = vdwg.mxu0
      %v6622 = vadd.f32 %v6135, %v6264
      %v6623 = vadd.f32 %v6136, %v6266
      %v6624 = vadd.f32 %v6137, %v6335
      %v6625 = vadd.f32 %v6138, %v6337
      %v6626 = vadd.f32 %v6139, %v6406
      %v6627 = vadd.f32 %v6140, %v6408
      %v6628 = vadd.f32 %v6141, %v6477
      %v6629 = vadd.f32 %v6142, %v6479
      %v6630 = vadd.f32 %v6143, %v6548
      %v6631 = vadd.f32 %v6144, %v6550
      %v6632 = vadd.f32 %v6145, %v6619
      %s6633 = scalar_lea.vmem %s2, 32
      %v6634 = vld [vmem:[%s6633] sm:$0xff]
      %6635 = vrot.lane.b32.xlu0 %v4730, 109
      %v6636 = vpop.permute.xlu0 %6635
      %6637 = vrot.lane.b32.xlu0 %v4731, 109
      %v6638 = vpop.permute.xlu0 %6637
      %6639 = vrot.lane.b32.xlu0 %v4732, 109
      %v6640 = vpop.permute.xlu0 %6639
      %6641 = vrot.lane.b32.xlu0 %v4733, 109
      %v6642 = vpop.permute.xlu0 %6641
      %6643 = vrot.lane.b32.xlu0 %v4734, 109
      %v6644 = vpop.permute.xlu0 %6643
      %6645 = vrot.lane.b32.xlu0 %v4735, 109
      %v6646 = vpop.permute.xlu0 %6645
      %6647 = vrot.lane.b32.xlu0 %v4736, 109
      %v6648 = vpop.permute.xlu0 %6647
      %6649 = vrot.lane.b32.xlu0 %v4737, 109
      %v6650 = vpop.permute.xlu0 %6649
      %6651 = vrot.lane.b32.xlu0 %v4738, 109
      %v6652 = vpop.permute.xlu0 %6651
      %6653 = vrot.lane.b32.xlu0 %v4739, 109
      %v6654 = vpop.permute.xlu0 %6653
      %6655 = vrot.lane.b32.xlu0 %v4740, 109
      %v6656 = vpop.permute.xlu0 %6655
      %6657 = vrot.lane.b32.xlu0 %v4742, 109
      %v6658 = vpop.permute.xlu0 %6657
      %v6659 = vsel %vm2131, %v6636, %v6638
      %v6660 = vsel %vm2131, %v6638, %v6640
      %v6661 = vsel %vm2131, %v6640, %v6642
      %v6662 = vsel %vm2131, %v6642, %v6644
      %v6663 = vsel %vm2131, %v6644, %v6646
      %v6664 = vsel %vm2131, %v6646, %v6648
      %v6665 = vsel %vm2131, %v6648, %v6650
      %v6666 = vsel %vm2131, %v6650, %v6652
      %v6667 = vsel %vm2131, %v6652, %v6654
      %v6668 = vsel %vm2131, %v6654, %v6656
      %v6669 = vsel %vm2131, %v6656, %v6658
      %v6682 = vsel %vm272, %v6634, 0
      %6684 = vmatprep.subr.mxu0 %v6660
      %6685 = vmatpush1.msra.mxu0 %v6659
      %6686 = vmatprep.subr.mxu0 0.0
      %6687 = vmatpush1.msra.mxu0 0.0
      %6688 = vmatprep.subr.mxu0 0.0
      %6689 = vmatpush1.msra.mxu0 0.0
      %6690 = vmatprep.subr.mxu0 0.0
      %6691 = vmatpush1.msra.mxu0 0.0
      %6692 = vmatprep.subr.mxu0 0.0
      %6693 = vmatpush1.msra.mxu0 0.0
      %6694 = vmatprep.subr.mxu0 0.0
      %6695 = vmatpush1.msra.mxu0 0.0
      %6696 = vmatprep.subr.mxu0 0.0
      %6697 = vmatpush1.msra.mxu0 0.0
      %6698 = vmatprep.subr.mxu0 0.0
      %6699 = vmatpush1.msra.mxu0 0.0
      %6700 = vmatprep.subr.mxu0 0.0
      %6701 = vmatpush1.msra.mxu0 0.0
      %6702 = vmatprep.subr.mxu0 0.0
      %6703 = vmatpush1.msra.mxu0 0.0
      %6704 = vmatprep.subr.mxu0 0.0
      %6705 = vmatpush1.msra.mxu0 0.0
      %6706 = vmatprep.subr.mxu0 0.0
      %6707 = vmatpush1.msra.mxu0 0.0
      %6708 = vmatprep.subr.mxu0 0.0
      %6709 = vmatpush1.msra.mxu0 0.0
      %6710 = vmatprep.subr.mxu0 0.0
      %6711 = vmatpush1.msra.mxu0 0.0
      %6712 = vmatprep.subr.mxu0 0.0
      %6713 = vmatpush1.msra.mxu0 0.0
      %6714 = vmatprep.subr.mxu0 0.0
      %6715 = vmatpush1.msra.mxu0 0.0
      %6716 = vmatprep.subr.mxu0 0.0
      %6717 = vmatpush1.msra.mxu0 0.0
      %6718 = vmatprep.subr.mxu0 0.0
      %6719 = vmatpush1.msra.mxu0 0.0
      %6720 = vmatprep.subr.mxu0 0.0
      %6721 = vmatpush1.msra.mxu0 0.0
      %6722 = vmatprep.subr.mxu0 0.0
      %6723 = vmatpush1.msra.mxu0 0.0
      %6724 = vmatprep.subr.mxu0 0.0
      %6725 = vmatpush1.msra.mxu0 0.0
      %6726 = vmatprep.subr.mxu0 0.0
      %6727 = vmatpush1.msra.mxu0 0.0
      %6728 = vmatprep.subr.mxu0 0.0
      %6729 = vmatpush1.msra.mxu0 0.0
      %6730 = vmatprep.subr.mxu0 0.0
      %6731 = vmatpush1.msra.mxu0 0.0
      %6732 = vmatprep.subr.mxu0 0.0
      %6733 = vmatpush1.msra.mxu0 0.0
      %6734 = vmatprep.subr.mxu0 0.0
      %6735 = vmatpush1.msra.mxu0 0.0
      %6736 = vmatprep.subr.mxu0 0.0
      %6737 = vmatpush1.msra.mxu0 0.0
      %6738 = vmatprep.subr.mxu0 0.0
      %6739 = vmatpush1.msra.mxu0 0.0
      %6740 = vmatprep.subr.mxu0 0.0
      %6741 = vmatpush1.msra.mxu0 0.0
      %6742 = vmatprep.subr.mxu0 0.0
      %6743 = vmatpush1.msra.mxu0 0.0
      %6744 = vmatprep.subr.mxu0 0.0
      %6745 = vmatpush1.msra.mxu0 0.0
      %6746 = vmatprep.subr.mxu0 0.0
      %6747 = vmatpush1.msra.mxu0 0.0
      %6748 = vmatprep.mubr.f32.mxu0 0.0
      %6749 = vmatmul.mubr.f32.gmra.mrb[0].mxu0 %v6682
      %v6750 = vpop.f32.mrb[0].mxu0
      %v6751 = vadd.f32 0.0, %v6750
      %v6752 = vpop.f32.mrb[0].mxu0
      %v6753 = vadd.f32 0.0, %v6752
      %6754 = vdwg.mxu0
      %6755 = vmatprep.subr.mxu0 %v6662
      %6756 = vmatpush1.msra.mxu0 %v6661
      %6757 = vmatprep.subr.mxu0 0.0
      %6758 = vmatpush1.msra.mxu0 0.0
      %6759 = vmatprep.subr.mxu0 0.0
      %6760 = vmatpush1.msra.mxu0 0.0
      %6761 = vmatprep.subr.mxu0 0.0
      %6762 = vmatpush1.msra.mxu0 0.0
      %6763 = vmatprep.subr.mxu0 0.0
      %6764 = vmatpush1.msra.mxu0 0.0
      %6765 = vmatprep.subr.mxu0 0.0
      %6766 = vmatpush1.msra.mxu0 0.0
      %6767 = vmatprep.subr.mxu0 0.0
      %6768 = vmatpush1.msra.mxu0 0.0
      %6769 = vmatprep.subr.mxu0 0.0
      %6770 = vmatpush1.msra.mxu0 0.0
      %6771 = vmatprep.subr.mxu0 0.0
      %6772 = vmatpush1.msra.mxu0 0.0
      %6773 = vmatprep.subr.mxu0 0.0
      %6774 = vmatpush1.msra.mxu0 0.0
      %6775 = vmatprep.subr.mxu0 0.0
      %6776 = vmatpush1.msra.mxu0 0.0
      %6777 = vmatprep.subr.mxu0 0.0
      %6778 = vmatpush1.msra.mxu0 0.0
      %6779 = vmatprep.subr.mxu0 0.0
      %6780 = vmatpush1.msra.mxu0 0.0
      %6781 = vmatprep.subr.mxu0 0.0
      %6782 = vmatpush1.msra.mxu0 0.0
      %6783 = vmatprep.subr.mxu0 0.0
      %6784 = vmatpush1.msra.mxu0 0.0
      %6785 = vmatprep.subr.mxu0 0.0
      %6786 = vmatpush1.msra.mxu0 0.0
      %6787 = vmatprep.subr.mxu0 0.0
      %6788 = vmatpush1.msra.mxu0 0.0
      %6789 = vmatprep.subr.mxu0 0.0
      %6790 = vmatpush1.msra.mxu0 0.0
      %6791 = vmatprep.subr.mxu0 0.0
      %6792 = vmatpush1.msra.mxu0 0.0
      %6793 = vmatprep.subr.mxu0 0.0
      %6794 = vmatpush1.msra.mxu0 0.0
      %6795 = vmatprep.subr.mxu0 0.0
      %6796 = vmatpush1.msra.mxu0 0.0
      %6797 = vmatprep.subr.mxu0 0.0
      %6798 = vmatpush1.msra.mxu0 0.0
      %6799 = vmatprep.subr.mxu0 0.0
      %6800 = vmatpush1.msra.mxu0 0.0
      %6801 = vmatprep.subr.mxu0 0.0
      %6802 = vmatpush1.msra.mxu0 0.0
      %6803 = vmatprep.subr.mxu0 0.0
      %6804 = vmatpush1.msra.mxu0 0.0
      %6805 = vmatprep.subr.mxu0 0.0
      %6806 = vmatpush1.msra.mxu0 0.0
      %6807 = vmatprep.subr.mxu0 0.0
      %6808 = vmatpush1.msra.mxu0 0.0
      %6809 = vmatprep.subr.mxu0 0.0
      %6810 = vmatpush1.msra.mxu0 0.0
      %6811 = vmatprep.subr.mxu0 0.0
      %6812 = vmatpush1.msra.mxu0 0.0
      %6813 = vmatprep.subr.mxu0 0.0
      %6814 = vmatpush1.msra.mxu0 0.0
      %6815 = vmatprep.subr.mxu0 0.0
      %6816 = vmatpush1.msra.mxu0 0.0
      %6817 = vmatprep.subr.mxu0 0.0
      %6818 = vmatpush1.msra.mxu0 0.0
      %6819 = vmatprep.mubr.f32.mxu0 0.0
      %6820 = vmatmul.mubr.f32.gmra.mrb[0].mxu0 %v6682
      %v6821 = vpop.f32.mrb[0].mxu0
      %v6822 = vadd.f32 0.0, %v6821
      %v6823 = vpop.f32.mrb[0].mxu0
      %v6824 = vadd.f32 0.0, %v6823
      %6825 = vdwg.mxu0
      %6826 = vmatprep.subr.mxu0 %v6664
      %6827 = vmatpush1.msra.mxu0 %v6663
      %6828 = vmatprep.subr.mxu0 0.0
      %6829 = vmatpush1.msra.mxu0 0.0
      %6830 = vmatprep.subr.mxu0 0.0
      %6831 = vmatpush1.msra.mxu0 0.0
      %6832 = vmatprep.subr.mxu0 0.0
      %6833 = vmatpush1.msra.mxu0 0.0
      %6834 = vmatprep.subr.mxu0 0.0
      %6835 = vmatpush1.msra.mxu0 0.0
      %6836 = vmatprep.subr.mxu0 0.0
      %6837 = vmatpush1.msra.mxu0 0.0
      %6838 = vmatprep.subr.mxu0 0.0
      %6839 = vmatpush1.msra.mxu0 0.0
      %6840 = vmatprep.subr.mxu0 0.0
      %6841 = vmatpush1.msra.mxu0 0.0
      %6842 = vmatprep.subr.mxu0 0.0
      %6843 = vmatpush1.msra.mxu0 0.0
      %6844 = vmatprep.subr.mxu0 0.0
      %6845 = vmatpush1.msra.mxu0 0.0
      %6846 = vmatprep.subr.mxu0 0.0
      %6847 = vmatpush1.msra.mxu0 0.0
      %6848 = vmatprep.subr.mxu0 0.0
      %6849 = vmatpush1.msra.mxu0 0.0
      %6850 = vmatprep.subr.mxu0 0.0
      %6851 = vmatpush1.msra.mxu0 0.0
      %6852 = vmatprep.subr.mxu0 0.0
      %6853 = vmatpush1.msra.mxu0 0.0
      %6854 = vmatprep.subr.mxu0 0.0
      %6855 = vmatpush1.msra.mxu0 0.0
      %6856 = vmatprep.subr.mxu0 0.0
      %6857 = vmatpush1.msra.mxu0 0.0
      %6858 = vmatprep.subr.mxu0 0.0
      %6859 = vmatpush1.msra.mxu0 0.0
      %6860 = vmatprep.subr.mxu0 0.0
      %6861 = vmatpush1.msra.mxu0 0.0
      %6862 = vmatprep.subr.mxu0 0.0
      %6863 = vmatpush1.msra.mxu0 0.0
      %6864 = vmatprep.subr.mxu0 0.0
      %6865 = vmatpush1.msra.mxu0 0.0
      %6866 = vmatprep.subr.mxu0 0.0
      %6867 = vmatpush1.msra.mxu0 0.0
      %6868 = vmatprep.subr.mxu0 0.0
      %6869 = vmatpush1.msra.mxu0 0.0
      %6870 = vmatprep.subr.mxu0 0.0
      %6871 = vmatpush1.msra.mxu0 0.0
      %6872 = vmatprep.subr.mxu0 0.0
      %6873 = vmatpush1.msra.mxu0 0.0
      %6874 = vmatprep.subr.mxu0 0.0
      %6875 = vmatpush1.msra.mxu0 0.0
      %6876 = vmatprep.subr.mxu0 0.0
      %6877 = vmatpush1.msra.mxu0 0.0
      %6878 = vmatprep.subr.mxu0 0.0
      %6879 = vmatpush1.msra.mxu0 0.0
      %6880 = vmatprep.subr.mxu0 0.0
      %6881 = vmatpush1.msra.mxu0 0.0
      %6882 = vmatprep.subr.mxu0 0.0
      %6883 = vmatpush1.msra.mxu0 0.0
      %6884 = vmatprep.subr.mxu0 0.0
      %6885 = vmatpush1.msra.mxu0 0.0
      %6886 = vmatprep.subr.mxu0 0.0
      %6887 = vmatpush1.msra.mxu0 0.0
      %6888 = vmatprep.subr.mxu0 0.0
      %6889 = vmatpush1.msra.mxu0 0.0
      %6890 = vmatprep.mubr.f32.mxu0 0.0
      %6891 = vmatmul.mubr.f32.gmra.mrb[0].mxu0 %v6682
      %v6892 = vpop.f32.mrb[0].mxu0
      %v6893 = vadd.f32 0.0, %v6892
      %v6894 = vpop.f32.mrb[0].mxu0
      %v6895 = vadd.f32 0.0, %v6894
      %6896 = vdwg.mxu0
      %6897 = vmatprep.subr.mxu0 %v6666
      %6898 = vmatpush1.msra.mxu0 %v6665
      %6899 = vmatprep.subr.mxu0 0.0
      %6900 = vmatpush1.msra.mxu0 0.0
      %6901 = vmatprep.subr.mxu0 0.0
      %6902 = vmatpush1.msra.mxu0 0.0
      %6903 = vmatprep.subr.mxu0 0.0
      %6904 = vmatpush1.msra.mxu0 0.0
      %6905 = vmatprep.subr.mxu0 0.0
      %6906 = vmatpush1.msra.mxu0 0.0
      %6907 = vmatprep.subr.mxu0 0.0
      %6908 = vmatpush1.msra.mxu0 0.0
      %6909 = vmatprep.subr.mxu0 0.0
      %6910 = vmatpush1.msra.mxu0 0.0
      %6911 = vmatprep.subr.mxu0 0.0
      %6912 = vmatpush1.msra.mxu0 0.0
      %6913 = vmatprep.subr.mxu0 0.0
      %6914 = vmatpush1.msra.mxu0 0.0
      %6915 = vmatprep.subr.mxu0 0.0
      %6916 = vmatpush1.msra.mxu0 0.0
      %6917 = vmatprep.subr.mxu0 0.0
      %6918 = vmatpush1.msra.mxu0 0.0
      %6919 = vmatprep.subr.mxu0 0.0
      %6920 = vmatpush1.msra.mxu0 0.0
      %6921 = vmatprep.subr.mxu0 0.0
      %6922 = vmatpush1.msra.mxu0 0.0
      %6923 = vmatprep.subr.mxu0 0.0
      %6924 = vmatpush1.msra.mxu0 0.0
      %6925 = vmatprep.subr.mxu0 0.0
      %6926 = vmatpush1.msra.mxu0 0.0
      %6927 = vmatprep.subr.mxu0 0.0
      %6928 = vmatpush1.msra.mxu0 0.0
      %6929 = vmatprep.subr.mxu0 0.0
      %6930 = vmatpush1.msra.mxu0 0.0
      %6931 = vmatprep.subr.mxu0 0.0
      %6932 = vmatpush1.msra.mxu0 0.0
      %6933 = vmatprep.subr.mxu0 0.0
      %6934 = vmatpush1.msra.mxu0 0.0
      %6935 = vmatprep.subr.mxu0 0.0
      %6936 = vmatpush1.msra.mxu0 0.0
      %6937 = vmatprep.subr.mxu0 0.0
      %6938 = vmatpush1.msra.mxu0 0.0
      %6939 = vmatprep.subr.mxu0 0.0
      %6940 = vmatpush1.msra.mxu0 0.0
      %6941 = vmatprep.subr.mxu0 0.0
      %6942 = vmatpush1.msra.mxu0 0.0
      %6943 = vmatprep.subr.mxu0 0.0
      %6944 = vmatpush1.msra.mxu0 0.0
      %6945 = vmatprep.subr.mxu0 0.0
      %6946 = vmatpush1.msra.mxu0 0.0
      %6947 = vmatprep.subr.mxu0 0.0
      %6948 = vmatpush1.msra.mxu0 0.0
      %6949 = vmatprep.subr.mxu0 0.0
      %6950 = vmatpush1.msra.mxu0 0.0
      %6951 = vmatprep.subr.mxu0 0.0
      %6952 = vmatpush1.msra.mxu0 0.0
      %6953 = vmatprep.subr.mxu0 0.0
      %6954 = vmatpush1.msra.mxu0 0.0
      %6955 = vmatprep.subr.mxu0 0.0
      %6956 = vmatpush1.msra.mxu0 0.0
      %6957 = vmatprep.subr.mxu0 0.0
      %6958 = vmatpush1.msra.mxu0 0.0
      %6959 = vmatprep.subr.mxu0 0.0
      %6960 = vmatpush1.msra.mxu0 0.0
      %6961 = vmatprep.mubr.f32.mxu0 0.0
      %6962 = vmatmul.mubr.f32.gmra.mrb[0].mxu0 %v6682
      %v6963 = vpop.f32.mrb[0].mxu0
      %v6964 = vadd.f32 0.0, %v6963
      %v6965 = vpop.f32.mrb[0].mxu0
      %v6966 = vadd.f32 0.0, %v6965
      %6967 = vdwg.mxu0
      %6968 = vmatprep.subr.mxu0 %v6668
      %6969 = vmatpush1.msra.mxu0 %v6667
      %6970 = vmatprep.subr.mxu0 0.0
      %6971 = vmatpush1.msra.mxu0 0.0
      %6972 = vmatprep.subr.mxu0 0.0
      %6973 = vmatpush1.msra.mxu0 0.0
      %6974 = vmatprep.subr.mxu0 0.0
      %6975 = vmatpush1.msra.mxu0 0.0
      %6976 = vmatprep.subr.mxu0 0.0
      %6977 = vmatpush1.msra.mxu0 0.0
      %6978 = vmatprep.subr.mxu0 0.0
      %6979 = vmatpush1.msra.mxu0 0.0
      %6980 = vmatprep.subr.mxu0 0.0
      %6981 = vmatpush1.msra.mxu0 0.0
      %6982 = vmatprep.subr.mxu0 0.0
      %6983 = vmatpush1.msra.mxu0 0.0
      %6984 = vmatprep.subr.mxu0 0.0
      %6985 = vmatpush1.msra.mxu0 0.0
      %6986 = vmatprep.subr.mxu0 0.0
      %6987 = vmatpush1.msra.mxu0 0.0
      %6988 = vmatprep.subr.mxu0 0.0
      %6989 = vmatpush1.msra.mxu0 0.0
      %6990 = vmatprep.subr.mxu0 0.0
      %6991 = vmatpush1.msra.mxu0 0.0
      %6992 = vmatprep.subr.mxu0 0.0
      %6993 = vmatpush1.msra.mxu0 0.0
      %6994 = vmatprep.subr.mxu0 0.0
      %6995 = vmatpush1.msra.mxu0 0.0
      %6996 = vmatprep.subr.mxu0 0.0
      %6997 = vmatpush1.msra.mxu0 0.0
      %6998 = vmatprep.subr.mxu0 0.0
      %6999 = vmatpush1.msra.mxu0 0.0
      %7000 = vmatprep.subr.mxu0 0.0
      %7001 = vmatpush1.msra.mxu0 0.0
      %7002 = vmatprep.subr.mxu0 0.0
      %7003 = vmatpush1.msra.mxu0 0.0
      %7004 = vmatprep.subr.mxu0 0.0
      %7005 = vmatpush1.msra.mxu0 0.0
      %7006 = vmatprep.subr.mxu0 0.0
      %7007 = vmatpush1.msra.mxu0 0.0
      %7008 = vmatprep.subr.mxu0 0.0
      %7009 = vmatpush1.msra.mxu0 0.0
      %7010 = vmatprep.subr.mxu0 0.0
      %7011 = vmatpush1.msra.mxu0 0.0
      %7012 = vmatprep.subr.mxu0 0.0
      %7013 = vmatpush1.msra.mxu0 0.0
      %7014 = vmatprep.subr.mxu0 0.0
      %7015 = vmatpush1.msra.mxu0 0.0
      %7016 = vmatprep.subr.mxu0 0.0
      %7017 = vmatpush1.msra.mxu0 0.0
      %7018 = vmatprep.subr.mxu0 0.0
      %7019 = vmatpush1.msra.mxu0 0.0
      %7020 = vmatprep.subr.mxu0 0.0
      %7021 = vmatpush1.msra.mxu0 0.0
      %7022 = vmatprep.subr.mxu0 0.0
      %7023 = vmatpush1.msra.mxu0 0.0
      %7024 = vmatprep.subr.mxu0 0.0
      %7025 = vmatpush1.msra.mxu0 0.0
      %7026 = vmatprep.subr.mxu0 0.0
      %7027 = vmatpush1.msra.mxu0 0.0
      %7028 = vmatprep.subr.mxu0 0.0
      %7029 = vmatpush1.msra.mxu0 0.0
      %7030 = vmatprep.subr.mxu0 0.0
      %7031 = vmatpush1.msra.mxu0 0.0
      %7032 = vmatprep.mubr.f32.mxu0 0.0
      %7033 = vmatmul.mubr.f32.gmra.mrb[0].mxu0 %v6682
      %v7034 = vpop.f32.mrb[0].mxu0
      %v7035 = vadd.f32 0.0, %v7034
      %v7036 = vpop.f32.mrb[0].mxu0
      %v7037 = vadd.f32 0.0, %v7036
      %7038 = vdwg.mxu0
      %7039 = vmatprep.subr.mxu0 0.0
      %7040 = vmatpush1.msra.mxu0 %v6669
      %7041 = vmatprep.subr.mxu0 0.0
      %7042 = vmatpush1.msra.mxu0 0.0
      %7043 = vmatprep.subr.mxu0 0.0
      %7044 = vmatpush1.msra.mxu0 0.0
      %7045 = vmatprep.subr.mxu0 0.0
      %7046 = vmatpush1.msra.mxu0 0.0
      %7047 = vmatprep.subr.mxu0 0.0
      %7048 = vmatpush1.msra.mxu0 0.0
      %7049 = vmatprep.subr.mxu0 0.0
      %7050 = vmatpush1.msra.mxu0 0.0
      %7051 = vmatprep.subr.mxu0 0.0
      %7052 = vmatpush1.msra.mxu0 0.0
      %7053 = vmatprep.subr.mxu0 0.0
      %7054 = vmatpush1.msra.mxu0 0.0
      %7055 = vmatprep.subr.mxu0 0.0
      %7056 = vmatpush1.msra.mxu0 0.0
      %7057 = vmatprep.subr.mxu0 0.0
      %7058 = vmatpush1.msra.mxu0 0.0
      %7059 = vmatprep.subr.mxu0 0.0
      %7060 = vmatpush1.msra.mxu0 0.0
      %7061 = vmatprep.subr.mxu0 0.0
      %7062 = vmatpush1.msra.mxu0 0.0
      %7063 = vmatprep.subr.mxu0 0.0
      %7064 = vmatpush1.msra.mxu0 0.0
      %7065 = vmatprep.subr.mxu0 0.0
      %7066 = vmatpush1.msra.mxu0 0.0
      %7067 = vmatprep.subr.mxu0 0.0
      %7068 = vmatpush1.msra.mxu0 0.0
      %7069 = vmatprep.subr.mxu0 0.0
      %7070 = vmatpush1.msra.mxu0 0.0
      %7071 = vmatprep.subr.mxu0 0.0
      %7072 = vmatpush1.msra.mxu0 0.0
      %7073 = vmatprep.subr.mxu0 0.0
      %7074 = vmatpush1.msra.mxu0 0.0
      %7075 = vmatprep.subr.mxu0 0.0
      %7076 = vmatpush1.msra.mxu0 0.0
      %7077 = vmatprep.subr.mxu0 0.0
      %7078 = vmatpush1.msra.mxu0 0.0
      %7079 = vmatprep.subr.mxu0 0.0
      %7080 = vmatpush1.msra.mxu0 0.0
      %7081 = vmatprep.subr.mxu0 0.0
      %7082 = vmatpush1.msra.mxu0 0.0
      %7083 = vmatprep.subr.mxu0 0.0
      %7084 = vmatpush1.msra.mxu0 0.0
      %7085 = vmatprep.subr.mxu0 0.0
      %7086 = vmatpush1.msra.mxu0 0.0
      %7087 = vmatprep.subr.mxu0 0.0
      %7088 = vmatpush1.msra.mxu0 0.0
      %7089 = vmatprep.subr.mxu0 0.0
      %7090 = vmatpush1.msra.mxu0 0.0
      %7091 = vmatprep.subr.mxu0 0.0
      %7092 = vmatpush1.msra.mxu0 0.0
      %7093 = vmatprep.subr.mxu0 0.0
      %7094 = vmatpush1.msra.mxu0 0.0
      %7095 = vmatprep.subr.mxu0 0.0
      %7096 = vmatpush1.msra.mxu0 0.0
      %7097 = vmatprep.subr.mxu0 0.0
      %7098 = vmatpush1.msra.mxu0 0.0
      %7099 = vmatprep.subr.mxu0 0.0
      %7100 = vmatpush1.msra.mxu0 0.0
      %7101 = vmatprep.subr.mxu0 0.0
      %7102 = vmatpush1.msra.mxu0 0.0
      %7103 = vmatprep.mubr.f32.mxu0 0.0
      %7104 = vmatmul.mubr.f32.gmra.mrb[0].mxu0 %v6682
      %v7105 = vpop.f32.mrb[0].mxu0
      %v7106 = vadd.f32 0.0, %v7105
      %v7107 = vpop.f32.mrb[0].mxu0
      %7108 = vdwg.mxu0
      %v7109 = vadd.f32 %v6622, %v6751
      %v7110 = vadd.f32 %v6623, %v6753
      %v7111 = vadd.f32 %v6624, %v6822
      %v7112 = vadd.f32 %v6625, %v6824
      %v7113 = vadd.f32 %v6626, %v6893
      %v7114 = vadd.f32 %v6627, %v6895
      %v7115 = vadd.f32 %v6628, %v6964
      %v7116 = vadd.f32 %v6629, %v6966
      %v7117 = vadd.f32 %v6630, %v7035
      %v7118 = vadd.f32 %v6631, %v7037
      %v7119 = vadd.f32 %v6632, %v7106
      %s7120 = scalar_lea.vmem %s2, 40
      %v7121 = vld [vmem:[%s7120] sm:$0xff]
      %7122 = vrot.lane.b32.xlu0 %v4730, 108
      %v7123 = vpop.permute.xlu0 %7122
      %7124 = vrot.lane.b32.xlu0 %v4731, 108
      %v7125 = vpop.permute.xlu0 %7124
      %7126 = vrot.lane.b32.xlu0 %v4732, 108
      %v7127 = vpop.permute.xlu0 %7126
      %7128 = vrot.lane.b32.xlu0 %v4733, 108
      %v7129 = vpop.permute.xlu0 %7128
      %7130 = vrot.lane.b32.xlu0 %v4734, 108
      %v7131 = vpop.permute.xlu0 %7130
      %7132 = vrot.lane.b32.xlu0 %v4735, 108
      %v7133 = vpop.permute.xlu0 %7132
      %7134 = vrot.lane.b32.xlu0 %v4736, 108
      %v7135 = vpop.permute.xlu0 %7134
      %7136 = vrot.lane.b32.xlu0 %v4737, 108
      %v7137 = vpop.permute.xlu0 %7136
      %7138 = vrot.lane.b32.xlu0 %v4738, 108
      %v7139 = vpop.permute.xlu0 %7138
      %7140 = vrot.lane.b32.xlu0 %v4739, 108
      %v7141 = vpop.permute.xlu0 %7140
      %7142 = vrot.lane.b32.xlu0 %v4740, 108
      %v7143 = vpop.permute.xlu0 %7142
      %7144 = vrot.lane.b32.xlu0 %v4742, 108
      %v7145 = vpop.permute.xlu0 %7144
      %v7146 = vsel %vm2619, %v7123, %v7125
      %v7147 = vsel %vm2619, %v7125, %v7127
      %v7148 = vsel %vm2619, %v7127, %v7129
      %v7149 = vsel %vm2619, %v7129, %v7131
      %v7150 = vsel %vm2619, %v7131, %v7133
      %v7151 = vsel %vm2619, %v7133, %v7135
      %v7152 = vsel %vm2619, %v7135, %v7137
      %v7153 = vsel %vm2619, %v7137, %v7139
      %v7154 = vsel %vm2619, %v7139, %v7141
      %v7155 = vsel %vm2619, %v7141, %v7143
      %v7156 = vsel %vm2619, %v7143, %v7145
      %v7169 = vsel %vm272, %v7121, 0
      %7171 = vmatprep.subr.mxu0 %v7147
      %7172 = vmatpush1.msra.mxu0 %v7146
      %7173 = vmatprep.subr.mxu0 0.0
      %7174 = vmatpush1.msra.mxu0 0.0
      %7175 = vmatprep.subr.mxu0 0.0
      %7176 = vmatpush1.msra.mxu0 0.0
      %7177 = vmatprep.subr.mxu0 0.0
      %7178 = vmatpush1.msra.mxu0 0.0
      %7179 = vmatprep.subr.mxu0 0.0
      %7180 = vmatpush1.msra.mxu0 0.0
      %7181 = vmatprep.subr.mxu0 0.0
      %7182 = vmatpush1.msra.mxu0 0.0
      %7183 = vmatprep.subr.mxu0 0.0
      %7184 = vmatpush1.msra.mxu0 0.0
      %7185 = vmatprep.subr.mxu0 0.0
      %7186 = vmatpush1.msra.mxu0 0.0
      %7187 = vmatprep.subr.mxu0 0.0
      %7188 = vmatpush1.msra.mxu0 0.0
      %7189 = vmatprep.subr.mxu0 0.0
      %7190 = vmatpush1.msra.mxu0 0.0
      %7191 = vmatprep.subr.mxu0 0.0
      %7192 = vmatpush1.msra.mxu0 0.0
      %7193 = vmatprep.subr.mxu0 0.0
      %7194 = vmatpush1.msra.mxu0 0.0
      %7195 = vmatprep.subr.mxu0 0.0
      %7196 = vmatpush1.msra.mxu0 0.0
      %7197 = vmatprep.subr.mxu0 0.0
      %7198 = vmatpush1.msra.mxu0 0.0
      %7199 = vmatprep.subr.mxu0 0.0
      %7200 = vmatpush1.msra.mxu0 0.0
      %7201 = vmatprep.subr.mxu0 0.0
      %7202 = vmatpush1.msra.mxu0 0.0
      %7203 = vmatprep.subr.mxu0 0.0
      %7204 = vmatpush1.msra.mxu0 0.0
      %7205 = vmatprep.subr.mxu0 0.0
      %7206 = vmatpush1.msra.mxu0 0.0
      %7207 = vmatprep.subr.mxu0 0.0
      %7208 = vmatpush1.msra.mxu0 0.0
      %7209 = vmatprep.subr.mxu0 0.0
      %7210 = vmatpush1.msra.mxu0 0.0
      %7211 = vmatprep.subr.mxu0 0.0
      %7212 = vmatpush1.msra.mxu0 0.0
      %7213 = vmatprep.subr.mxu0 0.0
      %7214 = vmatpush1.msra.mxu0 0.0
      %7215 = vmatprep.subr.mxu0 0.0
      %7216 = vmatpush1.msra.mxu0 0.0
      %7217 = vmatprep.subr.mxu0 0.0
      %7218 = vmatpush1.msra.mxu0 0.0
      %7219 = vmatprep.subr.mxu0 0.0
      %7220 = vmatpush1.msra.mxu0 0.0
      %7221 = vmatprep.subr.mxu0 0.0
      %7222 = vmatpush1.msra.mxu0 0.0
      %7223 = vmatprep.subr.mxu0 0.0
      %7224 = vmatpush1.msra.mxu0 0.0
      %7225 = vmatprep.subr.mxu0 0.0
      %7226 = vmatpush1.msra.mxu0 0.0
      %7227 = vmatprep.subr.mxu0 0.0
      %7228 = vmatpush1.msra.mxu0 0.0
      %7229 = vmatprep.subr.mxu0 0.0
      %7230 = vmatpush1.msra.mxu0 0.0
      %7231 = vmatprep.subr.mxu0 0.0
      %7232 = vmatpush1.msra.mxu0 0.0
      %7233 = vmatprep.subr.mxu0 0.0
      %7234 = vmatpush1.msra.mxu0 0.0
      %7235 = vmatprep.mubr.f32.mxu0 0.0
      %7236 = vmatmul.mubr.f32.gmra.mrb[0].mxu0 %v7169
      %v7237 = vpop.f32.mrb[0].mxu0
      %v7238 = vadd.f32 0.0, %v7237
      %v7239 = vpop.f32.mrb[0].mxu0
      %v7240 = vadd.f32 0.0, %v7239
      %7241 = vdwg.mxu0
      %7242 = vmatprep.subr.mxu0 %v7149
      %7243 = vmatpush1.msra.mxu0 %v7148
      %7244 = vmatprep.subr.mxu0 0.0
      %7245 = vmatpush1.msra.mxu0 0.0
      %7246 = vmatprep.subr.mxu0 0.0
      %7247 = vmatpush1.msra.mxu0 0.0
      %7248 = vmatprep.subr.mxu0 0.0
      %7249 = vmatpush1.msra.mxu0 0.0
      %7250 = vmatprep.subr.mxu0 0.0
      %7251 = vmatpush1.msra.mxu0 0.0
      %7252 = vmatprep.subr.mxu0 0.0
      %7253 = vmatpush1.msra.mxu0 0.0
      %7254 = vmatprep.subr.mxu0 0.0
      %7255 = vmatpush1.msra.mxu0 0.0
      %7256 = vmatprep.subr.mxu0 0.0
      %7257 = vmatpush1.msra.mxu0 0.0
      %7258 = vmatprep.subr.mxu0 0.0
      %7259 = vmatpush1.msra.mxu0 0.0
      %7260 = vmatprep.subr.mxu0 0.0
      %7261 = vmatpush1.msra.mxu0 0.0
      %7262 = vmatprep.subr.mxu0 0.0
      %7263 = vmatpush1.msra.mxu0 0.0
      %7264 = vmatprep.subr.mxu0 0.0
      %7265 = vmatpush1.msra.mxu0 0.0
      %7266 = vmatprep.subr.mxu0 0.0
      %7267 = vmatpush1.msra.mxu0 0.0
      %7268 = vmatprep.subr.mxu0 0.0
      %7269 = vmatpush1.msra.mxu0 0.0
      %7270 = vmatprep.subr.mxu0 0.0
      %7271 = vmatpush1.msra.mxu0 0.0
      %7272 = vmatprep.subr.mxu0 0.0
      %7273 = vmatpush1.msra.mxu0 0.0
      %7274 = vmatprep.subr.mxu0 0.0
      %7275 = vmatpush1.msra.mxu0 0.0
      %7276 = vmatprep.subr.mxu0 0.0
      %7277 = vmatpush1.msra.mxu0 0.0
      %7278 = vmatprep.subr.mxu0 0.0
      %7279 = vmatpush1.msra.mxu0 0.0
      %7280 = vmatprep.subr.mxu0 0.0
      %7281 = vmatpush1.msra.mxu0 0.0
      %7282 = vmatprep.subr.mxu0 0.0
      %7283 = vmatpush1.msra.mxu0 0.0
      %7284 = vmatprep.subr.mxu0 0.0
      %7285 = vmatpush1.msra.mxu0 0.0
      %7286 = vmatprep.subr.mxu0 0.0
      %7287 = vmatpush1.msra.mxu0 0.0
      %7288 = vmatprep.subr.mxu0 0.0
      %7289 = vmatpush1.msra.mxu0 0.0
      %7290 = vmatprep.subr.mxu0 0.0
      %7291 = vmatpush1.msra.mxu0 0.0
      %7292 = vmatprep.subr.mxu0 0.0
      %7293 = vmatpush1.msra.mxu0 0.0
      %7294 = vmatprep.subr.mxu0 0.0
      %7295 = vmatpush1.msra.mxu0 0.0
      %7296 = vmatprep.subr.mxu0 0.0
      %7297 = vmatpush1.msra.mxu0 0.0
      %7298 = vmatprep.subr.mxu0 0.0
      %7299 = vmatpush1.msra.mxu0 0.0
      %7300 = vmatprep.subr.mxu0 0.0
      %7301 = vmatpush1.msra.mxu0 0.0
      %7302 = vmatprep.subr.mxu0 0.0
      %7303 = vmatpush1.msra.mxu0 0.0
      %7304 = vmatprep.subr.mxu0 0.0
      %7305 = vmatpush1.msra.mxu0 0.0
      %7306 = vmatprep.mubr.f32.mxu0 0.0
      %7307 = vmatmul.mubr.f32.gmra.mrb[0].mxu0 %v7169
      %v7308 = vpop.f32.mrb[0].mxu0
      %v7309 = vadd.f32 0.0, %v7308
      %v7310 = vpop.f32.mrb[0].mxu0
      %v7311 = vadd.f32 0.0, %v7310
      %7312 = vdwg.mxu0
      %7313 = vmatprep.subr.mxu0 %v7151
      %7314 = vmatpush1.msra.mxu0 %v7150
      %7315 = vmatprep.subr.mxu0 0.0
      %7316 = vmatpush1.msra.mxu0 0.0
      %7317 = vmatprep.subr.mxu0 0.0
      %7318 = vmatpush1.msra.mxu0 0.0
      %7319 = vmatprep.subr.mxu0 0.0
      %7320 = vmatpush1.msra.mxu0 0.0
      %7321 = vmatprep.subr.mxu0 0.0
      %7322 = vmatpush1.msra.mxu0 0.0
      %7323 = vmatprep.subr.mxu0 0.0
      %7324 = vmatpush1.msra.mxu0 0.0
      %7325 = vmatprep.subr.mxu0 0.0
      %7326 = vmatpush1.msra.mxu0 0.0
      %7327 = vmatprep.subr.mxu0 0.0
      %7328 = vmatpush1.msra.mxu0 0.0
      %7329 = vmatprep.subr.mxu0 0.0
      %7330 = vmatpush1.msra.mxu0 0.0
      %7331 = vmatprep.subr.mxu0 0.0
      %7332 = vmatpush1.msra.mxu0 0.0
      %7333 = vmatprep.subr.mxu0 0.0
      %7334 = vmatpush1.msra.mxu0 0.0
      %7335 = vmatprep.subr.mxu0 0.0
      %7336 = vmatpush1.msra.mxu0 0.0
      %7337 = vmatprep.subr.mxu0 0.0
      %7338 = vmatpush1.msra.mxu0 0.0
      %7339 = vmatprep.subr.mxu0 0.0
      %7340 = vmatpush1.msra.mxu0 0.0
      %7341 = vmatprep.subr.mxu0 0.0
      %7342 = vmatpush1.msra.mxu0 0.0
      %7343 = vmatprep.subr.mxu0 0.0
      %7344 = vmatpush1.msra.mxu0 0.0
      %7345 = vmatprep.subr.mxu0 0.0
      %7346 = vmatpush1.msra.mxu0 0.0
      %7347 = vmatprep.subr.mxu0 0.0
      %7348 = vmatpush1.msra.mxu0 0.0
      %7349 = vmatprep.subr.mxu0 0.0
      %7350 = vmatpush1.msra.mxu0 0.0
      %7351 = vmatprep.subr.mxu0 0.0
      %7352 = vmatpush1.msra.mxu0 0.0
      %7353 = vmatprep.subr.mxu0 0.0
      %7354 = vmatpush1.msra.mxu0 0.0
      %7355 = vmatprep.subr.mxu0 0.0
      %7356 = vmatpush1.msra.mxu0 0.0
      %7357 = vmatprep.subr.mxu0 0.0
      %7358 = vmatpush1.msra.mxu0 0.0
      %7359 = vmatprep.subr.mxu0 0.0
      %7360 = vmatpush1.msra.mxu0 0.0
      %7361 = vmatprep.subr.mxu0 0.0
      %7362 = vmatpush1.msra.mxu0 0.0
      %7363 = vmatprep.subr.mxu0 0.0
      %7364 = vmatpush1.msra.mxu0 0.0
      %7365 = vmatprep.subr.mxu0 0.0
      %7366 = vmatpush1.msra.mxu0 0.0
      %7367 = vmatprep.subr.mxu0 0.0
      %7368 = vmatpush1.msra.mxu0 0.0
      %7369 = vmatprep.subr.mxu0 0.0
      %7370 = vmatpush1.msra.mxu0 0.0
      %7371 = vmatprep.subr.mxu0 0.0
      %7372 = vmatpush1.msra.mxu0 0.0
      %7373 = vmatprep.subr.mxu0 0.0
      %7374 = vmatpush1.msra.mxu0 0.0
      %7375 = vmatprep.subr.mxu0 0.0
      %7376 = vmatpush1.msra.mxu0 0.0
      %7377 = vmatprep.mubr.f32.mxu0 0.0
      %7378 = vmatmul.mubr.f32.gmra.mrb[0].mxu0 %v7169
      %v7379 = vpop.f32.mrb[0].mxu0
      %v7380 = vadd.f32 0.0, %v7379
      %v7381 = vpop.f32.mrb[0].mxu0
      %v7382 = vadd.f32 0.0, %v7381
      %7383 = vdwg.mxu0
      %7384 = vmatprep.subr.mxu0 %v7153
      %7385 = vmatpush1.msra.mxu0 %v7152
      %7386 = vmatprep.subr.mxu0 0.0
      %7387 = vmatpush1.msra.mxu0 0.0
      %7388 = vmatprep.subr.mxu0 0.0
      %7389 = vmatpush1.msra.mxu0 0.0
      %7390 = vmatprep.subr.mxu0 0.0
      %7391 = vmatpush1.msra.mxu0 0.0
      %7392 = vmatprep.subr.mxu0 0.0
      %7393 = vmatpush1.msra.mxu0 0.0
      %7394 = vmatprep.subr.mxu0 0.0
      %7395 = vmatpush1.msra.mxu0 0.0
      %7396 = vmatprep.subr.mxu0 0.0
      %7397 = vmatpush1.msra.mxu0 0.0
      %7398 = vmatprep.subr.mxu0 0.0
      %7399 = vmatpush1.msra.mxu0 0.0
      %7400 = vmatprep.subr.mxu0 0.0
      %7401 = vmatpush1.msra.mxu0 0.0
      %7402 = vmatprep.subr.mxu0 0.0
      %7403 = vmatpush1.msra.mxu0 0.0
      %7404 = vmatprep.subr.mxu0 0.0
      %7405 = vmatpush1.msra.mxu0 0.0
      %7406 = vmatprep.subr.mxu0 0.0
      %7407 = vmatpush1.msra.mxu0 0.0
      %7408 = vmatprep.subr.mxu0 0.0
      %7409 = vmatpush1.msra.mxu0 0.0
      %7410 = vmatprep.subr.mxu0 0.0
      %7411 = vmatpush1.msra.mxu0 0.0
      %7412 = vmatprep.subr.mxu0 0.0
      %7413 = vmatpush1.msra.mxu0 0.0
      %7414 = vmatprep.subr.mxu0 0.0
      %7415 = vmatpush1.msra.mxu0 0.0
      %7416 = vmatprep.subr.mxu0 0.0
      %7417 = vmatpush1.msra.mxu0 0.0
      %7418 = vmatprep.subr.mxu0 0.0
      %7419 = vmatpush1.msra.mxu0 0.0
      %7420 = vmatprep.subr.mxu0 0.0
      %7421 = vmatpush1.msra.mxu0 0.0
      %7422 = vmatprep.subr.mxu0 0.0
      %7423 = vmatpush1.msra.mxu0 0.0
      %7424 = vmatprep.subr.mxu0 0.0
      %7425 = vmatpush1.msra.mxu0 0.0
      %7426 = vmatprep.subr.mxu0 0.0
      %7427 = vmatpush1.msra.mxu0 0.0
      %7428 = vmatprep.subr.mxu0 0.0
      %7429 = vmatpush1.msra.mxu0 0.0
      %7430 = vmatprep.subr.mxu0 0.0
      %7431 = vmatpush1.msra.mxu0 0.0
      %7432 = vmatprep.subr.mxu0 0.0
      %7433 = vmatpush1.msra.mxu0 0.0
      %7434 = vmatprep.subr.mxu0 0.0
      %7435 = vmatpush1.msra.mxu0 0.0
      %7436 = vmatprep.subr.mxu0 0.0
      %7437 = vmatpush1.msra.mxu0 0.0
      %7438 = vmatprep.subr.mxu0 0.0
      %7439 = vmatpush1.msra.mxu0 0.0
      %7440 = vmatprep.subr.mxu0 0.0
      %7441 = vmatpush1.msra.mxu0 0.0
      %7442 = vmatprep.subr.mxu0 0.0
      %7443 = vmatpush1.msra.mxu0 0.0
      %7444 = vmatprep.subr.mxu0 0.0
      %7445 = vmatpush1.msra.mxu0 0.0
      %7446 = vmatprep.subr.mxu0 0.0
      %7447 = vmatpush1.msra.mxu0 0.0
      %7448 = vmatprep.mubr.f32.mxu0 0.0
      %7449 = vmatmul.mubr.f32.gmra.mrb[0].mxu0 %v7169
      %v7450 = vpop.f32.mrb[0].mxu0
      %v7451 = vadd.f32 0.0, %v7450
      %v7452 = vpop.f32.mrb[0].mxu0
      %v7453 = vadd.f32 0.0, %v7452
      %7454 = vdwg.mxu0
      %7455 = vmatprep.subr.mxu0 %v7155
      %7456 = vmatpush1.msra.mxu0 %v7154
      %7457 = vmatprep.subr.mxu0 0.0
      %7458 = vmatpush1.msra.mxu0 0.0
      %7459 = vmatprep.subr.mxu0 0.0
      %7460 = vmatpush1.msra.mxu0 0.0
      %7461 = vmatprep.subr.mxu0 0.0
      %7462 = vmatpush1.msra.mxu0 0.0
      %7463 = vmatprep.subr.mxu0 0.0
      %7464 = vmatpush1.msra.mxu0 0.0
      %7465 = vmatprep.subr.mxu0 0.0
      %7466 = vmatpush1.msra.mxu0 0.0
      %7467 = vmatprep.subr.mxu0 0.0
      %7468 = vmatpush1.msra.mxu0 0.0
      %7469 = vmatprep.subr.mxu0 0.0
      %7470 = vmatpush1.msra.mxu0 0.0
      %7471 = vmatprep.subr.mxu0 0.0
      %7472 = vmatpush1.msra.mxu0 0.0
      %7473 = vmatprep.subr.mxu0 0.0
      %7474 = vmatpush1.msra.mxu0 0.0
      %7475 = vmatprep.subr.mxu0 0.0
      %7476 = vmatpush1.msra.mxu0 0.0
      %7477 = vmatprep.subr.mxu0 0.0
      %7478 = vmatpush1.msra.mxu0 0.0
      %7479 = vmatprep.subr.mxu0 0.0
      %7480 = vmatpush1.msra.mxu0 0.0
      %7481 = vmatprep.subr.mxu0 0.0
      %7482 = vmatpush1.msra.mxu0 0.0
      %7483 = vmatprep.subr.mxu0 0.0
      %7484 = vmatpush1.msra.mxu0 0.0
      %7485 = vmatprep.subr.mxu0 0.0
      %7486 = vmatpush1.msra.mxu0 0.0
      %7487 = vmatprep.subr.mxu0 0.0
      %7488 = vmatpush1.msra.mxu0 0.0
      %7489 = vmatprep.subr.mxu0 0.0
      %7490 = vmatpush1.msra.mxu0 0.0
      %7491 = vmatprep.subr.mxu0 0.0
      %7492 = vmatpush1.msra.mxu0 0.0
      %7493 = vmatprep.subr.mxu0 0.0
      %7494 = vmatpush1.msra.mxu0 0.0
      %7495 = vmatprep.subr.mxu0 0.0
      %7496 = vmatpush1.msra.mxu0 0.0
      %7497 = vmatprep.subr.mxu0 0.0
      %7498 = vmatpush1.msra.mxu0 0.0
      %7499 = vmatprep.subr.mxu0 0.0
      %7500 = vmatpush1.msra.mxu0 0.0
      %7501 = vmatprep.subr.mxu0 0.0
      %7502 = vmatpush1.msra.mxu0 0.0
      %7503 = vmatprep.subr.mxu0 0.0
      %7504 = vmatpush1.msra.mxu0 0.0
      %7505 = vmatprep.subr.mxu0 0.0
      %7506 = vmatpush1.msra.mxu0 0.0
      %7507 = vmatprep.subr.mxu0 0.0
      %7508 = vmatpush1.msra.mxu0 0.0
      %7509 = vmatprep.subr.mxu0 0.0
      %7510 = vmatpush1.msra.mxu0 0.0
      %7511 = vmatprep.subr.mxu0 0.0
      %7512 = vmatpush1.msra.mxu0 0.0
      %7513 = vmatprep.subr.mxu0 0.0
      %7514 = vmatpush1.msra.mxu0 0.0
      %7515 = vmatprep.subr.mxu0 0.0
      %7516 = vmatpush1.msra.mxu0 0.0
      %7517 = vmatprep.subr.mxu0 0.0
      %7518 = vmatpush1.msra.mxu0 0.0
      %7519 = vmatprep.mubr.f32.mxu0 0.0
      %7520 = vmatmul.mubr.f32.gmra.mrb[0].mxu0 %v7169
      %v7521 = vpop.f32.mrb[0].mxu0
      %v7522 = vadd.f32 0.0, %v7521
      %v7523 = vpop.f32.mrb[0].mxu0
      %v7524 = vadd.f32 0.0, %v7523
      %7525 = vdwg.mxu0
      %7526 = vmatprep.subr.mxu0 0.0
      %7527 = vmatpush1.msra.mxu0 %v7156
      %7528 = vmatprep.subr.mxu0 0.0
      %7529 = vmatpush1.msra.mxu0 0.0
      %7530 = vmatprep.subr.mxu0 0.0
      %7531 = vmatpush1.msra.mxu0 0.0
      %7532 = vmatprep.subr.mxu0 0.0
      %7533 = vmatpush1.msra.mxu0 0.0
      %7534 = vmatprep.subr.mxu0 0.0
      %7535 = vmatpush1.msra.mxu0 0.0
      %7536 = vmatprep.subr.mxu0 0.0
      %7537 = vmatpush1.msra.mxu0 0.0
      %7538 = vmatprep.subr.mxu0 0.0
      %7539 = vmatpush1.msra.mxu0 0.0
      %7540 = vmatprep.subr.mxu0 0.0
      %7541 = vmatpush1.msra.mxu0 0.0
      %7542 = vmatprep.subr.mxu0 0.0
      %7543 = vmatpush1.msra.mxu0 0.0
      %7544 = vmatprep.subr.mxu0 0.0
      %7545 = vmatpush1.msra.mxu0 0.0
      %7546 = vmatprep.subr.mxu0 0.0
      %7547 = vmatpush1.msra.mxu0 0.0
      %7548 = vmatprep.subr.mxu0 0.0
      %7549 = vmatpush1.msra.mxu0 0.0
      %7550 = vmatprep.subr.mxu0 0.0
      %7551 = vmatpush1.msra.mxu0 0.0
      %7552 = vmatprep.subr.mxu0 0.0
      %7553 = vmatpush1.msra.mxu0 0.0
      %7554 = vmatprep.subr.mxu0 0.0
      %7555 = vmatpush1.msra.mxu0 0.0
      %7556 = vmatprep.subr.mxu0 0.0
      %7557 = vmatpush1.msra.mxu0 0.0
      %7558 = vmatprep.subr.mxu0 0.0
      %7559 = vmatpush1.msra.mxu0 0.0
      %7560 = vmatprep.subr.mxu0 0.0
      %7561 = vmatpush1.msra.mxu0 0.0
      %7562 = vmatprep.subr.mxu0 0.0
      %7563 = vmatpush1.msra.mxu0 0.0
      %7564 = vmatprep.subr.mxu0 0.0
      %7565 = vmatpush1.msra.mxu0 0.0
      %7566 = vmatprep.subr.mxu0 0.0
      %7567 = vmatpush1.msra.mxu0 0.0
      %7568 = vmatprep.subr.mxu0 0.0
      %7569 = vmatpush1.msra.mxu0 0.0
      %7570 = vmatprep.subr.mxu0 0.0
      %7571 = vmatpush1.msra.mxu0 0.0
      %7572 = vmatprep.subr.mxu0 0.0
      %7573 = vmatpush1.msra.mxu0 0.0
      %7574 = vmatprep.subr.mxu0 0.0
      %7575 = vmatpush1.msra.mxu0 0.0
      %7576 = vmatprep.subr.mxu0 0.0
      %7577 = vmatpush1.msra.mxu0 0.0
      %7578 = vmatprep.subr.mxu0 0.0
      %7579 = vmatpush1.msra.mxu0 0.0
      %7580 = vmatprep.subr.mxu0 0.0
      %7581 = vmatpush1.msra.mxu0 0.0
      %7582 = vmatprep.subr.mxu0 0.0
      %7583 = vmatpush1.msra.mxu0 0.0
      %7584 = vmatprep.subr.mxu0 0.0
      %7585 = vmatpush1.msra.mxu0 0.0
      %7586 = vmatprep.subr.mxu0 0.0
      %7587 = vmatpush1.msra.mxu0 0.0
      %7588 = vmatprep.subr.mxu0 0.0
      %7589 = vmatpush1.msra.mxu0 0.0
      %7590 = vmatprep.mubr.f32.mxu0 0.0
      %7591 = vmatmul.mubr.f32.gmra.mrb[0].mxu0 %v7169
      %v7592 = vpop.f32.mrb[0].mxu0
      %v7593 = vadd.f32 0.0, %v7592
      %v7594 = vpop.f32.mrb[0].mxu0
      %7595 = vdwg.mxu0
      %v7596 = vadd.f32 %v7109, %v7238
      %v7597 = vadd.f32 %v7110, %v7240
      %v7598 = vadd.f32 %v7111, %v7309
      %v7599 = vadd.f32 %v7112, %v7311
      %v7600 = vadd.f32 %v7113, %v7380
      %v7601 = vadd.f32 %v7114, %v7382
      %v7602 = vadd.f32 %v7115, %v7451
      %v7603 = vadd.f32 %v7116, %v7453
      %v7604 = vadd.f32 %v7117, %v7522
      %v7605 = vadd.f32 %v7118, %v7524
      %v7606 = vadd.f32 %v7119, %v7593
      %s7607 = scalar_lea.vmem %s2, 48
      %v7608 = vld [vmem:[%s7607] sm:$0xff]
      %7609 = vrot.lane.b32.xlu0 %v4730, 92
      %v7610 = vpop.permute.xlu0 %7609
      %7611 = vrot.lane.b32.xlu0 %v4731, 92
      %v7612 = vpop.permute.xlu0 %7611
      %7613 = vrot.lane.b32.xlu0 %v4732, 92
      %v7614 = vpop.permute.xlu0 %7613
      %7615 = vrot.lane.b32.xlu0 %v4733, 92
      %v7616 = vpop.permute.xlu0 %7615
      %7617 = vrot.lane.b32.xlu0 %v4734, 92
      %v7618 = vpop.permute.xlu0 %7617
      %7619 = vrot.lane.b32.xlu0 %v4735, 92
      %v7620 = vpop.permute.xlu0 %7619
      %7621 = vrot.lane.b32.xlu0 %v4736, 92
      %v7622 = vpop.permute.xlu0 %7621
      %7623 = vrot.lane.b32.xlu0 %v4737, 92
      %v7624 = vpop.permute.xlu0 %7623
      %7625 = vrot.lane.b32.xlu0 %v4738, 92
      %v7626 = vpop.permute.xlu0 %7625
      %7627 = vrot.lane.b32.xlu0 %v4739, 92
      %v7628 = vpop.permute.xlu0 %7627
      %7629 = vrot.lane.b32.xlu0 %v4740, 92
      %v7630 = vpop.permute.xlu0 %7629
      %7631 = vrot.lane.b32.xlu0 %v4742, 92
      %v7632 = vpop.permute.xlu0 %7631
      %v7633 = vsel %vm3107, %v7610, %v7612
      %v7634 = vsel %vm3107, %v7612, %v7614
      %v7635 = vsel %vm3107, %v7614, %v7616
      %v7636 = vsel %vm3107, %v7616, %v7618
      %v7637 = vsel %vm3107, %v7618, %v7620
      %v7638 = vsel %vm3107, %v7620, %v7622
      %v7639 = vsel %vm3107, %v7622, %v7624
      %v7640 = vsel %vm3107, %v7624, %v7626
      %v7641 = vsel %vm3107, %v7626, %v7628
      %v7642 = vsel %vm3107, %v7628, %v7630
      %v7643 = vsel %vm3107, %v7630, %v7632
      %v7656 = vsel %vm272, %v7608, 0
      %7658 = vmatprep.subr.mxu0 %v7634
      %7659 = vmatpush1.msra.mxu0 %v7633
      %7660 = vmatprep.subr.mxu0 0.0
      %7661 = vmatpush1.msra.mxu0 0.0
      %7662 = vmatprep.subr.mxu0 0.0
      %7663 = vmatpush1.msra.mxu0 0.0
      %7664 = vmatprep.subr.mxu0 0.0
      %7665 = vmatpush1.msra.mxu0 0.0
      %7666 = vmatprep.subr.mxu0 0.0
      %7667 = vmatpush1.msra.mxu0 0.0
      %7668 = vmatprep.subr.mxu0 0.0
      %7669 = vmatpush1.msra.mxu0 0.0
      %7670 = vmatprep.subr.mxu0 0.0
      %7671 = vmatpush1.msra.mxu0 0.0
      %7672 = vmatprep.subr.mxu0 0.0
      %7673 = vmatpush1.msra.mxu0 0.0
      %7674 = vmatprep.subr.mxu0 0.0
      %7675 = vmatpush1.msra.mxu0 0.0
      %7676 = vmatprep.subr.mxu0 0.0
      %7677 = vmatpush1.msra.mxu0 0.0
      %7678 = vmatprep.subr.mxu0 0.0
      %7679 = vmatpush1.msra.mxu0 0.0
      %7680 = vmatprep.subr.mxu0 0.0
      %7681 = vmatpush1.msra.mxu0 0.0
      %7682 = vmatprep.subr.mxu0 0.0
      %7683 = vmatpush1.msra.mxu0 0.0
      %7684 = vmatprep.subr.mxu0 0.0
      %7685 = vmatpush1.msra.mxu0 0.0
      %7686 = vmatprep.subr.mxu0 0.0
      %7687 = vmatpush1.msra.mxu0 0.0
      %7688 = vmatprep.subr.mxu0 0.0
      %7689 = vmatpush1.msra.mxu0 0.0
      %7690 = vmatprep.subr.mxu0 0.0
      %7691 = vmatpush1.msra.mxu0 0.0
      %7692 = vmatprep.subr.mxu0 0.0
      %7693 = vmatpush1.msra.mxu0 0.0
      %7694 = vmatprep.subr.mxu0 0.0
      %7695 = vmatpush1.msra.mxu0 0.0
      %7696 = vmatprep.subr.mxu0 0.0
      %7697 = vmatpush1.msra.mxu0 0.0
      %7698 = vmatprep.subr.mxu0 0.0
      %7699 = vmatpush1.msra.mxu0 0.0
      %7700 = vmatprep.subr.mxu0 0.0
      %7701 = vmatpush1.msra.mxu0 0.0
      %7702 = vmatprep.subr.mxu0 0.0
      %7703 = vmatpush1.msra.mxu0 0.0
      %7704 = vmatprep.subr.mxu0 0.0
      %7705 = vmatpush1.msra.mxu0 0.0
      %7706 = vmatprep.subr.mxu0 0.0
      %7707 = vmatpush1.msra.mxu0 0.0
      %7708 = vmatprep.subr.mxu0 0.0
      %7709 = vmatpush1.msra.mxu0 0.0
      %7710 = vmatprep.subr.mxu0 0.0
      %7711 = vmatpush1.msra.mxu0 0.0
      %7712 = vmatprep.subr.mxu0 0.0
      %7713 = vmatpush1.msra.mxu0 0.0
      %7714 = vmatprep.subr.mxu0 0.0
      %7715 = vmatpush1.msra.mxu0 0.0
      %7716 = vmatprep.subr.mxu0 0.0
      %7717 = vmatpush1.msra.mxu0 0.0
      %7718 = vmatprep.subr.mxu0 0.0
      %7719 = vmatpush1.msra.mxu0 0.0
      %7720 = vmatprep.subr.mxu0 0.0
      %7721 = vmatpush1.msra.mxu0 0.0
      %7722 = vmatprep.mubr.f32.mxu0 0.0
      %7723 = vmatmul.mubr.f32.gmra.mrb[0].mxu0 %v7656
      %v7724 = vpop.f32.mrb[0].mxu0
      %v7725 = vadd.f32 0.0, %v7724
      %v7726 = vpop.f32.mrb[0].mxu0
      %v7727 = vadd.f32 0.0, %v7726
      %7728 = vdwg.mxu0
      %7729 = vmatprep.subr.mxu0 %v7636
      %7730 = vmatpush1.msra.mxu0 %v7635
      %7731 = vmatprep.subr.mxu0 0.0
      %7732 = vmatpush1.msra.mxu0 0.0
      %7733 = vmatprep.subr.mxu0 0.0
      %7734 = vmatpush1.msra.mxu0 0.0
      %7735 = vmatprep.subr.mxu0 0.0
      %7736 = vmatpush1.msra.mxu0 0.0
      %7737 = vmatprep.subr.mxu0 0.0
      %7738 = vmatpush1.msra.mxu0 0.0
      %7739 = vmatprep.subr.mxu0 0.0
      %7740 = vmatpush1.msra.mxu0 0.0
      %7741 = vmatprep.subr.mxu0 0.0
      %7742 = vmatpush1.msra.mxu0 0.0
      %7743 = vmatprep.subr.mxu0 0.0
      %7744 = vmatpush1.msra.mxu0 0.0
      %7745 = vmatprep.subr.mxu0 0.0
      %7746 = vmatpush1.msra.mxu0 0.0
      %7747 = vmatprep.subr.mxu0 0.0
      %7748 = vmatpush1.msra.mxu0 0.0
      %7749 = vmatprep.subr.mxu0 0.0
      %7750 = vmatpush1.msra.mxu0 0.0
      %7751 = vmatprep.subr.mxu0 0.0
      %7752 = vmatpush1.msra.mxu0 0.0
      %7753 = vmatprep.subr.mxu0 0.0
      %7754 = vmatpush1.msra.mxu0 0.0
      %7755 = vmatprep.subr.mxu0 0.0
      %7756 = vmatpush1.msra.mxu0 0.0
      %7757 = vmatprep.subr.mxu0 0.0
      %7758 = vmatpush1.msra.mxu0 0.0
      %7759 = vmatprep.subr.mxu0 0.0
      %7760 = vmatpush1.msra.mxu0 0.0
      %7761 = vmatprep.subr.mxu0 0.0
      %7762 = vmatpush1.msra.mxu0 0.0
      %7763 = vmatprep.subr.mxu0 0.0
      %7764 = vmatpush1.msra.mxu0 0.0
      %7765 = vmatprep.subr.mxu0 0.0
      %7766 = vmatpush1.msra.mxu0 0.0
      %7767 = vmatprep.subr.mxu0 0.0
      %7768 = vmatpush1.msra.mxu0 0.0
      %7769 = vmatprep.subr.mxu0 0.0
      %7770 = vmatpush1.msra.mxu0 0.0
      %7771 = vmatprep.subr.mxu0 0.0
      %7772 = vmatpush1.msra.mxu0 0.0
      %7773 = vmatprep.subr.mxu0 0.0
      %7774 = vmatpush1.msra.mxu0 0.0
      %7775 = vmatprep.subr.mxu0 0.0
      %7776 = vmatpush1.msra.mxu0 0.0
      %7777 = vmatprep.subr.mxu0 0.0
      %7778 = vmatpush1.msra.mxu0 0.0
      %7779 = vmatprep.subr.mxu0 0.0
      %7780 = vmatpush1.msra.mxu0 0.0
      %7781 = vmatprep.subr.mxu0 0.0
      %7782 = vmatpush1.msra.mxu0 0.0
      %7783 = vmatprep.subr.mxu0 0.0
      %7784 = vmatpush1.msra.mxu0 0.0
      %7785 = vmatprep.subr.mxu0 0.0
      %7786 = vmatpush1.msra.mxu0 0.0
      %7787 = vmatprep.subr.mxu0 0.0
      %7788 = vmatpush1.msra.mxu0 0.0
      %7789 = vmatprep.subr.mxu0 0.0
      %7790 = vmatpush1.msra.mxu0 0.0
      %7791 = vmatprep.subr.mxu0 0.0
      %7792 = vmatpush1.msra.mxu0 0.0
      %7793 = vmatprep.mubr.f32.mxu0 0.0
      %7794 = vmatmul.mubr.f32.gmra.mrb[0].mxu0 %v7656
      %v7795 = vpop.f32.mrb[0].mxu0
      %v7796 = vadd.f32 0.0, %v7795
      %v7797 = vpop.f32.mrb[0].mxu0
      %v7798 = vadd.f32 0.0, %v7797
      %7799 = vdwg.mxu0
      %7800 = vmatprep.subr.mxu0 %v7638
      %7801 = vmatpush1.msra.mxu0 %v7637
      %7802 = vmatprep.subr.mxu0 0.0
      %7803 = vmatpush1.msra.mxu0 0.0
      %7804 = vmatprep.subr.mxu0 0.0
      %7805 = vmatpush1.msra.mxu0 0.0
      %7806 = vmatprep.subr.mxu0 0.0
      %7807 = vmatpush1.msra.mxu0 0.0
      %7808 = vmatprep.subr.mxu0 0.0
      %7809 = vmatpush1.msra.mxu0 0.0
      %7810 = vmatprep.subr.mxu0 0.0
      %7811 = vmatpush1.msra.mxu0 0.0
      %7812 = vmatprep.subr.mxu0 0.0
      %7813 = vmatpush1.msra.mxu0 0.0
      %7814 = vmatprep.subr.mxu0 0.0
      %7815 = vmatpush1.msra.mxu0 0.0
      %7816 = vmatprep.subr.mxu0 0.0
      %7817 = vmatpush1.msra.mxu0 0.0
      %7818 = vmatprep.subr.mxu0 0.0
      %7819 = vmatpush1.msra.mxu0 0.0
      %7820 = vmatprep.subr.mxu0 0.0
      %7821 = vmatpush1.msra.mxu0 0.0
      %7822 = vmatprep.subr.mxu0 0.0
      %7823 = vmatpush1.msra.mxu0 0.0
      %7824 = vmatprep.subr.mxu0 0.0
      %7825 = vmatpush1.msra.mxu0 0.0
      %7826 = vmatprep.subr.mxu0 0.0
      %7827 = vmatpush1.msra.mxu0 0.0
      %7828 = vmatprep.subr.mxu0 0.0
      %7829 = vmatpush1.msra.mxu0 0.0
      %7830 = vmatprep.subr.mxu0 0.0
      %7831 = vmatpush1.msra.mxu0 0.0
      %7832 = vmatprep.subr.mxu0 0.0
      %7833 = vmatpush1.msra.mxu0 0.0
      %7834 = vmatprep.subr.mxu0 0.0
      %7835 = vmatpush1.msra.mxu0 0.0
      %7836 = vmatprep.subr.mxu0 0.0
      %7837 = vmatpush1.msra.mxu0 0.0
      %7838 = vmatprep.subr.mxu0 0.0
      %7839 = vmatpush1.msra.mxu0 0.0
      %7840 = vmatprep.subr.mxu0 0.0
      %7841 = vmatpush1.msra.mxu0 0.0
      %7842 = vmatprep.subr.mxu0 0.0
      %7843 = vmatpush1.msra.mxu0 0.0
      %7844 = vmatprep.subr.mxu0 0.0
      %7845 = vmatpush1.msra.mxu0 0.0
      %7846 = vmatprep.subr.mxu0 0.0
      %7847 = vmatpush1.msra.mxu0 0.0
      %7848 = vmatprep.subr.mxu0 0.0
      %7849 = vmatpush1.msra.mxu0 0.0
      %7850 = vmatprep.subr.mxu0 0.0
      %7851 = vmatpush1.msra.mxu0 0.0
      %7852 = vmatprep.subr.mxu0 0.0
      %7853 = vmatpush1.msra.mxu0 0.0
      %7854 = vmatprep.subr.mxu0 0.0
      %7855 = vmatpush1.msra.mxu0 0.0
      %7856 = vmatprep.subr.mxu0 0.0
      %7857 = vmatpush1.msra.mxu0 0.0
      %7858 = vmatprep.subr.mxu0 0.0
      %7859 = vmatpush1.msra.mxu0 0.0
      %7860 = vmatprep.subr.mxu0 0.0
      %7861 = vmatpush1.msra.mxu0 0.0
      %7862 = vmatprep.subr.mxu0 0.0
      %7863 = vmatpush1.msra.mxu0 0.0
      %7864 = vmatprep.mubr.f32.mxu0 0.0
      %7865 = vmatmul.mubr.f32.gmra.mrb[0].mxu0 %v7656
      %v7866 = vpop.f32.mrb[0].mxu0
      %v7867 = vadd.f32 0.0, %v7866
      %v7868 = vpop.f32.mrb[0].mxu0
      %v7869 = vadd.f32 0.0, %v7868
      %7870 = vdwg.mxu0
      %7871 = vmatprep.subr.mxu0 %v7640
      %7872 = vmatpush1.msra.mxu0 %v7639
      %7873 = vmatprep.subr.mxu0 0.0
      %7874 = vmatpush1.msra.mxu0 0.0
      %7875 = vmatprep.subr.mxu0 0.0
      %7876 = vmatpush1.msra.mxu0 0.0
      %7877 = vmatprep.subr.mxu0 0.0
      %7878 = vmatpush1.msra.mxu0 0.0
      %7879 = vmatprep.subr.mxu0 0.0
      %7880 = vmatpush1.msra.mxu0 0.0
      %7881 = vmatprep.subr.mxu0 0.0
      %7882 = vmatpush1.msra.mxu0 0.0
      %7883 = vmatprep.subr.mxu0 0.0
      %7884 = vmatpush1.msra.mxu0 0.0
      %7885 = vmatprep.subr.mxu0 0.0
      %7886 = vmatpush1.msra.mxu0 0.0
      %7887 = vmatprep.subr.mxu0 0.0
      %7888 = vmatpush1.msra.mxu0 0.0
      %7889 = vmatprep.subr.mxu0 0.0
      %7890 = vmatpush1.msra.mxu0 0.0
      %7891 = vmatprep.subr.mxu0 0.0
      %7892 = vmatpush1.msra.mxu0 0.0
      %7893 = vmatprep.subr.mxu0 0.0
      %7894 = vmatpush1.msra.mxu0 0.0
      %7895 = vmatprep.subr.mxu0 0.0
      %7896 = vmatpush1.msra.mxu0 0.0
      %7897 = vmatprep.subr.mxu0 0.0
      %7898 = vmatpush1.msra.mxu0 0.0
      %7899 = vmatprep.subr.mxu0 0.0
      %7900 = vmatpush1.msra.mxu0 0.0
      %7901 = vmatprep.subr.mxu0 0.0
      %7902 = vmatpush1.msra.mxu0 0.0
      %7903 = vmatprep.subr.mxu0 0.0
      %7904 = vmatpush1.msra.mxu0 0.0
      %7905 = vmatprep.subr.mxu0 0.0
      %7906 = vmatpush1.msra.mxu0 0.0
      %7907 = vmatprep.subr.mxu0 0.0
      %7908 = vmatpush1.msra.mxu0 0.0
      %7909 = vmatprep.subr.mxu0 0.0
      %7910 = vmatpush1.msra.mxu0 0.0
      %7911 = vmatprep.subr.mxu0 0.0
      %7912 = vmatpush1.msra.mxu0 0.0
      %7913 = vmatprep.subr.mxu0 0.0
      %7914 = vmatpush1.msra.mxu0 0.0
      %7915 = vmatprep.subr.mxu0 0.0
      %7916 = vmatpush1.msra.mxu0 0.0
      %7917 = vmatprep.subr.mxu0 0.0
      %7918 = vmatpush1.msra.mxu0 0.0
      %7919 = vmatprep.subr.mxu0 0.0
      %7920 = vmatpush1.msra.mxu0 0.0
      %7921 = vmatprep.subr.mxu0 0.0
      %7922 = vmatpush1.msra.mxu0 0.0
      %7923 = vmatprep.subr.mxu0 0.0
      %7924 = vmatpush1.msra.mxu0 0.0
      %7925 = vmatprep.subr.mxu0 0.0
      %7926 = vmatpush1.msra.mxu0 0.0
      %7927 = vmatprep.subr.mxu0 0.0
      %7928 = vmatpush1.msra.mxu0 0.0
      %7929 = vmatprep.subr.mxu0 0.0
      %7930 = vmatpush1.msra.mxu0 0.0
      %7931 = vmatprep.subr.mxu0 0.0
      %7932 = vmatpush1.msra.mxu0 0.0
      %7933 = vmatprep.subr.mxu0 0.0
      %7934 = vmatpush1.msra.mxu0 0.0
      %7935 = vmatprep.mubr.f32.mxu0 0.0
      %7936 = vmatmul.mubr.f32.gmra.mrb[0].mxu0 %v7656
      %v7937 = vpop.f32.mrb[0].mxu0
      %v7938 = vadd.f32 0.0, %v7937
      %v7939 = vpop.f32.mrb[0].mxu0
      %v7940 = vadd.f32 0.0, %v7939
      %7941 = vdwg.mxu0
      %7942 = vmatprep.subr.mxu0 %v7642
      %7943 = vmatpush1.msra.mxu0 %v7641
      %7944 = vmatprep.subr.mxu0 0.0
      %7945 = vmatpush1.msra.mxu0 0.0
      %7946 = vmatprep.subr.mxu0 0.0
      %7947 = vmatpush1.msra.mxu0 0.0
      %7948 = vmatprep.subr.mxu0 0.0
      %7949 = vmatpush1.msra.mxu0 0.0
      %7950 = vmatprep.subr.mxu0 0.0
      %7951 = vmatpush1.msra.mxu0 0.0
      %7952 = vmatprep.subr.mxu0 0.0
      %7953 = vmatpush1.msra.mxu0 0.0
      %7954 = vmatprep.subr.mxu0 0.0
      %7955 = vmatpush1.msra.mxu0 0.0
      %7956 = vmatprep.subr.mxu0 0.0
      %7957 = vmatpush1.msra.mxu0 0.0
      %7958 = vmatprep.subr.mxu0 0.0
      %7959 = vmatpush1.msra.mxu0 0.0
      %7960 = vmatprep.subr.mxu0 0.0
      %7961 = vmatpush1.msra.mxu0 0.0
      %7962 = vmatprep.subr.mxu0 0.0
      %7963 = vmatpush1.msra.mxu0 0.0
      %7964 = vmatprep.subr.mxu0 0.0
      %7965 = vmatpush1.msra.mxu0 0.0
      %7966 = vmatprep.subr.mxu0 0.0
      %7967 = vmatpush1.msra.mxu0 0.0
      %7968 = vmatprep.subr.mxu0 0.0
      %7969 = vmatpush1.msra.mxu0 0.0
      %7970 = vmatprep.subr.mxu0 0.0
      %7971 = vmatpush1.msra.mxu0 0.0
      %7972 = vmatprep.subr.mxu0 0.0
      %7973 = vmatpush1.msra.mxu0 0.0
      %7974 = vmatprep.subr.mxu0 0.0
      %7975 = vmatpush1.msra.mxu0 0.0
      %7976 = vmatprep.subr.mxu0 0.0
      %7977 = vmatpush1.msra.mxu0 0.0
      %7978 = vmatprep.subr.mxu0 0.0
      %7979 = vmatpush1.msra.mxu0 0.0
      %7980 = vmatprep.subr.mxu0 0.0
      %7981 = vmatpush1.msra.mxu0 0.0
      %7982 = vmatprep.subr.mxu0 0.0
      %7983 = vmatpush1.msra.mxu0 0.0
      %7984 = vmatprep.subr.mxu0 0.0
      %7985 = vmatpush1.msra.mxu0 0.0
      %7986 = vmatprep.subr.mxu0 0.0
      %7987 = vmatpush1.msra.mxu0 0.0
      %7988 = vmatprep.subr.mxu0 0.0
      %7989 = vmatpush1.msra.mxu0 0.0
      %7990 = vmatprep.subr.mxu0 0.0
      %7991 = vmatpush1.msra.mxu0 0.0
      %7992 = vmatprep.subr.mxu0 0.0
      %7993 = vmatpush1.msra.mxu0 0.0
      %7994 = vmatprep.subr.mxu0 0.0
      %7995 = vmatpush1.msra.mxu0 0.0
      %7996 = vmatprep.subr.mxu0 0.0
      %7997 = vmatpush1.msra.mxu0 0.0
      %7998 = vmatprep.subr.mxu0 0.0
      %7999 = vmatpush1.msra.mxu0 0.0
      %8000 = vmatprep.subr.mxu0 0.0
      %8001 = vmatpush1.msra.mxu0 0.0
      %8002 = vmatprep.subr.mxu0 0.0
      %8003 = vmatpush1.msra.mxu0 0.0
      %8004 = vmatprep.subr.mxu0 0.0
      %8005 = vmatpush1.msra.mxu0 0.0
      %8006 = vmatprep.mubr.f32.mxu0 0.0
      %8007 = vmatmul.mubr.f32.gmra.mrb[0].mxu0 %v7656
      %v8008 = vpop.f32.mrb[0].mxu0
      %v8009 = vadd.f32 0.0, %v8008
      %v8010 = vpop.f32.mrb[0].mxu0
      %v8011 = vadd.f32 0.0, %v8010
      %8012 = vdwg.mxu0
      %8013 = vmatprep.subr.mxu0 0.0
      %8014 = vmatpush1.msra.mxu0 %v7643
      %8015 = vmatprep.subr.mxu0 0.0
      %8016 = vmatpush1.msra.mxu0 0.0
      %8017 = vmatprep.subr.mxu0 0.0
      %8018 = vmatpush1.msra.mxu0 0.0
      %8019 = vmatprep.subr.mxu0 0.0
      %8020 = vmatpush1.msra.mxu0 0.0
      %8021 = vmatprep.subr.mxu0 0.0
      %8022 = vmatpush1.msra.mxu0 0.0
      %8023 = vmatprep.subr.mxu0 0.0
      %8024 = vmatpush1.msra.mxu0 0.0
      %8025 = vmatprep.subr.mxu0 0.0
      %8026 = vmatpush1.msra.mxu0 0.0
      %8027 = vmatprep.subr.mxu0 0.0
      %8028 = vmatpush1.msra.mxu0 0.0
      %8029 = vmatprep.subr.mxu0 0.0
      %8030 = vmatpush1.msra.mxu0 0.0
      %8031 = vmatprep.subr.mxu0 0.0
      %8032 = vmatpush1.msra.mxu0 0.0
      %8033 = vmatprep.subr.mxu0 0.0
      %8034 = vmatpush1.msra.mxu0 0.0
      %8035 = vmatprep.subr.mxu0 0.0
      %8036 = vmatpush1.msra.mxu0 0.0
      %8037 = vmatprep.subr.mxu0 0.0
      %8038 = vmatpush1.msra.mxu0 0.0
      %8039 = vmatprep.subr.mxu0 0.0
      %8040 = vmatpush1.msra.mxu0 0.0
      %8041 = vmatprep.subr.mxu0 0.0
      %8042 = vmatpush1.msra.mxu0 0.0
      %8043 = vmatprep.subr.mxu0 0.0
      %8044 = vmatpush1.msra.mxu0 0.0
      %8045 = vmatprep.subr.mxu0 0.0
      %8046 = vmatpush1.msra.mxu0 0.0
      %8047 = vmatprep.subr.mxu0 0.0
      %8048 = vmatpush1.msra.mxu0 0.0
      %8049 = vmatprep.subr.mxu0 0.0
      %8050 = vmatpush1.msra.mxu0 0.0
      %8051 = vmatprep.subr.mxu0 0.0
      %8052 = vmatpush1.msra.mxu0 0.0
      %8053 = vmatprep.subr.mxu0 0.0
      %8054 = vmatpush1.msra.mxu0 0.0
      %8055 = vmatprep.subr.mxu0 0.0
      %8056 = vmatpush1.msra.mxu0 0.0
      %8057 = vmatprep.subr.mxu0 0.0
      %8058 = vmatpush1.msra.mxu0 0.0
      %8059 = vmatprep.subr.mxu0 0.0
      %8060 = vmatpush1.msra.mxu0 0.0
      %8061 = vmatprep.subr.mxu0 0.0
      %8062 = vmatpush1.msra.mxu0 0.0
      %8063 = vmatprep.subr.mxu0 0.0
      %8064 = vmatpush1.msra.mxu0 0.0
      %8065 = vmatprep.subr.mxu0 0.0
      %8066 = vmatpush1.msra.mxu0 0.0
      %8067 = vmatprep.subr.mxu0 0.0
      %8068 = vmatpush1.msra.mxu0 0.0
      %8069 = vmatprep.subr.mxu0 0.0
      %8070 = vmatpush1.msra.mxu0 0.0
      %8071 = vmatprep.subr.mxu0 0.0
      %8072 = vmatpush1.msra.mxu0 0.0
      %8073 = vmatprep.subr.mxu0 0.0
      %8074 = vmatpush1.msra.mxu0 0.0
      %8075 = vmatprep.subr.mxu0 0.0
      %8076 = vmatpush1.msra.mxu0 0.0
      %8077 = vmatprep.mubr.f32.mxu0 0.0
      %8078 = vmatmul.mubr.f32.gmra.mrb[0].mxu0 %v7656
      %v8079 = vpop.f32.mrb[0].mxu0
      %v8080 = vadd.f32 0.0, %v8079
      %v8081 = vpop.f32.mrb[0].mxu0
      %8082 = vdwg.mxu0
      %v8083 = vadd.f32 %v7596, %v7725
      %v8084 = vadd.f32 %v7597, %v7727
      %v8085 = vadd.f32 %v7598, %v7796
      %v8086 = vadd.f32 %v7599, %v7798
      %v8087 = vadd.f32 %v7600, %v7867
      %v8088 = vadd.f32 %v7601, %v7869
      %v8089 = vadd.f32 %v7602, %v7938
      %v8090 = vadd.f32 %v7603, %v7940
      %v8091 = vadd.f32 %v7604, %v8009
      %v8092 = vadd.f32 %v7605, %v8011
      %v8093 = vadd.f32 %v7606, %v8080
      %s8094 = scalar_lea.vmem %s2, 56
      %v8095 = vld [vmem:[%s8094] sm:$0xff]
      %8096 = vrot.lane.b32.xlu0 %v4730, 91
      %v8097 = vpop.permute.xlu0 %8096
      %8098 = vrot.lane.b32.xlu0 %v4731, 91
      %v8099 = vpop.permute.xlu0 %8098
      %8100 = vrot.lane.b32.xlu0 %v4732, 91
      %v8101 = vpop.permute.xlu0 %8100
      %8102 = vrot.lane.b32.xlu0 %v4733, 91
      %v8103 = vpop.permute.xlu0 %8102
      %8104 = vrot.lane.b32.xlu0 %v4734, 91
      %v8105 = vpop.permute.xlu0 %8104
      %8106 = vrot.lane.b32.xlu0 %v4735, 91
      %v8107 = vpop.permute.xlu0 %8106
      %8108 = vrot.lane.b32.xlu0 %v4736, 91
      %v8109 = vpop.permute.xlu0 %8108
      %8110 = vrot.lane.b32.xlu0 %v4737, 91
      %v8111 = vpop.permute.xlu0 %8110
      %8112 = vrot.lane.b32.xlu0 %v4738, 91
      %v8113 = vpop.permute.xlu0 %8112
      %8114 = vrot.lane.b32.xlu0 %v4739, 91
      %v8115 = vpop.permute.xlu0 %8114
      %8116 = vrot.lane.b32.xlu0 %v4740, 91
      %v8117 = vpop.permute.xlu0 %8116
      %8118 = vrot.lane.b32.xlu0 %v4742, 91
      %v8119 = vpop.permute.xlu0 %8118
      %v8120 = vsel %vm3595, %v8097, %v8099
      %v8121 = vsel %vm3595, %v8099, %v8101
      %v8122 = vsel %vm3595, %v8101, %v8103
      %v8123 = vsel %vm3595, %v8103, %v8105
      %v8124 = vsel %vm3595, %v8105, %v8107
      %v8125 = vsel %vm3595, %v8107, %v8109
      %v8126 = vsel %vm3595, %v8109, %v8111
      %v8127 = vsel %vm3595, %v8111, %v8113
      %v8128 = vsel %vm3595, %v8113, %v8115
      %v8129 = vsel %vm3595, %v8115, %v8117
      %v8130 = vsel %vm3595, %v8117, %v8119
      %v8143 = vsel %vm272, %v8095, 0
      %8145 = vmatprep.subr.mxu0 %v8121
      %8146 = vmatpush1.msra.mxu0 %v8120
      %8147 = vmatprep.subr.mxu0 0.0
      %8148 = vmatpush1.msra.mxu0 0.0
      %8149 = vmatprep.subr.mxu0 0.0
      %8150 = vmatpush1.msra.mxu0 0.0
      %8151 = vmatprep.subr.mxu0 0.0
      %8152 = vmatpush1.msra.mxu0 0.0
      %8153 = vmatprep.subr.mxu0 0.0
      %8154 = vmatpush1.msra.mxu0 0.0
      %8155 = vmatprep.subr.mxu0 0.0
      %8156 = vmatpush1.msra.mxu0 0.0
      %8157 = vmatprep.subr.mxu0 0.0
      %8158 = vmatpush1.msra.mxu0 0.0
      %8159 = vmatprep.subr.mxu0 0.0
      %8160 = vmatpush1.msra.mxu0 0.0
      %8161 = vmatprep.subr.mxu0 0.0
      %8162 = vmatpush1.msra.mxu0 0.0
      %8163 = vmatprep.subr.mxu0 0.0
      %8164 = vmatpush1.msra.mxu0 0.0
      %8165 = vmatprep.subr.mxu0 0.0
      %8166 = vmatpush1.msra.mxu0 0.0
      %8167 = vmatprep.subr.mxu0 0.0
      %8168 = vmatpush1.msra.mxu0 0.0
      %8169 = vmatprep.subr.mxu0 0.0
      %8170 = vmatpush1.msra.mxu0 0.0
      %8171 = vmatprep.subr.mxu0 0.0
      %8172 = vmatpush1.msra.mxu0 0.0
      %8173 = vmatprep.subr.mxu0 0.0
      %8174 = vmatpush1.msra.mxu0 0.0
      %8175 = vmatprep.subr.mxu0 0.0
      %8176 = vmatpush1.msra.mxu0 0.0
      %8177 = vmatprep.subr.mxu0 0.0
      %8178 = vmatpush1.msra.mxu0 0.0
      %8179 = vmatprep.subr.mxu0 0.0
      %8180 = vmatpush1.msra.mxu0 0.0
      %8181 = vmatprep.subr.mxu0 0.0
      %8182 = vmatpush1.msra.mxu0 0.0
      %8183 = vmatprep.subr.mxu0 0.0
      %8184 = vmatpush1.msra.mxu0 0.0
      %8185 = vmatprep.subr.mxu0 0.0
      %8186 = vmatpush1.msra.mxu0 0.0
      %8187 = vmatprep.subr.mxu0 0.0
      %8188 = vmatpush1.msra.mxu0 0.0
      %8189 = vmatprep.subr.mxu0 0.0
      %8190 = vmatpush1.msra.mxu0 0.0
      %8191 = vmatprep.subr.mxu0 0.0
      %8192 = vmatpush1.msra.mxu0 0.0
      %8193 = vmatprep.subr.mxu0 0.0
      %8194 = vmatpush1.msra.mxu0 0.0
      %8195 = vmatprep.subr.mxu0 0.0
      %8196 = vmatpush1.msra.mxu0 0.0
      %8197 = vmatprep.subr.mxu0 0.0
      %8198 = vmatpush1.msra.mxu0 0.0
      %8199 = vmatprep.subr.mxu0 0.0
      %8200 = vmatpush1.msra.mxu0 0.0
      %8201 = vmatprep.subr.mxu0 0.0
      %8202 = vmatpush1.msra.mxu0 0.0
      %8203 = vmatprep.subr.mxu0 0.0
      %8204 = vmatpush1.msra.mxu0 0.0
      %8205 = vmatprep.subr.mxu0 0.0
      %8206 = vmatpush1.msra.mxu0 0.0
      %8207 = vmatprep.subr.mxu0 0.0
      %8208 = vmatpush1.msra.mxu0 0.0
      %8209 = vmatprep.mubr.f32.mxu0 0.0
      %8210 = vmatmul.mubr.f32.gmra.mrb[0].mxu0 %v8143
      %v8211 = vpop.f32.mrb[0].mxu0
      %v8212 = vadd.f32 0.0, %v8211
      %v8213 = vpop.f32.mrb[0].mxu0
      %v8214 = vadd.f32 0.0, %v8213
      %8215 = vdwg.mxu0
      %8216 = vmatprep.subr.mxu0 %v8123
      %8217 = vmatpush1.msra.mxu0 %v8122
      %8218 = vmatprep.subr.mxu0 0.0
      %8219 = vmatpush1.msra.mxu0 0.0
      %8220 = vmatprep.subr.mxu0 0.0
      %8221 = vmatpush1.msra.mxu0 0.0
      %8222 = vmatprep.subr.mxu0 0.0
      %8223 = vmatpush1.msra.mxu0 0.0
      %8224 = vmatprep.subr.mxu0 0.0
      %8225 = vmatpush1.msra.mxu0 0.0
      %8226 = vmatprep.subr.mxu0 0.0
      %8227 = vmatpush1.msra.mxu0 0.0
      %8228 = vmatprep.subr.mxu0 0.0
      %8229 = vmatpush1.msra.mxu0 0.0
      %8230 = vmatprep.subr.mxu0 0.0
      %8231 = vmatpush1.msra.mxu0 0.0
      %8232 = vmatprep.subr.mxu0 0.0
      %8233 = vmatpush1.msra.mxu0 0.0
      %8234 = vmatprep.subr.mxu0 0.0
      %8235 = vmatpush1.msra.mxu0 0.0
      %8236 = vmatprep.subr.mxu0 0.0
      %8237 = vmatpush1.msra.mxu0 0.0
      %8238 = vmatprep.subr.mxu0 0.0
      %8239 = vmatpush1.msra.mxu0 0.0
      %8240 = vmatprep.subr.mxu0 0.0
      %8241 = vmatpush1.msra.mxu0 0.0
      %8242 = vmatprep.subr.mxu0 0.0
      %8243 = vmatpush1.msra.mxu0 0.0
      %8244 = vmatprep.subr.mxu0 0.0
      %8245 = vmatpush1.msra.mxu0 0.0
      %8246 = vmatprep.subr.mxu0 0.0
      %8247 = vmatpush1.msra.mxu0 0.0
      %8248 = vmatprep.subr.mxu0 0.0
      %8249 = vmatpush1.msra.mxu0 0.0
      %8250 = vmatprep.subr.mxu0 0.0
      %8251 = vmatpush1.msra.mxu0 0.0
      %8252 = vmatprep.subr.mxu0 0.0
      %8253 = vmatpush1.msra.mxu0 0.0
      %8254 = vmatprep.subr.mxu0 0.0
      %8255 = vmatpush1.msra.mxu0 0.0
      %8256 = vmatprep.subr.mxu0 0.0
      %8257 = vmatpush1.msra.mxu0 0.0
      %8258 = vmatprep.subr.mxu0 0.0
      %8259 = vmatpush1.msra.mxu0 0.0
      %8260 = vmatprep.subr.mxu0 0.0
      %8261 = vmatpush1.msra.mxu0 0.0
      %8262 = vmatprep.subr.mxu0 0.0
      %8263 = vmatpush1.msra.mxu0 0.0
      %8264 = vmatprep.subr.mxu0 0.0
      %8265 = vmatpush1.msra.mxu0 0.0
      %8266 = vmatprep.subr.mxu0 0.0
      %8267 = vmatpush1.msra.mxu0 0.0
      %8268 = vmatprep.subr.mxu0 0.0
      %8269 = vmatpush1.msra.mxu0 0.0
      %8270 = vmatprep.subr.mxu0 0.0
      %8271 = vmatpush1.msra.mxu0 0.0
      %8272 = vmatprep.subr.mxu0 0.0
      %8273 = vmatpush1.msra.mxu0 0.0
      %8274 = vmatprep.subr.mxu0 0.0
      %8275 = vmatpush1.msra.mxu0 0.0
      %8276 = vmatprep.subr.mxu0 0.0
      %8277 = vmatpush1.msra.mxu0 0.0
      %8278 = vmatprep.subr.mxu0 0.0
      %8279 = vmatpush1.msra.mxu0 0.0
      %8280 = vmatprep.mubr.f32.mxu0 0.0
      %8281 = vmatmul.mubr.f32.gmra.mrb[0].mxu0 %v8143
      %v8282 = vpop.f32.mrb[0].mxu0
      %v8283 = vadd.f32 0.0, %v8282
      %v8284 = vpop.f32.mrb[0].mxu0
      %v8285 = vadd.f32 0.0, %v8284
      %8286 = vdwg.mxu0
      %8287 = vmatprep.subr.mxu0 %v8125
      %8288 = vmatpush1.msra.mxu0 %v8124
      %8289 = vmatprep.subr.mxu0 0.0
      %8290 = vmatpush1.msra.mxu0 0.0
      %8291 = vmatprep.subr.mxu0 0.0
      %8292 = vmatpush1.msra.mxu0 0.0
      %8293 = vmatprep.subr.mxu0 0.0
      %8294 = vmatpush1.msra.mxu0 0.0
      %8295 = vmatprep.subr.mxu0 0.0
      %8296 = vmatpush1.msra.mxu0 0.0
      %8297 = vmatprep.subr.mxu0 0.0
      %8298 = vmatpush1.msra.mxu0 0.0
      %8299 = vmatprep.subr.mxu0 0.0
      %8300 = vmatpush1.msra.mxu0 0.0
      %8301 = vmatprep.subr.mxu0 0.0
      %8302 = vmatpush1.msra.mxu0 0.0
      %8303 = vmatprep.subr.mxu0 0.0
      %8304 = vmatpush1.msra.mxu0 0.0
      %8305 = vmatprep.subr.mxu0 0.0
      %8306 = vmatpush1.msra.mxu0 0.0
      %8307 = vmatprep.subr.mxu0 0.0
      %8308 = vmatpush1.msra.mxu0 0.0
      %8309 = vmatprep.subr.mxu0 0.0
      %8310 = vmatpush1.msra.mxu0 0.0
      %8311 = vmatprep.subr.mxu0 0.0
      %8312 = vmatpush1.msra.mxu0 0.0
      %8313 = vmatprep.subr.mxu0 0.0
      %8314 = vmatpush1.msra.mxu0 0.0
      %8315 = vmatprep.subr.mxu0 0.0
      %8316 = vmatpush1.msra.mxu0 0.0
      %8317 = vmatprep.subr.mxu0 0.0
      %8318 = vmatpush1.msra.mxu0 0.0
      %8319 = vmatprep.subr.mxu0 0.0
      %8320 = vmatpush1.msra.mxu0 0.0
      %8321 = vmatprep.subr.mxu0 0.0
      %8322 = vmatpush1.msra.mxu0 0.0
      %8323 = vmatprep.subr.mxu0 0.0
      %8324 = vmatpush1.msra.mxu0 0.0
      %8325 = vmatprep.subr.mxu0 0.0
      %8326 = vmatpush1.msra.mxu0 0.0
      %8327 = vmatprep.subr.mxu0 0.0
      %8328 = vmatpush1.msra.mxu0 0.0
      %8329 = vmatprep.subr.mxu0 0.0
      %8330 = vmatpush1.msra.mxu0 0.0
      %8331 = vmatprep.subr.mxu0 0.0
      %8332 = vmatpush1.msra.mxu0 0.0
      %8333 = vmatprep.subr.mxu0 0.0
      %8334 = vmatpush1.msra.mxu0 0.0
      %8335 = vmatprep.subr.mxu0 0.0
      %8336 = vmatpush1.msra.mxu0 0.0
      %8337 = vmatprep.subr.mxu0 0.0
      %8338 = vmatpush1.msra.mxu0 0.0
      %8339 = vmatprep.subr.mxu0 0.0
      %8340 = vmatpush1.msra.mxu0 0.0
      %8341 = vmatprep.subr.mxu0 0.0
      %8342 = vmatpush1.msra.mxu0 0.0
      %8343 = vmatprep.subr.mxu0 0.0
      %8344 = vmatpush1.msra.mxu0 0.0
      %8345 = vmatprep.subr.mxu0 0.0
      %8346 = vmatpush1.msra.mxu0 0.0
      %8347 = vmatprep.subr.mxu0 0.0
      %8348 = vmatpush1.msra.mxu0 0.0
      %8349 = vmatprep.subr.mxu0 0.0
      %8350 = vmatpush1.msra.mxu0 0.0
      %8351 = vmatprep.mubr.f32.mxu0 0.0
      %8352 = vmatmul.mubr.f32.gmra.mrb[0].mxu0 %v8143
      %v8353 = vpop.f32.mrb[0].mxu0
      %v8354 = vadd.f32 0.0, %v8353
      %v8355 = vpop.f32.mrb[0].mxu0
      %v8356 = vadd.f32 0.0, %v8355
      %8357 = vdwg.mxu0
      %8358 = vmatprep.subr.mxu0 %v8127
      %8359 = vmatpush1.msra.mxu0 %v8126
      %8360 = vmatprep.subr.mxu0 0.0
      %8361 = vmatpush1.msra.mxu0 0.0
      %8362 = vmatprep.subr.mxu0 0.0
      %8363 = vmatpush1.msra.mxu0 0.0
      %8364 = vmatprep.subr.mxu0 0.0
      %8365 = vmatpush1.msra.mxu0 0.0
      %8366 = vmatprep.subr.mxu0 0.0
      %8367 = vmatpush1.msra.mxu0 0.0
      %8368 = vmatprep.subr.mxu0 0.0
      %8369 = vmatpush1.msra.mxu0 0.0
      %8370 = vmatprep.subr.mxu0 0.0
      %8371 = vmatpush1.msra.mxu0 0.0
      %8372 = vmatprep.subr.mxu0 0.0
      %8373 = vmatpush1.msra.mxu0 0.0
      %8374 = vmatprep.subr.mxu0 0.0
      %8375 = vmatpush1.msra.mxu0 0.0
      %8376 = vmatprep.subr.mxu0 0.0
      %8377 = vmatpush1.msra.mxu0 0.0
      %8378 = vmatprep.subr.mxu0 0.0
      %8379 = vmatpush1.msra.mxu0 0.0
      %8380 = vmatprep.subr.mxu0 0.0
      %8381 = vmatpush1.msra.mxu0 0.0
      %8382 = vmatprep.subr.mxu0 0.0
      %8383 = vmatpush1.msra.mxu0 0.0
      %8384 = vmatprep.subr.mxu0 0.0
      %8385 = vmatpush1.msra.mxu0 0.0
      %8386 = vmatprep.subr.mxu0 0.0
      %8387 = vmatpush1.msra.mxu0 0.0
      %8388 = vmatprep.subr.mxu0 0.0
      %8389 = vmatpush1.msra.mxu0 0.0
      %8390 = vmatprep.subr.mxu0 0.0
      %8391 = vmatpush1.msra.mxu0 0.0
      %8392 = vmatprep.subr.mxu0 0.0
      %8393 = vmatpush1.msra.mxu0 0.0
      %8394 = vmatprep.subr.mxu0 0.0
      %8395 = vmatpush1.msra.mxu0 0.0
      %8396 = vmatprep.subr.mxu0 0.0
      %8397 = vmatpush1.msra.mxu0 0.0
      %8398 = vmatprep.subr.mxu0 0.0
      %8399 = vmatpush1.msra.mxu0 0.0
      %8400 = vmatprep.subr.mxu0 0.0
      %8401 = vmatpush1.msra.mxu0 0.0
      %8402 = vmatprep.subr.mxu0 0.0
      %8403 = vmatpush1.msra.mxu0 0.0
      %8404 = vmatprep.subr.mxu0 0.0
      %8405 = vmatpush1.msra.mxu0 0.0
      %8406 = vmatprep.subr.mxu0 0.0
      %8407 = vmatpush1.msra.mxu0 0.0
      %8408 = vmatprep.subr.mxu0 0.0
      %8409 = vmatpush1.msra.mxu0 0.0
      %8410 = vmatprep.subr.mxu0 0.0
      %8411 = vmatpush1.msra.mxu0 0.0
      %8412 = vmatprep.subr.mxu0 0.0
      %8413 = vmatpush1.msra.mxu0 0.0
      %8414 = vmatprep.subr.mxu0 0.0
      %8415 = vmatpush1.msra.mxu0 0.0
      %8416 = vmatprep.subr.mxu0 0.0
      %8417 = vmatpush1.msra.mxu0 0.0
      %8418 = vmatprep.subr.mxu0 0.0
      %8419 = vmatpush1.msra.mxu0 0.0
      %8420 = vmatprep.subr.mxu0 0.0
      %8421 = vmatpush1.msra.mxu0 0.0
      %8422 = vmatprep.mubr.f32.mxu0 0.0
      %8423 = vmatmul.mubr.f32.gmra.mrb[0].mxu0 %v8143
      %v8424 = vpop.f32.mrb[0].mxu0
      %v8425 = vadd.f32 0.0, %v8424
      %v8426 = vpop.f32.mrb[0].mxu0
      %v8427 = vadd.f32 0.0, %v8426
      %8428 = vdwg.mxu0
      %8429 = vmatprep.subr.mxu0 %v8129
      %8430 = vmatpush1.msra.mxu0 %v8128
      %8431 = vmatprep.subr.mxu0 0.0
      %8432 = vmatpush1.msra.mxu0 0.0
      %8433 = vmatprep.subr.mxu0 0.0
      %8434 = vmatpush1.msra.mxu0 0.0
      %8435 = vmatprep.subr.mxu0 0.0
      %8436 = vmatpush1.msra.mxu0 0.0
      %8437 = vmatprep.subr.mxu0 0.0
      %8438 = vmatpush1.msra.mxu0 0.0
      %8439 = vmatprep.subr.mxu0 0.0
      %8440 = vmatpush1.msra.mxu0 0.0
      %8441 = vmatprep.subr.mxu0 0.0
      %8442 = vmatpush1.msra.mxu0 0.0
      %8443 = vmatprep.subr.mxu0 0.0
      %8444 = vmatpush1.msra.mxu0 0.0
      %8445 = vmatprep.subr.mxu0 0.0
      %8446 = vmatpush1.msra.mxu0 0.0
      %8447 = vmatprep.subr.mxu0 0.0
      %8448 = vmatpush1.msra.mxu0 0.0
      %8449 = vmatprep.subr.mxu0 0.0
      %8450 = vmatpush1.msra.mxu0 0.0
      %8451 = vmatprep.subr.mxu0 0.0
      %8452 = vmatpush1.msra.mxu0 0.0
      %8453 = vmatprep.subr.mxu0 0.0
      %8454 = vmatpush1.msra.mxu0 0.0
      %8455 = vmatprep.subr.mxu0 0.0
      %8456 = vmatpush1.msra.mxu0 0.0
      %8457 = vmatprep.subr.mxu0 0.0
      %8458 = vmatpush1.msra.mxu0 0.0
      %8459 = vmatprep.subr.mxu0 0.0
      %8460 = vmatpush1.msra.mxu0 0.0
      %8461 = vmatprep.subr.mxu0 0.0
      %8462 = vmatpush1.msra.mxu0 0.0
      %8463 = vmatprep.subr.mxu0 0.0
      %8464 = vmatpush1.msra.mxu0 0.0
      %8465 = vmatprep.subr.mxu0 0.0
      %8466 = vmatpush1.msra.mxu0 0.0
      %8467 = vmatprep.subr.mxu0 0.0
      %8468 = vmatpush1.msra.mxu0 0.0
      %8469 = vmatprep.subr.mxu0 0.0
      %8470 = vmatpush1.msra.mxu0 0.0
      %8471 = vmatprep.subr.mxu0 0.0
      %8472 = vmatpush1.msra.mxu0 0.0
      %8473 = vmatprep.subr.mxu0 0.0
      %8474 = vmatpush1.msra.mxu0 0.0
      %8475 = vmatprep.subr.mxu0 0.0
      %8476 = vmatpush1.msra.mxu0 0.0
      %8477 = vmatprep.subr.mxu0 0.0
      %8478 = vmatpush1.msra.mxu0 0.0
      %8479 = vmatprep.subr.mxu0 0.0
      %8480 = vmatpush1.msra.mxu0 0.0
      %8481 = vmatprep.subr.mxu0 0.0
      %8482 = vmatpush1.msra.mxu0 0.0
      %8483 = vmatprep.subr.mxu0 0.0
      %8484 = vmatpush1.msra.mxu0 0.0
      %8485 = vmatprep.subr.mxu0 0.0
      %8486 = vmatpush1.msra.mxu0 0.0
      %8487 = vmatprep.subr.mxu0 0.0
      %8488 = vmatpush1.msra.mxu0 0.0
      %8489 = vmatprep.subr.mxu0 0.0
      %8490 = vmatpush1.msra.mxu0 0.0
      %8491 = vmatprep.subr.mxu0 0.0
      %8492 = vmatpush1.msra.mxu0 0.0
      %8493 = vmatprep.mubr.f32.mxu0 0.0
      %8494 = vmatmul.mubr.f32.gmra.mrb[0].mxu0 %v8143
      %v8495 = vpop.f32.mrb[0].mxu0
      %v8496 = vadd.f32 0.0, %v8495
      %v8497 = vpop.f32.mrb[0].mxu0
      %v8498 = vadd.f32 0.0, %v8497
      %8499 = vdwg.mxu0
      %8500 = vmatprep.subr.mxu0 0.0
      %8501 = vmatpush1.msra.mxu0 %v8130
      %8502 = vmatprep.subr.mxu0 0.0
      %8503 = vmatpush1.msra.mxu0 0.0
      %8504 = vmatprep.subr.mxu0 0.0
      %8505 = vmatpush1.msra.mxu0 0.0
      %8506 = vmatprep.subr.mxu0 0.0
      %8507 = vmatpush1.msra.mxu0 0.0
      %8508 = vmatprep.subr.mxu0 0.0
      %8509 = vmatpush1.msra.mxu0 0.0
      %8510 = vmatprep.subr.mxu0 0.0
      %8511 = vmatpush1.msra.mxu0 0.0
      %8512 = vmatprep.subr.mxu0 0.0
      %8513 = vmatpush1.msra.mxu0 0.0
      %8514 = vmatprep.subr.mxu0 0.0
      %8515 = vmatpush1.msra.mxu0 0.0
      %8516 = vmatprep.subr.mxu0 0.0
      %8517 = vmatpush1.msra.mxu0 0.0
      %8518 = vmatprep.subr.mxu0 0.0
      %8519 = vmatpush1.msra.mxu0 0.0
      %8520 = vmatprep.subr.mxu0 0.0
      %8521 = vmatpush1.msra.mxu0 0.0
      %8522 = vmatprep.subr.mxu0 0.0
      %8523 = vmatpush1.msra.mxu0 0.0
      %8524 = vmatprep.subr.mxu0 0.0
      %8525 = vmatpush1.msra.mxu0 0.0
      %8526 = vmatprep.subr.mxu0 0.0
      %8527 = vmatpush1.msra.mxu0 0.0
      %8528 = vmatprep.subr.mxu0 0.0
      %8529 = vmatpush1.msra.mxu0 0.0
      %8530 = vmatprep.subr.mxu0 0.0
      %8531 = vmatpush1.msra.mxu0 0.0
      %8532 = vmatprep.subr.mxu0 0.0
      %8533 = vmatpush1.msra.mxu0 0.0
      %8534 = vmatprep.subr.mxu0 0.0
      %8535 = vmatpush1.msra.mxu0 0.0
      %8536 = vmatprep.subr.mxu0 0.0
      %8537 = vmatpush1.msra.mxu0 0.0
      %8538 = vmatprep.subr.mxu0 0.0
      %8539 = vmatpush1.msra.mxu0 0.0
      %8540 = vmatprep.subr.mxu0 0.0
      %8541 = vmatpush1.msra.mxu0 0.0
      %8542 = vmatprep.subr.mxu0 0.0
      %8543 = vmatpush1.msra.mxu0 0.0
      %8544 = vmatprep.subr.mxu0 0.0
      %8545 = vmatpush1.msra.mxu0 0.0
      %8546 = vmatprep.subr.mxu0 0.0
      %8547 = vmatpush1.msra.mxu0 0.0
      %8548 = vmatprep.subr.mxu0 0.0
      %8549 = vmatpush1.msra.mxu0 0.0
      %8550 = vmatprep.subr.mxu0 0.0
      %8551 = vmatpush1.msra.mxu0 0.0
      %8552 = vmatprep.subr.mxu0 0.0
      %8553 = vmatpush1.msra.mxu0 0.0
      %8554 = vmatprep.subr.mxu0 0.0
      %8555 = vmatpush1.msra.mxu0 0.0
      %8556 = vmatprep.subr.mxu0 0.0
      %8557 = vmatpush1.msra.mxu0 0.0
      %8558 = vmatprep.subr.mxu0 0.0
      %8559 = vmatpush1.msra.mxu0 0.0
      %8560 = vmatprep.subr.mxu0 0.0
      %8561 = vmatpush1.msra.mxu0 0.0
      %8562 = vmatprep.subr.mxu0 0.0
      %8563 = vmatpush1.msra.mxu0 0.0
      %8564 = vmatprep.mubr.f32.mxu0 0.0
      %8565 = vmatmul.mubr.f32.gmra.mrb[0].mxu0 %v8143
      %v8566 = vpop.f32.mrb[0].mxu0
      %v8567 = vadd.f32 0.0, %v8566
      %v8568 = vpop.f32.mrb[0].mxu0
      %8569 = vdwg.mxu0
      %v8570 = vadd.f32 %v8083, %v8212
      %v8571 = vadd.f32 %v8084, %v8214
      %v8572 = vadd.f32 %v8085, %v8283
      %v8573 = vadd.f32 %v8086, %v8285
      %v8574 = vadd.f32 %v8087, %v8354
      %v8575 = vadd.f32 %v8088, %v8356
      %v8576 = vadd.f32 %v8089, %v8425
      %v8577 = vadd.f32 %v8090, %v8427
      %v8578 = vadd.f32 %v8091, %v8496
      %v8579 = vadd.f32 %v8092, %v8498
      %v8580 = vadd.f32 %v8093, %v8567
      %s8581 = scalar_lea.vmem %s2, 64
      %v8582 = vld [vmem:[%s8581] sm:$0xff]
      %8583 = vrot.lane.b32.xlu0 %v4730, 90
      %v8584 = vpop.permute.xlu0 %8583
      %8585 = vrot.lane.b32.xlu0 %v4731, 90
      %v8586 = vpop.permute.xlu0 %8585
      %8587 = vrot.lane.b32.xlu0 %v4732, 90
      %v8588 = vpop.permute.xlu0 %8587
      %8589 = vrot.lane.b32.xlu0 %v4733, 90
      %v8590 = vpop.permute.xlu0 %8589
      %8591 = vrot.lane.b32.xlu0 %v4734, 90
      %v8592 = vpop.permute.xlu0 %8591
      %8593 = vrot.lane.b32.xlu0 %v4735, 90
      %v8594 = vpop.permute.xlu0 %8593
      %8595 = vrot.lane.b32.xlu0 %v4736, 90
      %v8596 = vpop.permute.xlu0 %8595
      %8597 = vrot.lane.b32.xlu0 %v4737, 90
      %v8598 = vpop.permute.xlu0 %8597
      %8599 = vrot.lane.b32.xlu0 %v4738, 90
      %v8600 = vpop.permute.xlu0 %8599
      %8601 = vrot.lane.b32.xlu0 %v4739, 90
      %v8602 = vpop.permute.xlu0 %8601
      %8603 = vrot.lane.b32.xlu0 %v4740, 90
      %v8604 = vpop.permute.xlu0 %8603
      %8605 = vrot.lane.b32.xlu0 %v4742, 90
      %v8606 = vpop.permute.xlu0 %8605
      %v8607 = vsel %vm4083, %v8584, %v8586
      %v8608 = vsel %vm4083, %v8586, %v8588
      %v8609 = vsel %vm4083, %v8588, %v8590
      %v8610 = vsel %vm4083, %v8590, %v8592
      %v8611 = vsel %vm4083, %v8592, %v8594
      %v8612 = vsel %vm4083, %v8594, %v8596
      %v8613 = vsel %vm4083, %v8596, %v8598
      %v8614 = vsel %vm4083, %v8598, %v8600
      %v8615 = vsel %vm4083, %v8600, %v8602
      %v8616 = vsel %vm4083, %v8602, %v8604
      %v8617 = vsel %vm4083, %v8604, %v8606
      %v8630 = vsel %vm272, %v8582, 0
      %8632 = vmatprep.subr.mxu0 %v8608
      %8633 = vmatpush1.msra.mxu0 %v8607
      %8634 = vmatprep.subr.mxu0 0.0
      %8635 = vmatpush1.msra.mxu0 0.0
      %8636 = vmatprep.subr.mxu0 0.0
      %8637 = vmatpush1.msra.mxu0 0.0
      %8638 = vmatprep.subr.mxu0 0.0
      %8639 = vmatpush1.msra.mxu0 0.0
      %8640 = vmatprep.subr.mxu0 0.0
      %8641 = vmatpush1.msra.mxu0 0.0
      %8642 = vmatprep.subr.mxu0 0.0
      %8643 = vmatpush1.msra.mxu0 0.0
      %8644 = vmatprep.subr.mxu0 0.0
      %8645 = vmatpush1.msra.mxu0 0.0
      %8646 = vmatprep.subr.mxu0 0.0
      %8647 = vmatpush1.msra.mxu0 0.0
      %8648 = vmatprep.subr.mxu0 0.0
      %8649 = vmatpush1.msra.mxu0 0.0
      %8650 = vmatprep.subr.mxu0 0.0
      %8651 = vmatpush1.msra.mxu0 0.0
      %8652 = vmatprep.subr.mxu0 0.0
      %8653 = vmatpush1.msra.mxu0 0.0
      %8654 = vmatprep.subr.mxu0 0.0
      %8655 = vmatpush1.msra.mxu0 0.0
      %8656 = vmatprep.subr.mxu0 0.0
      %8657 = vmatpush1.msra.mxu0 0.0
      %8658 = vmatprep.subr.mxu0 0.0
      %8659 = vmatpush1.msra.mxu0 0.0
      %8660 = vmatprep.subr.mxu0 0.0
      %8661 = vmatpush1.msra.mxu0 0.0
      %8662 = vmatprep.subr.mxu0 0.0
      %8663 = vmatpush1.msra.mxu0 0.0
      %8664 = vmatprep.subr.mxu0 0.0
      %8665 = vmatpush1.msra.mxu0 0.0
      %8666 = vmatprep.subr.mxu0 0.0
      %8667 = vmatpush1.msra.mxu0 0.0
      %8668 = vmatprep.subr.mxu0 0.0
      %8669 = vmatpush1.msra.mxu0 0.0
      %8670 = vmatprep.subr.mxu0 0.0
      %8671 = vmatpush1.msra.mxu0 0.0
      %8672 = vmatprep.subr.mxu0 0.0
      %8673 = vmatpush1.msra.mxu0 0.0
      %8674 = vmatprep.subr.mxu0 0.0
      %8675 = vmatpush1.msra.mxu0 0.0
      %8676 = vmatprep.subr.mxu0 0.0
      %8677 = vmatpush1.msra.mxu0 0.0
      %8678 = vmatprep.subr.mxu0 0.0
      %8679 = vmatpush1.msra.mxu0 0.0
      %8680 = vmatprep.subr.mxu0 0.0
      %8681 = vmatpush1.msra.mxu0 0.0
      %8682 = vmatprep.subr.mxu0 0.0
      %8683 = vmatpush1.msra.mxu0 0.0
      %8684 = vmatprep.subr.mxu0 0.0
      %8685 = vmatpush1.msra.mxu0 0.0
      %8686 = vmatprep.subr.mxu0 0.0
      %8687 = vmatpush1.msra.mxu0 0.0
      %8688 = vmatprep.subr.mxu0 0.0
      %8689 = vmatpush1.msra.mxu0 0.0
      %8690 = vmatprep.subr.mxu0 0.0
      %8691 = vmatpush1.msra.mxu0 0.0
      %8692 = vmatprep.subr.mxu0 0.0
      %8693 = vmatpush1.msra.mxu0 0.0
      %8694 = vmatprep.subr.mxu0 0.0
      %8695 = vmatpush1.msra.mxu0 0.0
      %8696 = vmatprep.mubr.f32.mxu0 0.0
      %8697 = vmatmul.mubr.f32.gmra.mrb[0].mxu0 %v8630
      %v8698 = vpop.f32.mrb[0].mxu0
      %v8699 = vadd.f32 0.0, %v8698
      %v8700 = vpop.f32.mrb[0].mxu0
      %v8701 = vadd.f32 0.0, %v8700
      %8702 = vdwg.mxu0
      %8703 = vmatprep.subr.mxu0 %v8610
      %8704 = vmatpush1.msra.mxu0 %v8609
      %8705 = vmatprep.subr.mxu0 0.0
      %8706 = vmatpush1.msra.mxu0 0.0
      %8707 = vmatprep.subr.mxu0 0.0
      %8708 = vmatpush1.msra.mxu0 0.0
      %8709 = vmatprep.subr.mxu0 0.0
      %8710 = vmatpush1.msra.mxu0 0.0
      %8711 = vmatprep.subr.mxu0 0.0
      %8712 = vmatpush1.msra.mxu0 0.0
      %8713 = vmatprep.subr.mxu0 0.0
      %8714 = vmatpush1.msra.mxu0 0.0
      %8715 = vmatprep.subr.mxu0 0.0
      %8716 = vmatpush1.msra.mxu0 0.0
      %8717 = vmatprep.subr.mxu0 0.0
      %8718 = vmatpush1.msra.mxu0 0.0
      %8719 = vmatprep.subr.mxu0 0.0
      %8720 = vmatpush1.msra.mxu0 0.0
      %8721 = vmatprep.subr.mxu0 0.0
      %8722 = vmatpush1.msra.mxu0 0.0
      %8723 = vmatprep.subr.mxu0 0.0
      %8724 = vmatpush1.msra.mxu0 0.0
      %8725 = vmatprep.subr.mxu0 0.0
      %8726 = vmatpush1.msra.mxu0 0.0
      %8727 = vmatprep.subr.mxu0 0.0
      %8728 = vmatpush1.msra.mxu0 0.0
      %8729 = vmatprep.subr.mxu0 0.0
      %8730 = vmatpush1.msra.mxu0 0.0
      %8731 = vmatprep.subr.mxu0 0.0
      %8732 = vmatpush1.msra.mxu0 0.0
      %8733 = vmatprep.subr.mxu0 0.0
      %8734 = vmatpush1.msra.mxu0 0.0
      %8735 = vmatprep.subr.mxu0 0.0
      %8736 = vmatpush1.msra.mxu0 0.0
      %8737 = vmatprep.subr.mxu0 0.0
      %8738 = vmatpush1.msra.mxu0 0.0
      %8739 = vmatprep.subr.mxu0 0.0
      %8740 = vmatpush1.msra.mxu0 0.0
      %8741 = vmatprep.subr.mxu0 0.0
      %8742 = vmatpush1.msra.mxu0 0.0
      %8743 = vmatprep.subr.mxu0 0.0
      %8744 = vmatpush1.msra.mxu0 0.0
      %8745 = vmatprep.subr.mxu0 0.0
      %8746 = vmatpush1.msra.mxu0 0.0
      %8747 = vmatprep.subr.mxu0 0.0
      %8748 = vmatpush1.msra.mxu0 0.0
      %8749 = vmatprep.subr.mxu0 0.0
      %8750 = vmatpush1.msra.mxu0 0.0
      %8751 = vmatprep.subr.mxu0 0.0
      %8752 = vmatpush1.msra.mxu0 0.0
      %8753 = vmatprep.subr.mxu0 0.0
      %8754 = vmatpush1.msra.mxu0 0.0
      %8755 = vmatprep.subr.mxu0 0.0
      %8756 = vmatpush1.msra.mxu0 0.0
      %8757 = vmatprep.subr.mxu0 0.0
      %8758 = vmatpush1.msra.mxu0 0.0
      %8759 = vmatprep.subr.mxu0 0.0
      %8760 = vmatpush1.msra.mxu0 0.0
      %8761 = vmatprep.subr.mxu0 0.0
      %8762 = vmatpush1.msra.mxu0 0.0
      %8763 = vmatprep.subr.mxu0 0.0
      %8764 = vmatpush1.msra.mxu0 0.0
      %8765 = vmatprep.subr.mxu0 0.0
      %8766 = vmatpush1.msra.mxu0 0.0
      %8767 = vmatprep.mubr.f32.mxu0 0.0
      %8768 = vmatmul.mubr.f32.gmra.mrb[0].mxu0 %v8630
      %v8769 = vpop.f32.mrb[0].mxu0
      %v8770 = vadd.f32 0.0, %v8769
      %v8771 = vpop.f32.mrb[0].mxu0
      %v8772 = vadd.f32 0.0, %v8771
      %8773 = vdwg.mxu0
      %8774 = vmatprep.subr.mxu0 %v8612
      %8775 = vmatpush1.msra.mxu0 %v8611
      %8776 = vmatprep.subr.mxu0 0.0
      %8777 = vmatpush1.msra.mxu0 0.0
      %8778 = vmatprep.subr.mxu0 0.0
      %8779 = vmatpush1.msra.mxu0 0.0
      %8780 = vmatprep.subr.mxu0 0.0
      %8781 = vmatpush1.msra.mxu0 0.0
      %8782 = vmatprep.subr.mxu0 0.0
      %8783 = vmatpush1.msra.mxu0 0.0
      %8784 = vmatprep.subr.mxu0 0.0
      %8785 = vmatpush1.msra.mxu0 0.0
      %8786 = vmatprep.subr.mxu0 0.0
      %8787 = vmatpush1.msra.mxu0 0.0
      %8788 = vmatprep.subr.mxu0 0.0
      %8789 = vmatpush1.msra.mxu0 0.0
      %8790 = vmatprep.subr.mxu0 0.0
      %8791 = vmatpush1.msra.mxu0 0.0
      %8792 = vmatprep.subr.mxu0 0.0
      %8793 = vmatpush1.msra.mxu0 0.0
      %8794 = vmatprep.subr.mxu0 0.0
      %8795 = vmatpush1.msra.mxu0 0.0
      %8796 = vmatprep.subr.mxu0 0.0
      %8797 = vmatpush1.msra.mxu0 0.0
      %8798 = vmatprep.subr.mxu0 0.0
      %8799 = vmatpush1.msra.mxu0 0.0
      %8800 = vmatprep.subr.mxu0 0.0
      %8801 = vmatpush1.msra.mxu0 0.0
      %8802 = vmatprep.subr.mxu0 0.0
      %8803 = vmatpush1.msra.mxu0 0.0
      %8804 = vmatprep.subr.mxu0 0.0
      %8805 = vmatpush1.msra.mxu0 0.0
      %8806 = vmatprep.subr.mxu0 0.0
      %8807 = vmatpush1.msra.mxu0 0.0
      %8808 = vmatprep.subr.mxu0 0.0
      %8809 = vmatpush1.msra.mxu0 0.0
      %8810 = vmatprep.subr.mxu0 0.0
      %8811 = vmatpush1.msra.mxu0 0.0
      %8812 = vmatprep.subr.mxu0 0.0
      %8813 = vmatpush1.msra.mxu0 0.0
      %8814 = vmatprep.subr.mxu0 0.0
      %8815 = vmatpush1.msra.mxu0 0.0
      %8816 = vmatprep.subr.mxu0 0.0
      %8817 = vmatpush1.msra.mxu0 0.0
      %8818 = vmatprep.subr.mxu0 0.0
      %8819 = vmatpush1.msra.mxu0 0.0
      %8820 = vmatprep.subr.mxu0 0.0
      %8821 = vmatpush1.msra.mxu0 0.0
      %8822 = vmatprep.subr.mxu0 0.0
      %8823 = vmatpush1.msra.mxu0 0.0
      %8824 = vmatprep.subr.mxu0 0.0
      %8825 = vmatpush1.msra.mxu0 0.0
      %8826 = vmatprep.subr.mxu0 0.0
      %8827 = vmatpush1.msra.mxu0 0.0
      %8828 = vmatprep.subr.mxu0 0.0
      %8829 = vmatpush1.msra.mxu0 0.0
      %8830 = vmatprep.subr.mxu0 0.0
      %8831 = vmatpush1.msra.mxu0 0.0
      %8832 = vmatprep.subr.mxu0 0.0
      %8833 = vmatpush1.msra.mxu0 0.0
      %8834 = vmatprep.subr.mxu0 0.0
      %8835 = vmatpush1.msra.mxu0 0.0
      %8836 = vmatprep.subr.mxu0 0.0
      %8837 = vmatpush1.msra.mxu0 0.0
      %8838 = vmatprep.mubr.f32.mxu0 0.0
      %8839 = vmatmul.mubr.f32.gmra.mrb[0].mxu0 %v8630
      %v8840 = vpop.f32.mrb[0].mxu0
      %v8841 = vadd.f32 0.0, %v8840
      %v8842 = vpop.f32.mrb[0].mxu0
      %v8843 = vadd.f32 0.0, %v8842
      %8844 = vdwg.mxu0
      %8845 = vmatprep.subr.mxu0 %v8614
      %8846 = vmatpush1.msra.mxu0 %v8613
      %8847 = vmatprep.subr.mxu0 0.0
      %8848 = vmatpush1.msra.mxu0 0.0
      %8849 = vmatprep.subr.mxu0 0.0
      %8850 = vmatpush1.msra.mxu0 0.0
      %8851 = vmatprep.subr.mxu0 0.0
      %8852 = vmatpush1.msra.mxu0 0.0
      %8853 = vmatprep.subr.mxu0 0.0
      %8854 = vmatpush1.msra.mxu0 0.0
      %8855 = vmatprep.subr.mxu0 0.0
      %8856 = vmatpush1.msra.mxu0 0.0
      %8857 = vmatprep.subr.mxu0 0.0
      %8858 = vmatpush1.msra.mxu0 0.0
      %8859 = vmatprep.subr.mxu0 0.0
      %8860 = vmatpush1.msra.mxu0 0.0
      %8861 = vmatprep.subr.mxu0 0.0
      %8862 = vmatpush1.msra.mxu0 0.0
      %8863 = vmatprep.subr.mxu0 0.0
      %8864 = vmatpush1.msra.mxu0 0.0
      %8865 = vmatprep.subr.mxu0 0.0
      %8866 = vmatpush1.msra.mxu0 0.0
      %8867 = vmatprep.subr.mxu0 0.0
      %8868 = vmatpush1.msra.mxu0 0.0
      %8869 = vmatprep.subr.mxu0 0.0
      %8870 = vmatpush1.msra.mxu0 0.0
      %8871 = vmatprep.subr.mxu0 0.0
      %8872 = vmatpush1.msra.mxu0 0.0
      %8873 = vmatprep.subr.mxu0 0.0
      %8874 = vmatpush1.msra.mxu0 0.0
      %8875 = vmatprep.subr.mxu0 0.0
      %8876 = vmatpush1.msra.mxu0 0.0
      %8877 = vmatprep.subr.mxu0 0.0
      %8878 = vmatpush1.msra.mxu0 0.0
      %8879 = vmatprep.subr.mxu0 0.0
      %8880 = vmatpush1.msra.mxu0 0.0
      %8881 = vmatprep.subr.mxu0 0.0
      %8882 = vmatpush1.msra.mxu0 0.0
      %8883 = vmatprep.subr.mxu0 0.0
      %8884 = vmatpush1.msra.mxu0 0.0
      %8885 = vmatprep.subr.mxu0 0.0
      %8886 = vmatpush1.msra.mxu0 0.0
      %8887 = vmatprep.subr.mxu0 0.0
      %8888 = vmatpush1.msra.mxu0 0.0
      %8889 = vmatprep.subr.mxu0 0.0
      %8890 = vmatpush1.msra.mxu0 0.0
      %8891 = vmatprep.subr.mxu0 0.0
      %8892 = vmatpush1.msra.mxu0 0.0
      %8893 = vmatprep.subr.mxu0 0.0
      %8894 = vmatpush1.msra.mxu0 0.0
      %8895 = vmatprep.subr.mxu0 0.0
      %8896 = vmatpush1.msra.mxu0 0.0
      %8897 = vmatprep.subr.mxu0 0.0
      %8898 = vmatpush1.msra.mxu0 0.0
      %8899 = vmatprep.subr.mxu0 0.0
      %8900 = vmatpush1.msra.mxu0 0.0
      %8901 = vmatprep.subr.mxu0 0.0
      %8902 = vmatpush1.msra.mxu0 0.0
      %8903 = vmatprep.subr.mxu0 0.0
      %8904 = vmatpush1.msra.mxu0 0.0
      %8905 = vmatprep.subr.mxu0 0.0
      %8906 = vmatpush1.msra.mxu0 0.0
      %8907 = vmatprep.subr.mxu0 0.0
      %8908 = vmatpush1.msra.mxu0 0.0
      %8909 = vmatprep.mubr.f32.mxu0 0.0
      %8910 = vmatmul.mubr.f32.gmra.mrb[0].mxu0 %v8630
      %v8911 = vpop.f32.mrb[0].mxu0
      %v8912 = vadd.f32 0.0, %v8911
      %v8913 = vpop.f32.mrb[0].mxu0
      %v8914 = vadd.f32 0.0, %v8913
      %8915 = vdwg.mxu0
      %8916 = vmatprep.subr.mxu0 %v8616
      %8917 = vmatpush1.msra.mxu0 %v8615
      %8918 = vmatprep.subr.mxu0 0.0
      %8919 = vmatpush1.msra.mxu0 0.0
      %8920 = vmatprep.subr.mxu0 0.0
      %8921 = vmatpush1.msra.mxu0 0.0
      %8922 = vmatprep.subr.mxu0 0.0
      %8923 = vmatpush1.msra.mxu0 0.0
      %8924 = vmatprep.subr.mxu0 0.0
      %8925 = vmatpush1.msra.mxu0 0.0
      %8926 = vmatprep.subr.mxu0 0.0
      %8927 = vmatpush1.msra.mxu0 0.0
      %8928 = vmatprep.subr.mxu0 0.0
      %8929 = vmatpush1.msra.mxu0 0.0
      %8930 = vmatprep.subr.mxu0 0.0
      %8931 = vmatpush1.msra.mxu0 0.0
      %8932 = vmatprep.subr.mxu0 0.0
      %8933 = vmatpush1.msra.mxu0 0.0
      %8934 = vmatprep.subr.mxu0 0.0
      %8935 = vmatpush1.msra.mxu0 0.0
      %8936 = vmatprep.subr.mxu0 0.0
      %8937 = vmatpush1.msra.mxu0 0.0
      %8938 = vmatprep.subr.mxu0 0.0
      %8939 = vmatpush1.msra.mxu0 0.0
      %8940 = vmatprep.subr.mxu0 0.0
      %8941 = vmatpush1.msra.mxu0 0.0
      %8942 = vmatprep.subr.mxu0 0.0
      %8943 = vmatpush1.msra.mxu0 0.0
      %8944 = vmatprep.subr.mxu0 0.0
      %8945 = vmatpush1.msra.mxu0 0.0
      %8946 = vmatprep.subr.mxu0 0.0
      %8947 = vmatpush1.msra.mxu0 0.0
      %8948 = vmatprep.subr.mxu0 0.0
      %8949 = vmatpush1.msra.mxu0 0.0
      %8950 = vmatprep.subr.mxu0 0.0
      %8951 = vmatpush1.msra.mxu0 0.0
      %8952 = vmatprep.subr.mxu0 0.0
      %8953 = vmatpush1.msra.mxu0 0.0
      %8954 = vmatprep.subr.mxu0 0.0
      %8955 = vmatpush1.msra.mxu0 0.0
      %8956 = vmatprep.subr.mxu0 0.0
      %8957 = vmatpush1.msra.mxu0 0.0
      %8958 = vmatprep.subr.mxu0 0.0
      %8959 = vmatpush1.msra.mxu0 0.0
      %8960 = vmatprep.subr.mxu0 0.0
      %8961 = vmatpush1.msra.mxu0 0.0
      %8962 = vmatprep.subr.mxu0 0.0
      %8963 = vmatpush1.msra.mxu0 0.0
      %8964 = vmatprep.subr.mxu0 0.0
      %8965 = vmatpush1.msra.mxu0 0.0
      %8966 = vmatprep.subr.mxu0 0.0
      %8967 = vmatpush1.msra.mxu0 0.0
      %8968 = vmatprep.subr.mxu0 0.0
      %8969 = vmatpush1.msra.mxu0 0.0
      %8970 = vmatprep.subr.mxu0 0.0
      %8971 = vmatpush1.msra.mxu0 0.0
      %8972 = vmatprep.subr.mxu0 0.0
      %8973 = vmatpush1.msra.mxu0 0.0
      %8974 = vmatprep.subr.mxu0 0.0
      %8975 = vmatpush1.msra.mxu0 0.0
      %8976 = vmatprep.subr.mxu0 0.0
      %8977 = vmatpush1.msra.mxu0 0.0
      %8978 = vmatprep.subr.mxu0 0.0
      %8979 = vmatpush1.msra.mxu0 0.0
      %8980 = vmatprep.mubr.f32.mxu0 0.0
      %8981 = vmatmul.mubr.f32.gmra.mrb[0].mxu0 %v8630
      %v8982 = vpop.f32.mrb[0].mxu0
      %v8983 = vadd.f32 0.0, %v8982
      %v8984 = vpop.f32.mrb[0].mxu0
      %v8985 = vadd.f32 0.0, %v8984
      %8986 = vdwg.mxu0
      %8987 = vmatprep.subr.mxu0 0.0
      %8988 = vmatpush1.msra.mxu0 %v8617
      %8989 = vmatprep.subr.mxu0 0.0
      %8990 = vmatpush1.msra.mxu0 0.0
      %8991 = vmatprep.subr.mxu0 0.0
      %8992 = vmatpush1.msra.mxu0 0.0
      %8993 = vmatprep.subr.mxu0 0.0
      %8994 = vmatpush1.msra.mxu0 0.0
      %8995 = vmatprep.subr.mxu0 0.0
      %8996 = vmatpush1.msra.mxu0 0.0
      %8997 = vmatprep.subr.mxu0 0.0
      %8998 = vmatpush1.msra.mxu0 0.0
      %8999 = vmatprep.subr.mxu0 0.0
      %9000 = vmatpush1.msra.mxu0 0.0
      %9001 = vmatprep.subr.mxu0 0.0
      %9002 = vmatpush1.msra.mxu0 0.0
      %9003 = vmatprep.subr.mxu0 0.0
      %9004 = vmatpush1.msra.mxu0 0.0
      %9005 = vmatprep.subr.mxu0 0.0
      %9006 = vmatpush1.msra.mxu0 0.0
      %9007 = vmatprep.subr.mxu0 0.0
      %9008 = vmatpush1.msra.mxu0 0.0
      %9009 = vmatprep.subr.mxu0 0.0
      %9010 = vmatpush1.msra.mxu0 0.0
      %9011 = vmatprep.subr.mxu0 0.0
      %9012 = vmatpush1.msra.mxu0 0.0
      %9013 = vmatprep.subr.mxu0 0.0
      %9014 = vmatpush1.msra.mxu0 0.0
      %9015 = vmatprep.subr.mxu0 0.0
      %9016 = vmatpush1.msra.mxu0 0.0
      %9017 = vmatprep.subr.mxu0 0.0
      %9018 = vmatpush1.msra.mxu0 0.0
      %9019 = vmatprep.subr.mxu0 0.0
      %9020 = vmatpush1.msra.mxu0 0.0
      %9021 = vmatprep.subr.mxu0 0.0
      %9022 = vmatpush1.msra.mxu0 0.0
      %9023 = vmatprep.subr.mxu0 0.0
      %9024 = vmatpush1.msra.mxu0 0.0
      %9025 = vmatprep.subr.mxu0 0.0
      %9026 = vmatpush1.msra.mxu0 0.0
      %9027 = vmatprep.subr.mxu0 0.0
      %9028 = vmatpush1.msra.mxu0 0.0
      %9029 = vmatprep.subr.mxu0 0.0
      %9030 = vmatpush1.msra.mxu0 0.0
      %9031 = vmatprep.subr.mxu0 0.0
      %9032 = vmatpush1.msra.mxu0 0.0
      %9033 = vmatprep.subr.mxu0 0.0
      %9034 = vmatpush1.msra.mxu0 0.0
      %9035 = vmatprep.subr.mxu0 0.0
      %9036 = vmatpush1.msra.mxu0 0.0
      %9037 = vmatprep.subr.mxu0 0.0
      %9038 = vmatpush1.msra.mxu0 0.0
      %9039 = vmatprep.subr.mxu0 0.0
      %9040 = vmatpush1.msra.mxu0 0.0
      %9041 = vmatprep.subr.mxu0 0.0
      %9042 = vmatpush1.msra.mxu0 0.0
      %9043 = vmatprep.subr.mxu0 0.0
      %9044 = vmatpush1.msra.mxu0 0.0
      %9045 = vmatprep.subr.mxu0 0.0
      %9046 = vmatpush1.msra.mxu0 0.0
      %9047 = vmatprep.subr.mxu0 0.0
      %9048 = vmatpush1.msra.mxu0 0.0
      %9049 = vmatprep.subr.mxu0 0.0
      %9050 = vmatpush1.msra.mxu0 0.0
      %9051 = vmatprep.mubr.f32.mxu0 0.0
      %9052 = vmatmul.mubr.f32.gmra.mrb[0].mxu0 %v8630
      %v9053 = vpop.f32.mrb[0].mxu0
      %v9054 = vadd.f32 0.0, %v9053
      %v9055 = vpop.f32.mrb[0].mxu0
      %9056 = vdwg.mxu0
      %v9057 = vadd.f32 %v8570, %v8699
      %v9058 = vadd.f32 %v8571, %v8701
      %v9059 = vadd.f32 %v8572, %v8770
      %v9060 = vadd.f32 %v8573, %v8772
      %v9061 = vadd.f32 %v8574, %v8841
      %v9062 = vadd.f32 %v8575, %v8843
      %v9063 = vadd.f32 %v8576, %v8912
      %v9064 = vadd.f32 %v8577, %v8914
      %v9065 = vadd.f32 %v8578, %v8983
      %v9066 = vadd.f32 %v8579, %v8985
      %v9067 = vadd.f32 %v8580, %v9054
      %v9068 = vld [vmem:[%s192] sm:$0xff]
      %v9069 = vld [vmem:[%s192 + $0x8] sm:$0xff]
      %v9070 = vld [vmem:[%s192 + $0x10] sm:$0xff]
      %v9071 = vld [vmem:[%s192 + $0x18] sm:$0xff]
      %v9072 = vld [vmem:[%s192 + $0x20] sm:$0xff]
      %v9073 = vld [vmem:[%s192 + $0x28] sm:$0xff]
      %v9074 = vld [vmem:[%s192 + $0x30] sm:$0xff]
      %v9075 = vld [vmem:[%s192 + $0x38] sm:$0xff]
      %v9076 = vld [vmem:[%s192 + $0x40] sm:$0xff]
      %v9077 = vld [vmem:[%s192 + $0x48] sm:$0xff]
      %v9078 = vld [vmem:[%s192 + $0x50] sm:$0xff]
      %v9079 = vld [vmem:[%s192 + $0x58] sm:$0xff]
      %9091 = vrot.lane.b32.xlu0 %v9057, 19
      %v9092 = vpop.permute.xlu0 %9091
      %9093 = vrot.lane.b32.xlu0 %v9058, 19
      %v9094 = vpop.permute.xlu0 %9093
      %9095 = vrot.lane.b32.xlu0 %v9059, 19
      %v9096 = vpop.permute.xlu0 %9095
      %9097 = vrot.lane.b32.xlu0 %v9060, 19
      %v9098 = vpop.permute.xlu0 %9097
      %9099 = vrot.lane.b32.xlu0 %v9061, 19
      %v9100 = vpop.permute.xlu0 %9099
      %9101 = vrot.lane.b32.xlu0 %v9062, 19
      %v9102 = vpop.permute.xlu0 %9101
      %9103 = vrot.lane.b32.xlu0 %v9063, 19
      %v9104 = vpop.permute.xlu0 %9103
      %9105 = vrot.lane.b32.xlu0 %v9064, 19
      %v9106 = vpop.permute.xlu0 %9105
      %9107 = vrot.lane.b32.xlu0 %v9065, 19
      %v9108 = vpop.permute.xlu0 %9107
      %9109 = vrot.lane.b32.xlu0 %v9066, 19
      %v9110 = vpop.permute.xlu0 %9109
      %9111 = vrot.lane.b32.xlu0 %v9067, 19
      %v9112 = vpop.permute.xlu0 %9111
      %v9113 = vsel %vm4694, %v9092, %v9094
      %v9114 = vsel %vm4694, %v9094, %v9096
      %v9115 = vsel %vm4694, %v9096, %v9098
      %v9116 = vsel %vm4694, %v9098, %v9100
      %v9117 = vsel %vm4694, %v9100, %v9102
      %v9118 = vsel %vm4694, %v9102, %v9104
      %v9119 = vsel %vm4694, %v9104, %v9106
      %v9120 = vsel %vm4694, %v9106, %v9108
      %v9121 = vsel %vm4694, %v9108, %v9110
      %v9122 = vsel %vm4694, %v9110, %v9112
      %v9135 = vadd.f32 %v9068, %v9092
      %v9136 = vadd.f32 %v9069, %v9113
      %v9137 = vadd.f32 %v9070, %v9114
      %v9138 = vadd.f32 %v9071, %v9115
      %v9139 = vadd.f32 %v9072, %v9116
      %v9140 = vadd.f32 %v9073, %v9117
      %v9141 = vadd.f32 %v9074, %v9118
      %v9142 = vadd.f32 %v9075, %v9119
      %v9143 = vadd.f32 %v9076, %v9120
      %v9144 = vadd.f32 %v9077, %v9121
      %v9145 = vadd.f32 %v9078, %v9122
      %v9146 = vadd.f32 %v9079, %v9112
      %9159 = vrot.lane.b32.xlu0 %v9135, 109
      %v9160 = vpop.permute.xlu0 %9159
      %9161 = vrot.lane.b32.xlu0 %v9136, 109
      %v9162 = vpop.permute.xlu0 %9161
      %9163 = vrot.lane.b32.xlu0 %v9137, 109
      %v9164 = vpop.permute.xlu0 %9163
      %9165 = vrot.lane.b32.xlu0 %v9138, 109
      %v9166 = vpop.permute.xlu0 %9165
      %9167 = vrot.lane.b32.xlu0 %v9139, 109
      %v9168 = vpop.permute.xlu0 %9167
      %9169 = vrot.lane.b32.xlu0 %v9140, 109
      %v9170 = vpop.permute.xlu0 %9169
      %9171 = vrot.lane.b32.xlu0 %v9141, 109
      %v9172 = vpop.permute.xlu0 %9171
      %9173 = vrot.lane.b32.xlu0 %v9142, 109
      %v9174 = vpop.permute.xlu0 %9173
      %9175 = vrot.lane.b32.xlu0 %v9143, 109
      %v9176 = vpop.permute.xlu0 %9175
      %9177 = vrot.lane.b32.xlu0 %v9144, 109
      %v9178 = vpop.permute.xlu0 %9177
      %9179 = vrot.lane.b32.xlu0 %v9145, 109
      %v9180 = vpop.permute.xlu0 %9179
      %9181 = vrot.lane.b32.xlu0 %v9146, 109
      %v9182 = vpop.permute.xlu0 %9181
      %v9183 = vsel %vm2131, %v9160, %v9162
      %v9184 = vsel %vm2131, %v9162, %v9164
      %v9185 = vsel %vm2131, %v9164, %v9166
      %v9186 = vsel %vm2131, %v9166, %v9168
      %v9187 = vsel %vm2131, %v9168, %v9170
      %v9188 = vsel %vm2131, %v9170, %v9172
      %v9189 = vsel %vm2131, %v9172, %v9174
      %v9190 = vsel %vm2131, %v9174, %v9176
      %v9191 = vsel %vm2131, %v9176, %v9178
      %v9192 = vsel %vm2131, %v9178, %v9180
      %v9193 = vsel %vm2131, %v9180, %v9182
      %9205 = vst [vmem:[%s197] sm:$0xff] %v9183
      %9206 = vst [vmem:[%s197 + $0x8] sm:$0xff] %v9184
      %9207 = vst [vmem:[%s197 + $0x10] sm:$0xff] %v9185
      %9208 = vst [vmem:[%s197 + $0x18] sm:$0xff] %v9186
      %9209 = vst [vmem:[%s197 + $0x20] sm:$0xff] %v9187
      %9210 = vst [vmem:[%s197 + $0x28] sm:$0xff] %v9188
      %9211 = vst [vmem:[%s197 + $0x30] sm:$0xff] %v9189
      %9212 = vst [vmem:[%s197 + $0x38] sm:$0xff] %v9190
      %9213 = vst [vmem:[%s197 + $0x40] sm:$0xff] %v9191
      %9214 = vst [vmem:[%s197 + $0x48] sm:$0xff] %v9192
      %9215 = vst [vmem:[%s197 + $0x50] sm:$0xff] %v9193
      %p9216 = scmp.lt.s32.totalorder %s15, 1
      %s9217 = scalar_select %p9216, %s15, 1
      %s9218 = smul.addr %s9217, 11
      %s9219 = smul.addr %s9218, 8
      %s9220 = scalar_lea.vmem %s4, %s9219
      // Predicated region
      $region37: #{resblock_pallas.1} parent=35 // pred_check
        %p9221 = pneg %p122
      $region38: #{resblock_pallas.1} parent=35 // pred_check_branch
        %9223 = sbr.rel (%p9221) target = $region40
      $region39: #{resblock_pallas.1} parent=35 // pred_region
        _
      $region40: #{resblock_pallas.1} parent=35 // pred_fallthru
        _
    $region36: #{resblock_pallas.1} parent=5 // pred_fallthru
      _
    %p9224 = scmp.le.s32.totalorder 2, %s10
    // Predicated region
    $region41: #{resblock_pallas.1} parent=5 // pred_check
      %p9225 = pneg %p9224
    $region42: #{resblock_pallas.1} parent=5 // pred_check_branch
      %9227 = sbr.rel (%p9225) target = $region44
    $region43: #{resblock_pallas.1} parent=5 // pred_region
      %s9228 = ssub.s32 %s10, 2
      // Predicated region
      $region45: #{resblock_pallas.1} parent=43 // pred_check
        %p9229 = pneg %p128
      $region46: #{resblock_pallas.1} parent=43 // pred_check_branch
        %9231 = sbr.rel (%p9229) target = $region48
      $region47: #{resblock_pallas.1} parent=43 // pred_region
        %p9232 = scmp.lt.s32.totalorder %s16, 1
        %s9233 = scalar_select %p9232, %s16, 1
        %s9234 = smul.addr %s9233, 11
        %s9235 = smul.addr %s9234, 8
        %s9236 = scalar_lea.vmem %s4, %s9235
      $region48: #{resblock_pallas.1} parent=43 // pred_fallthru
        _
    $region44: #{resblock_pallas.1} parent=5 // pred_fallthru
      _
  $region6: #{resblock_pallas.1} parent=0 // loop_footer
    %s14 = sadd.s32 1, %s10
  $region7: #{resblock_pallas.1} parent=0 // loop_footer_branch
    %9 = sbr.rel target = $region3
  $region8: #{resblock_pallas.1} parent=0 // loop_exit
    _

</llo_original>
